<compile_context>
chip_gen: v7x
topology: tpu7x:2x2x1
jax: 0.10.0
libtpu: 0.0.40
codegen_flags: <defaults>
</compile_context>

<pallas_src>
import jax
import jax.numpy as jnp
from jax import lax
from jax.experimental import pallas as pl
from jax.experimental.pallas import tpu as pltpu

BN_EPS = 1e-5
VMEM_LIMIT = 32 * 1024 * 1024           # safe for v5e/v6e/v7x scoped VMEM
IN_CHANNELS = 3
GLOBAL_POOL_OUT = (2, 2)
HIDDEN = 32


# ----------------------------------------------------------------------------
# Kernels
# ----------------------------------------------------------------------------
def _matmul_relu_affine_kernel(p_ref, w_ref, b_ref, s_ref, t_ref, o_ref):
    """o = relu(p @ w + b) * s + t   (conv-as-matmul + bias + ReLU + folded BN)."""
    acc = jnp.dot(p_ref[...], w_ref[...], preferred_element_type=jnp.float32)
    y = jnp.maximum(acc + b_ref[...], 0.0)
    o_ref[...] = y * s_ref[...] + t_ref[...]


def _window_max_kernel(w_ref, o_ref):
    o_ref[...] = jnp.max(w_ref[...], axis=0)


def _window_mean_kernel(w_ref, o_ref):
    x = w_ref[...]
    o_ref[...] = jnp.sum(x, axis=0) * (1.0 / x.shape[0])


def _gru_last_bn_kernel(x_ref,
                        wir_ref, wiz_ref, win_ref,
                        whr_ref, whz_ref, whn_ref,
                        br_ref, bz_ref, bin_ref, bhn_ref,
                        sc_ref, sh_ref,
                        o_ref, h_scr):
    """One GRU step per grid iteration; hidden carried in VMEM scratch.

    The folded BatchNorm1d affine is applied only in the last-step write.
    """
    t = pl.program_id(0)

    @pl.when(t == 0)
    def _():
        h_scr[...] = jnp.zeros_like(h_scr)

    x = x_ref[0]          # (B, F)
    h = h_scr[...]        # (B, H)

    def sig(v):
        return 1.0 / (1.0 + jnp.exp(-v))

    r = sig(jnp.dot(x, wir_ref[...], preferred_element_type=jnp.float32)
            + jnp.dot(h, whr_ref[...], preferred_element_type=jnp.float32)
            + br_ref[...])
    z = sig(jnp.dot(x, wiz_ref[...], preferred_element_type=jnp.float32)
            + jnp.dot(h, whz_ref[...], preferred_element_type=jnp.float32)
            + bz_ref[...])
    n = jnp.tanh(jnp.dot(x, win_ref[...], preferred_element_type=jnp.float32)
                 + bin_ref[...]
                 + r * (jnp.dot(h, whn_ref[...], preferred_element_type=jnp.float32)
                        + bhn_ref[...]))
    h_new = (1.0 - z) * n + z * h
    h_scr[...] = h_new

    @pl.when(t == pl.num_programs(0) - 1)
    def _():
        o_ref[...] = h_new * sc_ref[...] + sh_ref[...]


# ----------------------------------------------------------------------------
# Pallas call wrappers
# ----------------------------------------------------------------------------
def _pick_tile(m, want=256):
    return want if (m >= want and m % want == 0) else m


def fused_matmul_relu_affine(p, w, b, scale, shift):
    m, k = p.shape
    c_out = w.shape[1]
    tm = _pick_tile(m)
    # NOTE: an optional bf16 cast of (p, w) right before the dot (keeping f32
    # accumulation) halves activation HBM traffic on v6e/v7x; kept f32 here
    # for the tight correctness check at toy sizes.
    cost = pl.CostEstimate(
        flops=2 * m * k * c_out,
        transcendentals=0,
        bytes_accessed=4 * (m * k + k * c_out + m * c_out + 3 * c_out))
    return pl.pallas_call(
        _matmul_relu_affine_kernel,
        out_shape=jax.ShapeDtypeStruct((m, c_out), jnp.float32),
        grid=(m // tm,),
        in_specs=[
            pl.BlockSpec((tm, k), lambda i: (i, 0)),
            pl.BlockSpec((k, c_out), lambda i: (0, 0)),   # weights stay resident
            pl.BlockSpec((1, c_out), lambda i: (0, 0)),
            pl.BlockSpec((1, c_out), lambda i: (0, 0)),
            pl.BlockSpec((1, c_out), lambda i: (0, 0)),
        ],
        out_specs=pl.BlockSpec((tm, c_out), lambda i: (i, 0)),
        compiler_params=pltpu.CompilerParams(
            dimension_semantics=("parallel",),
            vmem_limit_bytes=VMEM_LIMIT),
        cost_estimate=cost,
    )(p, w, b, scale, shift)


def window_reduce(stack, kind):
    """stack: (KW, M, C) -> (M, C), reducing over the KW window positions."""
    kw, m, c = stack.shape
    tm = _pick_tile(m)
    kernel = _window_max_kernel if kind == "max" else _window_mean_kernel
    return pl.pallas_call(
        kernel,
        out_shape=jax.ShapeDtypeStruct((m, c), jnp.float32),
        grid=(m // tm,),
        in_specs=[pl.BlockSpec((kw, tm, c), lambda i: (0, i, 0))],
        out_specs=pl.BlockSpec((tm, c), lambda i: (i, 0)),
        compiler_params=pltpu.CompilerParams(
            dimension_semantics=("parallel",),
            vmem_limit_bytes=VMEM_LIMIT),
    )(stack)


def gru_last_bn(x_btf, gp, bn_scale, bn_shift):
    b, t, f = x_btf.shape
    hd = gp["w_hr"].shape[0]
    x_tbf = jnp.swapaxes(x_btf, 0, 1)        # (T, B, F)

    def full_spec(arr):
        nd = arr.ndim
        return pl.BlockSpec(arr.shape, lambda i: (0,) * nd)

    args = (x_tbf,
            gp["w_ir"], gp["w_iz"], gp["w_in"],
            gp["w_hr"], gp["w_hz"], gp["w_hn"],
            gp["b_r"], gp["b_z"], gp["b_in"], gp["b_hn"],
            bn_scale, bn_shift)
    in_specs = ([pl.BlockSpec((1, b, f), lambda i: (i, 0, 0))]
                + [full_spec(a) for a in args[1:]])
    return pl.pallas_call(
        _gru_last_bn_kernel,
        out_shape=jax.ShapeDtypeStruct((b, hd), jnp.float32),
        grid=(t,),
        in_specs=in_specs,
        out_specs=pl.BlockSpec((b, hd), lambda i: (0, 0)),
        scratch_shapes=[pltpu.VMEM((b, hd), jnp.float32)],
        compiler_params=pltpu.CompilerParams(
            dimension_semantics=("arbitrary",),      # sequential recurrence
            vmem_limit_bytes=VMEM_LIMIT),
    )(*args)


# ----------------------------------------------------------------------------
# Layout plumbing (wrapper-side, no arithmetic)
# ----------------------------------------------------------------------------
def _im2col_3x3(x_nhwc):
    n, h, w, c = x_nhwc.shape
    xp = jnp.pad(x_nhwc, ((0, 0), (1, 1), (1, 1), (0, 0)))
    cols = [xp[:, dy:dy + h, dx:dx + w, :] for dy in range(3) for dx in range(3)]
    return jnp.concatenate(cols, axis=-1).reshape(n * h * w, 9 * c)


def _pool_windows_max(x_nhwc, ksize=3, stride=2, pad=1):
    n, h, w, c = x_nhwc.shape
    xp = jnp.pad(x_nhwc, ((0, 0), (pad, pad), (pad, pad), (0, 0)),
                 constant_values=-jnp.inf)
    ho = (h + 2 * pad - ksize) // stride + 1
    wo = (w + 2 * pad - ksize) // stride + 1
    wins = [xp[:, dy:dy + stride * (ho - 1) + 1:stride,
               dx:dx + stride * (wo - 1) + 1:stride, :]
            for dy in range(ksize) for dx in range(ksize)]
    return (jnp.stack(wins, axis=0).reshape(ksize * ksize, n * ho * wo, c),
            (n, ho, wo, c))


def _pool_windows_avg(x_nhwc, out_hw):
    n, h, w, c = x_nhwc.shape
    oh, ow = out_hw
    kh, kw = h // oh, w // ow
    wins = [x_nhwc[:, dy::kh, dx::kw, :] for dy in range(kh) for dx in range(kw)]
    return (jnp.stack(wins, axis=0).reshape(kh * kw, n * oh * ow, c),
            (n, oh, ow, c))


def _bn_fold(gamma, beta, mean, var):
    scale = gamma * lax.rsqrt(var + BN_EPS)
    shift = beta - mean * scale
    return scale.reshape(1, -1), shift.reshape(1, -1)


# ----------------------------------------------------------------------------
# Forward
# ----------------------------------------------------------------------------
@jax.jit
def feature_extractor_forward(x, params):
    b, t, c, h, w = x.shape
    n = b * t
    feat = jnp.transpose(x.reshape(n, c, h, w), (0, 2, 3, 1))   # NHWC

    def conv3x3_block(y, p):
        nn_, hh, ww, cc = y.shape
        cols = _im2col_3x3(y)
        wmat = p["w"].reshape(9 * cc, -1)                       # HWIO -> (9C, Co)
        s, sh = _bn_fold(p["gamma"], p["beta"], p["mean"], p["var"])
        out = fused_matmul_relu_affine(cols, wmat, p["b"].reshape(1, -1), s, sh)
        return out.reshape(nn_, hh, ww, -1)

    def conv1x1_block(y, p):
        nn_, hh, ww, cc = y.shape
        wmat = p["w"].reshape(cc, -1)
        s, sh = _bn_fold(p["gamma"], p["beta"], p["mean"], p["var"])
        out = fused_matmul_relu_affine(y.reshape(nn_ * hh * ww, cc), wmat,
                                       p["b"].reshape(1, -1), s, sh)
        return out.reshape(nn_, hh, ww, -1)

    feat = conv3x3_block(feat, params["conv0"])
    feat = conv3x3_block(feat, params["conv1"])
    wins, oshape = _pool_windows_max(feat)
    feat = window_reduce(wins, "max").reshape(oshape)
    feat = conv3x3_block(feat, params["nin_conv"])
    feat = conv1x1_block(feat, params["nin_1x1_0"])
    feat = conv1x1_block(feat, params["nin_1x1_1"])
    wins, oshape = _pool_windows_avg(feat, GLOBAL_POOL_OUT)
    feat = window_reduce(wins, "mean").reshape(oshape)

    # Torch flattens (C, H, W)-major.
    feat = jnp.transpose(feat, (0, 3, 1, 2)).reshape(b, t, -1)

    bn1d = params["bn1d"]
    s, sh = _bn_fold(bn1d["gamma"], bn1d["beta"], bn1d["mean"], bn1d["var"])
    return gru_last_bn(feat, params["gru"], s, sh)


# ----------------------------------------------------------------------------
# Pure-JAX reference (independent math: lax.conv / reduce_window / scan)
# ----------------------------------------------------------------------------
def reference_forward(x, params):
    b, t, c, h, w = x.shape
    n = b * t
    y = jnp.transpose(x.reshape(n, c, h, w), (0, 2, 3, 1))

    def bn(a, p):
        return (a - p["mean"]) / jnp.sqrt(p["var"] + BN_EPS) * p["gamma"] + p["beta"]

    def conv(a, p, pad):
        o = lax.conv_general_dilated(a, p["w"], window_strides=(1, 1), padding=pad,
                                     dimension_numbers=("NHWC", "HWIO", "NHWC"))
        o = jnp.maximum(o + p["b"].reshape(1, 1, 1, -1), 0.0)
        return bn(o, p)

    y = conv(y, params["conv0"], ((1, 1), (1, 1)))
    y = conv(y, params["conv1"], ((1, 1), (1, 1)))
    y = lax.reduce_window(y, -jnp.inf, lax.max, (1, 3, 3, 1), (1, 2, 2, 1),
                          padding=((0, 0), (1, 1), (1, 1), (0, 0)))
    y = conv(y, params["nin_conv"], ((1, 1), (1, 1)))
    y = conv(y, params["nin_1x1_0"], ((0, 0), (0, 0)))
    y = conv(y, params["nin_1x1_1"], ((0, 0), (0, 0)))
    nn_, hh, ww, cc = y.shape
    oh, ow = GLOBAL_POOL_OUT
    y = y.reshape(nn_, oh, hh // oh, ow, ww // ow, cc).mean(axis=(2, 4))
    y = jnp.transpose(y, (0, 3, 1, 2)).reshape(b, t, -1)

    g = params["gru"]

    def step(hprev, xt):
        r = jax.nn.sigmoid(xt @ g["w_ir"] + hprev @ g["w_hr"] + g["b_r"])
        z = jax.nn.sigmoid(xt @ g["w_iz"] + hprev @ g["w_hz"] + g["b_z"])
        nn2 = jnp.tanh(xt @ g["w_in"] + g["b_in"] + r * (hprev @ g["w_hn"] + g["b_hn"]))
        return (1.0 - z) * nn2 + z * hprev, None

    h0 = jnp.zeros((b, g["w_hr"].shape[0]), jnp.float32)
    h_last, _ = lax.scan(step, h0, jnp.swapaxes(y, 0, 1))
    return bn(h_last, params["bn1d"])


# ----------------------------------------------------------------------------
# Deterministic parameters (PyTorch-shape-compatible, synthetic)
# ----------------------------------------------------------------------------
def make_params(key):
    ks = iter(jax.random.split(key, 64))

    def conv_p(kh, kw_, cin, cout):
        bound = 1.0 / jnp.sqrt(cin * kh * kw_)
        return dict(
            w=jax.random.uniform(next(ks), (kh, kw_, cin, cout), jnp.float32,
                                 -bound, bound),
            b=jax.random.uniform(next(ks), (cout,), jnp.float32, -bound, bound),
            gamma=jax.random.uniform(next(ks), (cout,), jnp.float32, 0.5, 1.5),
            beta=0.1 * jax.random.normal(next(ks), (cout,), jnp.float32),
            mean=0.1 * jax.random.normal(next(ks), (cout,), jnp.float32),
            var=jax.random.uniform(next(ks), (cout,), jnp.float32, 0.5, 1.5))

    def gru_p(fin, hd):
        bound = 1.0 / jnp.sqrt(hd)

        def m(shape):
            return jax.random.uniform(next(ks), shape, jnp.float32, -bound, bound)

        return dict(w_ir=m((fin, hd)), w_iz=m((fin, hd)), w_in=m((fin, hd)),
                    w_hr=m((hd, hd)), w_hz=m((hd, hd)), w_hn=m((hd, hd)),
                    b_r=m((1, hd)), b_z=m((1, hd)), b_in=m((1, hd)), b_hn=m((1, hd)))

    local_feature = 16 * GLOBAL_POOL_OUT[0] * GLOBAL_POOL_OUT[1]
    return dict(
        conv0=conv_p(3, 3, IN_CHANNELS, 8),
        conv1=conv_p(3, 3, 8, 16),
        nin_conv=conv_p(3, 3, 16, 16),
        nin_1x1_0=conv_p(1, 1, 16, 16),
        nin_1x1_1=conv_p(1, 1, 16, 16),
        gru=gru_p(local_feature, HIDDEN),
        bn1d=dict(
            gamma=jax.random.uniform(next(ks), (HIDDEN,), jnp.float32, 0.5, 1.5),
            beta=0.1 * jax.random.normal(next(ks), (HIDDEN,), jnp.float32),
            mean=0.1 * jax.random.normal(next(ks), (HIDDEN,), jnp.float32),
            var=jax.random.uniform(next(ks), (HIDDEN,), jnp.float32, 0.5, 1.5)))


if __name__ == "__main__":
    key = jax.random.PRNGKey(0)
    kx, kp = jax.random.split(key)

    B, T, H, W = 2, 4, 16, 16
    x = jax.random.normal(kx, (B, T, IN_CHANNELS, H, W), jnp.float32)
    params = make_params(kp)

    out = feature_extractor_forward(x, params)
    out = jax.block_until_ready(out)

    ref = reference_forward(x, params)
    assert out.shape == (B, HIDDEN), f"bad output shape {out.shape}"
    max_err = float(jnp.max(jnp.abs(out - ref)))
    assert jnp.allclose(out, ref, atol=3e-4, rtol=3e-3), f"mismatch, max abs err={max_err}"

    print("KERNEL_OK")
</pallas_src>

<mosaic_0001>
module attributes {stable_mosaic.version = 11 : i64} {
  func.func @_matmul_relu_affine_kernel(%arg0: i32, %arg1: memref<256x27xf32, #tpu.memory_space<vmem>>, %arg2: memref<27x8xf32, #tpu.memory_space<vmem>>, %arg3: memref<1x8xf32, #tpu.memory_space<vmem>>, %arg4: memref<1x8xf32, #tpu.memory_space<vmem>>, %arg5: memref<1x8xf32, #tpu.memory_space<vmem>>, %arg6: memref<256x8xf32, #tpu.memory_space<vmem>>) attributes {dimension_semantics = [#tpu.dimension_semantics<parallel>], iteration_bounds = array<i64: 8>, scalar_prefetch = 0 : i64, scratch_operands = 0 : i64, tpu.core_type = #tpu.core_type<tc>, window_params = [{transform_indices = @transform_0, window_bounds = array<i64: 256, 27>}, {pipeline_mode = #tpu.pipeline_mode<synchronous>, transform_indices = @transform_1, window_bounds = array<i64: 27, 8>}, {pipeline_mode = #tpu.pipeline_mode<synchronous>, transform_indices = @transform_2, window_bounds = array<i64: 1, 8>}, {pipeline_mode = #tpu.pipeline_mode<synchronous>, transform_indices = @transform_3, window_bounds = array<i64: 1, 8>}, {pipeline_mode = #tpu.pipeline_mode<synchronous>, transform_indices = @transform_4, window_bounds = array<i64: 1, 8>}, {transform_indices = @transform_5, window_bounds = array<i64: 256, 8>}]} {
    %c0 = arith.constant 0 : index
    %c0_0 = arith.constant 0 : index
    %0 = vector.load %arg1[%c0, %c0_0] : memref<256x27xf32, #tpu.memory_space<vmem>>, vector<256x27xf32>
    %c0_1 = arith.constant 0 : index
    %c0_2 = arith.constant 0 : index
    %1 = vector.load %arg2[%c0_1, %c0_2] : memref<27x8xf32, #tpu.memory_space<vmem>>, vector<27x8xf32>
    %cst = arith.constant dense<0.000000e+00> : vector<256x8xf32>
    %2 = tpu.matmul %0, %1, %cst {dimension_numbers = #tpu.dot_dimension_numbers<[1], [0], [0], [1], [0, 0, 1, 1], [], []>} : vector<256x27xf32>, vector<27x8xf32>, vector<256x8xf32> -> vector<256x8xf32>
    %c0_3 = arith.constant 0 : index
    %c0_4 = arith.constant 0 : index
    %3 = vector.load %arg3[%c0_3, %c0_4] : memref<1x8xf32, #tpu.memory_space<vmem>>, vector<1x8xf32>
    %4 = vector.broadcast %3 : vector<1x8xf32> to vector<256x8xf32>
    %5 = arith.addf %2, %4 : vector<256x8xf32>
    %cst_5 = arith.constant 0.000000e+00 : f32
    %6 = vector.broadcast %cst_5 : f32 to vector<256x8xf32>
    %7 = arith.maximumf %5, %6 : vector<256x8xf32>
    %c0_6 = arith.constant 0 : index
    %c0_7 = arith.constant 0 : index
    %8 = vector.load %arg4[%c0_6, %c0_7] : memref<1x8xf32, #tpu.memory_space<vmem>>, vector<1x8xf32>
    %9 = vector.broadcast %8 : vector<1x8xf32> to vector<256x8xf32>
    %10 = arith.mulf %7, %9 : vector<256x8xf32>
    %c0_8 = arith.constant 0 : index
    %c0_9 = arith.constant 0 : index
    %11 = vector.load %arg5[%c0_8, %c0_9] : memref<1x8xf32, #tpu.memory_space<vmem>>, vector<1x8xf32>
    %12 = vector.broadcast %11 : vector<1x8xf32> to vector<256x8xf32>
    %13 = arith.addf %10, %12 : vector<256x8xf32>
    %c0_10 = arith.constant 0 : index
    %c0_11 = arith.constant 0 : index
    %14 = vector.load %arg6[%c0_10, %c0_11] : memref<256x8xf32, #tpu.memory_space<vmem>>, vector<256x8xf32>
    tpu.vector_store %arg6[%c0_10, %c0_11], %13 {strides = array<i32>} : memref<256x8xf32, #tpu.memory_space<vmem>>, vector<256x8xf32>,
    return
  }
  func.func @transform_0(%arg0: i32) -> (i32, i32) {
    %c0_i32 = arith.constant 0 : i32
    %c0_i32_0 = arith.constant 0 : i32
    return %arg0, %c0_i32 : i32, i32
  }
  func.func @transform_1(%arg0: i32) -> (i32, i32) {
    %c0_i32 = arith.constant 0 : i32
    %c0_i32_0 = arith.constant 0 : i32
    %c0_i32_1 = arith.constant 0 : i32
    return %c0_i32, %c0_i32_0 : i32, i32
  }
  func.func @transform_2(%arg0: i32) -> (i32, i32) {
    %c0_i32 = arith.constant 0 : i32
    %c0_i32_0 = arith.constant 0 : i32
    %c0_i32_1 = arith.constant 0 : i32
    return %c0_i32, %c0_i32_0 : i32, i32
  }
  func.func @transform_3(%arg0: i32) -> (i32, i32) {
    %c0_i32 = arith.constant 0 : i32
    %c0_i32_0 = arith.constant 0 : i32
    %c0_i32_1 = arith.constant 0 : i32
    return %c0_i32, %c0_i32_0 : i32, i32
  }
  func.func @transform_4(%arg0: i32) -> (i32, i32) {
    %c0_i32 = arith.constant 0 : i32
    %c0_i32_0 = arith.constant 0 : i32
    %c0_i32_1 = arith.constant 0 : i32
    return %c0_i32, %c0_i32_0 : i32, i32
  }
  func.func @transform_5(%arg0: i32) -> (i32, i32) {
    %c0_i32 = arith.constant 0 : i32
    %c0_i32_0 = arith.constant 0 : i32
    return %arg0, %c0_i32 : i32, i32
  }
}

module attributes {stable_mosaic.version = 11 : i64} {
  func.func @_matmul_relu_affine_kernel(%arg0: i32, %arg1: memref<256x72xf32, #tpu.memory_space<vmem>>, %arg2: memref<72x16xf32, #tpu.memory_space<vmem>>, %arg3: memref<1x16xf32, #tpu.memory_space<vmem>>, %arg4: memref<1x16xf32, #tpu.memory_space<vmem>>, %arg5: memref<1x16xf32, #tpu.memory_space<vmem>>, %arg6: memref<256x16xf32, #tpu.memory_space<vmem>>) attributes {dimension_semantics = [#tpu.dimension_semantics<parallel>], iteration_bounds = array<i64: 8>, scalar_prefetch = 0 : i64, scratch_operands = 0 : i64, tpu.core_type = #tpu.core_type<tc>, window_params = [{transform_indices = @transform_0, window_bounds = array<i64: 256, 72>}, {pipeline_mode = #tpu.pipeline_mode<synchronous>, transform_indices = @transform_1, window_bounds = array<i64: 72, 16>}, {pipeline_mode = #tpu.pipeline_mode<synchronous>, transform_indices = @transform_2, window_bounds = array<i64: 1, 16>}, {pipeline_mode = #tpu.pipeline_mode<synchronous>, transform_indices = @transform_3, window_bounds = array<i64: 1, 16>}, {pipeline_mode = #tpu.pipeline_mode<synchronous>, transform_indices = @transform_4, window_bounds = array<i64: 1, 16>}, {transform_indices = @transform_5, window_bounds = array<i64: 256, 16>}]} {
    %c0 = arith.constant 0 : index
    %c0_0 = arith.constant 0 : index
    %0 = vector.load %arg1[%c0, %c0_0] : memref<256x72xf32, #tpu.memory_space<vmem>>, vector<256x72xf32>
    %c0_1 = arith.constant 0 : index
    %c0_2 = arith.constant 0 : index
    %1 = vector.load %arg2[%c0_1, %c0_2] : memref<72x16xf32, #tpu.memory_space<vmem>>, vector<72x16xf32>
    %cst = arith.constant dense<0.000000e+00> : vector<256x16xf32>
    %2 = tpu.matmul %0, %1, %cst {dimension_numbers = #tpu.dot_dimension_numbers<[1], [0], [0], [1], [0, 0, 1, 1], [], []>} : vector<256x72xf32>, vector<72x16xf32>, vector<256x16xf32> -> vector<256x16xf32>
    %c0_3 = arith.constant 0 : index
    %c0_4 = arith.constant 0 : index
    %3 = vector.load %arg3[%c0_3, %c0_4] : memref<1x16xf32, #tpu.memory_space<vmem>>, vector<1x16xf32>
    %4 = vector.broadcast %3 : vector<1x16xf32> to vector<256x16xf32>
    %5 = arith.addf %2, %4 : vector<256x16xf32>
    %cst_5 = arith.constant 0.000000e+00 : f32
    %6 = vector.broadcast %cst_5 : f32 to vector<256x16xf32>
    %7 = arith.maximumf %5, %6 : vector<256x16xf32>
    %c0_6 = arith.constant 0 : index
    %c0_7 = arith.constant 0 : index
    %8 = vector.load %arg4[%c0_6, %c0_7] : memref<1x16xf32, #tpu.memory_space<vmem>>, vector<1x16xf32>
    %9 = vector.broadcast %8 : vector<1x16xf32> to vector<256x16xf32>
    %10 = arith.mulf %7, %9 : vector<256x16xf32>
    %c0_8 = arith.constant 0 : index
    %c0_9 = arith.constant 0 : index
    %11 = vector.load %arg5[%c0_8, %c0_9] : memref<1x16xf32, #tpu.memory_space<vmem>>, vector<1x16xf32>
    %12 = vector.broadcast %11 : vector<1x16xf32> to vector<256x16xf32>
    %13 = arith.addf %10, %12 : vector<256x16xf32>
    %c0_10 = arith.constant 0 : index
    %c0_11 = arith.constant 0 : index
    %14 = vector.load %arg6[%c0_10, %c0_11] : memref<256x16xf32, #tpu.memory_space<vmem>>, vector<256x16xf32>
    tpu.vector_store %arg6[%c0_10, %c0_11], %13 {strides = array<i32>} : memref<256x16xf32, #tpu.memory_space<vmem>>, vector<256x16xf32>,
    return
  }
  func.func @transform_0(%arg0: i32) -> (i32, i32) {
    %c0_i32 = arith.constant 0 : i32
    %c0_i32_0 = arith.constant 0 : i32
    return %arg0, %c0_i32 : i32, i32
  }
  func.func @transform_1(%arg0: i32) -> (i32, i32) {
    %c0_i32 = arith.constant 0 : i32
    %c0_i32_0 = arith.constant 0 : i32
    %c0_i32_1 = arith.constant 0 : i32
    return %c0_i32, %c0_i32_0 : i32, i32
  }
  func.func @transform_2(%arg0: i32) -> (i32, i32) {
    %c0_i32 = arith.constant 0 : i32
    %c0_i32_0 = arith.constant 0 : i32
    %c0_i32_1 = arith.constant 0 : i32
    return %c0_i32, %c0_i32_0 : i32, i32
  }
  func.func @transform_3(%arg0: i32) -> (i32, i32) {
    %c0_i32 = arith.constant 0 : i32
    %c0_i32_0 = arith.constant 0 : i32
    %c0_i32_1 = arith.constant 0 : i32
    return %c0_i32, %c0_i32_0 : i32, i32
  }
  func.func @transform_4(%arg0: i32) -> (i32, i32) {
    %c0_i32 = arith.constant 0 : i32
    %c0_i32_0 = arith.constant 0 : i32
    %c0_i32_1 = arith.constant 0 : i32
    return %c0_i32, %c0_i32_0 : i32, i32
  }
  func.func @transform_5(%arg0: i32) -> (i32, i32) {
    %c0_i32 = arith.constant 0 : i32
    %c0_i32_0 = arith.constant 0 : i32
    return %arg0, %c0_i32 : i32, i32
  }
}

module attributes {stable_mosaic.version = 11 : i64} {
  func.func @_window_max_kernel(%arg0: i32, %arg1: memref<9x256x16xf32, #tpu.memory_space<vmem>>, %arg2: memref<256x16xf32, #tpu.memory_space<vmem>>) attributes {dimension_semantics = [#tpu.dimension_semantics<parallel>], iteration_bounds = array<i64: 2>, scalar_prefetch = 0 : i64, scratch_operands = 0 : i64, tpu.core_type = #tpu.core_type<tc>, window_params = [{transform_indices = @transform_0, window_bounds = array<i64: 9, 256, 16>}, {transform_indices = @transform_1, window_bounds = array<i64: 256, 16>}]} {
    %c0 = arith.constant 0 : index
    %c0_0 = arith.constant 0 : index
    %c0_1 = arith.constant 0 : index
    %0 = vector.load %arg1[%c0, %c0_0, %c0_1] : memref<9x256x16xf32, #tpu.memory_space<vmem>>, vector<9x256x16xf32>
    %cst = arith.constant dense<0xFF800000> : vector<256x16xf32>
    %1 = vector.multi_reduction <maximumf>, %0, %cst [0] : vector<9x256x16xf32> to vector<256x16xf32>
    %c0_2 = arith.constant 0 : index
    %c0_3 = arith.constant 0 : index
    %2 = vector.load %arg2[%c0_2, %c0_3] : memref<256x16xf32, #tpu.memory_space<vmem>>, vector<256x16xf32>
    tpu.vector_store %arg2[%c0_2, %c0_3], %1 {strides = array<i32>} : memref<256x16xf32, #tpu.memory_space<vmem>>, vector<256x16xf32>,
    return
  }
  func.func @transform_0(%arg0: i32) -> (i32, i32, i32) {
    %c0_i32 = arith.constant 0 : i32
    %c0_i32_0 = arith.constant 0 : i32
    %c0_i32_1 = arith.constant 0 : i32
    return %c0_i32, %arg0, %c0_i32_0 : i32, i32, i32
  }
  func.func @transform_1(%arg0: i32) -> (i32, i32) {
    %c0_i32 = arith.constant 0 : i32
    %c0_i32_0 = arith.constant 0 : i32
    return %arg0, %c0_i32 : i32, i32
  }
}

module attributes {stable_mosaic.version = 11 : i64} {
  func.func @_matmul_relu_affine_kernel(%arg0: i32, %arg1: memref<256x144xf32, #tpu.memory_space<vmem>>, %arg2: memref<144x16xf32, #tpu.memory_space<vmem>>, %arg3: memref<1x16xf32, #tpu.memory_space<vmem>>, %arg4: memref<1x16xf32, #tpu.memory_space<vmem>>, %arg5: memref<1x16xf32, #tpu.memory_space<vmem>>, %arg6: memref<256x16xf32, #tpu.memory_space<vmem>>) attributes {dimension_semantics = [#tpu.dimension_semantics<parallel>], iteration_bounds = array<i64: 2>, scalar_prefetch = 0 : i64, scratch_operands = 0 : i64, tpu.core_type = #tpu.core_type<tc>, window_params = [{transform_indices = @transform_0, window_bounds = array<i64: 256, 144>}, {pipeline_mode = #tpu.pipeline_mode<synchronous>, transform_indices = @transform_1, window_bounds = array<i64: 144, 16>}, {pipeline_mode = #tpu.pipeline_mode<synchronous>, transform_indices = @transform_2, window_bounds = array<i64: 1, 16>}, {pipeline_mode = #tpu.pipeline_mode<synchronous>, transform_indices = @transform_3, window_bounds = array<i64: 1, 16>}, {pipeline_mode = #tpu.pipeline_mode<synchronous>, transform_indices = @transform_4, window_bounds = array<i64: 1, 16>}, {transform_indices = @transform_5, window_bounds = array<i64: 256, 16>}]} {
    %c0 = arith.constant 0 : index
    %c0_0 = arith.constant 0 : index
    %0 = vector.load %arg1[%c0, %c0_0] : memref<256x144xf32, #tpu.memory_space<vmem>>, vector<256x144xf32>
    %c0_1 = arith.constant 0 : index
    %c0_2 = arith.constant 0 : index
    %1 = vector.load %arg2[%c0_1, %c0_2] : memref<144x16xf32, #tpu.memory_space<vmem>>, vector<144x16xf32>
    %cst = arith.constant dense<0.000000e+00> : vector<256x16xf32>
    %2 = tpu.matmul %0, %1, %cst {dimension_numbers = #tpu.dot_dimension_numbers<[1], [0], [0], [1], [0, 0, 1, 1], [], []>} : vector<256x144xf32>, vector<144x16xf32>, vector<256x16xf32> -> vector<256x16xf32>
    %c0_3 = arith.constant 0 : index
    %c0_4 = arith.constant 0 : index
    %3 = vector.load %arg3[%c0_3, %c0_4] : memref<1x16xf32, #tpu.memory_space<vmem>>, vector<1x16xf32>
    %4 = vector.broadcast %3 : vector<1x16xf32> to vector<256x16xf32>
    %5 = arith.addf %2, %4 : vector<256x16xf32>
    %cst_5 = arith.constant 0.000000e+00 : f32
    %6 = vector.broadcast %cst_5 : f32 to vector<256x16xf32>
    %7 = arith.maximumf %5, %6 : vector<256x16xf32>
    %c0_6 = arith.constant 0 : index
    %c0_7 = arith.constant 0 : index
    %8 = vector.load %arg4[%c0_6, %c0_7] : memref<1x16xf32, #tpu.memory_space<vmem>>, vector<1x16xf32>
    %9 = vector.broadcast %8 : vector<1x16xf32> to vector<256x16xf32>
    %10 = arith.mulf %7, %9 : vector<256x16xf32>
    %c0_8 = arith.constant 0 : index
    %c0_9 = arith.constant 0 : index
    %11 = vector.load %arg5[%c0_8, %c0_9] : memref<1x16xf32, #tpu.memory_space<vmem>>, vector<1x16xf32>
    %12 = vector.broadcast %11 : vector<1x16xf32> to vector<256x16xf32>
    %13 = arith.addf %10, %12 : vector<256x16xf32>
    %c0_10 = arith.constant 0 : index
    %c0_11 = arith.constant 0 : index
    %14 = vector.load %arg6[%c0_10, %c0_11] : memref<256x16xf32, #tpu.memory_space<vmem>>, vector<256x16xf32>
    tpu.vector_store %arg6[%c0_10, %c0_11], %13 {strides = array<i32>} : memref<256x16xf32, #tpu.memory_space<vmem>>, vector<256x16xf32>,
    return
  }
  func.func @transform_0(%arg0: i32) -> (i32, i32) {
    %c0_i32 = arith.constant 0 : i32
    %c0_i32_0 = arith.constant 0 : i32
    return %arg0, %c0_i32 : i32, i32
  }
  func.func @transform_1(%arg0: i32) -> (i32, i32) {
    %c0_i32 = arith.constant 0 : i32
    %c0_i32_0 = arith.constant 0 : i32
    %c0_i32_1 = arith.constant 0 : i32
    return %c0_i32, %c0_i32_0 : i32, i32
  }
  func.func @transform_2(%arg0: i32) -> (i32, i32) {
    %c0_i32 = arith.constant 0 : i32
    %c0_i32_0 = arith.constant 0 : i32
    %c0_i32_1 = arith.constant 0 : i32
    return %c0_i32, %c0_i32_0 : i32, i32
  }
  func.func @transform_3(%arg0: i32) -> (i32, i32) {
    %c0_i32 = arith.constant 0 : i32
    %c0_i32_0 = arith.constant 0 : i32
    %c0_i32_1 = arith.constant 0 : i32
    return %c0_i32, %c0_i32_0 : i32, i32
  }
  func.func @transform_4(%arg0: i32) -> (i32, i32) {
    %c0_i32 = arith.constant 0 : i32
    %c0_i32_0 = arith.constant 0 : i32
    %c0_i32_1 = arith.constant 0 : i32
    return %c0_i32, %c0_i32_0 : i32, i32
  }
  func.func @transform_5(%arg0: i32) -> (i32, i32) {
    %c0_i32 = arith.constant 0 : i32
    %c0_i32_0 = arith.constant 0 : i32
    return %arg0, %c0_i32 : i32, i32
  }
}

module attributes {stable_mosaic.version = 11 : i64} {
  func.func @_matmul_relu_affine_kernel(%arg0: i32, %arg1: memref<256x16xf32, #tpu.memory_space<vmem>>, %arg2: memref<16x16xf32, #tpu.memory_space<vmem>>, %arg3: memref<1x16xf32, #tpu.memory_space<vmem>>, %arg4: memref<1x16xf32, #tpu.memory_space<vmem>>, %arg5: memref<1x16xf32, #tpu.memory_space<vmem>>, %arg6: memref<256x16xf32, #tpu.memory_space<vmem>>) attributes {dimension_semantics = [#tpu.dimension_semantics<parallel>], iteration_bounds = array<i64: 2>, scalar_prefetch = 0 : i64, scratch_operands = 0 : i64, tpu.core_type = #tpu.core_type<tc>, window_params = [{transform_indices = @transform_0, window_bounds = array<i64: 256, 16>}, {pipeline_mode = #tpu.pipeline_mode<synchronous>, transform_indices = @transform_1, window_bounds = array<i64: 16, 16>}, {pipeline_mode = #tpu.pipeline_mode<synchronous>, transform_indices = @transform_2, window_bounds = array<i64: 1, 16>}, {pipeline_mode = #tpu.pipeline_mode<synchronous>, transform_indices = @transform_3, window_bounds = array<i64: 1, 16>}, {pipeline_mode = #tpu.pipeline_mode<synchronous>, transform_indices = @transform_4, window_bounds = array<i64: 1, 16>}, {transform_indices = @transform_5, window_bounds = array<i64: 256, 16>}]} {
    %c0 = arith.constant 0 : index
    %c0_0 = arith.constant 0 : index
    %0 = vector.load %arg1[%c0, %c0_0] : memref<256x16xf32, #tpu.memory_space<vmem>>, vector<256x16xf32>
    %c0_1 = arith.constant 0 : index
    %c0_2 = arith.constant 0 : index
    %1 = vector.load %arg2[%c0_1, %c0_2] : memref<16x16xf32, #tpu.memory_space<vmem>>, vector<16x16xf32>
    %cst = arith.constant dense<0.000000e+00> : vector<256x16xf32>
    %2 = tpu.matmul %0, %1, %cst {dimension_numbers = #tpu.dot_dimension_numbers<[1], [0], [0], [1], [0, 0, 1, 1], [], []>} : vector<256x16xf32>, vector<16x16xf32>, vector<256x16xf32> -> vector<256x16xf32>
    %c0_3 = arith.constant 0 : index
    %c0_4 = arith.constant 0 : index
    %3 = vector.load %arg3[%c0_3, %c0_4] : memref<1x16xf32, #tpu.memory_space<vmem>>, vector<1x16xf32>
    %4 = vector.broadcast %3 : vector<1x16xf32> to vector<256x16xf32>
    %5 = arith.addf %2, %4 : vector<256x16xf32>
    %cst_5 = arith.constant 0.000000e+00 : f32
    %6 = vector.broadcast %cst_5 : f32 to vector<256x16xf32>
    %7 = arith.maximumf %5, %6 : vector<256x16xf32>
    %c0_6 = arith.constant 0 : index
    %c0_7 = arith.constant 0 : index
    %8 = vector.load %arg4[%c0_6, %c0_7] : memref<1x16xf32, #tpu.memory_space<vmem>>, vector<1x16xf32>
    %9 = vector.broadcast %8 : vector<1x16xf32> to vector<256x16xf32>
    %10 = arith.mulf %7, %9 : vector<256x16xf32>
    %c0_8 = arith.constant 0 : index
    %c0_9 = arith.constant 0 : index
    %11 = vector.load %arg5[%c0_8, %c0_9] : memref<1x16xf32, #tpu.memory_space<vmem>>, vector<1x16xf32>
    %12 = vector.broadcast %11 : vector<1x16xf32> to vector<256x16xf32>
    %13 = arith.addf %10, %12 : vector<256x16xf32>
    %c0_10 = arith.constant 0 : index
    %c0_11 = arith.constant 0 : index
    %14 = vector.load %arg6[%c0_10, %c0_11] : memref<256x16xf32, #tpu.memory_space<vmem>>, vector<256x16xf32>
    tpu.vector_store %arg6[%c0_10, %c0_11], %13 {strides = array<i32>} : memref<256x16xf32, #tpu.memory_space<vmem>>, vector<256x16xf32>,
    return
  }
  func.func @transform_0(%arg0: i32) -> (i32, i32) {
    %c0_i32 = arith.constant 0 : i32
    %c0_i32_0 = arith.constant 0 : i32
    return %arg0, %c0_i32 : i32, i32
  }
  func.func @transform_1(%arg0: i32) -> (i32, i32) {
    %c0_i32 = arith.constant 0 : i32
    %c0_i32_0 = arith.constant 0 : i32
    %c0_i32_1 = arith.constant 0 : i32
    return %c0_i32, %c0_i32_0 : i32, i32
  }
  func.func @transform_2(%arg0: i32) -> (i32, i32) {
    %c0_i32 = arith.constant 0 : i32
    %c0_i32_0 = arith.constant 0 : i32
    %c0_i32_1 = arith.constant 0 : i32
    return %c0_i32, %c0_i32_0 : i32, i32
  }
  func.func @transform_3(%arg0: i32) -> (i32, i32) {
    %c0_i32 = arith.constant 0 : i32
    %c0_i32_0 = arith.constant 0 : i32
    %c0_i32_1 = arith.constant 0 : i32
    return %c0_i32, %c0_i32_0 : i32, i32
  }
  func.func @transform_4(%arg0: i32) -> (i32, i32) {
    %c0_i32 = arith.constant 0 : i32
    %c0_i32_0 = arith.constant 0 : i32
    %c0_i32_1 = arith.constant 0 : i32
    return %c0_i32, %c0_i32_0 : i32, i32
  }
  func.func @transform_5(%arg0: i32) -> (i32, i32) {
    %c0_i32 = arith.constant 0 : i32
    %c0_i32_0 = arith.constant 0 : i32
    return %arg0, %c0_i32 : i32, i32
  }
}

module attributes {stable_mosaic.version = 11 : i64} {
  func.func @_gru_last_bn_kernel(%arg0: i32, %arg1: memref<1x2x64xf32, #tpu.memory_space<vmem>>, %arg2: memref<64x32xf32, #tpu.memory_space<vmem>>, %arg3: memref<64x32xf32, #tpu.memory_space<vmem>>, %arg4: memref<64x32xf32, #tpu.memory_space<vmem>>, %arg5: memref<32x32xf32, #tpu.memory_space<vmem>>, %arg6: memref<32x32xf32, #tpu.memory_space<vmem>>, %arg7: memref<32x32xf32, #tpu.memory_space<vmem>>, %arg8: memref<1x32xf32, #tpu.memory_space<vmem>>, %arg9: memref<1x32xf32, #tpu.memory_space<vmem>>, %arg10: memref<1x32xf32, #tpu.memory_space<vmem>>, %arg11: memref<1x32xf32, #tpu.memory_space<vmem>>, %arg12: memref<1x32xf32, #tpu.memory_space<vmem>>, %arg13: memref<1x32xf32, #tpu.memory_space<vmem>>, %arg14: memref<2x32xf32, #tpu.memory_space<vmem>>, %arg15: memref<2x32xf32, #tpu.memory_space<vmem>>) attributes {dimension_semantics = [#tpu.dimension_semantics<arbitrary>], iteration_bounds = array<i64: 4>, scalar_prefetch = 0 : i64, scratch_operands = 1 : i64, tpu.core_type = #tpu.core_type<tc>, window_params = [{transform_indices = @transform_0, window_bounds = array<i64: 1, 2, 64>}, {pipeline_mode = #tpu.pipeline_mode<synchronous>, transform_indices = @transform_1, window_bounds = array<i64: 64, 32>}, {pipeline_mode = #tpu.pipeline_mode<synchronous>, transform_indices = @transform_2, window_bounds = array<i64: 64, 32>}, {pipeline_mode = #tpu.pipeline_mode<synchronous>, transform_indices = @transform_3, window_bounds = array<i64: 64, 32>}, {pipeline_mode = #tpu.pipeline_mode<synchronous>, transform_indices = @transform_4, window_bounds = array<i64: 32, 32>}, {pipeline_mode = #tpu.pipeline_mode<synchronous>, transform_indices = @transform_5, window_bounds = array<i64: 32, 32>}, {pipeline_mode = #tpu.pipeline_mode<synchronous>, transform_indices = @transform_6, window_bounds = array<i64: 32, 32>}, {pipeline_mode = #tpu.pipeline_mode<synchronous>, transform_indices = @transform_7, window_bounds = array<i64: 1, 32>}, {pipeline_mode = #tpu.pipeline_mode<synchronous>, transform_indices = @transform_8, window_bounds = array<i64: 1, 32>}, {pipeline_mode = #tpu.pipeline_mode<synchronous>, transform_indices = @transform_9, window_bounds = array<i64: 1, 32>}, {pipeline_mode = #tpu.pipeline_mode<synchronous>, transform_indices = @transform_10, window_bounds = array<i64: 1, 32>}, {pipeline_mode = #tpu.pipeline_mode<synchronous>, transform_indices = @transform_11, window_bounds = array<i64: 1, 32>}, {pipeline_mode = #tpu.pipeline_mode<synchronous>, transform_indices = @transform_12, window_bounds = array<i64: 1, 32>}, {pipeline_mode = #tpu.pipeline_mode<synchronous>, transform_indices = @transform_13, window_bounds = array<i64: 2, 32>}]} {
    %c0_i32 = arith.constant 0 : i32
    %0 = arith.cmpi eq, %arg0, %c0_i32 : i32
    %1 = arith.extui %0 : i1 to i32
    %c0_i32_0 = arith.constant 0 : i32
    %2 = arith.cmpi ne, %1, %c0_i32_0 : i32
    scf.if %2 {
      %cst_40 = arith.constant 0.000000e+00 : f32
      %58 = vector.broadcast %cst_40 : f32 to vector<2x32xf32>
      %c0_41 = arith.constant 0 : index
      %c0_42 = arith.constant 0 : index
      %59 = vector.load %arg15[%c0_41, %c0_42] : memref<2x32xf32, #tpu.memory_space<vmem>>, vector<2x32xf32>
      tpu.vector_store %arg15[%c0_41, %c0_42], %58 {strides = array<i32>} : memref<2x32xf32, #tpu.memory_space<vmem>>, vector<2x32xf32>,
    } else {
    }
    %c0 = arith.constant 0 : index
    %c0_1 = arith.constant 0 : index
    %c0_2 = arith.constant 0 : index
    %3 = vector.load %arg1[%c0, %c0_1, %c0_2] : memref<1x2x64xf32, #tpu.memory_space<vmem>>, vector<1x2x64xf32>
    %4 = vector.shape_cast %3 : vector<1x2x64xf32> to vector<2x64xf32>
    %c0_3 = arith.constant 0 : index
    %c0_4 = arith.constant 0 : index
    %5 = vector.load %arg15[%c0_3, %c0_4] : memref<2x32xf32, #tpu.memory_space<vmem>>, vector<2x32xf32>
    %c0_5 = arith.constant 0 : index
    %c0_6 = arith.constant 0 : index
    %6 = vector.load %arg2[%c0_5, %c0_6] : memref<64x32xf32, #tpu.memory_space<vmem>>, vector<64x32xf32>
    %cst = arith.constant dense<0.000000e+00> : vector<2x32xf32>
    %7 = tpu.matmul %4, %6, %cst {dimension_numbers = #tpu.dot_dimension_numbers<[1], [0], [0], [1], [0, 0, 1, 1], [], []>} : vector<2x64xf32>, vector<64x32xf32>, vector<2x32xf32> -> vector<2x32xf32>
    %c0_7 = arith.constant 0 : index
    %c0_8 = arith.constant 0 : index
    %8 = vector.load %arg5[%c0_7, %c0_8] : memref<32x32xf32, #tpu.memory_space<vmem>>, vector<32x32xf32>
    %cst_9 = arith.constant dense<0.000000e+00> : vector<2x32xf32>
    %9 = tpu.matmul %5, %8, %cst_9 {dimension_numbers = #tpu.dot_dimension_numbers<[1], [0], [0], [1], [0, 0, 1, 1], [], []>} : vector<2x32xf32>, vector<32x32xf32>, vector<2x32xf32> -> vector<2x32xf32>
    %10 = arith.addf %7, %9 : vector<2x32xf32>
    %c0_10 = arith.constant 0 : index
    %c0_11 = arith.constant 0 : index
    %11 = vector.load %arg8[%c0_10, %c0_11] : memref<1x32xf32, #tpu.memory_space<vmem>>, vector<1x32xf32>
    %12 = vector.broadcast %11 : vector<1x32xf32> to vector<2x32xf32>
    %13 = arith.addf %10, %12 : vector<2x32xf32>
    %cst_12 = arith.constant 0.000000e+00 : f32
    %14 = vector.broadcast %cst_12 : f32 to vector<2x32xf32>
    %15 = arith.subf %14, %13 : vector<2x32xf32>
    %16 = math.exp %15 : vector<2x32xf32>
    %cst_13 = arith.constant 1.000000e+00 : f32
    %17 = vector.broadcast %cst_13 : f32 to vector<2x32xf32>
    %18 = arith.addf %17, %16 : vector<2x32xf32>
    %cst_14 = arith.constant 1.000000e+00 : f32
    %19 = vector.broadcast %cst_14 : f32 to vector<2x32xf32>
    %20 = arith.divf %19, %18 : vector<2x32xf32>
    %c0_15 = arith.constant 0 : index
    %c0_16 = arith.constant 0 : index
    %21 = vector.load %arg3[%c0_15, %c0_16] : memref<64x32xf32, #tpu.memory_space<vmem>>, vector<64x32xf32>
    %cst_17 = arith.constant dense<0.000000e+00> : vector<2x32xf32>
    %22 = tpu.matmul %4, %21, %cst_17 {dimension_numbers = #tpu.dot_dimension_numbers<[1], [0], [0], [1], [0, 0, 1, 1], [], []>} : vector<2x64xf32>, vector<64x32xf32>, vector<2x32xf32> -> vector<2x32xf32>
    %c0_18 = arith.constant 0 : index
    %c0_19 = arith.constant 0 : index
    %23 = vector.load %arg6[%c0_18, %c0_19] : memref<32x32xf32, #tpu.memory_space<vmem>>, vector<32x32xf32>
    %cst_20 = arith.constant dense<0.000000e+00> : vector<2x32xf32>
    %24 = tpu.matmul %5, %23, %cst_20 {dimension_numbers = #tpu.dot_dimension_numbers<[1], [0], [0], [1], [0, 0, 1, 1], [], []>} : vector<2x32xf32>, vector<32x32xf32>, vector<2x32xf32> -> vector<2x32xf32>
    %25 = arith.addf %22, %24 : vector<2x32xf32>
    %c0_21 = arith.constant 0 : index
    %c0_22 = arith.constant 0 : index
    %26 = vector.load %arg9[%c0_21, %c0_22] : memref<1x32xf32, #tpu.memory_space<vmem>>, vector<1x32xf32>
    %27 = vector.broadcast %26 : vector<1x32xf32> to vector<2x32xf32>
    %28 = arith.addf %25, %27 : vector<2x32xf32>
    %cst_23 = arith.constant 0.000000e+00 : f32
    %29 = vector.broadcast %cst_23 : f32 to vector<2x32xf32>
    %30 = arith.subf %29, %28 : vector<2x32xf32>
    %31 = math.exp %30 : vector<2x32xf32>
    %cst_24 = arith.constant 1.000000e+00 : f32
    %32 = vector.broadcast %cst_24 : f32 to vector<2x32xf32>
    %33 = arith.addf %32, %31 : vector<2x32xf32>
    %cst_25 = arith.constant 1.000000e+00 : f32
    %34 = vector.broadcast %cst_25 : f32 to vector<2x32xf32>
    %35 = arith.divf %34, %33 : vector<2x32xf32>
    %c0_26 = arith.constant 0 : index
    %c0_27 = arith.constant 0 : index
    %36 = vector.load %arg4[%c0_26, %c0_27] : memref<64x32xf32, #tpu.memory_space<vmem>>, vector<64x32xf32>
    %cst_28 = arith.constant dense<0.000000e+00> : vector<2x32xf32>
    %37 = tpu.matmul %4, %36, %cst_28 {dimension_numbers = #tpu.dot_dimension_numbers<[1], [0], [0], [1], [0, 0, 1, 1], [], []>} : vector<2x64xf32>, vector<64x32xf32>, vector<2x32xf32> -> vector<2x32xf32>
    %c0_29 = arith.constant 0 : index
    %c0_30 = arith.constant 0 : index
    %38 = vector.load %arg10[%c0_29, %c0_30] : memref<1x32xf32, #tpu.memory_space<vmem>>, vector<1x32xf32>
    %39 = vector.broadcast %38 : vector<1x32xf32> to vector<2x32xf32>
    %40 = arith.addf %37, %39 : vector<2x32xf32>
    %c0_31 = arith.constant 0 : index
    %c0_32 = arith.constant 0 : index
    %41 = vector.load %arg7[%c0_31, %c0_32] : memref<32x32xf32, #tpu.memory_space<vmem>>, vector<32x32xf32>
    %cst_33 = arith.constant dense<0.000000e+00> : vector<2x32xf32>
    %42 = tpu.matmul %5, %41, %cst_33 {dimension_numbers = #tpu.dot_dimension_numbers<[1], [0], [0], [1], [0, 0, 1, 1], [], []>} : vector<2x32xf32>, vector<32x32xf32>, vector<2x32xf32> -> vector<2x32xf32>
    %c0_34 = arith.constant 0 : index
    %c0_35 = arith.constant 0 : index
    %43 = vector.load %arg11[%c0_34, %c0_35] : memref<1x32xf32, #tpu.memory_space<vmem>>, vector<1x32xf32>
    %44 = vector.broadcast %43 : vector<1x32xf32> to vector<2x32xf32>
    %45 = arith.addf %42, %44 : vector<2x32xf32>
    %46 = arith.mulf %20, %45 : vector<2x32xf32>
    %47 = arith.addf %40, %46 : vector<2x32xf32>
    %48 = math.tanh %47 : vector<2x32xf32>
    %cst_36 = arith.constant 1.000000e+00 : f32
    %49 = vector.broadcast %cst_36 : f32 to vector<2x32xf32>
    %50 = arith.subf %49, %35 : vector<2x32xf32>
    %51 = arith.mulf %50, %48 : vector<2x32xf32>
    %52 = arith.mulf %35, %5 : vector<2x32xf32>
    %53 = arith.addf %51, %52 : vector<2x32xf32>
    %c0_37 = arith.constant 0 : index
    %c0_38 = arith.constant 0 : index
    %54 = vector.load %arg15[%c0_37, %c0_38] : memref<2x32xf32, #tpu.memory_space<vmem>>, vector<2x32xf32>
    tpu.vector_store %arg15[%c0_37, %c0_38], %53 {strides = array<i32>} : memref<2x32xf32, #tpu.memory_space<vmem>>, vector<2x32xf32>,
    %c3_i32 = arith.constant 3 : i32
    %55 = arith.cmpi eq, %arg0, %c3_i32 : i32
    %56 = arith.extui %55 : i1 to i32
    %c0_i32_39 = arith.constant 0 : i32
    %57 = arith.cmpi ne, %56, %c0_i32_39 : i32
    scf.if %57 {
      %c0_40 = arith.constant 0 : index
      %c0_41 = arith.constant 0 : index
      %58 = vector.load %arg12[%c0_40, %c0_41] : memref<1x32xf32, #tpu.memory_space<vmem>>, vector<1x32xf32>
      %59 = vector.broadcast %58 : vector<1x32xf32> to vector<2x32xf32>
      %60 = arith.mulf %53, %59 : vector<2x32xf32>
      %c0_42 = arith.constant 0 : index
      %c0_43 = arith.constant 0 : index
      %61 = vector.load %arg13[%c0_42, %c0_43] : memref<1x32xf32, #tpu.memory_space<vmem>>, vector<1x32xf32>
      %62 = vector.broadcast %61 : vector<1x32xf32> to vector<2x32xf32>
      %63 = arith.addf %60, %62 : vector<2x32xf32>
      %c0_44 = arith.constant 0 : index
      %c0_45 = arith.constant 0 : index
      %64 = vector.load %arg14[%c0_44, %c0_45] : memref<2x32xf32, #tpu.memory_space<vmem>>, vector<2x32xf32>
      tpu.vector_store %arg14[%c0_44, %c0_45], %63 {strides = array<i32>} : memref<2x32xf32, #tpu.memory_space<vmem>>, vector<2x32xf32>,
    } else {
    }
    return
  }
  func.func @transform_0(%arg0: i32) -> (i32, i32, i32) {
    %c0_i32 = arith.constant 0 : i32
    %c0_i32_0 = arith.constant 0 : i32
    %c0_i32_1 = arith.constant 0 : i32
    return %arg0, %c0_i32, %c0_i32_0 : i32, i32, i32
  }
  func.func @transform_1(%arg0: i32) -> (i32, i32) {
    %c0_i32 = arith.constant 0 : i32
    %c0_i32_0 = arith.constant 0 : i32
    %c0_i32_1 = arith.constant 0 : i32
    return %c0_i32, %c0_i32_0 : i32, i32
  }
  func.func @transform_2(%arg0: i32) -> (i32, i32) {
    %c0_i32 = arith.constant 0 : i32
    %c0_i32_0 = arith.constant 0 : i32
    %c0_i32_1 = arith.constant 0 : i32
    return %c0_i32, %c0_i32_0 : i32, i32
  }
  func.func @transform_3(%arg0: i32) -> (i32, i32) {
    %c0_i32 = arith.constant 0 : i32
    %c0_i32_0 = arith.constant 0 : i32
    %c0_i32_1 = arith.constant 0 : i32
    return %c0_i32, %c0_i32_0 : i32, i32
  }
  func.func @transform_4(%arg0: i32) -> (i32, i32) {
    %c0_i32 = arith.constant 0 : i32
    %c0_i32_0 = arith.constant 0 : i32
    %c0_i32_1 = arith.constant 0 : i32
    return %c0_i32, %c0_i32_0 : i32, i32
  }
  func.func @transform_5(%arg0: i32) -> (i32, i32) {
    %c0_i32 = arith.constant 0 : i32
    %c0_i32_0 = arith.constant 0 : i32
    %c0_i32_1 = arith.constant 0 : i32
    return %c0_i32, %c0_i32_0 : i32, i32
  }
  func.func @transform_6(%arg0: i32) -> (i32, i32) {
    %c0_i32 = arith.constant 0 : i32
    %c0_i32_0 = arith.constant 0 : i32
    %c0_i32_1 = arith.constant 0 : i32
    return %c0_i32, %c0_i32_0 : i32, i32
  }
  func.func @transform_7(%arg0: i32) -> (i32, i32) {
    %c0_i32 = arith.constant 0 : i32
    %c0_i32_0 = arith.constant 0 : i32
    %c0_i32_1 = arith.constant 0 : i32
    return %c0_i32, %c0_i32_0 : i32, i32
  }
  func.func @transform_8(%arg0: i32) -> (i32, i32) {
    %c0_i32 = arith.constant 0 : i32
    %c0_i32_0 = arith.constant 0 : i32
    %c0_i32_1 = arith.constant 0 : i32
    return %c0_i32, %c0_i32_0 : i32, i32
  }
  func.func @transform_9(%arg0: i32) -> (i32, i32) {
    %c0_i32 = arith.constant 0 : i32
    %c0_i32_0 = arith.constant 0 : i32
    %c0_i32_1 = arith.constant 0 : i32
    return %c0_i32, %c0_i32_0 : i32, i32
  }
  func.func @transform_10(%arg0: i32) -> (i32, i32) {
    %c0_i32 = arith.constant 0 : i32
    %c0_i32_0 = arith.constant 0 : i32
    %c0_i32_1 = arith.constant 0 : i32
    return %c0_i32, %c0_i32_0 : i32, i32
  }
  func.func @transform_11(%arg0: i32) -> (i32, i32) {
    %c0_i32 = arith.constant 0 : i32
    %c0_i32_0 = arith.constant 0 : i32
    %c0_i32_1 = arith.constant 0 : i32
    return %c0_i32, %c0_i32_0 : i32, i32
  }
  func.func @transform_12(%arg0: i32) -> (i32, i32) {
    %c0_i32 = arith.constant 0 : i32
    %c0_i32_0 = arith.constant 0 : i32
    %c0_i32_1 = arith.constant 0 : i32
    return %c0_i32, %c0_i32_0 : i32, i32
  }
  func.func @transform_13(%arg0: i32) -> (i32, i32) {
    %c0_i32 = arith.constant 0 : i32
    %c0_i32_0 = arith.constant 0 : i32
    %c0_i32_1 = arith.constant 0 : i32
    return %c0_i32, %c0_i32_0 : i32, i32
  }
}

module attributes {stable_mosaic.version = 11 : i64} {
  func.func @_window_mean_kernel(%arg0: i32, %arg1: memref<16x32x16xf32, #tpu.memory_space<vmem>>, %arg2: memref<32x16xf32, #tpu.memory_space<vmem>>) attributes {dimension_semantics = [#tpu.dimension_semantics<parallel>], iteration_bounds = array<i64: 1>, scalar_prefetch = 0 : i64, scratch_operands = 0 : i64, tpu.core_type = #tpu.core_type<tc>, window_params = [{transform_indices = @transform_0, window_bounds = array<i64: 16, 32, 16>}, {transform_indices = @transform_1, window_bounds = array<i64: 32, 16>}]} {
    %c0 = arith.constant 0 : index
    %c0_0 = arith.constant 0 : index
    %c0_1 = arith.constant 0 : index
    %0 = vector.load %arg1[%c0, %c0_0, %c0_1] : memref<16x32x16xf32, #tpu.memory_space<vmem>>, vector<16x32x16xf32>
    %cst = arith.constant dense<0.000000e+00> : vector<32x16xf32>
    %1 = vector.multi_reduction <add>, %0, %cst [0] : vector<16x32x16xf32> to vector<32x16xf32>
    %cst_2 = arith.constant 6.250000e-02 : f32
    %2 = vector.broadcast %cst_2 : f32 to vector<32x16xf32>
    %3 = arith.mulf %1, %2 : vector<32x16xf32>
    %c0_3 = arith.constant 0 : index
    %c0_4 = arith.constant 0 : index
    %4 = vector.load %arg2[%c0_3, %c0_4] : memref<32x16xf32, #tpu.memory_space<vmem>>, vector<32x16xf32>
    tpu.vector_store %arg2[%c0_3, %c0_4], %3 {strides = array<i32>} : memref<32x16xf32, #tpu.memory_space<vmem>>, vector<32x16xf32>,
    return
  }
  func.func @transform_0(%arg0: i32) -> (i32, i32, i32) {
    %c0_i32 = arith.constant 0 : i32
    %c0_i32_0 = arith.constant 0 : i32
    %c0_i32_1 = arith.constant 0 : i32
    return %c0_i32, %arg0, %c0_i32_0 : i32, i32, i32
  }
  func.func @transform_1(%arg0: i32) -> (i32, i32) {
    %c0_i32 = arith.constant 0 : i32
    %c0_i32_0 = arith.constant 0 : i32
    return %arg0, %c0_i32 : i32, i32
  }
}

</mosaic_0001>

<llo_original>
// kernel: feature_extractor_forward.8
$region0: #{feature_extractor_forward.8}
  #allocation0 [shape = 'u32[]', space=smem, size = 0x4, offset = 0x4, fixed_abs, tag = 'smem constant byte address 0x4 - core index']
  #allocation1 [shape = 'u32[144,128]{1,0:T(1,128)}', space=vmem, size = 0x12000, scoped, tag = 'internal scratch']
  %s0 = inlined_call_operand.vmem [shape: f32[2048,27], index: 0, kind: input, shape index: {}]
  %s1 = inlined_call_operand.vmem [shape: f32[27,8], index: 1, kind: input, shape index: {}]
  %s2 = inlined_call_operand.vmem [shape: f32[1,8], index: 2, kind: input, shape index: {}]
  %s3 = inlined_call_operand.vmem [shape: f32[1,8], index: 3, kind: input, shape index: {}]
  %s4 = inlined_call_operand.vmem [shape: f32[1,8], index: 4, kind: input, shape index: {}]
  %s5 = inlined_call_operand.vmem [shape: f32[2048,8], index: 5, kind: output, shape index: {}]
  %s6 = sld [smem:[#allocation0]]
  $region53: #{feature_extractor_forward.8} parent=0
    _
  %s8 = ssub.s32 1, %s6
  %s9 = scalar_select 0, %s8, %s6
  loop: start=0, step=1, limit=10
  $region2: #{feature_extractor_forward.8} parent=0 // loop_pre_header
    _
  $region3: #{feature_extractor_forward.8} parent=0 // loop_header
    %s11 = sphi 0, %s15
    %p12 = scmp.ge.s32.totalorder %s11, 10
    %s21 = sphi 0, %s23
    %s24 = sphi 0, %s21
    %s25 = sphi 0, %s24
    %s41 = sphi 0, %s25
    %s45 = sphi 0, %s45
    %s47 = sphi 0, %s45
    %s48 = sphi 0, %s47
    %s62 = sphi 0, %s48
    %s66 = sphi 0, %s66
    %s68 = sphi 0, %s66
    %s69 = sphi 0, %s68
    %s83 = sphi 0, %s69
    %s87 = sphi 0, %s87
    %s89 = sphi 0, %s87
    %s90 = sphi 0, %s89
    %s104 = sphi 0, %s90
    %s108 = sphi 0, %s108
    %s110 = sphi 0, %s108
    %s111 = sphi 0, %s110
    %s125 = sphi 0, %s111
    %s131 = sphi 0, %s133
    %s134 = sphi 0, %s131
    %s135 = sphi 0, %s134
    %s151 = sphi 0, %s135
  $region4: #{feature_extractor_forward.8} parent=0 // loop_header_branch
    %14 = sbr.rel (%p12) target = $region8
  $region5: #{feature_extractor_forward.8} parent=0 // loop_body
    %s16 = ssub.s32 %s11, 1
    %s17 = ssub.s32 %s11, 2
    %s18 = sadd.s32 %s11, 1
    %s19 = ssub.s32 %s11, %s18
    %p20 = scmp.eq.s32.totalorder %s19, 0
    %s22 = sadd.s32 %s21, 1
    %s23 = scalar_select %p20, %s21, %s22
    %p26 = pneg %p20
    %p27 = scmp.eq.s32.totalorder %s11, 7
    %p28 = por %p26, %p27
    %p29 = scmp.ne.s32.totalorder %s21, %s24
    %p30 = scmp.eq.s32.totalorder %s11, 0
    %p31 = por %p29, %p30
    %p32 = scmp.ne.s32.totalorder %s21, %s24
    %p33 = scmp.eq.s32.totalorder %s16, 7
    %p34 = por %p32, %p33
    %p35 = scmp.ne.s32.totalorder %s24, %s25
    %p36 = scmp.eq.s32.totalorder %s16, 0
    %p37 = por %p35, %p36
    %p38 = scmp.ne.s32.totalorder %s24, %s25
    %p39 = scmp.eq.s32.totalorder %s17, 7
    %p40 = por %p38, %p39
    %p42 = scmp.ne.s32.totalorder %s25, %s41
    %p43 = scmp.eq.s32.totalorder %s17, 0
    %p44 = por %p42, %p43
    %s46 = sadd.s32 %s45, 1
    %p49 = scmp.eq.s32.totalorder %s11, 7
    %p50 = scmp.ne.s32.totalorder %s45, %s47
    %p51 = scmp.eq.s32.totalorder %s11, 0
    %p52 = por %p50, %p51
    %p53 = scmp.ne.s32.totalorder %s45, %s47
    %p54 = scmp.eq.s32.totalorder %s16, 7
    %p55 = por %p53, %p54
    %p56 = scmp.ne.s32.totalorder %s47, %s48
    %p57 = scmp.eq.s32.totalorder %s16, 0
    %p58 = por %p56, %p57
    %p59 = scmp.ne.s32.totalorder %s47, %s48
    %p60 = scmp.eq.s32.totalorder %s17, 7
    %p61 = por %p59, %p60
    %p63 = scmp.ne.s32.totalorder %s48, %s62
    %p64 = scmp.eq.s32.totalorder %s17, 0
    %p65 = por %p63, %p64
    %s67 = sadd.s32 %s66, 1
    %p70 = scmp.eq.s32.totalorder %s11, 7
    %p71 = scmp.ne.s32.totalorder %s66, %s68
    %p72 = scmp.eq.s32.totalorder %s11, 0
    %p73 = por %p71, %p72
    %p74 = scmp.ne.s32.totalorder %s66, %s68
    %p75 = scmp.eq.s32.totalorder %s16, 7
    %p76 = por %p74, %p75
    %p77 = scmp.ne.s32.totalorder %s68, %s69
    %p78 = scmp.eq.s32.totalorder %s16, 0
    %p79 = por %p77, %p78
    %p80 = scmp.ne.s32.totalorder %s68, %s69
    %p81 = scmp.eq.s32.totalorder %s17, 7
    %p82 = por %p80, %p81
    %p84 = scmp.ne.s32.totalorder %s69, %s83
    %p85 = scmp.eq.s32.totalorder %s17, 0
    %p86 = por %p84, %p85
    %s88 = sadd.s32 %s87, 1
    %p91 = scmp.eq.s32.totalorder %s11, 7
    %p92 = scmp.ne.s32.totalorder %s87, %s89
    %p93 = scmp.eq.s32.totalorder %s11, 0
    %p94 = por %p92, %p93
    %p95 = scmp.ne.s32.totalorder %s87, %s89
    %p96 = scmp.eq.s32.totalorder %s16, 7
    %p97 = por %p95, %p96
    %p98 = scmp.ne.s32.totalorder %s89, %s90
    %p99 = scmp.eq.s32.totalorder %s16, 0
    %p100 = por %p98, %p99
    %p101 = scmp.ne.s32.totalorder %s89, %s90
    %p102 = scmp.eq.s32.totalorder %s17, 7
    %p103 = por %p101, %p102
    %p105 = scmp.ne.s32.totalorder %s90, %s104
    %p106 = scmp.eq.s32.totalorder %s17, 0
    %p107 = por %p105, %p106
    %s109 = sadd.s32 %s108, 1
    %p112 = scmp.eq.s32.totalorder %s11, 7
    %p113 = scmp.ne.s32.totalorder %s108, %s110
    %p114 = scmp.eq.s32.totalorder %s11, 0
    %p115 = por %p113, %p114
    %p116 = scmp.ne.s32.totalorder %s108, %s110
    %p117 = scmp.eq.s32.totalorder %s16, 7
    %p118 = por %p116, %p117
    %p119 = scmp.ne.s32.totalorder %s110, %s111
    %p120 = scmp.eq.s32.totalorder %s16, 0
    %p121 = por %p119, %p120
    %p122 = scmp.ne.s32.totalorder %s110, %s111
    %p123 = scmp.eq.s32.totalorder %s17, 7
    %p124 = por %p122, %p123
    %p126 = scmp.ne.s32.totalorder %s111, %s125
    %p127 = scmp.eq.s32.totalorder %s17, 0
    %p128 = por %p126, %p127
    %s129 = ssub.s32 %s11, %s18
    %p130 = scmp.eq.s32.totalorder %s129, 0
    %s132 = sadd.s32 %s131, 1
    %s133 = scalar_select %p130, %s131, %s132
    %p136 = pneg %p130
    %p137 = scmp.eq.s32.totalorder %s11, 7
    %p138 = por %p136, %p137
    %p139 = scmp.ne.s32.totalorder %s131, %s134
    %p140 = scmp.eq.s32.totalorder %s11, 0
    %p141 = por %p139, %p140
    %p142 = scmp.ne.s32.totalorder %s131, %s134
    %p143 = scmp.eq.s32.totalorder %s16, 7
    %p144 = por %p142, %p143
    %p145 = scmp.ne.s32.totalorder %s134, %s135
    %p146 = scmp.eq.s32.totalorder %s16, 0
    %p147 = por %p145, %p146
    %p148 = scmp.ne.s32.totalorder %s134, %s135
    %p149 = scmp.eq.s32.totalorder %s17, 7
    %p150 = por %p148, %p149
    %p152 = scmp.ne.s32.totalorder %s135, %s151
    %p153 = scmp.eq.s32.totalorder %s17, 0
    %p154 = por %p152, %p153
    %p155 = scmp.le.s32.totalorder 1, %s11
    %p156 = scmp.lt.s32.totalorder %s11, 9
    %p157 = pnand %p155, %p156
    %p158 = pneg %p157
    // Predicated region
    $region9: #{feature_extractor_forward.8} parent=5 // pred_check
      _
    $region10: #{feature_extractor_forward.8} parent=5 // pred_check_branch
      %160 = sbr.rel (%p157) target = $region12
    $region11: #{feature_extractor_forward.8} parent=5 // pred_region
      %s161 = ssub.s32 %s11, 1
      // Predicated region
      $region13: #{feature_extractor_forward.8} parent=11 // pred_check
        %p162 = pneg %p58
      $region14: #{feature_extractor_forward.8} parent=11 // pred_check_branch
        %164 = sbr.rel (%p162) target = $region16
      $region15: #{feature_extractor_forward.8} parent=11 // pred_region
        _
      $region16: #{feature_extractor_forward.8} parent=11 // pred_fallthru
        _
      // Predicated region
      $region17: #{feature_extractor_forward.8} parent=11 // pred_check
        %p165 = pneg %p79
      $region18: #{feature_extractor_forward.8} parent=11 // pred_check_branch
        %167 = sbr.rel (%p165) target = $region20
      $region19: #{feature_extractor_forward.8} parent=11 // pred_region
        _
      $region20: #{feature_extractor_forward.8} parent=11 // pred_fallthru
        _
      // Predicated region
      $region21: #{feature_extractor_forward.8} parent=11 // pred_check
        %p168 = pneg %p100
      $region22: #{feature_extractor_forward.8} parent=11 // pred_check_branch
        %170 = sbr.rel (%p168) target = $region24
      $region23: #{feature_extractor_forward.8} parent=11 // pred_region
        _
      $region24: #{feature_extractor_forward.8} parent=11 // pred_fallthru
        _
      // Predicated region
      $region25: #{feature_extractor_forward.8} parent=11 // pred_check
        %p171 = pneg %p121
      $region26: #{feature_extractor_forward.8} parent=11 // pred_check_branch
        %173 = sbr.rel (%p171) target = $region28
      $region27: #{feature_extractor_forward.8} parent=11 // pred_region
        _
      $region28: #{feature_extractor_forward.8} parent=11 // pred_fallthru
        _
    $region12: #{feature_extractor_forward.8} parent=5 // pred_fallthru
      _
    %p174 = scmp.lt.s32.totalorder %s11, 8
    // Predicated region
    $region29: #{feature_extractor_forward.8} parent=5 // pred_check
      %p175 = pneg %p174
    $region30: #{feature_extractor_forward.8} parent=5 // pred_check_branch
      %177 = sbr.rel (%p175) target = $region32
    $region31: #{feature_extractor_forward.8} parent=5 // pred_region
      // Predicated region
      $region33: #{feature_extractor_forward.8} parent=31 // pred_check
        %p178 = pneg %p31
      $region34: #{feature_extractor_forward.8} parent=31 // pred_check_branch
        %180 = sbr.rel (%p178) target = $region36
      $region35: #{feature_extractor_forward.8} parent=31 // pred_region
        %s181 = smul.u32 32, %s11
        %p182 = scmp.lt.s32.totalorder %s181, 255
        %s183 = scalar_select %p182, %s181, 255
        %s184 = smul.addr %s183, 8
        %s185 = scalar_lea.vmem %s0, %s184
        %s186 = smul.u32 32, %s11
      $region36: #{feature_extractor_forward.8} parent=31 // pred_fallthru
        _
    $region32: #{feature_extractor_forward.8} parent=5 // pred_fallthru
      _
    %p187 = scmp.le.s32.totalorder 1, %s11
    %p188 = scmp.lt.s32.totalorder %s11, 9
    %p189 = pnand %p187, %p188
    %p190 = pneg %p189
    // Predicated region
    $region37: #{feature_extractor_forward.8} parent=5 // pred_check
      _
    $region38: #{feature_extractor_forward.8} parent=5 // pred_check_branch
      %192 = sbr.rel (%p189) target = $region40
    $region39: #{feature_extractor_forward.8} parent=5 // pred_region
      %s193 = ssub.s32 %s11, 1
      %s194 = smul.u32 32, %s16
      %p195 = scmp.lt.s32.totalorder %s194, 255
      %s196 = scalar_select %p195, %s194, 255
      %s197 = smul.addr %s196, 8
      %s198 = scalar_lea.vmem %s0, %s197
      %p199 = pneg %p37
      %p200 = pneg %p34
      %p201 = pneg %p58
      %p202 = pneg %p55
      %p203 = pneg %p79
      %p204 = pneg %p76
      %p205 = pneg %p100
      %p206 = pneg %p97
      %p207 = pneg %p121
      %p208 = pneg %p118
      %p209 = pneg %p147
      %p210 = pneg %p144
      %s211 = smul.u32 32, %s16
      %p212 = scmp.lt.s32.totalorder %s211, 255
      %s213 = scalar_select %p212, %s211, 255
      %s214 = smul.addr %s213, 8
      %s215 = scalar_lea.vmem %s5, %s214
      %s216 = smul.u32 32, %s16
      %p217 = scmp.lt.s32.totalorder %s216, 255
      %s218 = scalar_select %p217, %s216, 255
      %s219 = smul.addr %s218, 8
      %s220 = scalar_lea.vmem %s0, %s219
      %s221 = smul.u32 32, %s16
      %s222 = smul.u32 32, %s16
      %p223 = scmp.lt.s32.totalorder %s222, 255
      %s224 = scalar_select %p223, %s222, 255
      %s225 = smul.addr %s224, 8
      %s226 = scalar_lea.vmem %s5, %s225
      %s227 = smul.u32 32, %s16
      %v228 = vld [vmem:[%s220] sm:$0xff]
      %v229 = vld [vmem:[%s220 + $0x8] sm:$0xff]
      %v230 = vld [vmem:[%s220 + $0x10] sm:$0xff]
      %v231 = vld [vmem:[%s220 + $0x18] sm:$0xff]
      %v232 = vld [vmem:[%s220 + $0x20] sm:$0xff]
      %v233 = vld [vmem:[%s220 + $0x28] sm:$0xff]
      %v234 = vld [vmem:[%s220 + $0x30] sm:$0xff]
      %v235 = vld [vmem:[%s220 + $0x38] sm:$0xff]
      %v236 = vld [vmem:[%s220 + $0x40] sm:$0xff]
      %v237 = vld [vmem:[%s220 + $0x48] sm:$0xff]
      %v238 = vld [vmem:[%s220 + $0x50] sm:$0xff]
      %v239 = vld [vmem:[%s220 + $0x58] sm:$0xff]
      %v240 = vld [vmem:[%s220 + $0x60] sm:$0xff]
      %v241 = vld [vmem:[%s220 + $0x68] sm:$0xff]
      %v242 = vld [vmem:[%s220 + $0x70] sm:$0xff]
      %v243 = vld [vmem:[%s220 + $0x78] sm:$0xff]
      %v244 = vld [vmem:[%s220 + $0x80] sm:$0xff]
      %v245 = vld [vmem:[%s220 + $0x88] sm:$0xff]
      %v246 = vld [vmem:[%s220 + $0x90] sm:$0xff]
      %v247 = vld [vmem:[%s220 + $0x98] sm:$0xff]
      %v248 = vld [vmem:[%s220 + $0xa0] sm:$0xff]
      %v249 = vld [vmem:[%s220 + $0xa8] sm:$0xff]
      %v250 = vld [vmem:[%s220 + $0xb0] sm:$0xff]
      %v251 = vld [vmem:[%s220 + $0xb8] sm:$0xff]
      %v252 = vld [vmem:[%s220 + $0xc0] sm:$0xff]
      %v253 = vld [vmem:[%s220 + $0xc8] sm:$0xff]
      %v254 = vld [vmem:[%s220 + $0xd0] sm:$0xff]
      %v255 = vld [vmem:[%s220 + $0xd8] sm:$0xff]
      %v256 = vld [vmem:[%s220 + $0xe0] sm:$0xff]
      %v257 = vld [vmem:[%s220 + $0xe8] sm:$0xff]
      %v258 = vld [vmem:[%s220 + $0xf0] sm:$0xff]
      %v259 = vld [vmem:[%s220 + $0xf8] sm:$0xff]
      %v260 = vld [vmem:[%s1] sm:$0xff]
      %v261 = vld [vmem:[%s1 + $0x8] sm:$0xff]
      %v262 = vld [vmem:[%s1 + $0x10] sm:$0xff]
      %v263 = vld [vmem:[%s1 + $0x18] sm:$0x7]
      %v264 = vld [vmem:[%s2] sm:$0x1]
      %v266 = vlaneseq
      %v267 = vshrl.u32 %v266, 7
      %v268 = vsub.s32 0, %v267
      %v269 = vrot.slane %v264, %v268
      %vm271 = vcmask 220160
      %v273 = vsel %vm271, %v228, 0
      %v276 = vsel %vm271, %v229, 0
      %v279 = vsel %vm271, %v230, 0
      %v282 = vsel %vm271, %v231, 0
      %v285 = vsel %vm271, %v232, 0
      %v288 = vsel %vm271, %v233, 0
      %v291 = vsel %vm271, %v234, 0
      %v294 = vsel %vm271, %v235, 0
      %v297 = vsel %vm271, %v236, 0
      %v300 = vsel %vm271, %v237, 0
      %v303 = vsel %vm271, %v238, 0
      %v306 = vsel %vm271, %v239, 0
      %v309 = vsel %vm271, %v240, 0
      %v312 = vsel %vm271, %v241, 0
      %v315 = vsel %vm271, %v242, 0
      %v318 = vsel %vm271, %v243, 0
      %v321 = vsel %vm271, %v244, 0
      %v324 = vsel %vm271, %v245, 0
      %v327 = vsel %vm271, %v246, 0
      %v330 = vsel %vm271, %v247, 0
      %v333 = vsel %vm271, %v248, 0
      %v336 = vsel %vm271, %v249, 0
      %v339 = vsel %vm271, %v250, 0
      %v342 = vsel %vm271, %v251, 0
      %v345 = vsel %vm271, %v252, 0
      %v348 = vsel %vm271, %v253, 0
      %v351 = vsel %vm271, %v254, 0
      %v354 = vsel %vm271, %v255, 0
      %v357 = vsel %vm271, %v256, 0
      %v360 = vsel %vm271, %v257, 0
      %v363 = vsel %vm271, %v258, 0
      %v366 = vsel %vm271, %v259, 0
      %vm368 = vcmask 1042432
      %v370 = vsel %vm368, %v263, 0
      %372 = vmatprep.subr.mxu0 0.0
      %373 = vmatpush1.msra.mxu0 %v260
      %374 = vmatprep.subr.mxu0 0.0
      %375 = vmatpush1.msra.mxu0 %v261
      %376 = vmatprep.subr.mxu0 0.0
      %377 = vmatpush1.msra.mxu0 %v262
      %378 = vmatprep.subr.mxu0 0.0
      %379 = vmatpush1.msra.mxu0 %v370
      %380 = vmatprep.subr.mxu0 0.0
      %381 = vmatpush1.msra.mxu0 0.0
      %382 = vmatprep.subr.mxu0 0.0
      %383 = vmatpush1.msra.mxu0 0.0
      %384 = vmatprep.subr.mxu0 0.0
      %385 = vmatpush1.msra.mxu0 0.0
      %386 = vmatprep.subr.mxu0 0.0
      %387 = vmatpush1.msra.mxu0 0.0
      %388 = vmatprep.subr.mxu0 0.0
      %389 = vmatpush1.msra.mxu0 0.0
      %390 = vmatprep.subr.mxu0 0.0
      %391 = vmatpush1.msra.mxu0 0.0
      %392 = vmatprep.subr.mxu0 0.0
      %393 = vmatpush1.msra.mxu0 0.0
      %394 = vmatprep.subr.mxu0 0.0
      %395 = vmatpush1.msra.mxu0 0.0
      %396 = vmatprep.subr.mxu0 0.0
      %397 = vmatpush1.msra.mxu0 0.0
      %398 = vmatprep.subr.mxu0 0.0
      %399 = vmatpush1.msra.mxu0 0.0
      %400 = vmatprep.subr.mxu0 0.0
      %401 = vmatpush1.msra.mxu0 0.0
      %402 = vmatprep.subr.mxu0 0.0
      %403 = vmatpush1.msra.mxu0 0.0
      %404 = vmatprep.subr.mxu0 0.0
      %405 = vmatpush1.msra.mxu0 0.0
      %406 = vmatprep.subr.mxu0 0.0
      %407 = vmatpush1.msra.mxu0 0.0
      %408 = vmatprep.subr.mxu0 0.0
      %409 = vmatpush1.msra.mxu0 0.0
      %410 = vmatprep.subr.mxu0 0.0
      %411 = vmatpush1.msra.mxu0 0.0
      %412 = vmatprep.subr.mxu0 0.0
      %413 = vmatpush1.msra.mxu0 0.0
      %414 = vmatprep.subr.mxu0 0.0
      %415 = vmatpush1.msra.mxu0 0.0
      %416 = vmatprep.subr.mxu0 0.0
      %417 = vmatpush1.msra.mxu0 0.0
      %418 = vmatprep.subr.mxu0 0.0
      %419 = vmatpush1.msra.mxu0 0.0
      %420 = vmatprep.subr.mxu0 0.0
      %421 = vmatpush1.msra.mxu0 0.0
      %422 = vmatprep.subr.mxu0 0.0
      %423 = vmatpush1.msra.mxu0 0.0
      %424 = vmatprep.subr.mxu0 0.0
      %425 = vmatpush1.msra.mxu0 0.0
      %426 = vmatprep.subr.mxu0 0.0
      %427 = vmatpush1.msra.mxu0 0.0
      %428 = vmatprep.subr.mxu0 0.0
      %429 = vmatpush1.msra.mxu0 0.0
      %430 = vmatprep.subr.mxu0 0.0
      %431 = vmatpush1.msra.mxu0 0.0
      %432 = vmatprep.subr.mxu0 0.0
      %433 = vmatpush1.msra.mxu0 0.0
      %434 = vmatprep.subr.mxu0 0.0
      %435 = vmatpush1.msra.mxu0 0.0
      %436 = vmatprep.mubr.f32.mxu0 0.0
      %437 = vmatmul.mubr.f32.gmra.mrb[0].mxu0 %v273
      %v438 = vpop.f32.mrb[0].mxu0
      %v439 = vadd.f32 %v269, %v438
      %v440 = vpop.f32.mrb[0].mxu0
      %441 = vmatprep.mubr.f32.mxu0 0.0
      %442 = vmatmul.mubr.f32.gmra.mrb[0].mxu0 %v276
      %v443 = vpop.f32.mrb[0].mxu0
      %v444 = vadd.f32 %v269, %v443
      %v445 = vpop.f32.mrb[0].mxu0
      %446 = vmatprep.mubr.f32.mxu0 0.0
      %447 = vmatmul.mubr.f32.gmra.mrb[0].mxu0 %v279
      %v448 = vpop.f32.mrb[0].mxu0
      %v449 = vadd.f32 %v269, %v448
      %v450 = vpop.f32.mrb[0].mxu0
      %451 = vmatprep.mubr.f32.mxu0 0.0
      %452 = vmatmul.mubr.f32.gmra.mrb[0].mxu0 %v282
      %v453 = vpop.f32.mrb[0].mxu0
      %v454 = vadd.f32 %v269, %v453
      %v455 = vpop.f32.mrb[0].mxu0
      %456 = vmatprep.mubr.f32.mxu0 0.0
      %457 = vmatmul.mubr.f32.gmra.mrb[0].mxu0 %v285
      %v458 = vpop.f32.mrb[0].mxu0
      %v459 = vadd.f32 %v269, %v458
      %v460 = vpop.f32.mrb[0].mxu0
      %461 = vmatprep.mubr.f32.mxu0 0.0
      %462 = vmatmul.mubr.f32.gmra.mrb[0].mxu0 %v288
      %v463 = vpop.f32.mrb[0].mxu0
      %v464 = vadd.f32 %v269, %v463
      %v465 = vpop.f32.mrb[0].mxu0
      %466 = vmatprep.mubr.f32.mxu0 0.0
      %467 = vmatmul.mubr.f32.gmra.mrb[0].mxu0 %v291
      %v468 = vpop.f32.mrb[0].mxu0
      %v469 = vadd.f32 %v269, %v468
      %v470 = vpop.f32.mrb[0].mxu0
      %471 = vmatprep.mubr.f32.mxu0 0.0
      %472 = vmatmul.mubr.f32.gmra.mrb[0].mxu0 %v294
      %v473 = vpop.f32.mrb[0].mxu0
      %v474 = vadd.f32 %v269, %v473
      %v475 = vpop.f32.mrb[0].mxu0
      %476 = vmatprep.mubr.f32.mxu0 0.0
      %477 = vmatmul.mubr.f32.gmra.mrb[0].mxu0 %v297
      %v478 = vpop.f32.mrb[0].mxu0
      %v479 = vadd.f32 %v269, %v478
      %v480 = vpop.f32.mrb[0].mxu0
      %481 = vmatprep.mubr.f32.mxu0 0.0
      %482 = vmatmul.mubr.f32.gmra.mrb[0].mxu0 %v300
      %v483 = vpop.f32.mrb[0].mxu0
      %v484 = vadd.f32 %v269, %v483
      %v485 = vpop.f32.mrb[0].mxu0
      %486 = vmatprep.mubr.f32.mxu0 0.0
      %487 = vmatmul.mubr.f32.gmra.mrb[0].mxu0 %v303
      %v488 = vpop.f32.mrb[0].mxu0
      %v489 = vadd.f32 %v269, %v488
      %v490 = vpop.f32.mrb[0].mxu0
      %491 = vmatprep.mubr.f32.mxu0 0.0
      %492 = vmatmul.mubr.f32.gmra.mrb[0].mxu0 %v306
      %v493 = vpop.f32.mrb[0].mxu0
      %v494 = vadd.f32 %v269, %v493
      %v495 = vpop.f32.mrb[0].mxu0
      %496 = vmatprep.mubr.f32.mxu0 0.0
      %497 = vmatmul.mubr.f32.gmra.mrb[0].mxu0 %v309
      %v498 = vpop.f32.mrb[0].mxu0
      %v499 = vadd.f32 %v269, %v498
      %v500 = vpop.f32.mrb[0].mxu0
      %501 = vmatprep.mubr.f32.mxu0 0.0
      %502 = vmatmul.mubr.f32.gmra.mrb[0].mxu0 %v312
      %v503 = vpop.f32.mrb[0].mxu0
      %v504 = vadd.f32 %v269, %v503
      %v505 = vpop.f32.mrb[0].mxu0
      %506 = vmatprep.mubr.f32.mxu0 0.0
      %507 = vmatmul.mubr.f32.gmra.mrb[0].mxu0 %v315
      %v508 = vpop.f32.mrb[0].mxu0
      %v509 = vadd.f32 %v269, %v508
      %v510 = vpop.f32.mrb[0].mxu0
      %511 = vmatprep.mubr.f32.mxu0 0.0
      %512 = vmatmul.mubr.f32.gmra.mrb[0].mxu0 %v318
      %v513 = vpop.f32.mrb[0].mxu0
      %v514 = vadd.f32 %v269, %v513
      %v515 = vpop.f32.mrb[0].mxu0
      %516 = vmatprep.mubr.f32.mxu0 0.0
      %517 = vmatmul.mubr.f32.gmra.mrb[0].mxu0 %v321
      %v518 = vpop.f32.mrb[0].mxu0
      %v519 = vadd.f32 %v269, %v518
      %v520 = vpop.f32.mrb[0].mxu0
      %521 = vmatprep.mubr.f32.mxu0 0.0
      %522 = vmatmul.mubr.f32.gmra.mrb[0].mxu0 %v324
      %v523 = vpop.f32.mrb[0].mxu0
      %v524 = vadd.f32 %v269, %v523
      %v525 = vpop.f32.mrb[0].mxu0
      %526 = vmatprep.mubr.f32.mxu0 0.0
      %527 = vmatmul.mubr.f32.gmra.mrb[0].mxu0 %v327
      %v528 = vpop.f32.mrb[0].mxu0
      %v529 = vadd.f32 %v269, %v528
      %v530 = vpop.f32.mrb[0].mxu0
      %531 = vmatprep.mubr.f32.mxu0 0.0
      %532 = vmatmul.mubr.f32.gmra.mrb[0].mxu0 %v330
      %v533 = vpop.f32.mrb[0].mxu0
      %v534 = vadd.f32 %v269, %v533
      %v535 = vpop.f32.mrb[0].mxu0
      %536 = vmatprep.mubr.f32.mxu0 0.0
      %537 = vmatmul.mubr.f32.gmra.mrb[0].mxu0 %v333
      %v538 = vpop.f32.mrb[0].mxu0
      %v539 = vadd.f32 %v269, %v538
      %v540 = vpop.f32.mrb[0].mxu0
      %541 = vmatprep.mubr.f32.mxu0 0.0
      %542 = vmatmul.mubr.f32.gmra.mrb[0].mxu0 %v336
      %v543 = vpop.f32.mrb[0].mxu0
      %v544 = vadd.f32 %v269, %v543
      %v545 = vpop.f32.mrb[0].mxu0
      %546 = vmatprep.mubr.f32.mxu0 0.0
      %547 = vmatmul.mubr.f32.gmra.mrb[0].mxu0 %v339
      %v548 = vpop.f32.mrb[0].mxu0
      %v549 = vadd.f32 %v269, %v548
      %v550 = vpop.f32.mrb[0].mxu0
      %551 = vmatprep.mubr.f32.mxu0 0.0
      %552 = vmatmul.mubr.f32.gmra.mrb[0].mxu0 %v342
      %v553 = vpop.f32.mrb[0].mxu0
      %v554 = vadd.f32 %v269, %v553
      %v555 = vpop.f32.mrb[0].mxu0
      %556 = vmatprep.mubr.f32.mxu0 0.0
      %557 = vmatmul.mubr.f32.gmra.mrb[0].mxu0 %v345
      %v558 = vpop.f32.mrb[0].mxu0
      %v559 = vadd.f32 %v269, %v558
      %v560 = vpop.f32.mrb[0].mxu0
      %561 = vmatprep.mubr.f32.mxu0 0.0
      %562 = vmatmul.mubr.f32.gmra.mrb[0].mxu0 %v348
      %v563 = vpop.f32.mrb[0].mxu0
      %v564 = vadd.f32 %v269, %v563
      %v565 = vpop.f32.mrb[0].mxu0
      %566 = vmatprep.mubr.f32.mxu0 0.0
      %567 = vmatmul.mubr.f32.gmra.mrb[0].mxu0 %v351
      %v568 = vpop.f32.mrb[0].mxu0
      %v569 = vadd.f32 %v269, %v568
      %v570 = vpop.f32.mrb[0].mxu0
      %571 = vmatprep.mubr.f32.mxu0 0.0
      %572 = vmatmul.mubr.f32.gmra.mrb[0].mxu0 %v354
      %v573 = vpop.f32.mrb[0].mxu0
      %v574 = vadd.f32 %v269, %v573
      %v575 = vpop.f32.mrb[0].mxu0
      %576 = vmatprep.mubr.f32.mxu0 0.0
      %577 = vmatmul.mubr.f32.gmra.mrb[0].mxu0 %v357
      %v578 = vpop.f32.mrb[0].mxu0
      %v579 = vadd.f32 %v269, %v578
      %v580 = vpop.f32.mrb[0].mxu0
      %581 = vmatprep.mubr.f32.mxu0 0.0
      %582 = vmatmul.mubr.f32.gmra.mrb[0].mxu0 %v360
      %v583 = vpop.f32.mrb[0].mxu0
      %v584 = vadd.f32 %v269, %v583
      %v585 = vpop.f32.mrb[0].mxu0
      %586 = vmatprep.mubr.f32.mxu0 0.0
      %587 = vmatmul.mubr.f32.gmra.mrb[0].mxu0 %v363
      %v588 = vpop.f32.mrb[0].mxu0
      %v589 = vadd.f32 %v269, %v588
      %v590 = vpop.f32.mrb[0].mxu0
      %591 = vmatprep.mubr.f32.mxu0 0.0
      %592 = vmatmul.mubr.f32.gmra.mrb[0].mxu0 %v366
      %v593 = vpop.f32.mrb[0].mxu0
      %v594 = vadd.f32 %v269, %v593
      %v595 = vpop.f32.mrb[0].mxu0
      %596 = vdwg.mxu0
      %v597 = vmax.f32 %v439, 0.0
      %v598 = vmax.f32 %v444, 0.0
      %v599 = vmax.f32 %v449, 0.0
      %v600 = vmax.f32 %v454, 0.0
      %v601 = vmax.f32 %v459, 0.0
      %v602 = vmax.f32 %v464, 0.0
      %v603 = vmax.f32 %v469, 0.0
      %v604 = vmax.f32 %v474, 0.0
      %v605 = vmax.f32 %v479, 0.0
      %v606 = vmax.f32 %v484, 0.0
      %v607 = vmax.f32 %v489, 0.0
      %v608 = vmax.f32 %v494, 0.0
      %v609 = vmax.f32 %v499, 0.0
      %v610 = vmax.f32 %v504, 0.0
      %v611 = vmax.f32 %v509, 0.0
      %v612 = vmax.f32 %v514, 0.0
      %v613 = vmax.f32 %v519, 0.0
      %v614 = vmax.f32 %v524, 0.0
      %v615 = vmax.f32 %v529, 0.0
      %v616 = vmax.f32 %v534, 0.0
      %v617 = vmax.f32 %v539, 0.0
      %v618 = vmax.f32 %v544, 0.0
      %v619 = vmax.f32 %v549, 0.0
      %v620 = vmax.f32 %v554, 0.0
      %v621 = vmax.f32 %v559, 0.0
      %v622 = vmax.f32 %v564, 0.0
      %v623 = vmax.f32 %v569, 0.0
      %v624 = vmax.f32 %v574, 0.0
      %v625 = vmax.f32 %v579, 0.0
      %v626 = vmax.f32 %v584, 0.0
      %v627 = vmax.f32 %v589, 0.0
      %v628 = vmax.f32 %v594, 0.0
      %v629 = vld [vmem:[%s3] sm:$0x1]
      %v631 = vlaneseq
      %v632 = vshrl.u32 %v631, 7
      %v633 = vsub.s32 0, %v632
      %v634 = vrot.slane %v629, %v633
      %v636 = vmul.f32 %v597, %v634
      %v637 = vmul.f32 %v598, %v634
      %v638 = vmul.f32 %v599, %v634
      %v639 = vmul.f32 %v600, %v634
      %v640 = vmul.f32 %v601, %v634
      %v641 = vmul.f32 %v602, %v634
      %v642 = vmul.f32 %v603, %v634
      %v643 = vmul.f32 %v604, %v634
      %v644 = vmul.f32 %v605, %v634
      %v645 = vmul.f32 %v606, %v634
      %v646 = vmul.f32 %v607, %v634
      %v647 = vmul.f32 %v608, %v634
      %v648 = vmul.f32 %v609, %v634
      %v649 = vmul.f32 %v610, %v634
      %v650 = vmul.f32 %v611, %v634
      %v651 = vmul.f32 %v612, %v634
      %v652 = vmul.f32 %v613, %v634
      %v653 = vmul.f32 %v614, %v634
      %v654 = vmul.f32 %v615, %v634
      %v655 = vmul.f32 %v616, %v634
      %v656 = vmul.f32 %v617, %v634
      %v657 = vmul.f32 %v618, %v634
      %v658 = vmul.f32 %v619, %v634
      %v659 = vmul.f32 %v620, %v634
      %v660 = vmul.f32 %v621, %v634
      %v661 = vmul.f32 %v622, %v634
      %v662 = vmul.f32 %v623, %v634
      %v663 = vmul.f32 %v624, %v634
      %v664 = vmul.f32 %v625, %v634
      %v665 = vmul.f32 %v626, %v634
      %v666 = vmul.f32 %v627, %v634
      %v667 = vmul.f32 %v628, %v634
      %v668 = vld [vmem:[%s4] sm:$0x1]
      %v670 = vlaneseq
      %v671 = vshrl.u32 %v670, 7
      %v672 = vsub.s32 0, %v671
      %v673 = vrot.slane %v668, %v672
      %v675 = vadd.f32 %v636, %v673
      %v676 = vadd.f32 %v637, %v673
      %v677 = vadd.f32 %v638, %v673
      %v678 = vadd.f32 %v639, %v673
      %v679 = vadd.f32 %v640, %v673
      %v680 = vadd.f32 %v641, %v673
      %v681 = vadd.f32 %v642, %v673
      %v682 = vadd.f32 %v643, %v673
      %v683 = vadd.f32 %v644, %v673
      %v684 = vadd.f32 %v645, %v673
      %v685 = vadd.f32 %v646, %v673
      %v686 = vadd.f32 %v647, %v673
      %v687 = vadd.f32 %v648, %v673
      %v688 = vadd.f32 %v649, %v673
      %v689 = vadd.f32 %v650, %v673
      %v690 = vadd.f32 %v651, %v673
      %v691 = vadd.f32 %v652, %v673
      %v692 = vadd.f32 %v653, %v673
      %v693 = vadd.f32 %v654, %v673
      %v694 = vadd.f32 %v655, %v673
      %v695 = vadd.f32 %v656, %v673
      %v696 = vadd.f32 %v657, %v673
      %v697 = vadd.f32 %v658, %v673
      %v698 = vadd.f32 %v659, %v673
      %v699 = vadd.f32 %v660, %v673
      %v700 = vadd.f32 %v661, %v673
      %v701 = vadd.f32 %v662, %v673
      %v702 = vadd.f32 %v663, %v673
      %v703 = vadd.f32 %v664, %v673
      %v704 = vadd.f32 %v665, %v673
      %v705 = vadd.f32 %v666, %v673
      %v706 = vadd.f32 %v667, %v673
      %vm707 = vcmask 64512
      %708 = vst.msk [vmem:[%s226] sm:$0xff] %vm707, %v675
      %709 = vst.msk [vmem:[%s226 + $0x8] sm:$0xff] %vm707, %v676
      %710 = vst.msk [vmem:[%s226 + $0x10] sm:$0xff] %vm707, %v677
      %711 = vst.msk [vmem:[%s226 + $0x18] sm:$0xff] %vm707, %v678
      %712 = vst.msk [vmem:[%s226 + $0x20] sm:$0xff] %vm707, %v679
      %713 = vst.msk [vmem:[%s226 + $0x28] sm:$0xff] %vm707, %v680
      %714 = vst.msk [vmem:[%s226 + $0x30] sm:$0xff] %vm707, %v681
      %715 = vst.msk [vmem:[%s226 + $0x38] sm:$0xff] %vm707, %v682
      %716 = vst.msk [vmem:[%s226 + $0x40] sm:$0xff] %vm707, %v683
      %717 = vst.msk [vmem:[%s226 + $0x48] sm:$0xff] %vm707, %v684
      %718 = vst.msk [vmem:[%s226 + $0x50] sm:$0xff] %vm707, %v685
      %719 = vst.msk [vmem:[%s226 + $0x58] sm:$0xff] %vm707, %v686
      %720 = vst.msk [vmem:[%s226 + $0x60] sm:$0xff] %vm707, %v687
      %721 = vst.msk [vmem:[%s226 + $0x68] sm:$0xff] %vm707, %v688
      %722 = vst.msk [vmem:[%s226 + $0x70] sm:$0xff] %vm707, %v689
      %723 = vst.msk [vmem:[%s226 + $0x78] sm:$0xff] %vm707, %v690
      %724 = vst.msk [vmem:[%s226 + $0x80] sm:$0xff] %vm707, %v691
      %725 = vst.msk [vmem:[%s226 + $0x88] sm:$0xff] %vm707, %v692
      %726 = vst.msk [vmem:[%s226 + $0x90] sm:$0xff] %vm707, %v693
      %727 = vst.msk [vmem:[%s226 + $0x98] sm:$0xff] %vm707, %v694
      %728 = vst.msk [vmem:[%s226 + $0xa0] sm:$0xff] %vm707, %v695
      %729 = vst.msk [vmem:[%s226 + $0xa8] sm:$0xff] %vm707, %v696
      %730 = vst.msk [vmem:[%s226 + $0xb0] sm:$0xff] %vm707, %v697
      %731 = vst.msk [vmem:[%s226 + $0xb8] sm:$0xff] %vm707, %v698
      %732 = vst.msk [vmem:[%s226 + $0xc0] sm:$0xff] %vm707, %v699
      %733 = vst.msk [vmem:[%s226 + $0xc8] sm:$0xff] %vm707, %v700
      %734 = vst.msk [vmem:[%s226 + $0xd0] sm:$0xff] %vm707, %v701
      %735 = vst.msk [vmem:[%s226 + $0xd8] sm:$0xff] %vm707, %v702
      %736 = vst.msk [vmem:[%s226 + $0xe0] sm:$0xff] %vm707, %v703
      %737 = vst.msk [vmem:[%s226 + $0xe8] sm:$0xff] %vm707, %v704
      %738 = vst.msk [vmem:[%s226 + $0xf0] sm:$0xff] %vm707, %v705
      %739 = vst.msk [vmem:[%s226 + $0xf8] sm:$0xff] %vm707, %v706
      %s740 = smul.u32 32, %s16
      %p741 = scmp.lt.s32.totalorder %s740, 255
      %s742 = scalar_select %p741, %s740, 255
      %s743 = smul.addr %s742, 8
      %s744 = scalar_lea.vmem %s5, %s743
      // Predicated region
      $region41: #{feature_extractor_forward.8} parent=39 // pred_check
        %p745 = pneg %p144
      $region42: #{feature_extractor_forward.8} parent=39 // pred_check_branch
        %747 = sbr.rel (%p745) target = $region44
      $region43: #{feature_extractor_forward.8} parent=39 // pred_region
        %s748 = smul.u32 32, %s16
      $region44: #{feature_extractor_forward.8} parent=39 // pred_fallthru
        _
    $region40: #{feature_extractor_forward.8} parent=5 // pred_fallthru
      _
    %p749 = scmp.le.s32.totalorder 2, %s11
    // Predicated region
    $region45: #{feature_extractor_forward.8} parent=5 // pred_check
      %p750 = pneg %p749
    $region46: #{feature_extractor_forward.8} parent=5 // pred_check_branch
      %752 = sbr.rel (%p750) target = $region48
    $region47: #{feature_extractor_forward.8} parent=5 // pred_region
      %s753 = ssub.s32 %s11, 2
      // Predicated region
      $region49: #{feature_extractor_forward.8} parent=47 // pred_check
        %p754 = pneg %p150
      $region50: #{feature_extractor_forward.8} parent=47 // pred_check_branch
        %756 = sbr.rel (%p754) target = $region52
      $region51: #{feature_extractor_forward.8} parent=47 // pred_region
        %s757 = smul.u32 32, %s17
        %p758 = scmp.lt.s32.totalorder %s757, 255
        %s759 = scalar_select %p758, %s757, 255
        %s760 = smul.addr %s759, 8
        %s761 = scalar_lea.vmem %s5, %s760
      $region52: #{feature_extractor_forward.8} parent=47 // pred_fallthru
        _
    $region48: #{feature_extractor_forward.8} parent=5 // pred_fallthru
      _
  $region6: #{feature_extractor_forward.8} parent=0 // loop_footer
    %s15 = sadd.s32 1, %s11
  $region7: #{feature_extractor_forward.8} parent=0 // loop_footer_branch
    %10 = sbr.rel target = $region3
  $region8: #{feature_extractor_forward.8} parent=0 // loop_exit
    _

// kernel: feature_extractor_forward.9
$region0: #{feature_extractor_forward.9}
  #allocation0 [shape = 'u32[]', space=smem, size = 0x4, offset = 0x4, fixed_abs, tag = 'smem constant byte address 0x4 - core index']
  #allocation1 [shape = 'u32[144,128]{1,0:T(1,128)}', space=vmem, size = 0x12000, scoped, tag = 'internal scratch']
  %s0 = inlined_call_operand.vmem [shape: f32[2048,72], index: 0, kind: input, shape index: {}]
  %s1 = inlined_call_operand.vmem [shape: f32[72,16], index: 1, kind: input, shape index: {}]
  %s2 = inlined_call_operand.vmem [shape: f32[1,16], index: 2, kind: input, shape index: {}]
  %s3 = inlined_call_operand.vmem [shape: f32[1,16], index: 3, kind: input, shape index: {}]
  %s4 = inlined_call_operand.vmem [shape: f32[1,16], index: 4, kind: input, shape index: {}]
  %s5 = inlined_call_operand.vmem [shape: f32[2048,16], index: 5, kind: output, shape index: {}]
  %s6 = sld [smem:[#allocation0]]
  $region53: #{feature_extractor_forward.9} parent=0
    _
  %s8 = ssub.s32 1, %s6
  %s9 = scalar_select 0, %s8, %s6
  loop: start=0, step=1, limit=10
  $region2: #{feature_extractor_forward.9} parent=0 // loop_pre_header
    _
  $region3: #{feature_extractor_forward.9} parent=0 // loop_header
    %s11 = sphi 0, %s15
    %p12 = scmp.ge.s32.totalorder %s11, 10
    %s21 = sphi 0, %s23
    %s24 = sphi 0, %s21
    %s25 = sphi 0, %s24
    %s41 = sphi 0, %s25
    %s45 = sphi 0, %s45
    %s47 = sphi 0, %s45
    %s48 = sphi 0, %s47
    %s62 = sphi 0, %s48
    %s66 = sphi 0, %s66
    %s68 = sphi 0, %s66
    %s69 = sphi 0, %s68
    %s83 = sphi 0, %s69
    %s87 = sphi 0, %s87
    %s89 = sphi 0, %s87
    %s90 = sphi 0, %s89
    %s104 = sphi 0, %s90
    %s108 = sphi 0, %s108
    %s110 = sphi 0, %s108
    %s111 = sphi 0, %s110
    %s125 = sphi 0, %s111
    %s131 = sphi 0, %s133
    %s134 = sphi 0, %s131
    %s135 = sphi 0, %s134
    %s151 = sphi 0, %s135
  $region4: #{feature_extractor_forward.9} parent=0 // loop_header_branch
    %14 = sbr.rel (%p12) target = $region8
  $region5: #{feature_extractor_forward.9} parent=0 // loop_body
    %s16 = ssub.s32 %s11, 1
    %s17 = ssub.s32 %s11, 2
    %s18 = sadd.s32 %s11, 1
    %s19 = ssub.s32 %s11, %s18
    %p20 = scmp.eq.s32.totalorder %s19, 0
    %s22 = sadd.s32 %s21, 1
    %s23 = scalar_select %p20, %s21, %s22
    %p26 = pneg %p20
    %p27 = scmp.eq.s32.totalorder %s11, 7
    %p28 = por %p26, %p27
    %p29 = scmp.ne.s32.totalorder %s21, %s24
    %p30 = scmp.eq.s32.totalorder %s11, 0
    %p31 = por %p29, %p30
    %p32 = scmp.ne.s32.totalorder %s21, %s24
    %p33 = scmp.eq.s32.totalorder %s16, 7
    %p34 = por %p32, %p33
    %p35 = scmp.ne.s32.totalorder %s24, %s25
    %p36 = scmp.eq.s32.totalorder %s16, 0
    %p37 = por %p35, %p36
    %p38 = scmp.ne.s32.totalorder %s24, %s25
    %p39 = scmp.eq.s32.totalorder %s17, 7
    %p40 = por %p38, %p39
    %p42 = scmp.ne.s32.totalorder %s25, %s41
    %p43 = scmp.eq.s32.totalorder %s17, 0
    %p44 = por %p42, %p43
    %s46 = sadd.s32 %s45, 1
    %p49 = scmp.eq.s32.totalorder %s11, 7
    %p50 = scmp.ne.s32.totalorder %s45, %s47
    %p51 = scmp.eq.s32.totalorder %s11, 0
    %p52 = por %p50, %p51
    %p53 = scmp.ne.s32.totalorder %s45, %s47
    %p54 = scmp.eq.s32.totalorder %s16, 7
    %p55 = por %p53, %p54
    %p56 = scmp.ne.s32.totalorder %s47, %s48
    %p57 = scmp.eq.s32.totalorder %s16, 0
    %p58 = por %p56, %p57
    %p59 = scmp.ne.s32.totalorder %s47, %s48
    %p60 = scmp.eq.s32.totalorder %s17, 7
    %p61 = por %p59, %p60
    %p63 = scmp.ne.s32.totalorder %s48, %s62
    %p64 = scmp.eq.s32.totalorder %s17, 0
    %p65 = por %p63, %p64
    %s67 = sadd.s32 %s66, 1
    %p70 = scmp.eq.s32.totalorder %s11, 7
    %p71 = scmp.ne.s32.totalorder %s66, %s68
    %p72 = scmp.eq.s32.totalorder %s11, 0
    %p73 = por %p71, %p72
    %p74 = scmp.ne.s32.totalorder %s66, %s68
    %p75 = scmp.eq.s32.totalorder %s16, 7
    %p76 = por %p74, %p75
    %p77 = scmp.ne.s32.totalorder %s68, %s69
    %p78 = scmp.eq.s32.totalorder %s16, 0
    %p79 = por %p77, %p78
    %p80 = scmp.ne.s32.totalorder %s68, %s69
    %p81 = scmp.eq.s32.totalorder %s17, 7
    %p82 = por %p80, %p81
    %p84 = scmp.ne.s32.totalorder %s69, %s83
    %p85 = scmp.eq.s32.totalorder %s17, 0
    %p86 = por %p84, %p85
    %s88 = sadd.s32 %s87, 1
    %p91 = scmp.eq.s32.totalorder %s11, 7
    %p92 = scmp.ne.s32.totalorder %s87, %s89
    %p93 = scmp.eq.s32.totalorder %s11, 0
    %p94 = por %p92, %p93
    %p95 = scmp.ne.s32.totalorder %s87, %s89
    %p96 = scmp.eq.s32.totalorder %s16, 7
    %p97 = por %p95, %p96
    %p98 = scmp.ne.s32.totalorder %s89, %s90
    %p99 = scmp.eq.s32.totalorder %s16, 0
    %p100 = por %p98, %p99
    %p101 = scmp.ne.s32.totalorder %s89, %s90
    %p102 = scmp.eq.s32.totalorder %s17, 7
    %p103 = por %p101, %p102
    %p105 = scmp.ne.s32.totalorder %s90, %s104
    %p106 = scmp.eq.s32.totalorder %s17, 0
    %p107 = por %p105, %p106
    %s109 = sadd.s32 %s108, 1
    %p112 = scmp.eq.s32.totalorder %s11, 7
    %p113 = scmp.ne.s32.totalorder %s108, %s110
    %p114 = scmp.eq.s32.totalorder %s11, 0
    %p115 = por %p113, %p114
    %p116 = scmp.ne.s32.totalorder %s108, %s110
    %p117 = scmp.eq.s32.totalorder %s16, 7
    %p118 = por %p116, %p117
    %p119 = scmp.ne.s32.totalorder %s110, %s111
    %p120 = scmp.eq.s32.totalorder %s16, 0
    %p121 = por %p119, %p120
    %p122 = scmp.ne.s32.totalorder %s110, %s111
    %p123 = scmp.eq.s32.totalorder %s17, 7
    %p124 = por %p122, %p123
    %p126 = scmp.ne.s32.totalorder %s111, %s125
    %p127 = scmp.eq.s32.totalorder %s17, 0
    %p128 = por %p126, %p127
    %s129 = ssub.s32 %s11, %s18
    %p130 = scmp.eq.s32.totalorder %s129, 0
    %s132 = sadd.s32 %s131, 1
    %s133 = scalar_select %p130, %s131, %s132
    %p136 = pneg %p130
    %p137 = scmp.eq.s32.totalorder %s11, 7
    %p138 = por %p136, %p137
    %p139 = scmp.ne.s32.totalorder %s131, %s134
    %p140 = scmp.eq.s32.totalorder %s11, 0
    %p141 = por %p139, %p140
    %p142 = scmp.ne.s32.totalorder %s131, %s134
    %p143 = scmp.eq.s32.totalorder %s16, 7
    %p144 = por %p142, %p143
    %p145 = scmp.ne.s32.totalorder %s134, %s135
    %p146 = scmp.eq.s32.totalorder %s16, 0
    %p147 = por %p145, %p146
    %p148 = scmp.ne.s32.totalorder %s134, %s135
    %p149 = scmp.eq.s32.totalorder %s17, 7
    %p150 = por %p148, %p149
    %p152 = scmp.ne.s32.totalorder %s135, %s151
    %p153 = scmp.eq.s32.totalorder %s17, 0
    %p154 = por %p152, %p153
    %p155 = scmp.le.s32.totalorder 1, %s11
    %p156 = scmp.lt.s32.totalorder %s11, 9
    %p157 = pnand %p155, %p156
    %p158 = pneg %p157
    // Predicated region
    $region9: #{feature_extractor_forward.9} parent=5 // pred_check
      _
    $region10: #{feature_extractor_forward.9} parent=5 // pred_check_branch
      %160 = sbr.rel (%p157) target = $region12
    $region11: #{feature_extractor_forward.9} parent=5 // pred_region
      %s161 = ssub.s32 %s11, 1
      // Predicated region
      $region13: #{feature_extractor_forward.9} parent=11 // pred_check
        %p162 = pneg %p58
      $region14: #{feature_extractor_forward.9} parent=11 // pred_check_branch
        %164 = sbr.rel (%p162) target = $region16
      $region15: #{feature_extractor_forward.9} parent=11 // pred_region
        _
      $region16: #{feature_extractor_forward.9} parent=11 // pred_fallthru
        _
      // Predicated region
      $region17: #{feature_extractor_forward.9} parent=11 // pred_check
        %p165 = pneg %p79
      $region18: #{feature_extractor_forward.9} parent=11 // pred_check_branch
        %167 = sbr.rel (%p165) target = $region20
      $region19: #{feature_extractor_forward.9} parent=11 // pred_region
        _
      $region20: #{feature_extractor_forward.9} parent=11 // pred_fallthru
        _
      // Predicated region
      $region21: #{feature_extractor_forward.9} parent=11 // pred_check
        %p168 = pneg %p100
      $region22: #{feature_extractor_forward.9} parent=11 // pred_check_branch
        %170 = sbr.rel (%p168) target = $region24
      $region23: #{feature_extractor_forward.9} parent=11 // pred_region
        _
      $region24: #{feature_extractor_forward.9} parent=11 // pred_fallthru
        _
      // Predicated region
      $region25: #{feature_extractor_forward.9} parent=11 // pred_check
        %p171 = pneg %p121
      $region26: #{feature_extractor_forward.9} parent=11 // pred_check_branch
        %173 = sbr.rel (%p171) target = $region28
      $region27: #{feature_extractor_forward.9} parent=11 // pred_region
        _
      $region28: #{feature_extractor_forward.9} parent=11 // pred_fallthru
        _
    $region12: #{feature_extractor_forward.9} parent=5 // pred_fallthru
      _
    %p174 = scmp.lt.s32.totalorder %s11, 8
    // Predicated region
    $region29: #{feature_extractor_forward.9} parent=5 // pred_check
      %p175 = pneg %p174
    $region30: #{feature_extractor_forward.9} parent=5 // pred_check_branch
      %177 = sbr.rel (%p175) target = $region32
    $region31: #{feature_extractor_forward.9} parent=5 // pred_region
      // Predicated region
      $region33: #{feature_extractor_forward.9} parent=31 // pred_check
        %p178 = pneg %p31
      $region34: #{feature_extractor_forward.9} parent=31 // pred_check_branch
        %180 = sbr.rel (%p178) target = $region36
      $region35: #{feature_extractor_forward.9} parent=31 // pred_region
        %s181 = smul.u32 32, %s11
        %p182 = scmp.lt.s32.totalorder %s181, 255
        %s183 = scalar_select %p182, %s181, 255
        %s184 = smul.addr %s183, 8
        %s185 = scalar_lea.vmem %s0, %s184
        %s186 = smul.u32 32, %s11
      $region36: #{feature_extractor_forward.9} parent=31 // pred_fallthru
        _
    $region32: #{feature_extractor_forward.9} parent=5 // pred_fallthru
      _
    %p187 = scmp.le.s32.totalorder 1, %s11
    %p188 = scmp.lt.s32.totalorder %s11, 9
    %p189 = pnand %p187, %p188
    %p190 = pneg %p189
    // Predicated region
    $region37: #{feature_extractor_forward.9} parent=5 // pred_check
      _
    $region38: #{feature_extractor_forward.9} parent=5 // pred_check_branch
      %192 = sbr.rel (%p189) target = $region40
    $region39: #{feature_extractor_forward.9} parent=5 // pred_region
      %s193 = ssub.s32 %s11, 1
      %s194 = smul.u32 32, %s16
      %p195 = scmp.lt.s32.totalorder %s194, 255
      %s196 = scalar_select %p195, %s194, 255
      %s197 = smul.addr %s196, 8
      %s198 = scalar_lea.vmem %s0, %s197
      %p199 = pneg %p37
      %p200 = pneg %p34
      %p201 = pneg %p58
      %p202 = pneg %p55
      %p203 = pneg %p79
      %p204 = pneg %p76
      %p205 = pneg %p100
      %p206 = pneg %p97
      %p207 = pneg %p121
      %p208 = pneg %p118
      %p209 = pneg %p147
      %p210 = pneg %p144
      %s211 = smul.u32 32, %s16
      %p212 = scmp.lt.s32.totalorder %s211, 255
      %s213 = scalar_select %p212, %s211, 255
      %s214 = smul.addr %s213, 8
      %s215 = scalar_lea.vmem %s5, %s214
      %s216 = smul.u32 32, %s16
      %p217 = scmp.lt.s32.totalorder %s216, 255
      %s218 = scalar_select %p217, %s216, 255
      %s219 = smul.addr %s218, 8
      %s220 = scalar_lea.vmem %s0, %s219
      %s221 = smul.u32 32, %s16
      %s222 = smul.u32 32, %s16
      %p223 = scmp.lt.s32.totalorder %s222, 255
      %s224 = scalar_select %p223, %s222, 255
      %s225 = smul.addr %s224, 8
      %s226 = scalar_lea.vmem %s5, %s225
      %s227 = smul.u32 32, %s16
      %v228 = vld [vmem:[%s220] sm:$0xff]
      %v229 = vld [vmem:[%s220 + $0x8] sm:$0xff]
      %v230 = vld [vmem:[%s220 + $0x10] sm:$0xff]
      %v231 = vld [vmem:[%s220 + $0x18] sm:$0xff]
      %v232 = vld [vmem:[%s220 + $0x20] sm:$0xff]
      %v233 = vld [vmem:[%s220 + $0x28] sm:$0xff]
      %v234 = vld [vmem:[%s220 + $0x30] sm:$0xff]
      %v235 = vld [vmem:[%s220 + $0x38] sm:$0xff]
      %v236 = vld [vmem:[%s220 + $0x40] sm:$0xff]
      %v237 = vld [vmem:[%s220 + $0x48] sm:$0xff]
      %v238 = vld [vmem:[%s220 + $0x50] sm:$0xff]
      %v239 = vld [vmem:[%s220 + $0x58] sm:$0xff]
      %v240 = vld [vmem:[%s220 + $0x60] sm:$0xff]
      %v241 = vld [vmem:[%s220 + $0x68] sm:$0xff]
      %v242 = vld [vmem:[%s220 + $0x70] sm:$0xff]
      %v243 = vld [vmem:[%s220 + $0x78] sm:$0xff]
      %v244 = vld [vmem:[%s220 + $0x80] sm:$0xff]
      %v245 = vld [vmem:[%s220 + $0x88] sm:$0xff]
      %v246 = vld [vmem:[%s220 + $0x90] sm:$0xff]
      %v247 = vld [vmem:[%s220 + $0x98] sm:$0xff]
      %v248 = vld [vmem:[%s220 + $0xa0] sm:$0xff]
      %v249 = vld [vmem:[%s220 + $0xa8] sm:$0xff]
      %v250 = vld [vmem:[%s220 + $0xb0] sm:$0xff]
      %v251 = vld [vmem:[%s220 + $0xb8] sm:$0xff]
      %v252 = vld [vmem:[%s220 + $0xc0] sm:$0xff]
      %v253 = vld [vmem:[%s220 + $0xc8] sm:$0xff]
      %v254 = vld [vmem:[%s220 + $0xd0] sm:$0xff]
      %v255 = vld [vmem:[%s220 + $0xd8] sm:$0xff]
      %v256 = vld [vmem:[%s220 + $0xe0] sm:$0xff]
      %v257 = vld [vmem:[%s220 + $0xe8] sm:$0xff]
      %v258 = vld [vmem:[%s220 + $0xf0] sm:$0xff]
      %v259 = vld [vmem:[%s220 + $0xf8] sm:$0xff]
      %v260 = vld [vmem:[%s1] sm:$0xff]
      %v261 = vld [vmem:[%s1 + $0x8] sm:$0xff]
      %v262 = vld [vmem:[%s1 + $0x10] sm:$0xff]
      %v263 = vld [vmem:[%s1 + $0x18] sm:$0xff]
      %v264 = vld [vmem:[%s1 + $0x20] sm:$0xff]
      %v265 = vld [vmem:[%s1 + $0x28] sm:$0xff]
      %v266 = vld [vmem:[%s1 + $0x30] sm:$0xff]
      %v267 = vld [vmem:[%s1 + $0x38] sm:$0xff]
      %v268 = vld [vmem:[%s1 + $0x40] sm:$0xff]
      %v269 = vld [vmem:[%s2] sm:$0x1]
      %v271 = vlaneseq
      %v272 = vshrl.u32 %v271, 7
      %v273 = vsub.s32 0, %v272
      %v274 = vrot.slane %v269, %v273
      %vm276 = vcmask 588800
      %v278 = vsel %vm276, %v228, 0
      %v281 = vsel %vm276, %v229, 0
      %v284 = vsel %vm276, %v230, 0
      %v287 = vsel %vm276, %v231, 0
      %v290 = vsel %vm276, %v232, 0
      %v293 = vsel %vm276, %v233, 0
      %v296 = vsel %vm276, %v234, 0
      %v299 = vsel %vm276, %v235, 0
      %v302 = vsel %vm276, %v236, 0
      %v305 = vsel %vm276, %v237, 0
      %v308 = vsel %vm276, %v238, 0
      %v311 = vsel %vm276, %v239, 0
      %v314 = vsel %vm276, %v240, 0
      %v317 = vsel %vm276, %v241, 0
      %v320 = vsel %vm276, %v242, 0
      %v323 = vsel %vm276, %v243, 0
      %v326 = vsel %vm276, %v244, 0
      %v329 = vsel %vm276, %v245, 0
      %v332 = vsel %vm276, %v246, 0
      %v335 = vsel %vm276, %v247, 0
      %v338 = vsel %vm276, %v248, 0
      %v341 = vsel %vm276, %v249, 0
      %v344 = vsel %vm276, %v250, 0
      %v347 = vsel %vm276, %v251, 0
      %v350 = vsel %vm276, %v252, 0
      %v353 = vsel %vm276, %v253, 0
      %v356 = vsel %vm276, %v254, 0
      %v359 = vsel %vm276, %v255, 0
      %v362 = vsel %vm276, %v256, 0
      %v365 = vsel %vm276, %v257, 0
      %v368 = vsel %vm276, %v258, 0
      %v371 = vsel %vm276, %v259, 0
      %373 = vmatprep.subr.mxu0 0.0
      %374 = vmatpush1.msra.mxu0 %v260
      %375 = vmatprep.subr.mxu0 0.0
      %376 = vmatpush1.msra.mxu0 %v261
      %377 = vmatprep.subr.mxu0 0.0
      %378 = vmatpush1.msra.mxu0 %v262
      %379 = vmatprep.subr.mxu0 0.0
      %380 = vmatpush1.msra.mxu0 %v263
      %381 = vmatprep.subr.mxu0 0.0
      %382 = vmatpush1.msra.mxu0 %v264
      %383 = vmatprep.subr.mxu0 0.0
      %384 = vmatpush1.msra.mxu0 %v265
      %385 = vmatprep.subr.mxu0 0.0
      %386 = vmatpush1.msra.mxu0 %v266
      %387 = vmatprep.subr.mxu0 0.0
      %388 = vmatpush1.msra.mxu0 %v267
      %389 = vmatprep.subr.mxu0 0.0
      %390 = vmatpush1.msra.mxu0 %v268
      %391 = vmatprep.subr.mxu0 0.0
      %392 = vmatpush1.msra.mxu0 0.0
      %393 = vmatprep.subr.mxu0 0.0
      %394 = vmatpush1.msra.mxu0 0.0
      %395 = vmatprep.subr.mxu0 0.0
      %396 = vmatpush1.msra.mxu0 0.0
      %397 = vmatprep.subr.mxu0 0.0
      %398 = vmatpush1.msra.mxu0 0.0
      %399 = vmatprep.subr.mxu0 0.0
      %400 = vmatpush1.msra.mxu0 0.0
      %401 = vmatprep.subr.mxu0 0.0
      %402 = vmatpush1.msra.mxu0 0.0
      %403 = vmatprep.subr.mxu0 0.0
      %404 = vmatpush1.msra.mxu0 0.0
      %405 = vmatprep.subr.mxu0 0.0
      %406 = vmatpush1.msra.mxu0 0.0
      %407 = vmatprep.subr.mxu0 0.0
      %408 = vmatpush1.msra.mxu0 0.0
      %409 = vmatprep.subr.mxu0 0.0
      %410 = vmatpush1.msra.mxu0 0.0
      %411 = vmatprep.subr.mxu0 0.0
      %412 = vmatpush1.msra.mxu0 0.0
      %413 = vmatprep.subr.mxu0 0.0
      %414 = vmatpush1.msra.mxu0 0.0
      %415 = vmatprep.subr.mxu0 0.0
      %416 = vmatpush1.msra.mxu0 0.0
      %417 = vmatprep.subr.mxu0 0.0
      %418 = vmatpush1.msra.mxu0 0.0
      %419 = vmatprep.subr.mxu0 0.0
      %420 = vmatpush1.msra.mxu0 0.0
      %421 = vmatprep.subr.mxu0 0.0
      %422 = vmatpush1.msra.mxu0 0.0
      %423 = vmatprep.subr.mxu0 0.0
      %424 = vmatpush1.msra.mxu0 0.0
      %425 = vmatprep.subr.mxu0 0.0
      %426 = vmatpush1.msra.mxu0 0.0
      %427 = vmatprep.subr.mxu0 0.0
      %428 = vmatpush1.msra.mxu0 0.0
      %429 = vmatprep.subr.mxu0 0.0
      %430 = vmatpush1.msra.mxu0 0.0
      %431 = vmatprep.subr.mxu0 0.0
      %432 = vmatpush1.msra.mxu0 0.0
      %433 = vmatprep.subr.mxu0 0.0
      %434 = vmatpush1.msra.mxu0 0.0
      %435 = vmatprep.subr.mxu0 0.0
      %436 = vmatpush1.msra.mxu0 0.0
      %437 = vmatprep.mubr.f32.mxu0 0.0
      %438 = vmatmul.mubr.f32.gmra.mrb[0].mxu0 %v278
      %v439 = vpop.f32.mrb[0].mxu0
      %v440 = vadd.f32 %v274, %v439
      %v441 = vpop.f32.mrb[0].mxu0
      %442 = vmatprep.mubr.f32.mxu0 0.0
      %443 = vmatmul.mubr.f32.gmra.mrb[0].mxu0 %v281
      %v444 = vpop.f32.mrb[0].mxu0
      %v445 = vadd.f32 %v274, %v444
      %v446 = vpop.f32.mrb[0].mxu0
      %447 = vmatprep.mubr.f32.mxu0 0.0
      %448 = vmatmul.mubr.f32.gmra.mrb[0].mxu0 %v284
      %v449 = vpop.f32.mrb[0].mxu0
      %v450 = vadd.f32 %v274, %v449
      %v451 = vpop.f32.mrb[0].mxu0
      %452 = vmatprep.mubr.f32.mxu0 0.0
      %453 = vmatmul.mubr.f32.gmra.mrb[0].mxu0 %v287
      %v454 = vpop.f32.mrb[0].mxu0
      %v455 = vadd.f32 %v274, %v454
      %v456 = vpop.f32.mrb[0].mxu0
      %457 = vmatprep.mubr.f32.mxu0 0.0
      %458 = vmatmul.mubr.f32.gmra.mrb[0].mxu0 %v290
      %v459 = vpop.f32.mrb[0].mxu0
      %v460 = vadd.f32 %v274, %v459
      %v461 = vpop.f32.mrb[0].mxu0
      %462 = vmatprep.mubr.f32.mxu0 0.0
      %463 = vmatmul.mubr.f32.gmra.mrb[0].mxu0 %v293
      %v464 = vpop.f32.mrb[0].mxu0
      %v465 = vadd.f32 %v274, %v464
      %v466 = vpop.f32.mrb[0].mxu0
      %467 = vmatprep.mubr.f32.mxu0 0.0
      %468 = vmatmul.mubr.f32.gmra.mrb[0].mxu0 %v296
      %v469 = vpop.f32.mrb[0].mxu0
      %v470 = vadd.f32 %v274, %v469
      %v471 = vpop.f32.mrb[0].mxu0
      %472 = vmatprep.mubr.f32.mxu0 0.0
      %473 = vmatmul.mubr.f32.gmra.mrb[0].mxu0 %v299
      %v474 = vpop.f32.mrb[0].mxu0
      %v475 = vadd.f32 %v274, %v474
      %v476 = vpop.f32.mrb[0].mxu0
      %477 = vmatprep.mubr.f32.mxu0 0.0
      %478 = vmatmul.mubr.f32.gmra.mrb[0].mxu0 %v302
      %v479 = vpop.f32.mrb[0].mxu0
      %v480 = vadd.f32 %v274, %v479
      %v481 = vpop.f32.mrb[0].mxu0
      %482 = vmatprep.mubr.f32.mxu0 0.0
      %483 = vmatmul.mubr.f32.gmra.mrb[0].mxu0 %v305
      %v484 = vpop.f32.mrb[0].mxu0
      %v485 = vadd.f32 %v274, %v484
      %v486 = vpop.f32.mrb[0].mxu0
      %487 = vmatprep.mubr.f32.mxu0 0.0
      %488 = vmatmul.mubr.f32.gmra.mrb[0].mxu0 %v308
      %v489 = vpop.f32.mrb[0].mxu0
      %v490 = vadd.f32 %v274, %v489
      %v491 = vpop.f32.mrb[0].mxu0
      %492 = vmatprep.mubr.f32.mxu0 0.0
      %493 = vmatmul.mubr.f32.gmra.mrb[0].mxu0 %v311
      %v494 = vpop.f32.mrb[0].mxu0
      %v495 = vadd.f32 %v274, %v494
      %v496 = vpop.f32.mrb[0].mxu0
      %497 = vmatprep.mubr.f32.mxu0 0.0
      %498 = vmatmul.mubr.f32.gmra.mrb[0].mxu0 %v314
      %v499 = vpop.f32.mrb[0].mxu0
      %v500 = vadd.f32 %v274, %v499
      %v501 = vpop.f32.mrb[0].mxu0
      %502 = vmatprep.mubr.f32.mxu0 0.0
      %503 = vmatmul.mubr.f32.gmra.mrb[0].mxu0 %v317
      %v504 = vpop.f32.mrb[0].mxu0
      %v505 = vadd.f32 %v274, %v504
      %v506 = vpop.f32.mrb[0].mxu0
      %507 = vmatprep.mubr.f32.mxu0 0.0
      %508 = vmatmul.mubr.f32.gmra.mrb[0].mxu0 %v320
      %v509 = vpop.f32.mrb[0].mxu0
      %v510 = vadd.f32 %v274, %v509
      %v511 = vpop.f32.mrb[0].mxu0
      %512 = vmatprep.mubr.f32.mxu0 0.0
      %513 = vmatmul.mubr.f32.gmra.mrb[0].mxu0 %v323
      %v514 = vpop.f32.mrb[0].mxu0
      %v515 = vadd.f32 %v274, %v514
      %v516 = vpop.f32.mrb[0].mxu0
      %517 = vmatprep.mubr.f32.mxu0 0.0
      %518 = vmatmul.mubr.f32.gmra.mrb[0].mxu0 %v326
      %v519 = vpop.f32.mrb[0].mxu0
      %v520 = vadd.f32 %v274, %v519
      %v521 = vpop.f32.mrb[0].mxu0
      %522 = vmatprep.mubr.f32.mxu0 0.0
      %523 = vmatmul.mubr.f32.gmra.mrb[0].mxu0 %v329
      %v524 = vpop.f32.mrb[0].mxu0
      %v525 = vadd.f32 %v274, %v524
      %v526 = vpop.f32.mrb[0].mxu0
      %527 = vmatprep.mubr.f32.mxu0 0.0
      %528 = vmatmul.mubr.f32.gmra.mrb[0].mxu0 %v332
      %v529 = vpop.f32.mrb[0].mxu0
      %v530 = vadd.f32 %v274, %v529
      %v531 = vpop.f32.mrb[0].mxu0
      %532 = vmatprep.mubr.f32.mxu0 0.0
      %533 = vmatmul.mubr.f32.gmra.mrb[0].mxu0 %v335
      %v534 = vpop.f32.mrb[0].mxu0
      %v535 = vadd.f32 %v274, %v534
      %v536 = vpop.f32.mrb[0].mxu0
      %537 = vmatprep.mubr.f32.mxu0 0.0
      %538 = vmatmul.mubr.f32.gmra.mrb[0].mxu0 %v338
      %v539 = vpop.f32.mrb[0].mxu0
      %v540 = vadd.f32 %v274, %v539
      %v541 = vpop.f32.mrb[0].mxu0
      %542 = vmatprep.mubr.f32.mxu0 0.0
      %543 = vmatmul.mubr.f32.gmra.mrb[0].mxu0 %v341
      %v544 = vpop.f32.mrb[0].mxu0
      %v545 = vadd.f32 %v274, %v544
      %v546 = vpop.f32.mrb[0].mxu0
      %547 = vmatprep.mubr.f32.mxu0 0.0
      %548 = vmatmul.mubr.f32.gmra.mrb[0].mxu0 %v344
      %v549 = vpop.f32.mrb[0].mxu0
      %v550 = vadd.f32 %v274, %v549
      %v551 = vpop.f32.mrb[0].mxu0
      %552 = vmatprep.mubr.f32.mxu0 0.0
      %553 = vmatmul.mubr.f32.gmra.mrb[0].mxu0 %v347
      %v554 = vpop.f32.mrb[0].mxu0
      %v555 = vadd.f32 %v274, %v554
      %v556 = vpop.f32.mrb[0].mxu0
      %557 = vmatprep.mubr.f32.mxu0 0.0
      %558 = vmatmul.mubr.f32.gmra.mrb[0].mxu0 %v350
      %v559 = vpop.f32.mrb[0].mxu0
      %v560 = vadd.f32 %v274, %v559
      %v561 = vpop.f32.mrb[0].mxu0
      %562 = vmatprep.mubr.f32.mxu0 0.0
      %563 = vmatmul.mubr.f32.gmra.mrb[0].mxu0 %v353
      %v564 = vpop.f32.mrb[0].mxu0
      %v565 = vadd.f32 %v274, %v564
      %v566 = vpop.f32.mrb[0].mxu0
      %567 = vmatprep.mubr.f32.mxu0 0.0
      %568 = vmatmul.mubr.f32.gmra.mrb[0].mxu0 %v356
      %v569 = vpop.f32.mrb[0].mxu0
      %v570 = vadd.f32 %v274, %v569
      %v571 = vpop.f32.mrb[0].mxu0
      %572 = vmatprep.mubr.f32.mxu0 0.0
      %573 = vmatmul.mubr.f32.gmra.mrb[0].mxu0 %v359
      %v574 = vpop.f32.mrb[0].mxu0
      %v575 = vadd.f32 %v274, %v574
      %v576 = vpop.f32.mrb[0].mxu0
      %577 = vmatprep.mubr.f32.mxu0 0.0
      %578 = vmatmul.mubr.f32.gmra.mrb[0].mxu0 %v362
      %v579 = vpop.f32.mrb[0].mxu0
      %v580 = vadd.f32 %v274, %v579
      %v581 = vpop.f32.mrb[0].mxu0
      %582 = vmatprep.mubr.f32.mxu0 0.0
      %583 = vmatmul.mubr.f32.gmra.mrb[0].mxu0 %v365
      %v584 = vpop.f32.mrb[0].mxu0
      %v585 = vadd.f32 %v274, %v584
      %v586 = vpop.f32.mrb[0].mxu0
      %587 = vmatprep.mubr.f32.mxu0 0.0
      %588 = vmatmul.mubr.f32.gmra.mrb[0].mxu0 %v368
      %v589 = vpop.f32.mrb[0].mxu0
      %v590 = vadd.f32 %v274, %v589
      %v591 = vpop.f32.mrb[0].mxu0
      %592 = vmatprep.mubr.f32.mxu0 0.0
      %593 = vmatmul.mubr.f32.gmra.mrb[0].mxu0 %v371
      %v594 = vpop.f32.mrb[0].mxu0
      %v595 = vadd.f32 %v274, %v594
      %v596 = vpop.f32.mrb[0].mxu0
      %597 = vdwg.mxu0
      %v598 = vmax.f32 %v440, 0.0
      %v599 = vmax.f32 %v445, 0.0
      %v600 = vmax.f32 %v450, 0.0
      %v601 = vmax.f32 %v455, 0.0
      %v602 = vmax.f32 %v460, 0.0
      %v603 = vmax.f32 %v465, 0.0
      %v604 = vmax.f32 %v470, 0.0
      %v605 = vmax.f32 %v475, 0.0
      %v606 = vmax.f32 %v480, 0.0
      %v607 = vmax.f32 %v485, 0.0
      %v608 = vmax.f32 %v490, 0.0
      %v609 = vmax.f32 %v495, 0.0
      %v610 = vmax.f32 %v500, 0.0
      %v611 = vmax.f32 %v505, 0.0
      %v612 = vmax.f32 %v510, 0.0
      %v613 = vmax.f32 %v515, 0.0
      %v614 = vmax.f32 %v520, 0.0
      %v615 = vmax.f32 %v525, 0.0
      %v616 = vmax.f32 %v530, 0.0
      %v617 = vmax.f32 %v535, 0.0
      %v618 = vmax.f32 %v540, 0.0
      %v619 = vmax.f32 %v545, 0.0
      %v620 = vmax.f32 %v550, 0.0
      %v621 = vmax.f32 %v555, 0.0
      %v622 = vmax.f32 %v560, 0.0
      %v623 = vmax.f32 %v565, 0.0
      %v624 = vmax.f32 %v570, 0.0
      %v625 = vmax.f32 %v575, 0.0
      %v626 = vmax.f32 %v580, 0.0
      %v627 = vmax.f32 %v585, 0.0
      %v628 = vmax.f32 %v590, 0.0
      %v629 = vmax.f32 %v595, 0.0
      %v630 = vld [vmem:[%s3] sm:$0x1]
      %v632 = vlaneseq
      %v633 = vshrl.u32 %v632, 7
      %v634 = vsub.s32 0, %v633
      %v635 = vrot.slane %v630, %v634
      %v637 = vmul.f32 %v598, %v635
      %v638 = vmul.f32 %v599, %v635
      %v639 = vmul.f32 %v600, %v635
      %v640 = vmul.f32 %v601, %v635
      %v641 = vmul.f32 %v602, %v635
      %v642 = vmul.f32 %v603, %v635
      %v643 = vmul.f32 %v604, %v635
      %v644 = vmul.f32 %v605, %v635
      %v645 = vmul.f32 %v606, %v635
      %v646 = vmul.f32 %v607, %v635
      %v647 = vmul.f32 %v608, %v635
      %v648 = vmul.f32 %v609, %v635
      %v649 = vmul.f32 %v610, %v635
      %v650 = vmul.f32 %v611, %v635
      %v651 = vmul.f32 %v612, %v635
      %v652 = vmul.f32 %v613, %v635
      %v653 = vmul.f32 %v614, %v635
      %v654 = vmul.f32 %v615, %v635
      %v655 = vmul.f32 %v616, %v635
      %v656 = vmul.f32 %v617, %v635
      %v657 = vmul.f32 %v618, %v635
      %v658 = vmul.f32 %v619, %v635
      %v659 = vmul.f32 %v620, %v635
      %v660 = vmul.f32 %v621, %v635
      %v661 = vmul.f32 %v622, %v635
      %v662 = vmul.f32 %v623, %v635
      %v663 = vmul.f32 %v624, %v635
      %v664 = vmul.f32 %v625, %v635
      %v665 = vmul.f32 %v626, %v635
      %v666 = vmul.f32 %v627, %v635
      %v667 = vmul.f32 %v628, %v635
      %v668 = vmul.f32 %v629, %v635
      %v669 = vld [vmem:[%s4] sm:$0x1]
      %v671 = vlaneseq
      %v672 = vshrl.u32 %v671, 7
      %v673 = vsub.s32 0, %v672
      %v674 = vrot.slane %v669, %v673
      %v676 = vadd.f32 %v637, %v674
      %v677 = vadd.f32 %v638, %v674
      %v678 = vadd.f32 %v639, %v674
      %v679 = vadd.f32 %v640, %v674
      %v680 = vadd.f32 %v641, %v674
      %v681 = vadd.f32 %v642, %v674
      %v682 = vadd.f32 %v643, %v674
      %v683 = vadd.f32 %v644, %v674
      %v684 = vadd.f32 %v645, %v674
      %v685 = vadd.f32 %v646, %v674
      %v686 = vadd.f32 %v647, %v674
      %v687 = vadd.f32 %v648, %v674
      %v688 = vadd.f32 %v649, %v674
      %v689 = vadd.f32 %v650, %v674
      %v690 = vadd.f32 %v651, %v674
      %v691 = vadd.f32 %v652, %v674
      %v692 = vadd.f32 %v653, %v674
      %v693 = vadd.f32 %v654, %v674
      %v694 = vadd.f32 %v655, %v674
      %v695 = vadd.f32 %v656, %v674
      %v696 = vadd.f32 %v657, %v674
      %v697 = vadd.f32 %v658, %v674
      %v698 = vadd.f32 %v659, %v674
      %v699 = vadd.f32 %v660, %v674
      %v700 = vadd.f32 %v661, %v674
      %v701 = vadd.f32 %v662, %v674
      %v702 = vadd.f32 %v663, %v674
      %v703 = vadd.f32 %v664, %v674
      %v704 = vadd.f32 %v665, %v674
      %v705 = vadd.f32 %v666, %v674
      %v706 = vadd.f32 %v667, %v674
      %v707 = vadd.f32 %v668, %v674
      %vm708 = vcmask 130048
      %709 = vst.msk [vmem:[%s226] sm:$0xff] %vm708, %v676
      %710 = vst.msk [vmem:[%s226 + $0x8] sm:$0xff] %vm708, %v677
      %711 = vst.msk [vmem:[%s226 + $0x10] sm:$0xff] %vm708, %v678
      %712 = vst.msk [vmem:[%s226 + $0x18] sm:$0xff] %vm708, %v679
      %713 = vst.msk [vmem:[%s226 + $0x20] sm:$0xff] %vm708, %v680
      %714 = vst.msk [vmem:[%s226 + $0x28] sm:$0xff] %vm708, %v681
      %715 = vst.msk [vmem:[%s226 + $0x30] sm:$0xff] %vm708, %v682
      %716 = vst.msk [vmem:[%s226 + $0x38] sm:$0xff] %vm708, %v683
      %717 = vst.msk [vmem:[%s226 + $0x40] sm:$0xff] %vm708, %v684
      %718 = vst.msk [vmem:[%s226 + $0x48] sm:$0xff] %vm708, %v685
      %719 = vst.msk [vmem:[%s226 + $0x50] sm:$0xff] %vm708, %v686
      %720 = vst.msk [vmem:[%s226 + $0x58] sm:$0xff] %vm708, %v687
      %721 = vst.msk [vmem:[%s226 + $0x60] sm:$0xff] %vm708, %v688
      %722 = vst.msk [vmem:[%s226 + $0x68] sm:$0xff] %vm708, %v689
      %723 = vst.msk [vmem:[%s226 + $0x70] sm:$0xff] %vm708, %v690
      %724 = vst.msk [vmem:[%s226 + $0x78] sm:$0xff] %vm708, %v691
      %725 = vst.msk [vmem:[%s226 + $0x80] sm:$0xff] %vm708, %v692
      %726 = vst.msk [vmem:[%s226 + $0x88] sm:$0xff] %vm708, %v693
      %727 = vst.msk [vmem:[%s226 + $0x90] sm:$0xff] %vm708, %v694
      %728 = vst.msk [vmem:[%s226 + $0x98] sm:$0xff] %vm708, %v695
      %729 = vst.msk [vmem:[%s226 + $0xa0] sm:$0xff] %vm708, %v696
      %730 = vst.msk [vmem:[%s226 + $0xa8] sm:$0xff] %vm708, %v697
      %731 = vst.msk [vmem:[%s226 + $0xb0] sm:$0xff] %vm708, %v698
      %732 = vst.msk [vmem:[%s226 + $0xb8] sm:$0xff] %vm708, %v699
      %733 = vst.msk [vmem:[%s226 + $0xc0] sm:$0xff] %vm708, %v700
      %734 = vst.msk [vmem:[%s226 + $0xc8] sm:$0xff] %vm708, %v701
      %735 = vst.msk [vmem:[%s226 + $0xd0] sm:$0xff] %vm708, %v702
      %736 = vst.msk [vmem:[%s226 + $0xd8] sm:$0xff] %vm708, %v703
      %737 = vst.msk [vmem:[%s226 + $0xe0] sm:$0xff] %vm708, %v704
      %738 = vst.msk [vmem:[%s226 + $0xe8] sm:$0xff] %vm708, %v705
      %739 = vst.msk [vmem:[%s226 + $0xf0] sm:$0xff] %vm708, %v706
      %740 = vst.msk [vmem:[%s226 + $0xf8] sm:$0xff] %vm708, %v707
      %s741 = smul.u32 32, %s16
      %p742 = scmp.lt.s32.totalorder %s741, 255
      %s743 = scalar_select %p742, %s741, 255
      %s744 = smul.addr %s743, 8
      %s745 = scalar_lea.vmem %s5, %s744
      // Predicated region
      $region41: #{feature_extractor_forward.9} parent=39 // pred_check
        %p746 = pneg %p144
      $region42: #{feature_extractor_forward.9} parent=39 // pred_check_branch
        %748 = sbr.rel (%p746) target = $region44
      $region43: #{feature_extractor_forward.9} parent=39 // pred_region
        %s749 = smul.u32 32, %s16
      $region44: #{feature_extractor_forward.9} parent=39 // pred_fallthru
        _
    $region40: #{feature_extractor_forward.9} parent=5 // pred_fallthru
      _
    %p750 = scmp.le.s32.totalorder 2, %s11
    // Predicated region
    $region45: #{feature_extractor_forward.9} parent=5 // pred_check
      %p751 = pneg %p750
    $region46: #{feature_extractor_forward.9} parent=5 // pred_check_branch
      %753 = sbr.rel (%p751) target = $region48
    $region47: #{feature_extractor_forward.9} parent=5 // pred_region
      %s754 = ssub.s32 %s11, 2
      // Predicated region
      $region49: #{feature_extractor_forward.9} parent=47 // pred_check
        %p755 = pneg %p150
      $region50: #{feature_extractor_forward.9} parent=47 // pred_check_branch
        %757 = sbr.rel (%p755) target = $region52
      $region51: #{feature_extractor_forward.9} parent=47 // pred_region
        %s758 = smul.u32 32, %s17
        %p759 = scmp.lt.s32.totalorder %s758, 255
        %s760 = scalar_select %p759, %s758, 255
        %s761 = smul.addr %s760, 8
        %s762 = scalar_lea.vmem %s5, %s761
      $region52: #{feature_extractor_forward.9} parent=47 // pred_fallthru
        _
    $region48: #{feature_extractor_forward.9} parent=5 // pred_fallthru
      _
  $region6: #{feature_extractor_forward.9} parent=0 // loop_footer
    %s15 = sadd.s32 1, %s11
  $region7: #{feature_extractor_forward.9} parent=0 // loop_footer_branch
    %10 = sbr.rel target = $region3
  $region8: #{feature_extractor_forward.9} parent=0 // loop_exit
    _

// kernel: feature_extractor_forward.10
$region0: #{feature_extractor_forward.10}
  #allocation0 [shape = 'u32[]', space=smem, size = 0x4, offset = 0x4, fixed_abs, tag = 'smem constant byte address 0x4 - core index']
  #allocation1 [shape = 'u32[144,128]{1,0:T(1,128)}', space=vmem, size = 0x12000, scoped, tag = 'internal scratch']
  %s0 = inlined_call_operand.vmem [shape: f32[9,512,16], index: 0, kind: input, shape index: {}]
  %s1 = inlined_call_operand.vmem [shape: f32[512,16], index: 1, kind: output, shape index: {}]
  %s2 = sld [smem:[#allocation0]]
  $region75: #{feature_extractor_forward.10} parent=0
    _
  %s4 = ssub.s32 1, %s2
  %s5 = scalar_select 0, %s4, %s2
  $region1: #{feature_extractor_forward.10} parent=0
    #allocation2 [shape = 'u8[2359296]{0}', space=vmem, size = 0x240000, scoped, tag = 'input window, operand 0']
    loop: start=0, step=1, limit=4
    $region2: #{feature_extractor_forward.10} parent=1 // loop_pre_header
      _
    $region3: #{feature_extractor_forward.10} parent=1 // loop_header
      %s7 = sphi 0, %s11
      %p8 = scmp.ge.s32.totalorder %s7, 4
      %s17 = sphi 0, %s19
      %s20 = sphi 0, %s17
      %s21 = sphi 0, %s20
      %s37 = sphi 0, %s21
      %s43 = sphi 0, %s45
      %s46 = sphi 0, %s43
      %s47 = sphi 0, %s46
      %s63 = sphi 0, %s47
    $region4: #{feature_extractor_forward.10} parent=1 // loop_header_branch
      %10 = sbr.rel (%p8) target = $region8
    $region5: #{feature_extractor_forward.10} parent=1 // loop_body
      %s12 = ssub.s32 %s7, 1
      %s13 = ssub.s32 %s7, 2
      %s14 = sadd.s32 %s7, 1
      %s15 = ssub.s32 %s7, %s14
      %p16 = scmp.eq.s32.totalorder %s15, 0
      %s18 = sadd.s32 %s17, 1
      %s19 = scalar_select %p16, %s17, %s18
      %p22 = pneg %p16
      %p23 = scmp.eq.s32.totalorder %s7, 1
      %p24 = por %p22, %p23
      %p25 = scmp.ne.s32.totalorder %s17, %s20
      %p26 = scmp.eq.s32.totalorder %s7, 0
      %p27 = por %p25, %p26
      %p28 = scmp.ne.s32.totalorder %s17, %s20
      %p29 = scmp.eq.s32.totalorder %s12, 1
      %p30 = por %p28, %p29
      %p31 = scmp.ne.s32.totalorder %s20, %s21
      %p32 = scmp.eq.s32.totalorder %s12, 0
      %p33 = por %p31, %p32
      %p34 = scmp.ne.s32.totalorder %s20, %s21
      %p35 = scmp.eq.s32.totalorder %s13, 1
      %p36 = por %p34, %p35
      %p38 = scmp.ne.s32.totalorder %s21, %s37
      %p39 = scmp.eq.s32.totalorder %s13, 0
      %p40 = por %p38, %p39
      %s41 = ssub.s32 %s7, %s14
      %p42 = scmp.eq.s32.totalorder %s41, 0
      %s44 = sadd.s32 %s43, 1
      %s45 = scalar_select %p42, %s43, %s44
      %p48 = pneg %p42
      %p49 = scmp.eq.s32.totalorder %s7, 1
      %p50 = por %p48, %p49
      %p51 = scmp.ne.s32.totalorder %s43, %s46
      %p52 = scmp.eq.s32.totalorder %s7, 0
      %p53 = por %p51, %p52
      %p54 = scmp.ne.s32.totalorder %s43, %s46
      %p55 = scmp.eq.s32.totalorder %s12, 1
      %p56 = por %p54, %p55
      %p57 = scmp.ne.s32.totalorder %s46, %s47
      %p58 = scmp.eq.s32.totalorder %s12, 0
      %p59 = por %p57, %p58
      %p60 = scmp.ne.s32.totalorder %s46, %s47
      %p61 = scmp.eq.s32.totalorder %s13, 1
      %p62 = por %p60, %p61
      %p64 = scmp.ne.s32.totalorder %s47, %s63
      %p65 = scmp.eq.s32.totalorder %s13, 0
      %p66 = por %p64, %p65
      %p67 = scmp.le.s32.totalorder 1, %s7
      %p68 = scmp.lt.s32.totalorder %s7, 3
      %p69 = pnand %p67, %p68
      %p70 = pneg %p69
      // Predicated region
      $region9: #{feature_extractor_forward.10} parent=5 // pred_check
        _
      $region10: #{feature_extractor_forward.10} parent=5 // pred_check_branch
        %72 = sbr.rel (%p69) target = $region12
      $region11: #{feature_extractor_forward.10} parent=5 // pred_region
        %s73 = ssub.s32 %s7, 1
      $region12: #{feature_extractor_forward.10} parent=5 // pred_fallthru
        _
      %p74 = scmp.lt.s32.totalorder %s7, 2
      // Predicated region
      $region13: #{feature_extractor_forward.10} parent=5 // pred_check
        %p75 = pneg %p74
      $region14: #{feature_extractor_forward.10} parent=5 // pred_check_branch
        %77 = sbr.rel (%p75) target = $region16
      $region15: #{feature_extractor_forward.10} parent=5 // pred_region
        // Predicated region
        $region17: #{feature_extractor_forward.10} parent=15 // pred_check
          %p78 = pneg %p27
        $region18: #{feature_extractor_forward.10} parent=15 // pred_check_branch
          %80 = sbr.rel (%p78) target = $region20
        $region19: #{feature_extractor_forward.10} parent=15 // pred_region
          %s81 = sand.u32 %s17, 1
          %s82 = sand.u32 %s17, 1
          %s83 = smul.addr %s82, 2304
          %s84 = scalar_lea.vmem [#allocation2], %s83
          %s85 = smul.u32 32, %s7
          %s86 = smul.addr %s85, 8
          %s87 = scalar_lea.vmem %s0, %s86
          // Predicated region
          $region21: #{feature_extractor_forward.10} parent=19 // pred_check
            _
          $region22: #{feature_extractor_forward.10} parent=19 // pred_check_branch
            %89 = sbr.rel (0) target = $region24
          $region23: #{feature_extractor_forward.10} parent=19 // pred_region
            // Predicated region
            $region25: #{feature_extractor_forward.10} parent=23 // pred_check
              _
            $region26: #{feature_extractor_forward.10} parent=23 // pred_check_branch
              %91 = sbr.rel (0) target = $region28
            $region27: #{feature_extractor_forward.10} parent=23 // pred_region
              // Predicated region
              $region40: #{feature_extractor_forward.10} parent=27 // pred_check
                _
              $region41: #{feature_extractor_forward.10} parent=27 // pred_check_branch
                %680 = sbr.rel (0) target = $region43
              $region42: #{feature_extractor_forward.10} parent=27 // pred_region
                loop: start=0, step=1, limit=1
                $region44: #{feature_extractor_forward.10} parent=42 // loop_pre_header
                  _
                $region45: #{feature_extractor_forward.10} parent=42 // loop_header
                  %s682 = sphi 0, %s686
                  %p683 = scmp.ge.s32.totalorder %s682, 1
                  %s687 = sphi %s87, %s87
                  %s688 = sphi %s84, %s84
                $region46: #{feature_extractor_forward.10} parent=42 // loop_header_branch
                  %685 = sbr.rel (%p683) target = $region50
                $region47: #{feature_extractor_forward.10} parent=42 // loop_body
                  %v689 = vld [vmem:[%s687] sm:$0xff]
                  %690 = vst [vmem:[%s688] sm:$0xff] %v689
                  %v691 = vld [vmem:[%s687 + $0x8] sm:$0xff]
                  %692 = vst [vmem:[%s688 + $0x8] sm:$0xff] %v691
                  %v693 = vld [vmem:[%s687 + $0x10] sm:$0xff]
                  %694 = vst [vmem:[%s688 + $0x10] sm:$0xff] %v693
                  %v695 = vld [vmem:[%s687 + $0x18] sm:$0xff]
                  %696 = vst [vmem:[%s688 + $0x18] sm:$0xff] %v695
                  %v697 = vld [vmem:[%s687 + $0x20] sm:$0xff]
                  %698 = vst [vmem:[%s688 + $0x20] sm:$0xff] %v697
                  %v699 = vld [vmem:[%s687 + $0x28] sm:$0xff]
                  %700 = vst [vmem:[%s688 + $0x28] sm:$0xff] %v699
                  %v701 = vld [vmem:[%s687 + $0x30] sm:$0xff]
                  %702 = vst [vmem:[%s688 + $0x30] sm:$0xff] %v701
                  %v703 = vld [vmem:[%s687 + $0x38] sm:$0xff]
                  %704 = vst [vmem:[%s688 + $0x38] sm:$0xff] %v703
                  %v705 = vld [vmem:[%s687 + $0x40] sm:$0xff]
                  %706 = vst [vmem:[%s688 + $0x40] sm:$0xff] %v705
                  %v707 = vld [vmem:[%s687 + $0x48] sm:$0xff]
                  %708 = vst [vmem:[%s688 + $0x48] sm:$0xff] %v707
                  %v709 = vld [vmem:[%s687 + $0x50] sm:$0xff]
                  %710 = vst [vmem:[%s688 + $0x50] sm:$0xff] %v709
                  %v711 = vld [vmem:[%s687 + $0x58] sm:$0xff]
                  %712 = vst [vmem:[%s688 + $0x58] sm:$0xff] %v711
                  %v713 = vld [vmem:[%s687 + $0x60] sm:$0xff]
                  %714 = vst [vmem:[%s688 + $0x60] sm:$0xff] %v713
                  %v715 = vld [vmem:[%s687 + $0x68] sm:$0xff]
                  %716 = vst [vmem:[%s688 + $0x68] sm:$0xff] %v715
                  %v717 = vld [vmem:[%s687 + $0x70] sm:$0xff]
                  %718 = vst [vmem:[%s688 + $0x70] sm:$0xff] %v717
                  %v719 = vld [vmem:[%s687 + $0x78] sm:$0xff]
                  %720 = vst [vmem:[%s688 + $0x78] sm:$0xff] %v719
                  %v721 = vld [vmem:[%s687 + $0x80] sm:$0xff]
                  %722 = vst [vmem:[%s688 + $0x80] sm:$0xff] %v721
                  %v723 = vld [vmem:[%s687 + $0x88] sm:$0xff]
                  %724 = vst [vmem:[%s688 + $0x88] sm:$0xff] %v723
                  %v725 = vld [vmem:[%s687 + $0x90] sm:$0xff]
                  %726 = vst [vmem:[%s688 + $0x90] sm:$0xff] %v725
                  %v727 = vld [vmem:[%s687 + $0x98] sm:$0xff]
                  %728 = vst [vmem:[%s688 + $0x98] sm:$0xff] %v727
                  %v729 = vld [vmem:[%s687 + $0xa0] sm:$0xff]
                  %730 = vst [vmem:[%s688 + $0xa0] sm:$0xff] %v729
                  %v731 = vld [vmem:[%s687 + $0xa8] sm:$0xff]
                  %732 = vst [vmem:[%s688 + $0xa8] sm:$0xff] %v731
                  %v733 = vld [vmem:[%s687 + $0xb0] sm:$0xff]
                  %734 = vst [vmem:[%s688 + $0xb0] sm:$0xff] %v733
                  %v735 = vld [vmem:[%s687 + $0xb8] sm:$0xff]
                  %736 = vst [vmem:[%s688 + $0xb8] sm:$0xff] %v735
                  %v737 = vld [vmem:[%s687 + $0xc0] sm:$0xff]
                  %738 = vst [vmem:[%s688 + $0xc0] sm:$0xff] %v737
                  %v739 = vld [vmem:[%s687 + $0xc8] sm:$0xff]
                  %740 = vst [vmem:[%s688 + $0xc8] sm:$0xff] %v739
                  %v741 = vld [vmem:[%s687 + $0xd0] sm:$0xff]
                  %742 = vst [vmem:[%s688 + $0xd0] sm:$0xff] %v741
                  %v743 = vld [vmem:[%s687 + $0xd8] sm:$0xff]
                  %744 = vst [vmem:[%s688 + $0xd8] sm:$0xff] %v743
                  %v745 = vld [vmem:[%s687 + $0xe0] sm:$0xff]
                  %746 = vst [vmem:[%s688 + $0xe0] sm:$0xff] %v745
                  %v747 = vld [vmem:[%s687 + $0xe8] sm:$0xff]
                  %748 = vst [vmem:[%s688 + $0xe8] sm:$0xff] %v747
                  %v749 = vld [vmem:[%s687 + $0xf0] sm:$0xff]
                  %750 = vst [vmem:[%s688 + $0xf0] sm:$0xff] %v749
                  %v751 = vld [vmem:[%s687 + $0xf8] sm:$0xff]
                  %752 = vst [vmem:[%s688 + $0xf8] sm:$0xff] %v751
                  %v753 = vld [vmem:[%s687 + $0x200] sm:$0xff]
                  %754 = vst [vmem:[%s688 + $0x100] sm:$0xff] %v753
                  %v755 = vld [vmem:[%s687 + $0x208] sm:$0xff]
                  %756 = vst [vmem:[%s688 + $0x108] sm:$0xff] %v755
                  %v757 = vld [vmem:[%s687 + $0x210] sm:$0xff]
                  %758 = vst [vmem:[%s688 + $0x110] sm:$0xff] %v757
                  %v759 = vld [vmem:[%s687 + $0x218] sm:$0xff]
                  %760 = vst [vmem:[%s688 + $0x118] sm:$0xff] %v759
                  %v761 = vld [vmem:[%s687 + $0x220] sm:$0xff]
                  %762 = vst [vmem:[%s688 + $0x120] sm:$0xff] %v761
                  %v763 = vld [vmem:[%s687 + $0x228] sm:$0xff]
                  %764 = vst [vmem:[%s688 + $0x128] sm:$0xff] %v763
                  %v765 = vld [vmem:[%s687 + $0x230] sm:$0xff]
                  %766 = vst [vmem:[%s688 + $0x130] sm:$0xff] %v765
                  %v767 = vld [vmem:[%s687 + $0x238] sm:$0xff]
                  %768 = vst [vmem:[%s688 + $0x138] sm:$0xff] %v767
                  %v769 = vld [vmem:[%s687 + $0x240] sm:$0xff]
                  %770 = vst [vmem:[%s688 + $0x140] sm:$0xff] %v769
                  %v771 = vld [vmem:[%s687 + $0x248] sm:$0xff]
                  %772 = vst [vmem:[%s688 + $0x148] sm:$0xff] %v771
                  %v773 = vld [vmem:[%s687 + $0x250] sm:$0xff]
                  %774 = vst [vmem:[%s688 + $0x150] sm:$0xff] %v773
                  %v775 = vld [vmem:[%s687 + $0x258] sm:$0xff]
                  %776 = vst [vmem:[%s688 + $0x158] sm:$0xff] %v775
                  %v777 = vld [vmem:[%s687 + $0x260] sm:$0xff]
                  %778 = vst [vmem:[%s688 + $0x160] sm:$0xff] %v777
                  %v779 = vld [vmem:[%s687 + $0x268] sm:$0xff]
                  %780 = vst [vmem:[%s688 + $0x168] sm:$0xff] %v779
                  %v781 = vld [vmem:[%s687 + $0x270] sm:$0xff]
                  %782 = vst [vmem:[%s688 + $0x170] sm:$0xff] %v781
                  %v783 = vld [vmem:[%s687 + $0x278] sm:$0xff]
                  %784 = vst [vmem:[%s688 + $0x178] sm:$0xff] %v783
                  %v785 = vld [vmem:[%s687 + $0x280] sm:$0xff]
                  %786 = vst [vmem:[%s688 + $0x180] sm:$0xff] %v785
                  %v787 = vld [vmem:[%s687 + $0x288] sm:$0xff]
                  %788 = vst [vmem:[%s688 + $0x188] sm:$0xff] %v787
                  %v789 = vld [vmem:[%s687 + $0x290] sm:$0xff]
                  %790 = vst [vmem:[%s688 + $0x190] sm:$0xff] %v789
                  %v791 = vld [vmem:[%s687 + $0x298] sm:$0xff]
                  %792 = vst [vmem:[%s688 + $0x198] sm:$0xff] %v791
                  %v793 = vld [vmem:[%s687 + $0x2a0] sm:$0xff]
                  %794 = vst [vmem:[%s688 + $0x1a0] sm:$0xff] %v793
                  %v795 = vld [vmem:[%s687 + $0x2a8] sm:$0xff]
                  %796 = vst [vmem:[%s688 + $0x1a8] sm:$0xff] %v795
                  %v797 = vld [vmem:[%s687 + $0x2b0] sm:$0xff]
                  %798 = vst [vmem:[%s688 + $0x1b0] sm:$0xff] %v797
                  %v799 = vld [vmem:[%s687 + $0x2b8] sm:$0xff]
                  %800 = vst [vmem:[%s688 + $0x1b8] sm:$0xff] %v799
                  %v801 = vld [vmem:[%s687 + $0x2c0] sm:$0xff]
                  %802 = vst [vmem:[%s688 + $0x1c0] sm:$0xff] %v801
                  %v803 = vld [vmem:[%s687 + $0x2c8] sm:$0xff]
                  %804 = vst [vmem:[%s688 + $0x1c8] sm:$0xff] %v803
                  %v805 = vld [vmem:[%s687 + $0x2d0] sm:$0xff]
                  %806 = vst [vmem:[%s688 + $0x1d0] sm:$0xff] %v805
                  %v807 = vld [vmem:[%s687 + $0x2d8] sm:$0xff]
                  %808 = vst [vmem:[%s688 + $0x1d8] sm:$0xff] %v807
                  %v809 = vld [vmem:[%s687 + $0x2e0] sm:$0xff]
                  %810 = vst [vmem:[%s688 + $0x1e0] sm:$0xff] %v809
                  %v811 = vld [vmem:[%s687 + $0x2e8] sm:$0xff]
                  %812 = vst [vmem:[%s688 + $0x1e8] sm:$0xff] %v811
                  %v813 = vld [vmem:[%s687 + $0x2f0] sm:$0xff]
                  %814 = vst [vmem:[%s688 + $0x1f0] sm:$0xff] %v813
                  %v815 = vld [vmem:[%s687 + $0x2f8] sm:$0xff]
                  %816 = vst [vmem:[%s688 + $0x1f8] sm:$0xff] %v815
                  %v817 = vld [vmem:[%s687 + $0x400] sm:$0xff]
                  %818 = vst [vmem:[%s688 + $0x200] sm:$0xff] %v817
                  %v819 = vld [vmem:[%s687 + $0x408] sm:$0xff]
                  %820 = vst [vmem:[%s688 + $0x208] sm:$0xff] %v819
                  %v821 = vld [vmem:[%s687 + $0x410] sm:$0xff]
                  %822 = vst [vmem:[%s688 + $0x210] sm:$0xff] %v821
                  %v823 = vld [vmem:[%s687 + $0x418] sm:$0xff]
                  %824 = vst [vmem:[%s688 + $0x218] sm:$0xff] %v823
                  %v825 = vld [vmem:[%s687 + $0x420] sm:$0xff]
                  %826 = vst [vmem:[%s688 + $0x220] sm:$0xff] %v825
                  %v827 = vld [vmem:[%s687 + $0x428] sm:$0xff]
                  %828 = vst [vmem:[%s688 + $0x228] sm:$0xff] %v827
                  %v829 = vld [vmem:[%s687 + $0x430] sm:$0xff]
                  %830 = vst [vmem:[%s688 + $0x230] sm:$0xff] %v829
                  %v831 = vld [vmem:[%s687 + $0x438] sm:$0xff]
                  %832 = vst [vmem:[%s688 + $0x238] sm:$0xff] %v831
                  %v833 = vld [vmem:[%s687 + $0x440] sm:$0xff]
                  %834 = vst [vmem:[%s688 + $0x240] sm:$0xff] %v833
                  %v835 = vld [vmem:[%s687 + $0x448] sm:$0xff]
                  %836 = vst [vmem:[%s688 + $0x248] sm:$0xff] %v835
                  %v837 = vld [vmem:[%s687 + $0x450] sm:$0xff]
                  %838 = vst [vmem:[%s688 + $0x250] sm:$0xff] %v837
                  %v839 = vld [vmem:[%s687 + $0x458] sm:$0xff]
                  %840 = vst [vmem:[%s688 + $0x258] sm:$0xff] %v839
                  %v841 = vld [vmem:[%s687 + $0x460] sm:$0xff]
                  %842 = vst [vmem:[%s688 + $0x260] sm:$0xff] %v841
                  %v843 = vld [vmem:[%s687 + $0x468] sm:$0xff]
                  %844 = vst [vmem:[%s688 + $0x268] sm:$0xff] %v843
                  %v845 = vld [vmem:[%s687 + $0x470] sm:$0xff]
                  %846 = vst [vmem:[%s688 + $0x270] sm:$0xff] %v845
                  %v847 = vld [vmem:[%s687 + $0x478] sm:$0xff]
                  %848 = vst [vmem:[%s688 + $0x278] sm:$0xff] %v847
                  %v849 = vld [vmem:[%s687 + $0x480] sm:$0xff]
                  %850 = vst [vmem:[%s688 + $0x280] sm:$0xff] %v849
                  %v851 = vld [vmem:[%s687 + $0x488] sm:$0xff]
                  %852 = vst [vmem:[%s688 + $0x288] sm:$0xff] %v851
                  %v853 = vld [vmem:[%s687 + $0x490] sm:$0xff]
                  %854 = vst [vmem:[%s688 + $0x290] sm:$0xff] %v853
                  %v855 = vld [vmem:[%s687 + $0x498] sm:$0xff]
                  %856 = vst [vmem:[%s688 + $0x298] sm:$0xff] %v855
                  %v857 = vld [vmem:[%s687 + $0x4a0] sm:$0xff]
                  %858 = vst [vmem:[%s688 + $0x2a0] sm:$0xff] %v857
                  %v859 = vld [vmem:[%s687 + $0x4a8] sm:$0xff]
                  %860 = vst [vmem:[%s688 + $0x2a8] sm:$0xff] %v859
                  %v861 = vld [vmem:[%s687 + $0x4b0] sm:$0xff]
                  %862 = vst [vmem:[%s688 + $0x2b0] sm:$0xff] %v861
                  %v863 = vld [vmem:[%s687 + $0x4b8] sm:$0xff]
                  %864 = vst [vmem:[%s688 + $0x2b8] sm:$0xff] %v863
                  %v865 = vld [vmem:[%s687 + $0x4c0] sm:$0xff]
                  %866 = vst [vmem:[%s688 + $0x2c0] sm:$0xff] %v865
                  %v867 = vld [vmem:[%s687 + $0x4c8] sm:$0xff]
                  %868 = vst [vmem:[%s688 + $0x2c8] sm:$0xff] %v867
                  %v869 = vld [vmem:[%s687 + $0x4d0] sm:$0xff]
                  %870 = vst [vmem:[%s688 + $0x2d0] sm:$0xff] %v869
                  %v871 = vld [vmem:[%s687 + $0x4d8] sm:$0xff]
                  %872 = vst [vmem:[%s688 + $0x2d8] sm:$0xff] %v871
                  %v873 = vld [vmem:[%s687 + $0x4e0] sm:$0xff]
                  %874 = vst [vmem:[%s688 + $0x2e0] sm:$0xff] %v873
                  %v875 = vld [vmem:[%s687 + $0x4e8] sm:$0xff]
                  %876 = vst [vmem:[%s688 + $0x2e8] sm:$0xff] %v875
                  %v877 = vld [vmem:[%s687 + $0x4f0] sm:$0xff]
                  %878 = vst [vmem:[%s688 + $0x2f0] sm:$0xff] %v877
                  %v879 = vld [vmem:[%s687 + $0x4f8] sm:$0xff]
                  %880 = vst [vmem:[%s688 + $0x2f8] sm:$0xff] %v879
                  %v881 = vld [vmem:[%s687 + $0x600] sm:$0xff]
                  %882 = vst [vmem:[%s688 + $0x300] sm:$0xff] %v881
                  %v883 = vld [vmem:[%s687 + $0x608] sm:$0xff]
                  %884 = vst [vmem:[%s688 + $0x308] sm:$0xff] %v883
                  %v885 = vld [vmem:[%s687 + $0x610] sm:$0xff]
                  %886 = vst [vmem:[%s688 + $0x310] sm:$0xff] %v885
                  %v887 = vld [vmem:[%s687 + $0x618] sm:$0xff]
                  %888 = vst [vmem:[%s688 + $0x318] sm:$0xff] %v887
                  %v889 = vld [vmem:[%s687 + $0x620] sm:$0xff]
                  %890 = vst [vmem:[%s688 + $0x320] sm:$0xff] %v889
                  %v891 = vld [vmem:[%s687 + $0x628] sm:$0xff]
                  %892 = vst [vmem:[%s688 + $0x328] sm:$0xff] %v891
                  %v893 = vld [vmem:[%s687 + $0x630] sm:$0xff]
                  %894 = vst [vmem:[%s688 + $0x330] sm:$0xff] %v893
                  %v895 = vld [vmem:[%s687 + $0x638] sm:$0xff]
                  %896 = vst [vmem:[%s688 + $0x338] sm:$0xff] %v895
                  %v897 = vld [vmem:[%s687 + $0x640] sm:$0xff]
                  %898 = vst [vmem:[%s688 + $0x340] sm:$0xff] %v897
                  %v899 = vld [vmem:[%s687 + $0x648] sm:$0xff]
                  %900 = vst [vmem:[%s688 + $0x348] sm:$0xff] %v899
                  %v901 = vld [vmem:[%s687 + $0x650] sm:$0xff]
                  %902 = vst [vmem:[%s688 + $0x350] sm:$0xff] %v901
                  %v903 = vld [vmem:[%s687 + $0x658] sm:$0xff]
                  %904 = vst [vmem:[%s688 + $0x358] sm:$0xff] %v903
                  %v905 = vld [vmem:[%s687 + $0x660] sm:$0xff]
                  %906 = vst [vmem:[%s688 + $0x360] sm:$0xff] %v905
                  %v907 = vld [vmem:[%s687 + $0x668] sm:$0xff]
                  %908 = vst [vmem:[%s688 + $0x368] sm:$0xff] %v907
                  %v909 = vld [vmem:[%s687 + $0x670] sm:$0xff]
                  %910 = vst [vmem:[%s688 + $0x370] sm:$0xff] %v909
                  %v911 = vld [vmem:[%s687 + $0x678] sm:$0xff]
                  %912 = vst [vmem:[%s688 + $0x378] sm:$0xff] %v911
                  %v913 = vld [vmem:[%s687 + $0x680] sm:$0xff]
                  %914 = vst [vmem:[%s688 + $0x380] sm:$0xff] %v913
                  %v915 = vld [vmem:[%s687 + $0x688] sm:$0xff]
                  %916 = vst [vmem:[%s688 + $0x388] sm:$0xff] %v915
                  %v917 = vld [vmem:[%s687 + $0x690] sm:$0xff]
                  %918 = vst [vmem:[%s688 + $0x390] sm:$0xff] %v917
                  %v919 = vld [vmem:[%s687 + $0x698] sm:$0xff]
                  %920 = vst [vmem:[%s688 + $0x398] sm:$0xff] %v919
                  %v921 = vld [vmem:[%s687 + $0x6a0] sm:$0xff]
                  %922 = vst [vmem:[%s688 + $0x3a0] sm:$0xff] %v921
                  %v923 = vld [vmem:[%s687 + $0x6a8] sm:$0xff]
                  %924 = vst [vmem:[%s688 + $0x3a8] sm:$0xff] %v923
                  %v925 = vld [vmem:[%s687 + $0x6b0] sm:$0xff]
                  %926 = vst [vmem:[%s688 + $0x3b0] sm:$0xff] %v925
                  %v927 = vld [vmem:[%s687 + $0x6b8] sm:$0xff]
                  %928 = vst [vmem:[%s688 + $0x3b8] sm:$0xff] %v927
                  %v929 = vld [vmem:[%s687 + $0x6c0] sm:$0xff]
                  %930 = vst [vmem:[%s688 + $0x3c0] sm:$0xff] %v929
                  %v931 = vld [vmem:[%s687 + $0x6c8] sm:$0xff]
                  %932 = vst [vmem:[%s688 + $0x3c8] sm:$0xff] %v931
                  %v933 = vld [vmem:[%s687 + $0x6d0] sm:$0xff]
                  %934 = vst [vmem:[%s688 + $0x3d0] sm:$0xff] %v933
                  %v935 = vld [vmem:[%s687 + $0x6d8] sm:$0xff]
                  %936 = vst [vmem:[%s688 + $0x3d8] sm:$0xff] %v935
                  %v937 = vld [vmem:[%s687 + $0x6e0] sm:$0xff]
                  %938 = vst [vmem:[%s688 + $0x3e0] sm:$0xff] %v937
                  %v939 = vld [vmem:[%s687 + $0x6e8] sm:$0xff]
                  %940 = vst [vmem:[%s688 + $0x3e8] sm:$0xff] %v939
                  %v941 = vld [vmem:[%s687 + $0x6f0] sm:$0xff]
                  %942 = vst [vmem:[%s688 + $0x3f0] sm:$0xff] %v941
                  %v943 = vld [vmem:[%s687 + $0x6f8] sm:$0xff]
                  %944 = vst [vmem:[%s688 + $0x3f8] sm:$0xff] %v943
                  %v945 = vld [vmem:[%s687 + $0x800] sm:$0xff]
                  %946 = vst [vmem:[%s688 + $0x400] sm:$0xff] %v945
                  %v947 = vld [vmem:[%s687 + $0x808] sm:$0xff]
                  %948 = vst [vmem:[%s688 + $0x408] sm:$0xff] %v947
                  %v949 = vld [vmem:[%s687 + $0x810] sm:$0xff]
                  %950 = vst [vmem:[%s688 + $0x410] sm:$0xff] %v949
                  %v951 = vld [vmem:[%s687 + $0x818] sm:$0xff]
                  %952 = vst [vmem:[%s688 + $0x418] sm:$0xff] %v951
                  %v953 = vld [vmem:[%s687 + $0x820] sm:$0xff]
                  %954 = vst [vmem:[%s688 + $0x420] sm:$0xff] %v953
                  %v955 = vld [vmem:[%s687 + $0x828] sm:$0xff]
                  %956 = vst [vmem:[%s688 + $0x428] sm:$0xff] %v955
                  %v957 = vld [vmem:[%s687 + $0x830] sm:$0xff]
                  %958 = vst [vmem:[%s688 + $0x430] sm:$0xff] %v957
                  %v959 = vld [vmem:[%s687 + $0x838] sm:$0xff]
                  %960 = vst [vmem:[%s688 + $0x438] sm:$0xff] %v959
                  %v961 = vld [vmem:[%s687 + $0x840] sm:$0xff]
                  %962 = vst [vmem:[%s688 + $0x440] sm:$0xff] %v961
                  %v963 = vld [vmem:[%s687 + $0x848] sm:$0xff]
                  %964 = vst [vmem:[%s688 + $0x448] sm:$0xff] %v963
                  %v965 = vld [vmem:[%s687 + $0x850] sm:$0xff]
                  %966 = vst [vmem:[%s688 + $0x450] sm:$0xff] %v965
                  %v967 = vld [vmem:[%s687 + $0x858] sm:$0xff]
                  %968 = vst [vmem:[%s688 + $0x458] sm:$0xff] %v967
                  %v969 = vld [vmem:[%s687 + $0x860] sm:$0xff]
                  %970 = vst [vmem:[%s688 + $0x460] sm:$0xff] %v969
                  %v971 = vld [vmem:[%s687 + $0x868] sm:$0xff]
                  %972 = vst [vmem:[%s688 + $0x468] sm:$0xff] %v971
                  %v973 = vld [vmem:[%s687 + $0x870] sm:$0xff]
                  %974 = vst [vmem:[%s688 + $0x470] sm:$0xff] %v973
                  %v975 = vld [vmem:[%s687 + $0x878] sm:$0xff]
                  %976 = vst [vmem:[%s688 + $0x478] sm:$0xff] %v975
                  %v977 = vld [vmem:[%s687 + $0x880] sm:$0xff]
                  %978 = vst [vmem:[%s688 + $0x480] sm:$0xff] %v977
                  %v979 = vld [vmem:[%s687 + $0x888] sm:$0xff]
                  %980 = vst [vmem:[%s688 + $0x488] sm:$0xff] %v979
                  %v981 = vld [vmem:[%s687 + $0x890] sm:$0xff]
                  %982 = vst [vmem:[%s688 + $0x490] sm:$0xff] %v981
                  %v983 = vld [vmem:[%s687 + $0x898] sm:$0xff]
                  %984 = vst [vmem:[%s688 + $0x498] sm:$0xff] %v983
                  %v985 = vld [vmem:[%s687 + $0x8a0] sm:$0xff]
                  %986 = vst [vmem:[%s688 + $0x4a0] sm:$0xff] %v985
                  %v987 = vld [vmem:[%s687 + $0x8a8] sm:$0xff]
                  %988 = vst [vmem:[%s688 + $0x4a8] sm:$0xff] %v987
                  %v989 = vld [vmem:[%s687 + $0x8b0] sm:$0xff]
                  %990 = vst [vmem:[%s688 + $0x4b0] sm:$0xff] %v989
                  %v991 = vld [vmem:[%s687 + $0x8b8] sm:$0xff]
                  %992 = vst [vmem:[%s688 + $0x4b8] sm:$0xff] %v991
                  %v993 = vld [vmem:[%s687 + $0x8c0] sm:$0xff]
                  %994 = vst [vmem:[%s688 + $0x4c0] sm:$0xff] %v993
                  %v995 = vld [vmem:[%s687 + $0x8c8] sm:$0xff]
                  %996 = vst [vmem:[%s688 + $0x4c8] sm:$0xff] %v995
                  %v997 = vld [vmem:[%s687 + $0x8d0] sm:$0xff]
                  %998 = vst [vmem:[%s688 + $0x4d0] sm:$0xff] %v997
                  %v999 = vld [vmem:[%s687 + $0x8d8] sm:$0xff]
                  %1000 = vst [vmem:[%s688 + $0x4d8] sm:$0xff] %v999
                  %v1001 = vld [vmem:[%s687 + $0x8e0] sm:$0xff]
                  %1002 = vst [vmem:[%s688 + $0x4e0] sm:$0xff] %v1001
                  %v1003 = vld [vmem:[%s687 + $0x8e8] sm:$0xff]
                  %1004 = vst [vmem:[%s688 + $0x4e8] sm:$0xff] %v1003
                  %v1005 = vld [vmem:[%s687 + $0x8f0] sm:$0xff]
                  %1006 = vst [vmem:[%s688 + $0x4f0] sm:$0xff] %v1005
                  %v1007 = vld [vmem:[%s687 + $0x8f8] sm:$0xff]
                  %1008 = vst [vmem:[%s688 + $0x4f8] sm:$0xff] %v1007
                  %v1009 = vld [vmem:[%s687 + $0xa00] sm:$0xff]
                  %1010 = vst [vmem:[%s688 + $0x500] sm:$0xff] %v1009
                  %v1011 = vld [vmem:[%s687 + $0xa08] sm:$0xff]
                  %1012 = vst [vmem:[%s688 + $0x508] sm:$0xff] %v1011
                  %v1013 = vld [vmem:[%s687 + $0xa10] sm:$0xff]
                  %1014 = vst [vmem:[%s688 + $0x510] sm:$0xff] %v1013
                  %v1015 = vld [vmem:[%s687 + $0xa18] sm:$0xff]
                  %1016 = vst [vmem:[%s688 + $0x518] sm:$0xff] %v1015
                  %v1017 = vld [vmem:[%s687 + $0xa20] sm:$0xff]
                  %1018 = vst [vmem:[%s688 + $0x520] sm:$0xff] %v1017
                  %v1019 = vld [vmem:[%s687 + $0xa28] sm:$0xff]
                  %1020 = vst [vmem:[%s688 + $0x528] sm:$0xff] %v1019
                  %v1021 = vld [vmem:[%s687 + $0xa30] sm:$0xff]
                  %1022 = vst [vmem:[%s688 + $0x530] sm:$0xff] %v1021
                  %v1023 = vld [vmem:[%s687 + $0xa38] sm:$0xff]
                  %1024 = vst [vmem:[%s688 + $0x538] sm:$0xff] %v1023
                  %v1025 = vld [vmem:[%s687 + $0xa40] sm:$0xff]
                  %1026 = vst [vmem:[%s688 + $0x540] sm:$0xff] %v1025
                  %v1027 = vld [vmem:[%s687 + $0xa48] sm:$0xff]
                  %1028 = vst [vmem:[%s688 + $0x548] sm:$0xff] %v1027
                  %v1029 = vld [vmem:[%s687 + $0xa50] sm:$0xff]
                  %1030 = vst [vmem:[%s688 + $0x550] sm:$0xff] %v1029
                  %v1031 = vld [vmem:[%s687 + $0xa58] sm:$0xff]
                  %1032 = vst [vmem:[%s688 + $0x558] sm:$0xff] %v1031
                  %v1033 = vld [vmem:[%s687 + $0xa60] sm:$0xff]
                  %1034 = vst [vmem:[%s688 + $0x560] sm:$0xff] %v1033
                  %v1035 = vld [vmem:[%s687 + $0xa68] sm:$0xff]
                  %1036 = vst [vmem:[%s688 + $0x568] sm:$0xff] %v1035
                  %v1037 = vld [vmem:[%s687 + $0xa70] sm:$0xff]
                  %1038 = vst [vmem:[%s688 + $0x570] sm:$0xff] %v1037
                  %v1039 = vld [vmem:[%s687 + $0xa78] sm:$0xff]
                  %1040 = vst [vmem:[%s688 + $0x578] sm:$0xff] %v1039
                  %v1041 = vld [vmem:[%s687 + $0xa80] sm:$0xff]
                  %1042 = vst [vmem:[%s688 + $0x580] sm:$0xff] %v1041
                  %v1043 = vld [vmem:[%s687 + $0xa88] sm:$0xff]
                  %1044 = vst [vmem:[%s688 + $0x588] sm:$0xff] %v1043
                  %v1045 = vld [vmem:[%s687 + $0xa90] sm:$0xff]
                  %1046 = vst [vmem:[%s688 + $0x590] sm:$0xff] %v1045
                  %v1047 = vld [vmem:[%s687 + $0xa98] sm:$0xff]
                  %1048 = vst [vmem:[%s688 + $0x598] sm:$0xff] %v1047
                  %v1049 = vld [vmem:[%s687 + $0xaa0] sm:$0xff]
                  %1050 = vst [vmem:[%s688 + $0x5a0] sm:$0xff] %v1049
                  %v1051 = vld [vmem:[%s687 + $0xaa8] sm:$0xff]
                  %1052 = vst [vmem:[%s688 + $0x5a8] sm:$0xff] %v1051
                  %v1053 = vld [vmem:[%s687 + $0xab0] sm:$0xff]
                  %1054 = vst [vmem:[%s688 + $0x5b0] sm:$0xff] %v1053
                  %v1055 = vld [vmem:[%s687 + $0xab8] sm:$0xff]
                  %1056 = vst [vmem:[%s688 + $0x5b8] sm:$0xff] %v1055
                  %v1057 = vld [vmem:[%s687 + $0xac0] sm:$0xff]
                  %1058 = vst [vmem:[%s688 + $0x5c0] sm:$0xff] %v1057
                  %v1059 = vld [vmem:[%s687 + $0xac8] sm:$0xff]
                  %1060 = vst [vmem:[%s688 + $0x5c8] sm:$0xff] %v1059
                  %v1061 = vld [vmem:[%s687 + $0xad0] sm:$0xff]
                  %1062 = vst [vmem:[%s688 + $0x5d0] sm:$0xff] %v1061
                  %v1063 = vld [vmem:[%s687 + $0xad8] sm:$0xff]
                  %1064 = vst [vmem:[%s688 + $0x5d8] sm:$0xff] %v1063
                  %v1065 = vld [vmem:[%s687 + $0xae0] sm:$0xff]
                  %1066 = vst [vmem:[%s688 + $0x5e0] sm:$0xff] %v1065
                  %v1067 = vld [vmem:[%s687 + $0xae8] sm:$0xff]
                  %1068 = vst [vmem:[%s688 + $0x5e8] sm:$0xff] %v1067
                  %v1069 = vld [vmem:[%s687 + $0xaf0] sm:$0xff]
                  %1070 = vst [vmem:[%s688 + $0x5f0] sm:$0xff] %v1069
                  %v1071 = vld [vmem:[%s687 + $0xaf8] sm:$0xff]
                  %1072 = vst [vmem:[%s688 + $0x5f8] sm:$0xff] %v1071
                  %v1073 = vld [vmem:[%s687 + $0xc00] sm:$0xff]
                  %1074 = vst [vmem:[%s688 + $0x600] sm:$0xff] %v1073
                  %v1075 = vld [vmem:[%s687 + $0xc08] sm:$0xff]
                  %1076 = vst [vmem:[%s688 + $0x608] sm:$0xff] %v1075
                  %v1077 = vld [vmem:[%s687 + $0xc10] sm:$0xff]
                  %1078 = vst [vmem:[%s688 + $0x610] sm:$0xff] %v1077
                  %v1079 = vld [vmem:[%s687 + $0xc18] sm:$0xff]
                  %1080 = vst [vmem:[%s688 + $0x618] sm:$0xff] %v1079
                  %v1081 = vld [vmem:[%s687 + $0xc20] sm:$0xff]
                  %1082 = vst [vmem:[%s688 + $0x620] sm:$0xff] %v1081
                  %v1083 = vld [vmem:[%s687 + $0xc28] sm:$0xff]
                  %1084 = vst [vmem:[%s688 + $0x628] sm:$0xff] %v1083
                  %v1085 = vld [vmem:[%s687 + $0xc30] sm:$0xff]
                  %1086 = vst [vmem:[%s688 + $0x630] sm:$0xff] %v1085
                  %v1087 = vld [vmem:[%s687 + $0xc38] sm:$0xff]
                  %1088 = vst [vmem:[%s688 + $0x638] sm:$0xff] %v1087
                  %v1089 = vld [vmem:[%s687 + $0xc40] sm:$0xff]
                  %1090 = vst [vmem:[%s688 + $0x640] sm:$0xff] %v1089
                  %v1091 = vld [vmem:[%s687 + $0xc48] sm:$0xff]
                  %1092 = vst [vmem:[%s688 + $0x648] sm:$0xff] %v1091
                  %v1093 = vld [vmem:[%s687 + $0xc50] sm:$0xff]
                  %1094 = vst [vmem:[%s688 + $0x650] sm:$0xff] %v1093
                  %v1095 = vld [vmem:[%s687 + $0xc58] sm:$0xff]
                  %1096 = vst [vmem:[%s688 + $0x658] sm:$0xff] %v1095
                  %v1097 = vld [vmem:[%s687 + $0xc60] sm:$0xff]
                  %1098 = vst [vmem:[%s688 + $0x660] sm:$0xff] %v1097
                  %v1099 = vld [vmem:[%s687 + $0xc68] sm:$0xff]
                  %1100 = vst [vmem:[%s688 + $0x668] sm:$0xff] %v1099
                  %v1101 = vld [vmem:[%s687 + $0xc70] sm:$0xff]
                  %1102 = vst [vmem:[%s688 + $0x670] sm:$0xff] %v1101
                  %v1103 = vld [vmem:[%s687 + $0xc78] sm:$0xff]
                  %1104 = vst [vmem:[%s688 + $0x678] sm:$0xff] %v1103
                  %v1105 = vld [vmem:[%s687 + $0xc80] sm:$0xff]
                  %1106 = vst [vmem:[%s688 + $0x680] sm:$0xff] %v1105
                  %v1107 = vld [vmem:[%s687 + $0xc88] sm:$0xff]
                  %1108 = vst [vmem:[%s688 + $0x688] sm:$0xff] %v1107
                  %v1109 = vld [vmem:[%s687 + $0xc90] sm:$0xff]
                  %1110 = vst [vmem:[%s688 + $0x690] sm:$0xff] %v1109
                  %v1111 = vld [vmem:[%s687 + $0xc98] sm:$0xff]
                  %1112 = vst [vmem:[%s688 + $0x698] sm:$0xff] %v1111
                  %v1113 = vld [vmem:[%s687 + $0xca0] sm:$0xff]
                  %1114 = vst [vmem:[%s688 + $0x6a0] sm:$0xff] %v1113
                  %v1115 = vld [vmem:[%s687 + $0xca8] sm:$0xff]
                  %1116 = vst [vmem:[%s688 + $0x6a8] sm:$0xff] %v1115
                  %v1117 = vld [vmem:[%s687 + $0xcb0] sm:$0xff]
                  %1118 = vst [vmem:[%s688 + $0x6b0] sm:$0xff] %v1117
                  %v1119 = vld [vmem:[%s687 + $0xcb8] sm:$0xff]
                  %1120 = vst [vmem:[%s688 + $0x6b8] sm:$0xff] %v1119
                  %v1121 = vld [vmem:[%s687 + $0xcc0] sm:$0xff]
                  %1122 = vst [vmem:[%s688 + $0x6c0] sm:$0xff] %v1121
                  %v1123 = vld [vmem:[%s687 + $0xcc8] sm:$0xff]
                  %1124 = vst [vmem:[%s688 + $0x6c8] sm:$0xff] %v1123
                  %v1125 = vld [vmem:[%s687 + $0xcd0] sm:$0xff]
                  %1126 = vst [vmem:[%s688 + $0x6d0] sm:$0xff] %v1125
                  %v1127 = vld [vmem:[%s687 + $0xcd8] sm:$0xff]
                  %1128 = vst [vmem:[%s688 + $0x6d8] sm:$0xff] %v1127
                  %v1129 = vld [vmem:[%s687 + $0xce0] sm:$0xff]
                  %1130 = vst [vmem:[%s688 + $0x6e0] sm:$0xff] %v1129
                  %v1131 = vld [vmem:[%s687 + $0xce8] sm:$0xff]
                  %1132 = vst [vmem:[%s688 + $0x6e8] sm:$0xff] %v1131
                  %v1133 = vld [vmem:[%s687 + $0xcf0] sm:$0xff]
                  %1134 = vst [vmem:[%s688 + $0x6f0] sm:$0xff] %v1133
                  %v1135 = vld [vmem:[%s687 + $0xcf8] sm:$0xff]
                  %1136 = vst [vmem:[%s688 + $0x6f8] sm:$0xff] %v1135
                  %v1137 = vld [vmem:[%s687 + $0xe00] sm:$0xff]
                  %1138 = vst [vmem:[%s688 + $0x700] sm:$0xff] %v1137
                  %v1139 = vld [vmem:[%s687 + $0xe08] sm:$0xff]
                  %1140 = vst [vmem:[%s688 + $0x708] sm:$0xff] %v1139
                  %v1141 = vld [vmem:[%s687 + $0xe10] sm:$0xff]
                  %1142 = vst [vmem:[%s688 + $0x710] sm:$0xff] %v1141
                  %v1143 = vld [vmem:[%s687 + $0xe18] sm:$0xff]
                  %1144 = vst [vmem:[%s688 + $0x718] sm:$0xff] %v1143
                  %v1145 = vld [vmem:[%s687 + $0xe20] sm:$0xff]
                  %1146 = vst [vmem:[%s688 + $0x720] sm:$0xff] %v1145
                  %v1147 = vld [vmem:[%s687 + $0xe28] sm:$0xff]
                  %1148 = vst [vmem:[%s688 + $0x728] sm:$0xff] %v1147
                  %v1149 = vld [vmem:[%s687 + $0xe30] sm:$0xff]
                  %1150 = vst [vmem:[%s688 + $0x730] sm:$0xff] %v1149
                  %v1151 = vld [vmem:[%s687 + $0xe38] sm:$0xff]
                  %1152 = vst [vmem:[%s688 + $0x738] sm:$0xff] %v1151
                  %v1153 = vld [vmem:[%s687 + $0xe40] sm:$0xff]
                  %1154 = vst [vmem:[%s688 + $0x740] sm:$0xff] %v1153
                  %v1155 = vld [vmem:[%s687 + $0xe48] sm:$0xff]
                  %1156 = vst [vmem:[%s688 + $0x748] sm:$0xff] %v1155
                  %v1157 = vld [vmem:[%s687 + $0xe50] sm:$0xff]
                  %1158 = vst [vmem:[%s688 + $0x750] sm:$0xff] %v1157
                  %v1159 = vld [vmem:[%s687 + $0xe58] sm:$0xff]
                  %1160 = vst [vmem:[%s688 + $0x758] sm:$0xff] %v1159
                  %v1161 = vld [vmem:[%s687 + $0xe60] sm:$0xff]
                  %1162 = vst [vmem:[%s688 + $0x760] sm:$0xff] %v1161
                  %v1163 = vld [vmem:[%s687 + $0xe68] sm:$0xff]
                  %1164 = vst [vmem:[%s688 + $0x768] sm:$0xff] %v1163
                  %v1165 = vld [vmem:[%s687 + $0xe70] sm:$0xff]
                  %1166 = vst [vmem:[%s688 + $0x770] sm:$0xff] %v1165
                  %v1167 = vld [vmem:[%s687 + $0xe78] sm:$0xff]
                  %1168 = vst [vmem:[%s688 + $0x778] sm:$0xff] %v1167
                  %v1169 = vld [vmem:[%s687 + $0xe80] sm:$0xff]
                  %1170 = vst [vmem:[%s688 + $0x780] sm:$0xff] %v1169
                  %v1171 = vld [vmem:[%s687 + $0xe88] sm:$0xff]
                  %1172 = vst [vmem:[%s688 + $0x788] sm:$0xff] %v1171
                  %v1173 = vld [vmem:[%s687 + $0xe90] sm:$0xff]
                  %1174 = vst [vmem:[%s688 + $0x790] sm:$0xff] %v1173
                  %v1175 = vld [vmem:[%s687 + $0xe98] sm:$0xff]
                  %1176 = vst [vmem:[%s688 + $0x798] sm:$0xff] %v1175
                  %v1177 = vld [vmem:[%s687 + $0xea0] sm:$0xff]
                  %1178 = vst [vmem:[%s688 + $0x7a0] sm:$0xff] %v1177
                  %v1179 = vld [vmem:[%s687 + $0xea8] sm:$0xff]
                  %1180 = vst [vmem:[%s688 + $0x7a8] sm:$0xff] %v1179
                  %v1181 = vld [vmem:[%s687 + $0xeb0] sm:$0xff]
                  %1182 = vst [vmem:[%s688 + $0x7b0] sm:$0xff] %v1181
                  %v1183 = vld [vmem:[%s687 + $0xeb8] sm:$0xff]
                  %1184 = vst [vmem:[%s688 + $0x7b8] sm:$0xff] %v1183
                  %v1185 = vld [vmem:[%s687 + $0xec0] sm:$0xff]
                  %1186 = vst [vmem:[%s688 + $0x7c0] sm:$0xff] %v1185
                  %v1187 = vld [vmem:[%s687 + $0xec8] sm:$0xff]
                  %1188 = vst [vmem:[%s688 + $0x7c8] sm:$0xff] %v1187
                  %v1189 = vld [vmem:[%s687 + $0xed0] sm:$0xff]
                  %1190 = vst [vmem:[%s688 + $0x7d0] sm:$0xff] %v1189
                  %v1191 = vld [vmem:[%s687 + $0xed8] sm:$0xff]
                  %1192 = vst [vmem:[%s688 + $0x7d8] sm:$0xff] %v1191
                  %v1193 = vld [vmem:[%s687 + $0xee0] sm:$0xff]
                  %1194 = vst [vmem:[%s688 + $0x7e0] sm:$0xff] %v1193
                  %v1195 = vld [vmem:[%s687 + $0xee8] sm:$0xff]
                  %1196 = vst [vmem:[%s688 + $0x7e8] sm:$0xff] %v1195
                  %v1197 = vld [vmem:[%s687 + $0xef0] sm:$0xff]
                  %1198 = vst [vmem:[%s688 + $0x7f0] sm:$0xff] %v1197
                  %v1199 = vld [vmem:[%s687 + $0xef8] sm:$0xff]
                  %1200 = vst [vmem:[%s688 + $0x7f8] sm:$0xff] %v1199
                  %v1201 = vld [vmem:[%s687 + $0x1000] sm:$0xff]
                  %1202 = vst [vmem:[%s688 + $0x800] sm:$0xff] %v1201
                  %v1203 = vld [vmem:[%s687 + $0x1008] sm:$0xff]
                  %1204 = vst [vmem:[%s688 + $0x808] sm:$0xff] %v1203
                  %v1205 = vld [vmem:[%s687 + $0x1010] sm:$0xff]
                  %1206 = vst [vmem:[%s688 + $0x810] sm:$0xff] %v1205
                  %v1207 = vld [vmem:[%s687 + $0x1018] sm:$0xff]
                  %1208 = vst [vmem:[%s688 + $0x818] sm:$0xff] %v1207
                  %v1209 = vld [vmem:[%s687 + $0x1020] sm:$0xff]
                  %1210 = vst [vmem:[%s688 + $0x820] sm:$0xff] %v1209
                  %v1211 = vld [vmem:[%s687 + $0x1028] sm:$0xff]
                  %1212 = vst [vmem:[%s688 + $0x828] sm:$0xff] %v1211
                  %v1213 = vld [vmem:[%s687 + $0x1030] sm:$0xff]
                  %1214 = vst [vmem:[%s688 + $0x830] sm:$0xff] %v1213
                  %v1215 = vld [vmem:[%s687 + $0x1038] sm:$0xff]
                  %1216 = vst [vmem:[%s688 + $0x838] sm:$0xff] %v1215
                  %v1217 = vld [vmem:[%s687 + $0x1040] sm:$0xff]
                  %1218 = vst [vmem:[%s688 + $0x840] sm:$0xff] %v1217
                  %v1219 = vld [vmem:[%s687 + $0x1048] sm:$0xff]
                  %1220 = vst [vmem:[%s688 + $0x848] sm:$0xff] %v1219
                  %v1221 = vld [vmem:[%s687 + $0x1050] sm:$0xff]
                  %1222 = vst [vmem:[%s688 + $0x850] sm:$0xff] %v1221
                  %v1223 = vld [vmem:[%s687 + $0x1058] sm:$0xff]
                  %1224 = vst [vmem:[%s688 + $0x858] sm:$0xff] %v1223
                  %v1225 = vld [vmem:[%s687 + $0x1060] sm:$0xff]
                  %1226 = vst [vmem:[%s688 + $0x860] sm:$0xff] %v1225
                  %v1227 = vld [vmem:[%s687 + $0x1068] sm:$0xff]
                  %1228 = vst [vmem:[%s688 + $0x868] sm:$0xff] %v1227
                  %v1229 = vld [vmem:[%s687 + $0x1070] sm:$0xff]
                  %1230 = vst [vmem:[%s688 + $0x870] sm:$0xff] %v1229
                  %v1231 = vld [vmem:[%s687 + $0x1078] sm:$0xff]
                  %1232 = vst [vmem:[%s688 + $0x878] sm:$0xff] %v1231
                  %v1233 = vld [vmem:[%s687 + $0x1080] sm:$0xff]
                  %1234 = vst [vmem:[%s688 + $0x880] sm:$0xff] %v1233
                  %v1235 = vld [vmem:[%s687 + $0x1088] sm:$0xff]
                  %1236 = vst [vmem:[%s688 + $0x888] sm:$0xff] %v1235
                  %v1237 = vld [vmem:[%s687 + $0x1090] sm:$0xff]
                  %1238 = vst [vmem:[%s688 + $0x890] sm:$0xff] %v1237
                  %v1239 = vld [vmem:[%s687 + $0x1098] sm:$0xff]
                  %1240 = vst [vmem:[%s688 + $0x898] sm:$0xff] %v1239
                  %v1241 = vld [vmem:[%s687 + $0x10a0] sm:$0xff]
                  %1242 = vst [vmem:[%s688 + $0x8a0] sm:$0xff] %v1241
                  %v1243 = vld [vmem:[%s687 + $0x10a8] sm:$0xff]
                  %1244 = vst [vmem:[%s688 + $0x8a8] sm:$0xff] %v1243
                  %v1245 = vld [vmem:[%s687 + $0x10b0] sm:$0xff]
                  %1246 = vst [vmem:[%s688 + $0x8b0] sm:$0xff] %v1245
                  %v1247 = vld [vmem:[%s687 + $0x10b8] sm:$0xff]
                  %1248 = vst [vmem:[%s688 + $0x8b8] sm:$0xff] %v1247
                  %v1249 = vld [vmem:[%s687 + $0x10c0] sm:$0xff]
                  %1250 = vst [vmem:[%s688 + $0x8c0] sm:$0xff] %v1249
                  %v1251 = vld [vmem:[%s687 + $0x10c8] sm:$0xff]
                  %1252 = vst [vmem:[%s688 + $0x8c8] sm:$0xff] %v1251
                  %v1253 = vld [vmem:[%s687 + $0x10d0] sm:$0xff]
                  %1254 = vst [vmem:[%s688 + $0x8d0] sm:$0xff] %v1253
                  %v1255 = vld [vmem:[%s687 + $0x10d8] sm:$0xff]
                  %1256 = vst [vmem:[%s688 + $0x8d8] sm:$0xff] %v1255
                  %v1257 = vld [vmem:[%s687 + $0x10e0] sm:$0xff]
                  %1258 = vst [vmem:[%s688 + $0x8e0] sm:$0xff] %v1257
                  %v1259 = vld [vmem:[%s687 + $0x10e8] sm:$0xff]
                  %1260 = vst [vmem:[%s688 + $0x8e8] sm:$0xff] %v1259
                  %v1261 = vld [vmem:[%s687 + $0x10f0] sm:$0xff]
                  %1262 = vst [vmem:[%s688 + $0x8f0] sm:$0xff] %v1261
                  %v1263 = vld [vmem:[%s687 + $0x10f8] sm:$0xff]
                  %1264 = vst [vmem:[%s688 + $0x8f8] sm:$0xff] %v1263
                $region48: #{feature_extractor_forward.10} parent=42 // loop_footer
                  %s686 = sadd.s32 1, %s682
                $region49: #{feature_extractor_forward.10} parent=42 // loop_footer_branch
                  %681 = sbr.rel target = $region45
                $region50: #{feature_extractor_forward.10} parent=42 // loop_exit
                  _
              $region43: #{feature_extractor_forward.10} parent=27 // pred_fallthru
                _
              // Predicated region
              $region51: #{feature_extractor_forward.10} parent=27 // pred_check
                _
              $region52: #{feature_extractor_forward.10} parent=27 // pred_check_branch
                %1266 = sbr.rel target = $region54
              $region53: #{feature_extractor_forward.10} parent=27 // pred_region
                _
              $region54: #{feature_extractor_forward.10} parent=27 // pred_fallthru
                _
            $region28: #{feature_extractor_forward.10} parent=23 // pred_fallthru
              _
            // Predicated region
            $region29: #{feature_extractor_forward.10} parent=23 // pred_check
              _
            $region30: #{feature_extractor_forward.10} parent=23 // pred_check_branch
              %93 = sbr.rel target = $region32
            $region31: #{feature_extractor_forward.10} parent=23 // pred_region
              loop: start=0, step=1, limit=1
              $region33: #{feature_extractor_forward.10} parent=31 // loop_pre_header
                _
              $region34: #{feature_extractor_forward.10} parent=31 // loop_header
                %s96 = sphi 0, %s100
                %p97 = scmp.ge.s32.totalorder %s96, 1
                %s101 = sphi %s87, %s87
                %s102 = sphi %s84, %s84
              $region35: #{feature_extractor_forward.10} parent=31 // loop_header_branch
                %99 = sbr.rel (%p97) target = $region39
              $region36: #{feature_extractor_forward.10} parent=31 // loop_body
                %v103 = vld [vmem:[%s101] sm:$0xff]
                %104 = vst [vmem:[%s102] sm:$0xff] %v103
                %v105 = vld [vmem:[%s101 + $0x8] sm:$0xff]
                %106 = vst [vmem:[%s102 + $0x8] sm:$0xff] %v105
                %v107 = vld [vmem:[%s101 + $0x10] sm:$0xff]
                %108 = vst [vmem:[%s102 + $0x10] sm:$0xff] %v107
                %v109 = vld [vmem:[%s101 + $0x18] sm:$0xff]
                %110 = vst [vmem:[%s102 + $0x18] sm:$0xff] %v109
                %v111 = vld [vmem:[%s101 + $0x20] sm:$0xff]
                %112 = vst [vmem:[%s102 + $0x20] sm:$0xff] %v111
                %v113 = vld [vmem:[%s101 + $0x28] sm:$0xff]
                %114 = vst [vmem:[%s102 + $0x28] sm:$0xff] %v113
                %v115 = vld [vmem:[%s101 + $0x30] sm:$0xff]
                %116 = vst [vmem:[%s102 + $0x30] sm:$0xff] %v115
                %v117 = vld [vmem:[%s101 + $0x38] sm:$0xff]
                %118 = vst [vmem:[%s102 + $0x38] sm:$0xff] %v117
                %v119 = vld [vmem:[%s101 + $0x40] sm:$0xff]
                %120 = vst [vmem:[%s102 + $0x40] sm:$0xff] %v119
                %v121 = vld [vmem:[%s101 + $0x48] sm:$0xff]
                %122 = vst [vmem:[%s102 + $0x48] sm:$0xff] %v121
                %v123 = vld [vmem:[%s101 + $0x50] sm:$0xff]
                %124 = vst [vmem:[%s102 + $0x50] sm:$0xff] %v123
                %v125 = vld [vmem:[%s101 + $0x58] sm:$0xff]
                %126 = vst [vmem:[%s102 + $0x58] sm:$0xff] %v125
                %v127 = vld [vmem:[%s101 + $0x60] sm:$0xff]
                %128 = vst [vmem:[%s102 + $0x60] sm:$0xff] %v127
                %v129 = vld [vmem:[%s101 + $0x68] sm:$0xff]
                %130 = vst [vmem:[%s102 + $0x68] sm:$0xff] %v129
                %v131 = vld [vmem:[%s101 + $0x70] sm:$0xff]
                %132 = vst [vmem:[%s102 + $0x70] sm:$0xff] %v131
                %v133 = vld [vmem:[%s101 + $0x78] sm:$0xff]
                %134 = vst [vmem:[%s102 + $0x78] sm:$0xff] %v133
                %v135 = vld [vmem:[%s101 + $0x80] sm:$0xff]
                %136 = vst [vmem:[%s102 + $0x80] sm:$0xff] %v135
                %v137 = vld [vmem:[%s101 + $0x88] sm:$0xff]
                %138 = vst [vmem:[%s102 + $0x88] sm:$0xff] %v137
                %v139 = vld [vmem:[%s101 + $0x90] sm:$0xff]
                %140 = vst [vmem:[%s102 + $0x90] sm:$0xff] %v139
                %v141 = vld [vmem:[%s101 + $0x98] sm:$0xff]
                %142 = vst [vmem:[%s102 + $0x98] sm:$0xff] %v141
                %v143 = vld [vmem:[%s101 + $0xa0] sm:$0xff]
                %144 = vst [vmem:[%s102 + $0xa0] sm:$0xff] %v143
                %v145 = vld [vmem:[%s101 + $0xa8] sm:$0xff]
                %146 = vst [vmem:[%s102 + $0xa8] sm:$0xff] %v145
                %v147 = vld [vmem:[%s101 + $0xb0] sm:$0xff]
                %148 = vst [vmem:[%s102 + $0xb0] sm:$0xff] %v147
                %v149 = vld [vmem:[%s101 + $0xb8] sm:$0xff]
                %150 = vst [vmem:[%s102 + $0xb8] sm:$0xff] %v149
                %v151 = vld [vmem:[%s101 + $0xc0] sm:$0xff]
                %152 = vst [vmem:[%s102 + $0xc0] sm:$0xff] %v151
                %v153 = vld [vmem:[%s101 + $0xc8] sm:$0xff]
                %154 = vst [vmem:[%s102 + $0xc8] sm:$0xff] %v153
                %v155 = vld [vmem:[%s101 + $0xd0] sm:$0xff]
                %156 = vst [vmem:[%s102 + $0xd0] sm:$0xff] %v155
                %v157 = vld [vmem:[%s101 + $0xd8] sm:$0xff]
                %158 = vst [vmem:[%s102 + $0xd8] sm:$0xff] %v157
                %v159 = vld [vmem:[%s101 + $0xe0] sm:$0xff]
                %160 = vst [vmem:[%s102 + $0xe0] sm:$0xff] %v159
                %v161 = vld [vmem:[%s101 + $0xe8] sm:$0xff]
                %162 = vst [vmem:[%s102 + $0xe8] sm:$0xff] %v161
                %v163 = vld [vmem:[%s101 + $0xf0] sm:$0xff]
                %164 = vst [vmem:[%s102 + $0xf0] sm:$0xff] %v163
                %v165 = vld [vmem:[%s101 + $0xf8] sm:$0xff]
                %166 = vst [vmem:[%s102 + $0xf8] sm:$0xff] %v165
                %v167 = vld [vmem:[%s101 + $0x200] sm:$0xff]
                %168 = vst [vmem:[%s102 + $0x100] sm:$0xff] %v167
                %v169 = vld [vmem:[%s101 + $0x208] sm:$0xff]
                %170 = vst [vmem:[%s102 + $0x108] sm:$0xff] %v169
                %v171 = vld [vmem:[%s101 + $0x210] sm:$0xff]
                %172 = vst [vmem:[%s102 + $0x110] sm:$0xff] %v171
                %v173 = vld [vmem:[%s101 + $0x218] sm:$0xff]
                %174 = vst [vmem:[%s102 + $0x118] sm:$0xff] %v173
                %v175 = vld [vmem:[%s101 + $0x220] sm:$0xff]
                %176 = vst [vmem:[%s102 + $0x120] sm:$0xff] %v175
                %v177 = vld [vmem:[%s101 + $0x228] sm:$0xff]
                %178 = vst [vmem:[%s102 + $0x128] sm:$0xff] %v177
                %v179 = vld [vmem:[%s101 + $0x230] sm:$0xff]
                %180 = vst [vmem:[%s102 + $0x130] sm:$0xff] %v179
                %v181 = vld [vmem:[%s101 + $0x238] sm:$0xff]
                %182 = vst [vmem:[%s102 + $0x138] sm:$0xff] %v181
                %v183 = vld [vmem:[%s101 + $0x240] sm:$0xff]
                %184 = vst [vmem:[%s102 + $0x140] sm:$0xff] %v183
                %v185 = vld [vmem:[%s101 + $0x248] sm:$0xff]
                %186 = vst [vmem:[%s102 + $0x148] sm:$0xff] %v185
                %v187 = vld [vmem:[%s101 + $0x250] sm:$0xff]
                %188 = vst [vmem:[%s102 + $0x150] sm:$0xff] %v187
                %v189 = vld [vmem:[%s101 + $0x258] sm:$0xff]
                %190 = vst [vmem:[%s102 + $0x158] sm:$0xff] %v189
                %v191 = vld [vmem:[%s101 + $0x260] sm:$0xff]
                %192 = vst [vmem:[%s102 + $0x160] sm:$0xff] %v191
                %v193 = vld [vmem:[%s101 + $0x268] sm:$0xff]
                %194 = vst [vmem:[%s102 + $0x168] sm:$0xff] %v193
                %v195 = vld [vmem:[%s101 + $0x270] sm:$0xff]
                %196 = vst [vmem:[%s102 + $0x170] sm:$0xff] %v195
                %v197 = vld [vmem:[%s101 + $0x278] sm:$0xff]
                %198 = vst [vmem:[%s102 + $0x178] sm:$0xff] %v197
                %v199 = vld [vmem:[%s101 + $0x280] sm:$0xff]
                %200 = vst [vmem:[%s102 + $0x180] sm:$0xff] %v199
                %v201 = vld [vmem:[%s101 + $0x288] sm:$0xff]
                %202 = vst [vmem:[%s102 + $0x188] sm:$0xff] %v201
                %v203 = vld [vmem:[%s101 + $0x290] sm:$0xff]
                %204 = vst [vmem:[%s102 + $0x190] sm:$0xff] %v203
                %v205 = vld [vmem:[%s101 + $0x298] sm:$0xff]
                %206 = vst [vmem:[%s102 + $0x198] sm:$0xff] %v205
                %v207 = vld [vmem:[%s101 + $0x2a0] sm:$0xff]
                %208 = vst [vmem:[%s102 + $0x1a0] sm:$0xff] %v207
                %v209 = vld [vmem:[%s101 + $0x2a8] sm:$0xff]
                %210 = vst [vmem:[%s102 + $0x1a8] sm:$0xff] %v209
                %v211 = vld [vmem:[%s101 + $0x2b0] sm:$0xff]
                %212 = vst [vmem:[%s102 + $0x1b0] sm:$0xff] %v211
                %v213 = vld [vmem:[%s101 + $0x2b8] sm:$0xff]
                %214 = vst [vmem:[%s102 + $0x1b8] sm:$0xff] %v213
                %v215 = vld [vmem:[%s101 + $0x2c0] sm:$0xff]
                %216 = vst [vmem:[%s102 + $0x1c0] sm:$0xff] %v215
                %v217 = vld [vmem:[%s101 + $0x2c8] sm:$0xff]
                %218 = vst [vmem:[%s102 + $0x1c8] sm:$0xff] %v217
                %v219 = vld [vmem:[%s101 + $0x2d0] sm:$0xff]
                %220 = vst [vmem:[%s102 + $0x1d0] sm:$0xff] %v219
                %v221 = vld [vmem:[%s101 + $0x2d8] sm:$0xff]
                %222 = vst [vmem:[%s102 + $0x1d8] sm:$0xff] %v221
                %v223 = vld [vmem:[%s101 + $0x2e0] sm:$0xff]
                %224 = vst [vmem:[%s102 + $0x1e0] sm:$0xff] %v223
                %v225 = vld [vmem:[%s101 + $0x2e8] sm:$0xff]
                %226 = vst [vmem:[%s102 + $0x1e8] sm:$0xff] %v225
                %v227 = vld [vmem:[%s101 + $0x2f0] sm:$0xff]
                %228 = vst [vmem:[%s102 + $0x1f0] sm:$0xff] %v227
                %v229 = vld [vmem:[%s101 + $0x2f8] sm:$0xff]
                %230 = vst [vmem:[%s102 + $0x1f8] sm:$0xff] %v229
                %v231 = vld [vmem:[%s101 + $0x400] sm:$0xff]
                %232 = vst [vmem:[%s102 + $0x200] sm:$0xff] %v231
                %v233 = vld [vmem:[%s101 + $0x408] sm:$0xff]
                %234 = vst [vmem:[%s102 + $0x208] sm:$0xff] %v233
                %v235 = vld [vmem:[%s101 + $0x410] sm:$0xff]
                %236 = vst [vmem:[%s102 + $0x210] sm:$0xff] %v235
                %v237 = vld [vmem:[%s101 + $0x418] sm:$0xff]
                %238 = vst [vmem:[%s102 + $0x218] sm:$0xff] %v237
                %v239 = vld [vmem:[%s101 + $0x420] sm:$0xff]
                %240 = vst [vmem:[%s102 + $0x220] sm:$0xff] %v239
                %v241 = vld [vmem:[%s101 + $0x428] sm:$0xff]
                %242 = vst [vmem:[%s102 + $0x228] sm:$0xff] %v241
                %v243 = vld [vmem:[%s101 + $0x430] sm:$0xff]
                %244 = vst [vmem:[%s102 + $0x230] sm:$0xff] %v243
                %v245 = vld [vmem:[%s101 + $0x438] sm:$0xff]
                %246 = vst [vmem:[%s102 + $0x238] sm:$0xff] %v245
                %v247 = vld [vmem:[%s101 + $0x440] sm:$0xff]
                %248 = vst [vmem:[%s102 + $0x240] sm:$0xff] %v247
                %v249 = vld [vmem:[%s101 + $0x448] sm:$0xff]
                %250 = vst [vmem:[%s102 + $0x248] sm:$0xff] %v249
                %v251 = vld [vmem:[%s101 + $0x450] sm:$0xff]
                %252 = vst [vmem:[%s102 + $0x250] sm:$0xff] %v251
                %v253 = vld [vmem:[%s101 + $0x458] sm:$0xff]
                %254 = vst [vmem:[%s102 + $0x258] sm:$0xff] %v253
                %v255 = vld [vmem:[%s101 + $0x460] sm:$0xff]
                %256 = vst [vmem:[%s102 + $0x260] sm:$0xff] %v255
                %v257 = vld [vmem:[%s101 + $0x468] sm:$0xff]
                %258 = vst [vmem:[%s102 + $0x268] sm:$0xff] %v257
                %v259 = vld [vmem:[%s101 + $0x470] sm:$0xff]
                %260 = vst [vmem:[%s102 + $0x270] sm:$0xff] %v259
                %v261 = vld [vmem:[%s101 + $0x478] sm:$0xff]
                %262 = vst [vmem:[%s102 + $0x278] sm:$0xff] %v261
                %v263 = vld [vmem:[%s101 + $0x480] sm:$0xff]
                %264 = vst [vmem:[%s102 + $0x280] sm:$0xff] %v263
                %v265 = vld [vmem:[%s101 + $0x488] sm:$0xff]
                %266 = vst [vmem:[%s102 + $0x288] sm:$0xff] %v265
                %v267 = vld [vmem:[%s101 + $0x490] sm:$0xff]
                %268 = vst [vmem:[%s102 + $0x290] sm:$0xff] %v267
                %v269 = vld [vmem:[%s101 + $0x498] sm:$0xff]
                %270 = vst [vmem:[%s102 + $0x298] sm:$0xff] %v269
                %v271 = vld [vmem:[%s101 + $0x4a0] sm:$0xff]
                %272 = vst [vmem:[%s102 + $0x2a0] sm:$0xff] %v271
                %v273 = vld [vmem:[%s101 + $0x4a8] sm:$0xff]
                %274 = vst [vmem:[%s102 + $0x2a8] sm:$0xff] %v273
                %v275 = vld [vmem:[%s101 + $0x4b0] sm:$0xff]
                %276 = vst [vmem:[%s102 + $0x2b0] sm:$0xff] %v275
                %v277 = vld [vmem:[%s101 + $0x4b8] sm:$0xff]
                %278 = vst [vmem:[%s102 + $0x2b8] sm:$0xff] %v277
                %v279 = vld [vmem:[%s101 + $0x4c0] sm:$0xff]
                %280 = vst [vmem:[%s102 + $0x2c0] sm:$0xff] %v279
                %v281 = vld [vmem:[%s101 + $0x4c8] sm:$0xff]
                %282 = vst [vmem:[%s102 + $0x2c8] sm:$0xff] %v281
                %v283 = vld [vmem:[%s101 + $0x4d0] sm:$0xff]
                %284 = vst [vmem:[%s102 + $0x2d0] sm:$0xff] %v283
                %v285 = vld [vmem:[%s101 + $0x4d8] sm:$0xff]
                %286 = vst [vmem:[%s102 + $0x2d8] sm:$0xff] %v285
                %v287 = vld [vmem:[%s101 + $0x4e0] sm:$0xff]
                %288 = vst [vmem:[%s102 + $0x2e0] sm:$0xff] %v287
                %v289 = vld [vmem:[%s101 + $0x4e8] sm:$0xff]
                %290 = vst [vmem:[%s102 + $0x2e8] sm:$0xff] %v289
                %v291 = vld [vmem:[%s101 + $0x4f0] sm:$0xff]
                %292 = vst [vmem:[%s102 + $0x2f0] sm:$0xff] %v291
                %v293 = vld [vmem:[%s101 + $0x4f8] sm:$0xff]
                %294 = vst [vmem:[%s102 + $0x2f8] sm:$0xff] %v293
                %v295 = vld [vmem:[%s101 + $0x600] sm:$0xff]
                %296 = vst [vmem:[%s102 + $0x300] sm:$0xff] %v295
                %v297 = vld [vmem:[%s101 + $0x608] sm:$0xff]
                %298 = vst [vmem:[%s102 + $0x308] sm:$0xff] %v297
                %v299 = vld [vmem:[%s101 + $0x610] sm:$0xff]
                %300 = vst [vmem:[%s102 + $0x310] sm:$0xff] %v299
                %v301 = vld [vmem:[%s101 + $0x618] sm:$0xff]
                %302 = vst [vmem:[%s102 + $0x318] sm:$0xff] %v301
                %v303 = vld [vmem:[%s101 + $0x620] sm:$0xff]
                %304 = vst [vmem:[%s102 + $0x320] sm:$0xff] %v303
                %v305 = vld [vmem:[%s101 + $0x628] sm:$0xff]
                %306 = vst [vmem:[%s102 + $0x328] sm:$0xff] %v305
                %v307 = vld [vmem:[%s101 + $0x630] sm:$0xff]
                %308 = vst [vmem:[%s102 + $0x330] sm:$0xff] %v307
                %v309 = vld [vmem:[%s101 + $0x638] sm:$0xff]
                %310 = vst [vmem:[%s102 + $0x338] sm:$0xff] %v309
                %v311 = vld [vmem:[%s101 + $0x640] sm:$0xff]
                %312 = vst [vmem:[%s102 + $0x340] sm:$0xff] %v311
                %v313 = vld [vmem:[%s101 + $0x648] sm:$0xff]
                %314 = vst [vmem:[%s102 + $0x348] sm:$0xff] %v313
                %v315 = vld [vmem:[%s101 + $0x650] sm:$0xff]
                %316 = vst [vmem:[%s102 + $0x350] sm:$0xff] %v315
                %v317 = vld [vmem:[%s101 + $0x658] sm:$0xff]
                %318 = vst [vmem:[%s102 + $0x358] sm:$0xff] %v317
                %v319 = vld [vmem:[%s101 + $0x660] sm:$0xff]
                %320 = vst [vmem:[%s102 + $0x360] sm:$0xff] %v319
                %v321 = vld [vmem:[%s101 + $0x668] sm:$0xff]
                %322 = vst [vmem:[%s102 + $0x368] sm:$0xff] %v321
                %v323 = vld [vmem:[%s101 + $0x670] sm:$0xff]
                %324 = vst [vmem:[%s102 + $0x370] sm:$0xff] %v323
                %v325 = vld [vmem:[%s101 + $0x678] sm:$0xff]
                %326 = vst [vmem:[%s102 + $0x378] sm:$0xff] %v325
                %v327 = vld [vmem:[%s101 + $0x680] sm:$0xff]
                %328 = vst [vmem:[%s102 + $0x380] sm:$0xff] %v327
                %v329 = vld [vmem:[%s101 + $0x688] sm:$0xff]
                %330 = vst [vmem:[%s102 + $0x388] sm:$0xff] %v329
                %v331 = vld [vmem:[%s101 + $0x690] sm:$0xff]
                %332 = vst [vmem:[%s102 + $0x390] sm:$0xff] %v331
                %v333 = vld [vmem:[%s101 + $0x698] sm:$0xff]
                %334 = vst [vmem:[%s102 + $0x398] sm:$0xff] %v333
                %v335 = vld [vmem:[%s101 + $0x6a0] sm:$0xff]
                %336 = vst [vmem:[%s102 + $0x3a0] sm:$0xff] %v335
                %v337 = vld [vmem:[%s101 + $0x6a8] sm:$0xff]
                %338 = vst [vmem:[%s102 + $0x3a8] sm:$0xff] %v337
                %v339 = vld [vmem:[%s101 + $0x6b0] sm:$0xff]
                %340 = vst [vmem:[%s102 + $0x3b0] sm:$0xff] %v339
                %v341 = vld [vmem:[%s101 + $0x6b8] sm:$0xff]
                %342 = vst [vmem:[%s102 + $0x3b8] sm:$0xff] %v341
                %v343 = vld [vmem:[%s101 + $0x6c0] sm:$0xff]
                %344 = vst [vmem:[%s102 + $0x3c0] sm:$0xff] %v343
                %v345 = vld [vmem:[%s101 + $0x6c8] sm:$0xff]
                %346 = vst [vmem:[%s102 + $0x3c8] sm:$0xff] %v345
                %v347 = vld [vmem:[%s101 + $0x6d0] sm:$0xff]
                %348 = vst [vmem:[%s102 + $0x3d0] sm:$0xff] %v347
                %v349 = vld [vmem:[%s101 + $0x6d8] sm:$0xff]
                %350 = vst [vmem:[%s102 + $0x3d8] sm:$0xff] %v349
                %v351 = vld [vmem:[%s101 + $0x6e0] sm:$0xff]
                %352 = vst [vmem:[%s102 + $0x3e0] sm:$0xff] %v351
                %v353 = vld [vmem:[%s101 + $0x6e8] sm:$0xff]
                %354 = vst [vmem:[%s102 + $0x3e8] sm:$0xff] %v353
                %v355 = vld [vmem:[%s101 + $0x6f0] sm:$0xff]
                %356 = vst [vmem:[%s102 + $0x3f0] sm:$0xff] %v355
                %v357 = vld [vmem:[%s101 + $0x6f8] sm:$0xff]
                %358 = vst [vmem:[%s102 + $0x3f8] sm:$0xff] %v357
                %v359 = vld [vmem:[%s101 + $0x800] sm:$0xff]
                %360 = vst [vmem:[%s102 + $0x400] sm:$0xff] %v359
                %v361 = vld [vmem:[%s101 + $0x808] sm:$0xff]
                %362 = vst [vmem:[%s102 + $0x408] sm:$0xff] %v361
                %v363 = vld [vmem:[%s101 + $0x810] sm:$0xff]
                %364 = vst [vmem:[%s102 + $0x410] sm:$0xff] %v363
                %v365 = vld [vmem:[%s101 + $0x818] sm:$0xff]
                %366 = vst [vmem:[%s102 + $0x418] sm:$0xff] %v365
                %v367 = vld [vmem:[%s101 + $0x820] sm:$0xff]
                %368 = vst [vmem:[%s102 + $0x420] sm:$0xff] %v367
                %v369 = vld [vmem:[%s101 + $0x828] sm:$0xff]
                %370 = vst [vmem:[%s102 + $0x428] sm:$0xff] %v369
                %v371 = vld [vmem:[%s101 + $0x830] sm:$0xff]
                %372 = vst [vmem:[%s102 + $0x430] sm:$0xff] %v371
                %v373 = vld [vmem:[%s101 + $0x838] sm:$0xff]
                %374 = vst [vmem:[%s102 + $0x438] sm:$0xff] %v373
                %v375 = vld [vmem:[%s101 + $0x840] sm:$0xff]
                %376 = vst [vmem:[%s102 + $0x440] sm:$0xff] %v375
                %v377 = vld [vmem:[%s101 + $0x848] sm:$0xff]
                %378 = vst [vmem:[%s102 + $0x448] sm:$0xff] %v377
                %v379 = vld [vmem:[%s101 + $0x850] sm:$0xff]
                %380 = vst [vmem:[%s102 + $0x450] sm:$0xff] %v379
                %v381 = vld [vmem:[%s101 + $0x858] sm:$0xff]
                %382 = vst [vmem:[%s102 + $0x458] sm:$0xff] %v381
                %v383 = vld [vmem:[%s101 + $0x860] sm:$0xff]
                %384 = vst [vmem:[%s102 + $0x460] sm:$0xff] %v383
                %v385 = vld [vmem:[%s101 + $0x868] sm:$0xff]
                %386 = vst [vmem:[%s102 + $0x468] sm:$0xff] %v385
                %v387 = vld [vmem:[%s101 + $0x870] sm:$0xff]
                %388 = vst [vmem:[%s102 + $0x470] sm:$0xff] %v387
                %v389 = vld [vmem:[%s101 + $0x878] sm:$0xff]
                %390 = vst [vmem:[%s102 + $0x478] sm:$0xff] %v389
                %v391 = vld [vmem:[%s101 + $0x880] sm:$0xff]
                %392 = vst [vmem:[%s102 + $0x480] sm:$0xff] %v391
                %v393 = vld [vmem:[%s101 + $0x888] sm:$0xff]
                %394 = vst [vmem:[%s102 + $0x488] sm:$0xff] %v393
                %v395 = vld [vmem:[%s101 + $0x890] sm:$0xff]
                %396 = vst [vmem:[%s102 + $0x490] sm:$0xff] %v395
                %v397 = vld [vmem:[%s101 + $0x898] sm:$0xff]
                %398 = vst [vmem:[%s102 + $0x498] sm:$0xff] %v397
                %v399 = vld [vmem:[%s101 + $0x8a0] sm:$0xff]
                %400 = vst [vmem:[%s102 + $0x4a0] sm:$0xff] %v399
                %v401 = vld [vmem:[%s101 + $0x8a8] sm:$0xff]
                %402 = vst [vmem:[%s102 + $0x4a8] sm:$0xff] %v401
                %v403 = vld [vmem:[%s101 + $0x8b0] sm:$0xff]
                %404 = vst [vmem:[%s102 + $0x4b0] sm:$0xff] %v403
                %v405 = vld [vmem:[%s101 + $0x8b8] sm:$0xff]
                %406 = vst [vmem:[%s102 + $0x4b8] sm:$0xff] %v405
                %v407 = vld [vmem:[%s101 + $0x8c0] sm:$0xff]
                %408 = vst [vmem:[%s102 + $0x4c0] sm:$0xff] %v407
                %v409 = vld [vmem:[%s101 + $0x8c8] sm:$0xff]
                %410 = vst [vmem:[%s102 + $0x4c8] sm:$0xff] %v409
                %v411 = vld [vmem:[%s101 + $0x8d0] sm:$0xff]
                %412 = vst [vmem:[%s102 + $0x4d0] sm:$0xff] %v411
                %v413 = vld [vmem:[%s101 + $0x8d8] sm:$0xff]
                %414 = vst [vmem:[%s102 + $0x4d8] sm:$0xff] %v413
                %v415 = vld [vmem:[%s101 + $0x8e0] sm:$0xff]
                %416 = vst [vmem:[%s102 + $0x4e0] sm:$0xff] %v415
                %v417 = vld [vmem:[%s101 + $0x8e8] sm:$0xff]
                %418 = vst [vmem:[%s102 + $0x4e8] sm:$0xff] %v417
                %v419 = vld [vmem:[%s101 + $0x8f0] sm:$0xff]
                %420 = vst [vmem:[%s102 + $0x4f0] sm:$0xff] %v419
                %v421 = vld [vmem:[%s101 + $0x8f8] sm:$0xff]
                %422 = vst [vmem:[%s102 + $0x4f8] sm:$0xff] %v421
                %v423 = vld [vmem:[%s101 + $0xa00] sm:$0xff]
                %424 = vst [vmem:[%s102 + $0x500] sm:$0xff] %v423
                %v425 = vld [vmem:[%s101 + $0xa08] sm:$0xff]
                %426 = vst [vmem:[%s102 + $0x508] sm:$0xff] %v425
                %v427 = vld [vmem:[%s101 + $0xa10] sm:$0xff]
                %428 = vst [vmem:[%s102 + $0x510] sm:$0xff] %v427
                %v429 = vld [vmem:[%s101 + $0xa18] sm:$0xff]
                %430 = vst [vmem:[%s102 + $0x518] sm:$0xff] %v429
                %v431 = vld [vmem:[%s101 + $0xa20] sm:$0xff]
                %432 = vst [vmem:[%s102 + $0x520] sm:$0xff] %v431
                %v433 = vld [vmem:[%s101 + $0xa28] sm:$0xff]
                %434 = vst [vmem:[%s102 + $0x528] sm:$0xff] %v433
                %v435 = vld [vmem:[%s101 + $0xa30] sm:$0xff]
                %436 = vst [vmem:[%s102 + $0x530] sm:$0xff] %v435
                %v437 = vld [vmem:[%s101 + $0xa38] sm:$0xff]
                %438 = vst [vmem:[%s102 + $0x538] sm:$0xff] %v437
                %v439 = vld [vmem:[%s101 + $0xa40] sm:$0xff]
                %440 = vst [vmem:[%s102 + $0x540] sm:$0xff] %v439
                %v441 = vld [vmem:[%s101 + $0xa48] sm:$0xff]
                %442 = vst [vmem:[%s102 + $0x548] sm:$0xff] %v441
                %v443 = vld [vmem:[%s101 + $0xa50] sm:$0xff]
                %444 = vst [vmem:[%s102 + $0x550] sm:$0xff] %v443
                %v445 = vld [vmem:[%s101 + $0xa58] sm:$0xff]
                %446 = vst [vmem:[%s102 + $0x558] sm:$0xff] %v445
                %v447 = vld [vmem:[%s101 + $0xa60] sm:$0xff]
                %448 = vst [vmem:[%s102 + $0x560] sm:$0xff] %v447
                %v449 = vld [vmem:[%s101 + $0xa68] sm:$0xff]
                %450 = vst [vmem:[%s102 + $0x568] sm:$0xff] %v449
                %v451 = vld [vmem:[%s101 + $0xa70] sm:$0xff]
                %452 = vst [vmem:[%s102 + $0x570] sm:$0xff] %v451
                %v453 = vld [vmem:[%s101 + $0xa78] sm:$0xff]
                %454 = vst [vmem:[%s102 + $0x578] sm:$0xff] %v453
                %v455 = vld [vmem:[%s101 + $0xa80] sm:$0xff]
                %456 = vst [vmem:[%s102 + $0x580] sm:$0xff] %v455
                %v457 = vld [vmem:[%s101 + $0xa88] sm:$0xff]
                %458 = vst [vmem:[%s102 + $0x588] sm:$0xff] %v457
                %v459 = vld [vmem:[%s101 + $0xa90] sm:$0xff]
                %460 = vst [vmem:[%s102 + $0x590] sm:$0xff] %v459
                %v461 = vld [vmem:[%s101 + $0xa98] sm:$0xff]
                %462 = vst [vmem:[%s102 + $0x598] sm:$0xff] %v461
                %v463 = vld [vmem:[%s101 + $0xaa0] sm:$0xff]
                %464 = vst [vmem:[%s102 + $0x5a0] sm:$0xff] %v463
                %v465 = vld [vmem:[%s101 + $0xaa8] sm:$0xff]
                %466 = vst [vmem:[%s102 + $0x5a8] sm:$0xff] %v465
                %v467 = vld [vmem:[%s101 + $0xab0] sm:$0xff]
                %468 = vst [vmem:[%s102 + $0x5b0] sm:$0xff] %v467
                %v469 = vld [vmem:[%s101 + $0xab8] sm:$0xff]
                %470 = vst [vmem:[%s102 + $0x5b8] sm:$0xff] %v469
                %v471 = vld [vmem:[%s101 + $0xac0] sm:$0xff]
                %472 = vst [vmem:[%s102 + $0x5c0] sm:$0xff] %v471
                %v473 = vld [vmem:[%s101 + $0xac8] sm:$0xff]
                %474 = vst [vmem:[%s102 + $0x5c8] sm:$0xff] %v473
                %v475 = vld [vmem:[%s101 + $0xad0] sm:$0xff]
                %476 = vst [vmem:[%s102 + $0x5d0] sm:$0xff] %v475
                %v477 = vld [vmem:[%s101 + $0xad8] sm:$0xff]
                %478 = vst [vmem:[%s102 + $0x5d8] sm:$0xff] %v477
                %v479 = vld [vmem:[%s101 + $0xae0] sm:$0xff]
                %480 = vst [vmem:[%s102 + $0x5e0] sm:$0xff] %v479
                %v481 = vld [vmem:[%s101 + $0xae8] sm:$0xff]
                %482 = vst [vmem:[%s102 + $0x5e8] sm:$0xff] %v481
                %v483 = vld [vmem:[%s101 + $0xaf0] sm:$0xff]
                %484 = vst [vmem:[%s102 + $0x5f0] sm:$0xff] %v483
                %v485 = vld [vmem:[%s101 + $0xaf8] sm:$0xff]
                %486 = vst [vmem:[%s102 + $0x5f8] sm:$0xff] %v485
                %v487 = vld [vmem:[%s101 + $0xc00] sm:$0xff]
                %488 = vst [vmem:[%s102 + $0x600] sm:$0xff] %v487
                %v489 = vld [vmem:[%s101 + $0xc08] sm:$0xff]
                %490 = vst [vmem:[%s102 + $0x608] sm:$0xff] %v489
                %v491 = vld [vmem:[%s101 + $0xc10] sm:$0xff]
                %492 = vst [vmem:[%s102 + $0x610] sm:$0xff] %v491
                %v493 = vld [vmem:[%s101 + $0xc18] sm:$0xff]
                %494 = vst [vmem:[%s102 + $0x618] sm:$0xff] %v493
                %v495 = vld [vmem:[%s101 + $0xc20] sm:$0xff]
                %496 = vst [vmem:[%s102 + $0x620] sm:$0xff] %v495
                %v497 = vld [vmem:[%s101 + $0xc28] sm:$0xff]
                %498 = vst [vmem:[%s102 + $0x628] sm:$0xff] %v497
                %v499 = vld [vmem:[%s101 + $0xc30] sm:$0xff]
                %500 = vst [vmem:[%s102 + $0x630] sm:$0xff] %v499
                %v501 = vld [vmem:[%s101 + $0xc38] sm:$0xff]
                %502 = vst [vmem:[%s102 + $0x638] sm:$0xff] %v501
                %v503 = vld [vmem:[%s101 + $0xc40] sm:$0xff]
                %504 = vst [vmem:[%s102 + $0x640] sm:$0xff] %v503
                %v505 = vld [vmem:[%s101 + $0xc48] sm:$0xff]
                %506 = vst [vmem:[%s102 + $0x648] sm:$0xff] %v505
                %v507 = vld [vmem:[%s101 + $0xc50] sm:$0xff]
                %508 = vst [vmem:[%s102 + $0x650] sm:$0xff] %v507
                %v509 = vld [vmem:[%s101 + $0xc58] sm:$0xff]
                %510 = vst [vmem:[%s102 + $0x658] sm:$0xff] %v509
                %v511 = vld [vmem:[%s101 + $0xc60] sm:$0xff]
                %512 = vst [vmem:[%s102 + $0x660] sm:$0xff] %v511
                %v513 = vld [vmem:[%s101 + $0xc68] sm:$0xff]
                %514 = vst [vmem:[%s102 + $0x668] sm:$0xff] %v513
                %v515 = vld [vmem:[%s101 + $0xc70] sm:$0xff]
                %516 = vst [vmem:[%s102 + $0x670] sm:$0xff] %v515
                %v517 = vld [vmem:[%s101 + $0xc78] sm:$0xff]
                %518 = vst [vmem:[%s102 + $0x678] sm:$0xff] %v517
                %v519 = vld [vmem:[%s101 + $0xc80] sm:$0xff]
                %520 = vst [vmem:[%s102 + $0x680] sm:$0xff] %v519
                %v521 = vld [vmem:[%s101 + $0xc88] sm:$0xff]
                %522 = vst [vmem:[%s102 + $0x688] sm:$0xff] %v521
                %v523 = vld [vmem:[%s101 + $0xc90] sm:$0xff]
                %524 = vst [vmem:[%s102 + $0x690] sm:$0xff] %v523
                %v525 = vld [vmem:[%s101 + $0xc98] sm:$0xff]
                %526 = vst [vmem:[%s102 + $0x698] sm:$0xff] %v525
                %v527 = vld [vmem:[%s101 + $0xca0] sm:$0xff]
                %528 = vst [vmem:[%s102 + $0x6a0] sm:$0xff] %v527
                %v529 = vld [vmem:[%s101 + $0xca8] sm:$0xff]
                %530 = vst [vmem:[%s102 + $0x6a8] sm:$0xff] %v529
                %v531 = vld [vmem:[%s101 + $0xcb0] sm:$0xff]
                %532 = vst [vmem:[%s102 + $0x6b0] sm:$0xff] %v531
                %v533 = vld [vmem:[%s101 + $0xcb8] sm:$0xff]
                %534 = vst [vmem:[%s102 + $0x6b8] sm:$0xff] %v533
                %v535 = vld [vmem:[%s101 + $0xcc0] sm:$0xff]
                %536 = vst [vmem:[%s102 + $0x6c0] sm:$0xff] %v535
                %v537 = vld [vmem:[%s101 + $0xcc8] sm:$0xff]
                %538 = vst [vmem:[%s102 + $0x6c8] sm:$0xff] %v537
                %v539 = vld [vmem:[%s101 + $0xcd0] sm:$0xff]
                %540 = vst [vmem:[%s102 + $0x6d0] sm:$0xff] %v539
                %v541 = vld [vmem:[%s101 + $0xcd8] sm:$0xff]
                %542 = vst [vmem:[%s102 + $0x6d8] sm:$0xff] %v541
                %v543 = vld [vmem:[%s101 + $0xce0] sm:$0xff]
                %544 = vst [vmem:[%s102 + $0x6e0] sm:$0xff] %v543
                %v545 = vld [vmem:[%s101 + $0xce8] sm:$0xff]
                %546 = vst [vmem:[%s102 + $0x6e8] sm:$0xff] %v545
                %v547 = vld [vmem:[%s101 + $0xcf0] sm:$0xff]
                %548 = vst [vmem:[%s102 + $0x6f0] sm:$0xff] %v547
                %v549 = vld [vmem:[%s101 + $0xcf8] sm:$0xff]
                %550 = vst [vmem:[%s102 + $0x6f8] sm:$0xff] %v549
                %v551 = vld [vmem:[%s101 + $0xe00] sm:$0xff]
                %552 = vst [vmem:[%s102 + $0x700] sm:$0xff] %v551
                %v553 = vld [vmem:[%s101 + $0xe08] sm:$0xff]
                %554 = vst [vmem:[%s102 + $0x708] sm:$0xff] %v553
                %v555 = vld [vmem:[%s101 + $0xe10] sm:$0xff]
                %556 = vst [vmem:[%s102 + $0x710] sm:$0xff] %v555
                %v557 = vld [vmem:[%s101 + $0xe18] sm:$0xff]
                %558 = vst [vmem:[%s102 + $0x718] sm:$0xff] %v557
                %v559 = vld [vmem:[%s101 + $0xe20] sm:$0xff]
                %560 = vst [vmem:[%s102 + $0x720] sm:$0xff] %v559
                %v561 = vld [vmem:[%s101 + $0xe28] sm:$0xff]
                %562 = vst [vmem:[%s102 + $0x728] sm:$0xff] %v561
                %v563 = vld [vmem:[%s101 + $0xe30] sm:$0xff]
                %564 = vst [vmem:[%s102 + $0x730] sm:$0xff] %v563
                %v565 = vld [vmem:[%s101 + $0xe38] sm:$0xff]
                %566 = vst [vmem:[%s102 + $0x738] sm:$0xff] %v565
                %v567 = vld [vmem:[%s101 + $0xe40] sm:$0xff]
                %568 = vst [vmem:[%s102 + $0x740] sm:$0xff] %v567
                %v569 = vld [vmem:[%s101 + $0xe48] sm:$0xff]
                %570 = vst [vmem:[%s102 + $0x748] sm:$0xff] %v569
                %v571 = vld [vmem:[%s101 + $0xe50] sm:$0xff]
                %572 = vst [vmem:[%s102 + $0x750] sm:$0xff] %v571
                %v573 = vld [vmem:[%s101 + $0xe58] sm:$0xff]
                %574 = vst [vmem:[%s102 + $0x758] sm:$0xff] %v573
                %v575 = vld [vmem:[%s101 + $0xe60] sm:$0xff]
                %576 = vst [vmem:[%s102 + $0x760] sm:$0xff] %v575
                %v577 = vld [vmem:[%s101 + $0xe68] sm:$0xff]
                %578 = vst [vmem:[%s102 + $0x768] sm:$0xff] %v577
                %v579 = vld [vmem:[%s101 + $0xe70] sm:$0xff]
                %580 = vst [vmem:[%s102 + $0x770] sm:$0xff] %v579
                %v581 = vld [vmem:[%s101 + $0xe78] sm:$0xff]
                %582 = vst [vmem:[%s102 + $0x778] sm:$0xff] %v581
                %v583 = vld [vmem:[%s101 + $0xe80] sm:$0xff]
                %584 = vst [vmem:[%s102 + $0x780] sm:$0xff] %v583
                %v585 = vld [vmem:[%s101 + $0xe88] sm:$0xff]
                %586 = vst [vmem:[%s102 + $0x788] sm:$0xff] %v585
                %v587 = vld [vmem:[%s101 + $0xe90] sm:$0xff]
                %588 = vst [vmem:[%s102 + $0x790] sm:$0xff] %v587
                %v589 = vld [vmem:[%s101 + $0xe98] sm:$0xff]
                %590 = vst [vmem:[%s102 + $0x798] sm:$0xff] %v589
                %v591 = vld [vmem:[%s101 + $0xea0] sm:$0xff]
                %592 = vst [vmem:[%s102 + $0x7a0] sm:$0xff] %v591
                %v593 = vld [vmem:[%s101 + $0xea8] sm:$0xff]
                %594 = vst [vmem:[%s102 + $0x7a8] sm:$0xff] %v593
                %v595 = vld [vmem:[%s101 + $0xeb0] sm:$0xff]
                %596 = vst [vmem:[%s102 + $0x7b0] sm:$0xff] %v595
                %v597 = vld [vmem:[%s101 + $0xeb8] sm:$0xff]
                %598 = vst [vmem:[%s102 + $0x7b8] sm:$0xff] %v597
                %v599 = vld [vmem:[%s101 + $0xec0] sm:$0xff]
                %600 = vst [vmem:[%s102 + $0x7c0] sm:$0xff] %v599
                %v601 = vld [vmem:[%s101 + $0xec8] sm:$0xff]
                %602 = vst [vmem:[%s102 + $0x7c8] sm:$0xff] %v601
                %v603 = vld [vmem:[%s101 + $0xed0] sm:$0xff]
                %604 = vst [vmem:[%s102 + $0x7d0] sm:$0xff] %v603
                %v605 = vld [vmem:[%s101 + $0xed8] sm:$0xff]
                %606 = vst [vmem:[%s102 + $0x7d8] sm:$0xff] %v605
                %v607 = vld [vmem:[%s101 + $0xee0] sm:$0xff]
                %608 = vst [vmem:[%s102 + $0x7e0] sm:$0xff] %v607
                %v609 = vld [vmem:[%s101 + $0xee8] sm:$0xff]
                %610 = vst [vmem:[%s102 + $0x7e8] sm:$0xff] %v609
                %v611 = vld [vmem:[%s101 + $0xef0] sm:$0xff]
                %612 = vst [vmem:[%s102 + $0x7f0] sm:$0xff] %v611
                %v613 = vld [vmem:[%s101 + $0xef8] sm:$0xff]
                %614 = vst [vmem:[%s102 + $0x7f8] sm:$0xff] %v613
                %v615 = vld [vmem:[%s101 + $0x1000] sm:$0xff]
                %616 = vst [vmem:[%s102 + $0x800] sm:$0xff] %v615
                %v617 = vld [vmem:[%s101 + $0x1008] sm:$0xff]
                %618 = vst [vmem:[%s102 + $0x808] sm:$0xff] %v617
                %v619 = vld [vmem:[%s101 + $0x1010] sm:$0xff]
                %620 = vst [vmem:[%s102 + $0x810] sm:$0xff] %v619
                %v621 = vld [vmem:[%s101 + $0x1018] sm:$0xff]
                %622 = vst [vmem:[%s102 + $0x818] sm:$0xff] %v621
                %v623 = vld [vmem:[%s101 + $0x1020] sm:$0xff]
                %624 = vst [vmem:[%s102 + $0x820] sm:$0xff] %v623
                %v625 = vld [vmem:[%s101 + $0x1028] sm:$0xff]
                %626 = vst [vmem:[%s102 + $0x828] sm:$0xff] %v625
                %v627 = vld [vmem:[%s101 + $0x1030] sm:$0xff]
                %628 = vst [vmem:[%s102 + $0x830] sm:$0xff] %v627
                %v629 = vld [vmem:[%s101 + $0x1038] sm:$0xff]
                %630 = vst [vmem:[%s102 + $0x838] sm:$0xff] %v629
                %v631 = vld [vmem:[%s101 + $0x1040] sm:$0xff]
                %632 = vst [vmem:[%s102 + $0x840] sm:$0xff] %v631
                %v633 = vld [vmem:[%s101 + $0x1048] sm:$0xff]
                %634 = vst [vmem:[%s102 + $0x848] sm:$0xff] %v633
                %v635 = vld [vmem:[%s101 + $0x1050] sm:$0xff]
                %636 = vst [vmem:[%s102 + $0x850] sm:$0xff] %v635
                %v637 = vld [vmem:[%s101 + $0x1058] sm:$0xff]
                %638 = vst [vmem:[%s102 + $0x858] sm:$0xff] %v637
                %v639 = vld [vmem:[%s101 + $0x1060] sm:$0xff]
                %640 = vst [vmem:[%s102 + $0x860] sm:$0xff] %v639
                %v641 = vld [vmem:[%s101 + $0x1068] sm:$0xff]
                %642 = vst [vmem:[%s102 + $0x868] sm:$0xff] %v641
                %v643 = vld [vmem:[%s101 + $0x1070] sm:$0xff]
                %644 = vst [vmem:[%s102 + $0x870] sm:$0xff] %v643
                %v645 = vld [vmem:[%s101 + $0x1078] sm:$0xff]
                %646 = vst [vmem:[%s102 + $0x878] sm:$0xff] %v645
                %v647 = vld [vmem:[%s101 + $0x1080] sm:$0xff]
                %648 = vst [vmem:[%s102 + $0x880] sm:$0xff] %v647
                %v649 = vld [vmem:[%s101 + $0x1088] sm:$0xff]
                %650 = vst [vmem:[%s102 + $0x888] sm:$0xff] %v649
                %v651 = vld [vmem:[%s101 + $0x1090] sm:$0xff]
                %652 = vst [vmem:[%s102 + $0x890] sm:$0xff] %v651
                %v653 = vld [vmem:[%s101 + $0x1098] sm:$0xff]
                %654 = vst [vmem:[%s102 + $0x898] sm:$0xff] %v653
                %v655 = vld [vmem:[%s101 + $0x10a0] sm:$0xff]
                %656 = vst [vmem:[%s102 + $0x8a0] sm:$0xff] %v655
                %v657 = vld [vmem:[%s101 + $0x10a8] sm:$0xff]
                %658 = vst [vmem:[%s102 + $0x8a8] sm:$0xff] %v657
                %v659 = vld [vmem:[%s101 + $0x10b0] sm:$0xff]
                %660 = vst [vmem:[%s102 + $0x8b0] sm:$0xff] %v659
                %v661 = vld [vmem:[%s101 + $0x10b8] sm:$0xff]
                %662 = vst [vmem:[%s102 + $0x8b8] sm:$0xff] %v661
                %v663 = vld [vmem:[%s101 + $0x10c0] sm:$0xff]
                %664 = vst [vmem:[%s102 + $0x8c0] sm:$0xff] %v663
                %v665 = vld [vmem:[%s101 + $0x10c8] sm:$0xff]
                %666 = vst [vmem:[%s102 + $0x8c8] sm:$0xff] %v665
                %v667 = vld [vmem:[%s101 + $0x10d0] sm:$0xff]
                %668 = vst [vmem:[%s102 + $0x8d0] sm:$0xff] %v667
                %v669 = vld [vmem:[%s101 + $0x10d8] sm:$0xff]
                %670 = vst [vmem:[%s102 + $0x8d8] sm:$0xff] %v669
                %v671 = vld [vmem:[%s101 + $0x10e0] sm:$0xff]
                %672 = vst [vmem:[%s102 + $0x8e0] sm:$0xff] %v671
                %v673 = vld [vmem:[%s101 + $0x10e8] sm:$0xff]
                %674 = vst [vmem:[%s102 + $0x8e8] sm:$0xff] %v673
                %v675 = vld [vmem:[%s101 + $0x10f0] sm:$0xff]
                %676 = vst [vmem:[%s102 + $0x8f0] sm:$0xff] %v675
                %v677 = vld [vmem:[%s101 + $0x10f8] sm:$0xff]
                %678 = vst [vmem:[%s102 + $0x8f8] sm:$0xff] %v677
              $region37: #{feature_extractor_forward.10} parent=31 // loop_footer
                %s100 = sadd.s32 1, %s96
              $region38: #{feature_extractor_forward.10} parent=31 // loop_footer_branch
                %95 = sbr.rel target = $region34
              $region39: #{feature_extractor_forward.10} parent=31 // loop_exit
                _
            $region32: #{feature_extractor_forward.10} parent=23 // pred_fallthru
              _
          $region24: #{feature_extractor_forward.10} parent=19 // pred_fallthru
            _
          %1267 = vnop
        $region20: #{feature_extractor_forward.10} parent=15 // pred_fallthru
          _
      $region16: #{feature_extractor_forward.10} parent=5 // pred_fallthru
        _
      %p1268 = scmp.le.s32.totalorder 1, %s7
      %p1269 = scmp.lt.s32.totalorder %s7, 3
      %p1270 = pnand %p1268, %p1269
      %p1271 = pneg %p1270
      // Predicated region
      $region55: #{feature_extractor_forward.10} parent=5 // pred_check
        _
      $region56: #{feature_extractor_forward.10} parent=5 // pred_check_branch
        %1273 = sbr.rel (%p1270) target = $region58
      $region57: #{feature_extractor_forward.10} parent=5 // pred_region
        %s1274 = ssub.s32 %s7, 1
        %s1275 = sand.u32 %s20, 1
        %s1276 = sand.u32 %s20, 1
        %s1277 = smul.addr %s1276, 2304
        %s1278 = scalar_lea.vmem [#allocation2], %s1277
        // Predicated region
        $region59: #{feature_extractor_forward.10} parent=57 // pred_check
          %p1279 = pneg %p33
        $region60: #{feature_extractor_forward.10} parent=57 // pred_check_branch
          %1281 = sbr.rel (%p1279) target = $region62
        $region61: #{feature_extractor_forward.10} parent=57 // pred_region
          _
        $region62: #{feature_extractor_forward.10} parent=57 // pred_fallthru
          _
        %s1282 = sand.u32 %s20, 1
        %s1283 = sand.u32 %s20, 1
        %s1284 = smul.addr %s1283, 2304
        %s1285 = scalar_lea.vmem [#allocation2], %s1284
        %p1286 = pneg %p33
        %p1287 = pneg %p30
        %p1288 = pneg %p59
        %p1289 = pneg %p56
        %s1290 = smul.u32 32, %s12
        %p1291 = scmp.lt.s32.totalorder %s1290, 63
        %s1292 = scalar_select %p1291, %s1290, 63
        %s1293 = smul.addr %s1292, 8
        %s1294 = scalar_lea.vmem %s1, %s1293
        %s1295 = smul.u32 32, %s12
        %s1296 = smul.u32 32, %s12
        %p1297 = scmp.lt.s32.totalorder %s1296, 63
        %s1298 = scalar_select %p1297, %s1296, 63
        %s1299 = smul.addr %s1298, 8
        %s1300 = scalar_lea.vmem %s1, %s1299
        %s1301 = smul.u32 32, %s12
        %v1302 = vld [vmem:[%s1278] sm:$0xff]
        %v1303 = vld [vmem:[%s1278 + $0x8] sm:$0xff]
        %v1304 = vld [vmem:[%s1278 + $0x10] sm:$0xff]
        %v1305 = vld [vmem:[%s1278 + $0x18] sm:$0xff]
        %v1306 = vld [vmem:[%s1278 + $0x20] sm:$0xff]
        %v1307 = vld [vmem:[%s1278 + $0x28] sm:$0xff]
        %v1308 = vld [vmem:[%s1278 + $0x30] sm:$0xff]
        %v1309 = vld [vmem:[%s1278 + $0x38] sm:$0xff]
        %v1310 = vld [vmem:[%s1278 + $0x40] sm:$0xff]
        %v1311 = vld [vmem:[%s1278 + $0x48] sm:$0xff]
        %v1312 = vld [vmem:[%s1278 + $0x50] sm:$0xff]
        %v1313 = vld [vmem:[%s1278 + $0x58] sm:$0xff]
        %v1314 = vld [vmem:[%s1278 + $0x60] sm:$0xff]
        %v1315 = vld [vmem:[%s1278 + $0x68] sm:$0xff]
        %v1316 = vld [vmem:[%s1278 + $0x70] sm:$0xff]
        %v1317 = vld [vmem:[%s1278 + $0x78] sm:$0xff]
        %v1318 = vld [vmem:[%s1278 + $0x80] sm:$0xff]
        %v1319 = vld [vmem:[%s1278 + $0x88] sm:$0xff]
        %v1320 = vld [vmem:[%s1278 + $0x90] sm:$0xff]
        %v1321 = vld [vmem:[%s1278 + $0x98] sm:$0xff]
        %v1322 = vld [vmem:[%s1278 + $0xa0] sm:$0xff]
        %v1323 = vld [vmem:[%s1278 + $0xa8] sm:$0xff]
        %v1324 = vld [vmem:[%s1278 + $0xb0] sm:$0xff]
        %v1325 = vld [vmem:[%s1278 + $0xb8] sm:$0xff]
        %v1326 = vld [vmem:[%s1278 + $0xc0] sm:$0xff]
        %v1327 = vld [vmem:[%s1278 + $0xc8] sm:$0xff]
        %v1328 = vld [vmem:[%s1278 + $0xd0] sm:$0xff]
        %v1329 = vld [vmem:[%s1278 + $0xd8] sm:$0xff]
        %v1330 = vld [vmem:[%s1278 + $0xe0] sm:$0xff]
        %v1331 = vld [vmem:[%s1278 + $0xe8] sm:$0xff]
        %v1332 = vld [vmem:[%s1278 + $0xf0] sm:$0xff]
        %v1333 = vld [vmem:[%s1278 + $0xf8] sm:$0xff]
        %v1334 = vld [vmem:[%s1278 + $0x100] sm:$0xff]
        %v1335 = vld [vmem:[%s1278 + $0x108] sm:$0xff]
        %v1336 = vld [vmem:[%s1278 + $0x110] sm:$0xff]
        %v1337 = vld [vmem:[%s1278 + $0x118] sm:$0xff]
        %v1338 = vld [vmem:[%s1278 + $0x120] sm:$0xff]
        %v1339 = vld [vmem:[%s1278 + $0x128] sm:$0xff]
        %v1340 = vld [vmem:[%s1278 + $0x130] sm:$0xff]
        %v1341 = vld [vmem:[%s1278 + $0x138] sm:$0xff]
        %v1342 = vld [vmem:[%s1278 + $0x140] sm:$0xff]
        %v1343 = vld [vmem:[%s1278 + $0x148] sm:$0xff]
        %v1344 = vld [vmem:[%s1278 + $0x150] sm:$0xff]
        %v1345 = vld [vmem:[%s1278 + $0x158] sm:$0xff]
        %v1346 = vld [vmem:[%s1278 + $0x160] sm:$0xff]
        %v1347 = vld [vmem:[%s1278 + $0x168] sm:$0xff]
        %v1348 = vld [vmem:[%s1278 + $0x170] sm:$0xff]
        %v1349 = vld [vmem:[%s1278 + $0x178] sm:$0xff]
        %v1350 = vld [vmem:[%s1278 + $0x180] sm:$0xff]
        %v1351 = vld [vmem:[%s1278 + $0x188] sm:$0xff]
        %v1352 = vld [vmem:[%s1278 + $0x190] sm:$0xff]
        %v1353 = vld [vmem:[%s1278 + $0x198] sm:$0xff]
        %v1354 = vld [vmem:[%s1278 + $0x1a0] sm:$0xff]
        %v1355 = vld [vmem:[%s1278 + $0x1a8] sm:$0xff]
        %v1356 = vld [vmem:[%s1278 + $0x1b0] sm:$0xff]
        %v1357 = vld [vmem:[%s1278 + $0x1b8] sm:$0xff]
        %v1358 = vld [vmem:[%s1278 + $0x1c0] sm:$0xff]
        %v1359 = vld [vmem:[%s1278 + $0x1c8] sm:$0xff]
        %v1360 = vld [vmem:[%s1278 + $0x1d0] sm:$0xff]
        %v1361 = vld [vmem:[%s1278 + $0x1d8] sm:$0xff]
        %v1362 = vld [vmem:[%s1278 + $0x1e0] sm:$0xff]
        %v1363 = vld [vmem:[%s1278 + $0x1e8] sm:$0xff]
        %v1364 = vld [vmem:[%s1278 + $0x1f0] sm:$0xff]
        %v1365 = vld [vmem:[%s1278 + $0x1f8] sm:$0xff]
        %v1366 = vld [vmem:[%s1278 + $0x200] sm:$0xff]
        %v1367 = vld [vmem:[%s1278 + $0x208] sm:$0xff]
        %v1368 = vld [vmem:[%s1278 + $0x210] sm:$0xff]
        %v1369 = vld [vmem:[%s1278 + $0x218] sm:$0xff]
        %v1370 = vld [vmem:[%s1278 + $0x220] sm:$0xff]
        %v1371 = vld [vmem:[%s1278 + $0x228] sm:$0xff]
        %v1372 = vld [vmem:[%s1278 + $0x230] sm:$0xff]
        %v1373 = vld [vmem:[%s1278 + $0x238] sm:$0xff]
        %v1374 = vld [vmem:[%s1278 + $0x240] sm:$0xff]
        %v1375 = vld [vmem:[%s1278 + $0x248] sm:$0xff]
        %v1376 = vld [vmem:[%s1278 + $0x250] sm:$0xff]
        %v1377 = vld [vmem:[%s1278 + $0x258] sm:$0xff]
        %v1378 = vld [vmem:[%s1278 + $0x260] sm:$0xff]
        %v1379 = vld [vmem:[%s1278 + $0x268] sm:$0xff]
        %v1380 = vld [vmem:[%s1278 + $0x270] sm:$0xff]
        %v1381 = vld [vmem:[%s1278 + $0x278] sm:$0xff]
        %v1382 = vld [vmem:[%s1278 + $0x280] sm:$0xff]
        %v1383 = vld [vmem:[%s1278 + $0x288] sm:$0xff]
        %v1384 = vld [vmem:[%s1278 + $0x290] sm:$0xff]
        %v1385 = vld [vmem:[%s1278 + $0x298] sm:$0xff]
        %v1386 = vld [vmem:[%s1278 + $0x2a0] sm:$0xff]
        %v1387 = vld [vmem:[%s1278 + $0x2a8] sm:$0xff]
        %v1388 = vld [vmem:[%s1278 + $0x2b0] sm:$0xff]
        %v1389 = vld [vmem:[%s1278 + $0x2b8] sm:$0xff]
        %v1390 = vld [vmem:[%s1278 + $0x2c0] sm:$0xff]
        %v1391 = vld [vmem:[%s1278 + $0x2c8] sm:$0xff]
        %v1392 = vld [vmem:[%s1278 + $0x2d0] sm:$0xff]
        %v1393 = vld [vmem:[%s1278 + $0x2d8] sm:$0xff]
        %v1394 = vld [vmem:[%s1278 + $0x2e0] sm:$0xff]
        %v1395 = vld [vmem:[%s1278 + $0x2e8] sm:$0xff]
        %v1396 = vld [vmem:[%s1278 + $0x2f0] sm:$0xff]
        %v1397 = vld [vmem:[%s1278 + $0x2f8] sm:$0xff]
        %v1398 = vld [vmem:[%s1278 + $0x300] sm:$0xff]
        %v1399 = vld [vmem:[%s1278 + $0x308] sm:$0xff]
        %v1400 = vld [vmem:[%s1278 + $0x310] sm:$0xff]
        %v1401 = vld [vmem:[%s1278 + $0x318] sm:$0xff]
        %v1402 = vld [vmem:[%s1278 + $0x320] sm:$0xff]
        %v1403 = vld [vmem:[%s1278 + $0x328] sm:$0xff]
        %v1404 = vld [vmem:[%s1278 + $0x330] sm:$0xff]
        %v1405 = vld [vmem:[%s1278 + $0x338] sm:$0xff]
        %v1406 = vld [vmem:[%s1278 + $0x340] sm:$0xff]
        %v1407 = vld [vmem:[%s1278 + $0x348] sm:$0xff]
        %v1408 = vld [vmem:[%s1278 + $0x350] sm:$0xff]
        %v1409 = vld [vmem:[%s1278 + $0x358] sm:$0xff]
        %v1410 = vld [vmem:[%s1278 + $0x360] sm:$0xff]
        %v1411 = vld [vmem:[%s1278 + $0x368] sm:$0xff]
        %v1412 = vld [vmem:[%s1278 + $0x370] sm:$0xff]
        %v1413 = vld [vmem:[%s1278 + $0x378] sm:$0xff]
        %v1414 = vld [vmem:[%s1278 + $0x380] sm:$0xff]
        %v1415 = vld [vmem:[%s1278 + $0x388] sm:$0xff]
        %v1416 = vld [vmem:[%s1278 + $0x390] sm:$0xff]
        %v1417 = vld [vmem:[%s1278 + $0x398] sm:$0xff]
        %v1418 = vld [vmem:[%s1278 + $0x3a0] sm:$0xff]
        %v1419 = vld [vmem:[%s1278 + $0x3a8] sm:$0xff]
        %v1420 = vld [vmem:[%s1278 + $0x3b0] sm:$0xff]
        %v1421 = vld [vmem:[%s1278 + $0x3b8] sm:$0xff]
        %v1422 = vld [vmem:[%s1278 + $0x3c0] sm:$0xff]
        %v1423 = vld [vmem:[%s1278 + $0x3c8] sm:$0xff]
        %v1424 = vld [vmem:[%s1278 + $0x3d0] sm:$0xff]
        %v1425 = vld [vmem:[%s1278 + $0x3d8] sm:$0xff]
        %v1426 = vld [vmem:[%s1278 + $0x3e0] sm:$0xff]
        %v1427 = vld [vmem:[%s1278 + $0x3e8] sm:$0xff]
        %v1428 = vld [vmem:[%s1278 + $0x3f0] sm:$0xff]
        %v1429 = vld [vmem:[%s1278 + $0x3f8] sm:$0xff]
        %v1430 = vld [vmem:[%s1278 + $0x400] sm:$0xff]
        %v1431 = vld [vmem:[%s1278 + $0x408] sm:$0xff]
        %v1432 = vld [vmem:[%s1278 + $0x410] sm:$0xff]
        %v1433 = vld [vmem:[%s1278 + $0x418] sm:$0xff]
        %v1434 = vld [vmem:[%s1278 + $0x420] sm:$0xff]
        %v1435 = vld [vmem:[%s1278 + $0x428] sm:$0xff]
        %v1436 = vld [vmem:[%s1278 + $0x430] sm:$0xff]
        %v1437 = vld [vmem:[%s1278 + $0x438] sm:$0xff]
        %v1438 = vld [vmem:[%s1278 + $0x440] sm:$0xff]
        %v1439 = vld [vmem:[%s1278 + $0x448] sm:$0xff]
        %v1440 = vld [vmem:[%s1278 + $0x450] sm:$0xff]
        %v1441 = vld [vmem:[%s1278 + $0x458] sm:$0xff]
        %v1442 = vld [vmem:[%s1278 + $0x460] sm:$0xff]
        %v1443 = vld [vmem:[%s1278 + $0x468] sm:$0xff]
        %v1444 = vld [vmem:[%s1278 + $0x470] sm:$0xff]
        %v1445 = vld [vmem:[%s1278 + $0x478] sm:$0xff]
        %v1446 = vld [vmem:[%s1278 + $0x480] sm:$0xff]
        %v1447 = vld [vmem:[%s1278 + $0x488] sm:$0xff]
        %v1448 = vld [vmem:[%s1278 + $0x490] sm:$0xff]
        %v1449 = vld [vmem:[%s1278 + $0x498] sm:$0xff]
        %v1450 = vld [vmem:[%s1278 + $0x4a0] sm:$0xff]
        %v1451 = vld [vmem:[%s1278 + $0x4a8] sm:$0xff]
        %v1452 = vld [vmem:[%s1278 + $0x4b0] sm:$0xff]
        %v1453 = vld [vmem:[%s1278 + $0x4b8] sm:$0xff]
        %v1454 = vld [vmem:[%s1278 + $0x4c0] sm:$0xff]
        %v1455 = vld [vmem:[%s1278 + $0x4c8] sm:$0xff]
        %v1456 = vld [vmem:[%s1278 + $0x4d0] sm:$0xff]
        %v1457 = vld [vmem:[%s1278 + $0x4d8] sm:$0xff]
        %v1458 = vld [vmem:[%s1278 + $0x4e0] sm:$0xff]
        %v1459 = vld [vmem:[%s1278 + $0x4e8] sm:$0xff]
        %v1460 = vld [vmem:[%s1278 + $0x4f0] sm:$0xff]
        %v1461 = vld [vmem:[%s1278 + $0x4f8] sm:$0xff]
        %v1462 = vld [vmem:[%s1278 + $0x500] sm:$0xff]
        %v1463 = vld [vmem:[%s1278 + $0x508] sm:$0xff]
        %v1464 = vld [vmem:[%s1278 + $0x510] sm:$0xff]
        %v1465 = vld [vmem:[%s1278 + $0x518] sm:$0xff]
        %v1466 = vld [vmem:[%s1278 + $0x520] sm:$0xff]
        %v1467 = vld [vmem:[%s1278 + $0x528] sm:$0xff]
        %v1468 = vld [vmem:[%s1278 + $0x530] sm:$0xff]
        %v1469 = vld [vmem:[%s1278 + $0x538] sm:$0xff]
        %v1470 = vld [vmem:[%s1278 + $0x540] sm:$0xff]
        %v1471 = vld [vmem:[%s1278 + $0x548] sm:$0xff]
        %v1472 = vld [vmem:[%s1278 + $0x550] sm:$0xff]
        %v1473 = vld [vmem:[%s1278 + $0x558] sm:$0xff]
        %v1474 = vld [vmem:[%s1278 + $0x560] sm:$0xff]
        %v1475 = vld [vmem:[%s1278 + $0x568] sm:$0xff]
        %v1476 = vld [vmem:[%s1278 + $0x570] sm:$0xff]
        %v1477 = vld [vmem:[%s1278 + $0x578] sm:$0xff]
        %v1478 = vld [vmem:[%s1278 + $0x580] sm:$0xff]
        %v1479 = vld [vmem:[%s1278 + $0x588] sm:$0xff]
        %v1480 = vld [vmem:[%s1278 + $0x590] sm:$0xff]
        %v1481 = vld [vmem:[%s1278 + $0x598] sm:$0xff]
        %v1482 = vld [vmem:[%s1278 + $0x5a0] sm:$0xff]
        %v1483 = vld [vmem:[%s1278 + $0x5a8] sm:$0xff]
        %v1484 = vld [vmem:[%s1278 + $0x5b0] sm:$0xff]
        %v1485 = vld [vmem:[%s1278 + $0x5b8] sm:$0xff]
        %v1486 = vld [vmem:[%s1278 + $0x5c0] sm:$0xff]
        %v1487 = vld [vmem:[%s1278 + $0x5c8] sm:$0xff]
        %v1488 = vld [vmem:[%s1278 + $0x5d0] sm:$0xff]
        %v1489 = vld [vmem:[%s1278 + $0x5d8] sm:$0xff]
        %v1490 = vld [vmem:[%s1278 + $0x5e0] sm:$0xff]
        %v1491 = vld [vmem:[%s1278 + $0x5e8] sm:$0xff]
        %v1492 = vld [vmem:[%s1278 + $0x5f0] sm:$0xff]
        %v1493 = vld [vmem:[%s1278 + $0x5f8] sm:$0xff]
        %v1494 = vld [vmem:[%s1278 + $0x600] sm:$0xff]
        %v1495 = vld [vmem:[%s1278 + $0x608] sm:$0xff]
        %v1496 = vld [vmem:[%s1278 + $0x610] sm:$0xff]
        %v1497 = vld [vmem:[%s1278 + $0x618] sm:$0xff]
        %v1498 = vld [vmem:[%s1278 + $0x620] sm:$0xff]
        %v1499 = vld [vmem:[%s1278 + $0x628] sm:$0xff]
        %v1500 = vld [vmem:[%s1278 + $0x630] sm:$0xff]
        %v1501 = vld [vmem:[%s1278 + $0x638] sm:$0xff]
        %v1502 = vld [vmem:[%s1278 + $0x640] sm:$0xff]
        %v1503 = vld [vmem:[%s1278 + $0x648] sm:$0xff]
        %v1504 = vld [vmem:[%s1278 + $0x650] sm:$0xff]
        %v1505 = vld [vmem:[%s1278 + $0x658] sm:$0xff]
        %v1506 = vld [vmem:[%s1278 + $0x660] sm:$0xff]
        %v1507 = vld [vmem:[%s1278 + $0x668] sm:$0xff]
        %v1508 = vld [vmem:[%s1278 + $0x670] sm:$0xff]
        %v1509 = vld [vmem:[%s1278 + $0x678] sm:$0xff]
        %v1510 = vld [vmem:[%s1278 + $0x680] sm:$0xff]
        %v1511 = vld [vmem:[%s1278 + $0x688] sm:$0xff]
        %v1512 = vld [vmem:[%s1278 + $0x690] sm:$0xff]
        %v1513 = vld [vmem:[%s1278 + $0x698] sm:$0xff]
        %v1514 = vld [vmem:[%s1278 + $0x6a0] sm:$0xff]
        %v1515 = vld [vmem:[%s1278 + $0x6a8] sm:$0xff]
        %v1516 = vld [vmem:[%s1278 + $0x6b0] sm:$0xff]
        %v1517 = vld [vmem:[%s1278 + $0x6b8] sm:$0xff]
        %v1518 = vld [vmem:[%s1278 + $0x6c0] sm:$0xff]
        %v1519 = vld [vmem:[%s1278 + $0x6c8] sm:$0xff]
        %v1520 = vld [vmem:[%s1278 + $0x6d0] sm:$0xff]
        %v1521 = vld [vmem:[%s1278 + $0x6d8] sm:$0xff]
        %v1522 = vld [vmem:[%s1278 + $0x6e0] sm:$0xff]
        %v1523 = vld [vmem:[%s1278 + $0x6e8] sm:$0xff]
        %v1524 = vld [vmem:[%s1278 + $0x6f0] sm:$0xff]
        %v1525 = vld [vmem:[%s1278 + $0x6f8] sm:$0xff]
        %v1526 = vld [vmem:[%s1278 + $0x700] sm:$0xff]
        %v1527 = vld [vmem:[%s1278 + $0x708] sm:$0xff]
        %v1528 = vld [vmem:[%s1278 + $0x710] sm:$0xff]
        %v1529 = vld [vmem:[%s1278 + $0x718] sm:$0xff]
        %v1530 = vld [vmem:[%s1278 + $0x720] sm:$0xff]
        %v1531 = vld [vmem:[%s1278 + $0x728] sm:$0xff]
        %v1532 = vld [vmem:[%s1278 + $0x730] sm:$0xff]
        %v1533 = vld [vmem:[%s1278 + $0x738] sm:$0xff]
        %v1534 = vld [vmem:[%s1278 + $0x740] sm:$0xff]
        %v1535 = vld [vmem:[%s1278 + $0x748] sm:$0xff]
        %v1536 = vld [vmem:[%s1278 + $0x750] sm:$0xff]
        %v1537 = vld [vmem:[%s1278 + $0x758] sm:$0xff]
        %v1538 = vld [vmem:[%s1278 + $0x760] sm:$0xff]
        %v1539 = vld [vmem:[%s1278 + $0x768] sm:$0xff]
        %v1540 = vld [vmem:[%s1278 + $0x770] sm:$0xff]
        %v1541 = vld [vmem:[%s1278 + $0x778] sm:$0xff]
        %v1542 = vld [vmem:[%s1278 + $0x780] sm:$0xff]
        %v1543 = vld [vmem:[%s1278 + $0x788] sm:$0xff]
        %v1544 = vld [vmem:[%s1278 + $0x790] sm:$0xff]
        %v1545 = vld [vmem:[%s1278 + $0x798] sm:$0xff]
        %v1546 = vld [vmem:[%s1278 + $0x7a0] sm:$0xff]
        %v1547 = vld [vmem:[%s1278 + $0x7a8] sm:$0xff]
        %v1548 = vld [vmem:[%s1278 + $0x7b0] sm:$0xff]
        %v1549 = vld [vmem:[%s1278 + $0x7b8] sm:$0xff]
        %v1550 = vld [vmem:[%s1278 + $0x7c0] sm:$0xff]
        %v1551 = vld [vmem:[%s1278 + $0x7c8] sm:$0xff]
        %v1552 = vld [vmem:[%s1278 + $0x7d0] sm:$0xff]
        %v1553 = vld [vmem:[%s1278 + $0x7d8] sm:$0xff]
        %v1554 = vld [vmem:[%s1278 + $0x7e0] sm:$0xff]
        %v1555 = vld [vmem:[%s1278 + $0x7e8] sm:$0xff]
        %v1556 = vld [vmem:[%s1278 + $0x7f0] sm:$0xff]
        %v1557 = vld [vmem:[%s1278 + $0x7f8] sm:$0xff]
        %v1558 = vld [vmem:[%s1278 + $0x800] sm:$0xff]
        %v1559 = vld [vmem:[%s1278 + $0x808] sm:$0xff]
        %v1560 = vld [vmem:[%s1278 + $0x810] sm:$0xff]
        %v1561 = vld [vmem:[%s1278 + $0x818] sm:$0xff]
        %v1562 = vld [vmem:[%s1278 + $0x820] sm:$0xff]
        %v1563 = vld [vmem:[%s1278 + $0x828] sm:$0xff]
        %v1564 = vld [vmem:[%s1278 + $0x830] sm:$0xff]
        %v1565 = vld [vmem:[%s1278 + $0x838] sm:$0xff]
        %v1566 = vld [vmem:[%s1278 + $0x840] sm:$0xff]
        %v1567 = vld [vmem:[%s1278 + $0x848] sm:$0xff]
        %v1568 = vld [vmem:[%s1278 + $0x850] sm:$0xff]
        %v1569 = vld [vmem:[%s1278 + $0x858] sm:$0xff]
        %v1570 = vld [vmem:[%s1278 + $0x860] sm:$0xff]
        %v1571 = vld [vmem:[%s1278 + $0x868] sm:$0xff]
        %v1572 = vld [vmem:[%s1278 + $0x870] sm:$0xff]
        %v1573 = vld [vmem:[%s1278 + $0x878] sm:$0xff]
        %v1574 = vld [vmem:[%s1278 + $0x880] sm:$0xff]
        %v1575 = vld [vmem:[%s1278 + $0x888] sm:$0xff]
        %v1576 = vld [vmem:[%s1278 + $0x890] sm:$0xff]
        %v1577 = vld [vmem:[%s1278 + $0x898] sm:$0xff]
        %v1578 = vld [vmem:[%s1278 + $0x8a0] sm:$0xff]
        %v1579 = vld [vmem:[%s1278 + $0x8a8] sm:$0xff]
        %v1580 = vld [vmem:[%s1278 + $0x8b0] sm:$0xff]
        %v1581 = vld [vmem:[%s1278 + $0x8b8] sm:$0xff]
        %v1582 = vld [vmem:[%s1278 + $0x8c0] sm:$0xff]
        %v1583 = vld [vmem:[%s1278 + $0x8c8] sm:$0xff]
        %v1584 = vld [vmem:[%s1278 + $0x8d0] sm:$0xff]
        %v1585 = vld [vmem:[%s1278 + $0x8d8] sm:$0xff]
        %v1586 = vld [vmem:[%s1278 + $0x8e0] sm:$0xff]
        %v1587 = vld [vmem:[%s1278 + $0x8e8] sm:$0xff]
        %v1588 = vld [vmem:[%s1278 + $0x8f0] sm:$0xff]
        %v1589 = vld [vmem:[%s1278 + $0x8f8] sm:$0xff]
        %vm1590 = vcmask 130048
        %v1591 = vsel %vm1590, %v1302, -inf
        %v1592 = vsel %vm1590, %v1334, -inf
        %v1593 = vmax.f32 %v1591, %v1592
        %v1594 = vsel %vm1590, %v1366, -inf
        %v1595 = vmax.f32 %v1593, %v1594
        %v1596 = vsel %vm1590, %v1398, -inf
        %v1597 = vmax.f32 %v1595, %v1596
        %v1598 = vsel %vm1590, %v1430, -inf
        %v1599 = vmax.f32 %v1597, %v1598
        %v1600 = vsel %vm1590, %v1462, -inf
        %v1601 = vmax.f32 %v1599, %v1600
        %v1602 = vsel %vm1590, %v1494, -inf
        %v1603 = vmax.f32 %v1601, %v1602
        %v1604 = vsel %vm1590, %v1526, -inf
        %v1605 = vmax.f32 %v1603, %v1604
        %v1606 = vsel %vm1590, %v1558, -inf
        %v1607 = vmax.f32 %v1605, %v1606
        %v1608 = vsel %vm1590, %v1303, -inf
        %v1609 = vsel %vm1590, %v1335, -inf
        %v1610 = vmax.f32 %v1608, %v1609
        %v1611 = vsel %vm1590, %v1367, -inf
        %v1612 = vmax.f32 %v1610, %v1611
        %v1613 = vsel %vm1590, %v1399, -inf
        %v1614 = vmax.f32 %v1612, %v1613
        %v1615 = vsel %vm1590, %v1431, -inf
        %v1616 = vmax.f32 %v1614, %v1615
        %v1617 = vsel %vm1590, %v1463, -inf
        %v1618 = vmax.f32 %v1616, %v1617
        %v1619 = vsel %vm1590, %v1495, -inf
        %v1620 = vmax.f32 %v1618, %v1619
        %v1621 = vsel %vm1590, %v1527, -inf
        %v1622 = vmax.f32 %v1620, %v1621
        %v1623 = vsel %vm1590, %v1559, -inf
        %v1624 = vmax.f32 %v1622, %v1623
        %v1625 = vsel %vm1590, %v1304, -inf
        %v1626 = vsel %vm1590, %v1336, -inf
        %v1627 = vmax.f32 %v1625, %v1626
        %v1628 = vsel %vm1590, %v1368, -inf
        %v1629 = vmax.f32 %v1627, %v1628
        %v1630 = vsel %vm1590, %v1400, -inf
        %v1631 = vmax.f32 %v1629, %v1630
        %v1632 = vsel %vm1590, %v1432, -inf
        %v1633 = vmax.f32 %v1631, %v1632
        %v1634 = vsel %vm1590, %v1464, -inf
        %v1635 = vmax.f32 %v1633, %v1634
        %v1636 = vsel %vm1590, %v1496, -inf
        %v1637 = vmax.f32 %v1635, %v1636
        %v1638 = vsel %vm1590, %v1528, -inf
        %v1639 = vmax.f32 %v1637, %v1638
        %v1640 = vsel %vm1590, %v1560, -inf
        %v1641 = vmax.f32 %v1639, %v1640
        %v1642 = vsel %vm1590, %v1305, -inf
        %v1643 = vsel %vm1590, %v1337, -inf
        %v1644 = vmax.f32 %v1642, %v1643
        %v1645 = vsel %vm1590, %v1369, -inf
        %v1646 = vmax.f32 %v1644, %v1645
        %v1647 = vsel %vm1590, %v1401, -inf
        %v1648 = vmax.f32 %v1646, %v1647
        %v1649 = vsel %vm1590, %v1433, -inf
        %v1650 = vmax.f32 %v1648, %v1649
        %v1651 = vsel %vm1590, %v1465, -inf
        %v1652 = vmax.f32 %v1650, %v1651
        %v1653 = vsel %vm1590, %v1497, -inf
        %v1654 = vmax.f32 %v1652, %v1653
        %v1655 = vsel %vm1590, %v1529, -inf
        %v1656 = vmax.f32 %v1654, %v1655
        %v1657 = vsel %vm1590, %v1561, -inf
        %v1658 = vmax.f32 %v1656, %v1657
        %v1659 = vsel %vm1590, %v1306, -inf
        %v1660 = vsel %vm1590, %v1338, -inf
        %v1661 = vmax.f32 %v1659, %v1660
        %v1662 = vsel %vm1590, %v1370, -inf
        %v1663 = vmax.f32 %v1661, %v1662
        %v1664 = vsel %vm1590, %v1402, -inf
        %v1665 = vmax.f32 %v1663, %v1664
        %v1666 = vsel %vm1590, %v1434, -inf
        %v1667 = vmax.f32 %v1665, %v1666
        %v1668 = vsel %vm1590, %v1466, -inf
        %v1669 = vmax.f32 %v1667, %v1668
        %v1670 = vsel %vm1590, %v1498, -inf
        %v1671 = vmax.f32 %v1669, %v1670
        %v1672 = vsel %vm1590, %v1530, -inf
        %v1673 = vmax.f32 %v1671, %v1672
        %v1674 = vsel %vm1590, %v1562, -inf
        %v1675 = vmax.f32 %v1673, %v1674
        %v1676 = vsel %vm1590, %v1307, -inf
        %v1677 = vsel %vm1590, %v1339, -inf
        %v1678 = vmax.f32 %v1676, %v1677
        %v1679 = vsel %vm1590, %v1371, -inf
        %v1680 = vmax.f32 %v1678, %v1679
        %v1681 = vsel %vm1590, %v1403, -inf
        %v1682 = vmax.f32 %v1680, %v1681
        %v1683 = vsel %vm1590, %v1435, -inf
        %v1684 = vmax.f32 %v1682, %v1683
        %v1685 = vsel %vm1590, %v1467, -inf
        %v1686 = vmax.f32 %v1684, %v1685
        %v1687 = vsel %vm1590, %v1499, -inf
        %v1688 = vmax.f32 %v1686, %v1687
        %v1689 = vsel %vm1590, %v1531, -inf
        %v1690 = vmax.f32 %v1688, %v1689
        %v1691 = vsel %vm1590, %v1563, -inf
        %v1692 = vmax.f32 %v1690, %v1691
        %v1693 = vsel %vm1590, %v1308, -inf
        %v1694 = vsel %vm1590, %v1340, -inf
        %v1695 = vmax.f32 %v1693, %v1694
        %v1696 = vsel %vm1590, %v1372, -inf
        %v1697 = vmax.f32 %v1695, %v1696
        %v1698 = vsel %vm1590, %v1404, -inf
        %v1699 = vmax.f32 %v1697, %v1698
        %v1700 = vsel %vm1590, %v1436, -inf
        %v1701 = vmax.f32 %v1699, %v1700
        %v1702 = vsel %vm1590, %v1468, -inf
        %v1703 = vmax.f32 %v1701, %v1702
        %v1704 = vsel %vm1590, %v1500, -inf
        %v1705 = vmax.f32 %v1703, %v1704
        %v1706 = vsel %vm1590, %v1532, -inf
        %v1707 = vmax.f32 %v1705, %v1706
        %v1708 = vsel %vm1590, %v1564, -inf
        %v1709 = vmax.f32 %v1707, %v1708
        %v1710 = vsel %vm1590, %v1309, -inf
        %v1711 = vsel %vm1590, %v1341, -inf
        %v1712 = vmax.f32 %v1710, %v1711
        %v1713 = vsel %vm1590, %v1373, -inf
        %v1714 = vmax.f32 %v1712, %v1713
        %v1715 = vsel %vm1590, %v1405, -inf
        %v1716 = vmax.f32 %v1714, %v1715
        %v1717 = vsel %vm1590, %v1437, -inf
        %v1718 = vmax.f32 %v1716, %v1717
        %v1719 = vsel %vm1590, %v1469, -inf
        %v1720 = vmax.f32 %v1718, %v1719
        %v1721 = vsel %vm1590, %v1501, -inf
        %v1722 = vmax.f32 %v1720, %v1721
        %v1723 = vsel %vm1590, %v1533, -inf
        %v1724 = vmax.f32 %v1722, %v1723
        %v1725 = vsel %vm1590, %v1565, -inf
        %v1726 = vmax.f32 %v1724, %v1725
        %v1727 = vsel %vm1590, %v1310, -inf
        %v1728 = vsel %vm1590, %v1342, -inf
        %v1729 = vmax.f32 %v1727, %v1728
        %v1730 = vsel %vm1590, %v1374, -inf
        %v1731 = vmax.f32 %v1729, %v1730
        %v1732 = vsel %vm1590, %v1406, -inf
        %v1733 = vmax.f32 %v1731, %v1732
        %v1734 = vsel %vm1590, %v1438, -inf
        %v1735 = vmax.f32 %v1733, %v1734
        %v1736 = vsel %vm1590, %v1470, -inf
        %v1737 = vmax.f32 %v1735, %v1736
        %v1738 = vsel %vm1590, %v1502, -inf
        %v1739 = vmax.f32 %v1737, %v1738
        %v1740 = vsel %vm1590, %v1534, -inf
        %v1741 = vmax.f32 %v1739, %v1740
        %v1742 = vsel %vm1590, %v1566, -inf
        %v1743 = vmax.f32 %v1741, %v1742
        %v1744 = vsel %vm1590, %v1311, -inf
        %v1745 = vsel %vm1590, %v1343, -inf
        %v1746 = vmax.f32 %v1744, %v1745
        %v1747 = vsel %vm1590, %v1375, -inf
        %v1748 = vmax.f32 %v1746, %v1747
        %v1749 = vsel %vm1590, %v1407, -inf
        %v1750 = vmax.f32 %v1748, %v1749
        %v1751 = vsel %vm1590, %v1439, -inf
        %v1752 = vmax.f32 %v1750, %v1751
        %v1753 = vsel %vm1590, %v1471, -inf
        %v1754 = vmax.f32 %v1752, %v1753
        %v1755 = vsel %vm1590, %v1503, -inf
        %v1756 = vmax.f32 %v1754, %v1755
        %v1757 = vsel %vm1590, %v1535, -inf
        %v1758 = vmax.f32 %v1756, %v1757
        %v1759 = vsel %vm1590, %v1567, -inf
        %v1760 = vmax.f32 %v1758, %v1759
        %v1761 = vsel %vm1590, %v1312, -inf
        %v1762 = vsel %vm1590, %v1344, -inf
        %v1763 = vmax.f32 %v1761, %v1762
        %v1764 = vsel %vm1590, %v1376, -inf
        %v1765 = vmax.f32 %v1763, %v1764
        %v1766 = vsel %vm1590, %v1408, -inf
        %v1767 = vmax.f32 %v1765, %v1766
        %v1768 = vsel %vm1590, %v1440, -inf
        %v1769 = vmax.f32 %v1767, %v1768
        %v1770 = vsel %vm1590, %v1472, -inf
        %v1771 = vmax.f32 %v1769, %v1770
        %v1772 = vsel %vm1590, %v1504, -inf
        %v1773 = vmax.f32 %v1771, %v1772
        %v1774 = vsel %vm1590, %v1536, -inf
        %v1775 = vmax.f32 %v1773, %v1774
        %v1776 = vsel %vm1590, %v1568, -inf
        %v1777 = vmax.f32 %v1775, %v1776
        %v1778 = vsel %vm1590, %v1313, -inf
        %v1779 = vsel %vm1590, %v1345, -inf
        %v1780 = vmax.f32 %v1778, %v1779
        %v1781 = vsel %vm1590, %v1377, -inf
        %v1782 = vmax.f32 %v1780, %v1781
        %v1783 = vsel %vm1590, %v1409, -inf
        %v1784 = vmax.f32 %v1782, %v1783
        %v1785 = vsel %vm1590, %v1441, -inf
        %v1786 = vmax.f32 %v1784, %v1785
        %v1787 = vsel %vm1590, %v1473, -inf
        %v1788 = vmax.f32 %v1786, %v1787
        %v1789 = vsel %vm1590, %v1505, -inf
        %v1790 = vmax.f32 %v1788, %v1789
        %v1791 = vsel %vm1590, %v1537, -inf
        %v1792 = vmax.f32 %v1790, %v1791
        %v1793 = vsel %vm1590, %v1569, -inf
        %v1794 = vmax.f32 %v1792, %v1793
        %v1795 = vsel %vm1590, %v1314, -inf
        %v1796 = vsel %vm1590, %v1346, -inf
        %v1797 = vmax.f32 %v1795, %v1796
        %v1798 = vsel %vm1590, %v1378, -inf
        %v1799 = vmax.f32 %v1797, %v1798
        %v1800 = vsel %vm1590, %v1410, -inf
        %v1801 = vmax.f32 %v1799, %v1800
        %v1802 = vsel %vm1590, %v1442, -inf
        %v1803 = vmax.f32 %v1801, %v1802
        %v1804 = vsel %vm1590, %v1474, -inf
        %v1805 = vmax.f32 %v1803, %v1804
        %v1806 = vsel %vm1590, %v1506, -inf
        %v1807 = vmax.f32 %v1805, %v1806
        %v1808 = vsel %vm1590, %v1538, -inf
        %v1809 = vmax.f32 %v1807, %v1808
        %v1810 = vsel %vm1590, %v1570, -inf
        %v1811 = vmax.f32 %v1809, %v1810
        %v1812 = vsel %vm1590, %v1315, -inf
        %v1813 = vsel %vm1590, %v1347, -inf
        %v1814 = vmax.f32 %v1812, %v1813
        %v1815 = vsel %vm1590, %v1379, -inf
        %v1816 = vmax.f32 %v1814, %v1815
        %v1817 = vsel %vm1590, %v1411, -inf
        %v1818 = vmax.f32 %v1816, %v1817
        %v1819 = vsel %vm1590, %v1443, -inf
        %v1820 = vmax.f32 %v1818, %v1819
        %v1821 = vsel %vm1590, %v1475, -inf
        %v1822 = vmax.f32 %v1820, %v1821
        %v1823 = vsel %vm1590, %v1507, -inf
        %v1824 = vmax.f32 %v1822, %v1823
        %v1825 = vsel %vm1590, %v1539, -inf
        %v1826 = vmax.f32 %v1824, %v1825
        %v1827 = vsel %vm1590, %v1571, -inf
        %v1828 = vmax.f32 %v1826, %v1827
        %v1829 = vsel %vm1590, %v1316, -inf
        %v1830 = vsel %vm1590, %v1348, -inf
        %v1831 = vmax.f32 %v1829, %v1830
        %v1832 = vsel %vm1590, %v1380, -inf
        %v1833 = vmax.f32 %v1831, %v1832
        %v1834 = vsel %vm1590, %v1412, -inf
        %v1835 = vmax.f32 %v1833, %v1834
        %v1836 = vsel %vm1590, %v1444, -inf
        %v1837 = vmax.f32 %v1835, %v1836
        %v1838 = vsel %vm1590, %v1476, -inf
        %v1839 = vmax.f32 %v1837, %v1838
        %v1840 = vsel %vm1590, %v1508, -inf
        %v1841 = vmax.f32 %v1839, %v1840
        %v1842 = vsel %vm1590, %v1540, -inf
        %v1843 = vmax.f32 %v1841, %v1842
        %v1844 = vsel %vm1590, %v1572, -inf
        %v1845 = vmax.f32 %v1843, %v1844
        %v1846 = vsel %vm1590, %v1317, -inf
        %v1847 = vsel %vm1590, %v1349, -inf
        %v1848 = vmax.f32 %v1846, %v1847
        %v1849 = vsel %vm1590, %v1381, -inf
        %v1850 = vmax.f32 %v1848, %v1849
        %v1851 = vsel %vm1590, %v1413, -inf
        %v1852 = vmax.f32 %v1850, %v1851
        %v1853 = vsel %vm1590, %v1445, -inf
        %v1854 = vmax.f32 %v1852, %v1853
        %v1855 = vsel %vm1590, %v1477, -inf
        %v1856 = vmax.f32 %v1854, %v1855
        %v1857 = vsel %vm1590, %v1509, -inf
        %v1858 = vmax.f32 %v1856, %v1857
        %v1859 = vsel %vm1590, %v1541, -inf
        %v1860 = vmax.f32 %v1858, %v1859
        %v1861 = vsel %vm1590, %v1573, -inf
        %v1862 = vmax.f32 %v1860, %v1861
        %v1863 = vsel %vm1590, %v1318, -inf
        %v1864 = vsel %vm1590, %v1350, -inf
        %v1865 = vmax.f32 %v1863, %v1864
        %v1866 = vsel %vm1590, %v1382, -inf
        %v1867 = vmax.f32 %v1865, %v1866
        %v1868 = vsel %vm1590, %v1414, -inf
        %v1869 = vmax.f32 %v1867, %v1868
        %v1870 = vsel %vm1590, %v1446, -inf
        %v1871 = vmax.f32 %v1869, %v1870
        %v1872 = vsel %vm1590, %v1478, -inf
        %v1873 = vmax.f32 %v1871, %v1872
        %v1874 = vsel %vm1590, %v1510, -inf
        %v1875 = vmax.f32 %v1873, %v1874
        %v1876 = vsel %vm1590, %v1542, -inf
        %v1877 = vmax.f32 %v1875, %v1876
        %v1878 = vsel %vm1590, %v1574, -inf
        %v1879 = vmax.f32 %v1877, %v1878
        %v1880 = vsel %vm1590, %v1319, -inf
        %v1881 = vsel %vm1590, %v1351, -inf
        %v1882 = vmax.f32 %v1880, %v1881
        %v1883 = vsel %vm1590, %v1383, -inf
        %v1884 = vmax.f32 %v1882, %v1883
        %v1885 = vsel %vm1590, %v1415, -inf
        %v1886 = vmax.f32 %v1884, %v1885
        %v1887 = vsel %vm1590, %v1447, -inf
        %v1888 = vmax.f32 %v1886, %v1887
        %v1889 = vsel %vm1590, %v1479, -inf
        %v1890 = vmax.f32 %v1888, %v1889
        %v1891 = vsel %vm1590, %v1511, -inf
        %v1892 = vmax.f32 %v1890, %v1891
        %v1893 = vsel %vm1590, %v1543, -inf
        %v1894 = vmax.f32 %v1892, %v1893
        %v1895 = vsel %vm1590, %v1575, -inf
        %v1896 = vmax.f32 %v1894, %v1895
        %v1897 = vsel %vm1590, %v1320, -inf
        %v1898 = vsel %vm1590, %v1352, -inf
        %v1899 = vmax.f32 %v1897, %v1898
        %v1900 = vsel %vm1590, %v1384, -inf
        %v1901 = vmax.f32 %v1899, %v1900
        %v1902 = vsel %vm1590, %v1416, -inf
        %v1903 = vmax.f32 %v1901, %v1902
        %v1904 = vsel %vm1590, %v1448, -inf
        %v1905 = vmax.f32 %v1903, %v1904
        %v1906 = vsel %vm1590, %v1480, -inf
        %v1907 = vmax.f32 %v1905, %v1906
        %v1908 = vsel %vm1590, %v1512, -inf
        %v1909 = vmax.f32 %v1907, %v1908
        %v1910 = vsel %vm1590, %v1544, -inf
        %v1911 = vmax.f32 %v1909, %v1910
        %v1912 = vsel %vm1590, %v1576, -inf
        %v1913 = vmax.f32 %v1911, %v1912
        %v1914 = vsel %vm1590, %v1321, -inf
        %v1915 = vsel %vm1590, %v1353, -inf
        %v1916 = vmax.f32 %v1914, %v1915
        %v1917 = vsel %vm1590, %v1385, -inf
        %v1918 = vmax.f32 %v1916, %v1917
        %v1919 = vsel %vm1590, %v1417, -inf
        %v1920 = vmax.f32 %v1918, %v1919
        %v1921 = vsel %vm1590, %v1449, -inf
        %v1922 = vmax.f32 %v1920, %v1921
        %v1923 = vsel %vm1590, %v1481, -inf
        %v1924 = vmax.f32 %v1922, %v1923
        %v1925 = vsel %vm1590, %v1513, -inf
        %v1926 = vmax.f32 %v1924, %v1925
        %v1927 = vsel %vm1590, %v1545, -inf
        %v1928 = vmax.f32 %v1926, %v1927
        %v1929 = vsel %vm1590, %v1577, -inf
        %v1930 = vmax.f32 %v1928, %v1929
        %v1931 = vsel %vm1590, %v1322, -inf
        %v1932 = vsel %vm1590, %v1354, -inf
        %v1933 = vmax.f32 %v1931, %v1932
        %v1934 = vsel %vm1590, %v1386, -inf
        %v1935 = vmax.f32 %v1933, %v1934
        %v1936 = vsel %vm1590, %v1418, -inf
        %v1937 = vmax.f32 %v1935, %v1936
        %v1938 = vsel %vm1590, %v1450, -inf
        %v1939 = vmax.f32 %v1937, %v1938
        %v1940 = vsel %vm1590, %v1482, -inf
        %v1941 = vmax.f32 %v1939, %v1940
        %v1942 = vsel %vm1590, %v1514, -inf
        %v1943 = vmax.f32 %v1941, %v1942
        %v1944 = vsel %vm1590, %v1546, -inf
        %v1945 = vmax.f32 %v1943, %v1944
        %v1946 = vsel %vm1590, %v1578, -inf
        %v1947 = vmax.f32 %v1945, %v1946
        %v1948 = vsel %vm1590, %v1323, -inf
        %v1949 = vsel %vm1590, %v1355, -inf
        %v1950 = vmax.f32 %v1948, %v1949
        %v1951 = vsel %vm1590, %v1387, -inf
        %v1952 = vmax.f32 %v1950, %v1951
        %v1953 = vsel %vm1590, %v1419, -inf
        %v1954 = vmax.f32 %v1952, %v1953
        %v1955 = vsel %vm1590, %v1451, -inf
        %v1956 = vmax.f32 %v1954, %v1955
        %v1957 = vsel %vm1590, %v1483, -inf
        %v1958 = vmax.f32 %v1956, %v1957
        %v1959 = vsel %vm1590, %v1515, -inf
        %v1960 = vmax.f32 %v1958, %v1959
        %v1961 = vsel %vm1590, %v1547, -inf
        %v1962 = vmax.f32 %v1960, %v1961
        %v1963 = vsel %vm1590, %v1579, -inf
        %v1964 = vmax.f32 %v1962, %v1963
        %v1965 = vsel %vm1590, %v1324, -inf
        %v1966 = vsel %vm1590, %v1356, -inf
        %v1967 = vmax.f32 %v1965, %v1966
        %v1968 = vsel %vm1590, %v1388, -inf
        %v1969 = vmax.f32 %v1967, %v1968
        %v1970 = vsel %vm1590, %v1420, -inf
        %v1971 = vmax.f32 %v1969, %v1970
        %v1972 = vsel %vm1590, %v1452, -inf
        %v1973 = vmax.f32 %v1971, %v1972
        %v1974 = vsel %vm1590, %v1484, -inf
        %v1975 = vmax.f32 %v1973, %v1974
        %v1976 = vsel %vm1590, %v1516, -inf
        %v1977 = vmax.f32 %v1975, %v1976
        %v1978 = vsel %vm1590, %v1548, -inf
        %v1979 = vmax.f32 %v1977, %v1978
        %v1980 = vsel %vm1590, %v1580, -inf
        %v1981 = vmax.f32 %v1979, %v1980
        %v1982 = vsel %vm1590, %v1325, -inf
        %v1983 = vsel %vm1590, %v1357, -inf
        %v1984 = vmax.f32 %v1982, %v1983
        %v1985 = vsel %vm1590, %v1389, -inf
        %v1986 = vmax.f32 %v1984, %v1985
        %v1987 = vsel %vm1590, %v1421, -inf
        %v1988 = vmax.f32 %v1986, %v1987
        %v1989 = vsel %vm1590, %v1453, -inf
        %v1990 = vmax.f32 %v1988, %v1989
        %v1991 = vsel %vm1590, %v1485, -inf
        %v1992 = vmax.f32 %v1990, %v1991
        %v1993 = vsel %vm1590, %v1517, -inf
        %v1994 = vmax.f32 %v1992, %v1993
        %v1995 = vsel %vm1590, %v1549, -inf
        %v1996 = vmax.f32 %v1994, %v1995
        %v1997 = vsel %vm1590, %v1581, -inf
        %v1998 = vmax.f32 %v1996, %v1997
        %v1999 = vsel %vm1590, %v1326, -inf
        %v2000 = vsel %vm1590, %v1358, -inf
        %v2001 = vmax.f32 %v1999, %v2000
        %v2002 = vsel %vm1590, %v1390, -inf
        %v2003 = vmax.f32 %v2001, %v2002
        %v2004 = vsel %vm1590, %v1422, -inf
        %v2005 = vmax.f32 %v2003, %v2004
        %v2006 = vsel %vm1590, %v1454, -inf
        %v2007 = vmax.f32 %v2005, %v2006
        %v2008 = vsel %vm1590, %v1486, -inf
        %v2009 = vmax.f32 %v2007, %v2008
        %v2010 = vsel %vm1590, %v1518, -inf
        %v2011 = vmax.f32 %v2009, %v2010
        %v2012 = vsel %vm1590, %v1550, -inf
        %v2013 = vmax.f32 %v2011, %v2012
        %v2014 = vsel %vm1590, %v1582, -inf
        %v2015 = vmax.f32 %v2013, %v2014
        %v2016 = vsel %vm1590, %v1327, -inf
        %v2017 = vsel %vm1590, %v1359, -inf
        %v2018 = vmax.f32 %v2016, %v2017
        %v2019 = vsel %vm1590, %v1391, -inf
        %v2020 = vmax.f32 %v2018, %v2019
        %v2021 = vsel %vm1590, %v1423, -inf
        %v2022 = vmax.f32 %v2020, %v2021
        %v2023 = vsel %vm1590, %v1455, -inf
        %v2024 = vmax.f32 %v2022, %v2023
        %v2025 = vsel %vm1590, %v1487, -inf
        %v2026 = vmax.f32 %v2024, %v2025
        %v2027 = vsel %vm1590, %v1519, -inf
        %v2028 = vmax.f32 %v2026, %v2027
        %v2029 = vsel %vm1590, %v1551, -inf
        %v2030 = vmax.f32 %v2028, %v2029
        %v2031 = vsel %vm1590, %v1583, -inf
        %v2032 = vmax.f32 %v2030, %v2031
        %v2033 = vsel %vm1590, %v1328, -inf
        %v2034 = vsel %vm1590, %v1360, -inf
        %v2035 = vmax.f32 %v2033, %v2034
        %v2036 = vsel %vm1590, %v1392, -inf
        %v2037 = vmax.f32 %v2035, %v2036
        %v2038 = vsel %vm1590, %v1424, -inf
        %v2039 = vmax.f32 %v2037, %v2038
        %v2040 = vsel %vm1590, %v1456, -inf
        %v2041 = vmax.f32 %v2039, %v2040
        %v2042 = vsel %vm1590, %v1488, -inf
        %v2043 = vmax.f32 %v2041, %v2042
        %v2044 = vsel %vm1590, %v1520, -inf
        %v2045 = vmax.f32 %v2043, %v2044
        %v2046 = vsel %vm1590, %v1552, -inf
        %v2047 = vmax.f32 %v2045, %v2046
        %v2048 = vsel %vm1590, %v1584, -inf
        %v2049 = vmax.f32 %v2047, %v2048
        %v2050 = vsel %vm1590, %v1329, -inf
        %v2051 = vsel %vm1590, %v1361, -inf
        %v2052 = vmax.f32 %v2050, %v2051
        %v2053 = vsel %vm1590, %v1393, -inf
        %v2054 = vmax.f32 %v2052, %v2053
        %v2055 = vsel %vm1590, %v1425, -inf
        %v2056 = vmax.f32 %v2054, %v2055
        %v2057 = vsel %vm1590, %v1457, -inf
        %v2058 = vmax.f32 %v2056, %v2057
        %v2059 = vsel %vm1590, %v1489, -inf
        %v2060 = vmax.f32 %v2058, %v2059
        %v2061 = vsel %vm1590, %v1521, -inf
        %v2062 = vmax.f32 %v2060, %v2061
        %v2063 = vsel %vm1590, %v1553, -inf
        %v2064 = vmax.f32 %v2062, %v2063
        %v2065 = vsel %vm1590, %v1585, -inf
        %v2066 = vmax.f32 %v2064, %v2065
        %v2067 = vsel %vm1590, %v1330, -inf
        %v2068 = vsel %vm1590, %v1362, -inf
        %v2069 = vmax.f32 %v2067, %v2068
        %v2070 = vsel %vm1590, %v1394, -inf
        %v2071 = vmax.f32 %v2069, %v2070
        %v2072 = vsel %vm1590, %v1426, -inf
        %v2073 = vmax.f32 %v2071, %v2072
        %v2074 = vsel %vm1590, %v1458, -inf
        %v2075 = vmax.f32 %v2073, %v2074
        %v2076 = vsel %vm1590, %v1490, -inf
        %v2077 = vmax.f32 %v2075, %v2076
        %v2078 = vsel %vm1590, %v1522, -inf
        %v2079 = vmax.f32 %v2077, %v2078
        %v2080 = vsel %vm1590, %v1554, -inf
        %v2081 = vmax.f32 %v2079, %v2080
        %v2082 = vsel %vm1590, %v1586, -inf
        %v2083 = vmax.f32 %v2081, %v2082
        %v2084 = vsel %vm1590, %v1331, -inf
        %v2085 = vsel %vm1590, %v1363, -inf
        %v2086 = vmax.f32 %v2084, %v2085
        %v2087 = vsel %vm1590, %v1395, -inf
        %v2088 = vmax.f32 %v2086, %v2087
        %v2089 = vsel %vm1590, %v1427, -inf
        %v2090 = vmax.f32 %v2088, %v2089
        %v2091 = vsel %vm1590, %v1459, -inf
        %v2092 = vmax.f32 %v2090, %v2091
        %v2093 = vsel %vm1590, %v1491, -inf
        %v2094 = vmax.f32 %v2092, %v2093
        %v2095 = vsel %vm1590, %v1523, -inf
        %v2096 = vmax.f32 %v2094, %v2095
        %v2097 = vsel %vm1590, %v1555, -inf
        %v2098 = vmax.f32 %v2096, %v2097
        %v2099 = vsel %vm1590, %v1587, -inf
        %v2100 = vmax.f32 %v2098, %v2099
        %v2101 = vsel %vm1590, %v1332, -inf
        %v2102 = vsel %vm1590, %v1364, -inf
        %v2103 = vmax.f32 %v2101, %v2102
        %v2104 = vsel %vm1590, %v1396, -inf
        %v2105 = vmax.f32 %v2103, %v2104
        %v2106 = vsel %vm1590, %v1428, -inf
        %v2107 = vmax.f32 %v2105, %v2106
        %v2108 = vsel %vm1590, %v1460, -inf
        %v2109 = vmax.f32 %v2107, %v2108
        %v2110 = vsel %vm1590, %v1492, -inf
        %v2111 = vmax.f32 %v2109, %v2110
        %v2112 = vsel %vm1590, %v1524, -inf
        %v2113 = vmax.f32 %v2111, %v2112
        %v2114 = vsel %vm1590, %v1556, -inf
        %v2115 = vmax.f32 %v2113, %v2114
        %v2116 = vsel %vm1590, %v1588, -inf
        %v2117 = vmax.f32 %v2115, %v2116
        %v2118 = vsel %vm1590, %v1333, -inf
        %v2119 = vsel %vm1590, %v1365, -inf
        %v2120 = vmax.f32 %v2118, %v2119
        %v2121 = vsel %vm1590, %v1397, -inf
        %v2122 = vmax.f32 %v2120, %v2121
        %v2123 = vsel %vm1590, %v1429, -inf
        %v2124 = vmax.f32 %v2122, %v2123
        %v2125 = vsel %vm1590, %v1461, -inf
        %v2126 = vmax.f32 %v2124, %v2125
        %v2127 = vsel %vm1590, %v1493, -inf
        %v2128 = vmax.f32 %v2126, %v2127
        %v2129 = vsel %vm1590, %v1525, -inf
        %v2130 = vmax.f32 %v2128, %v2129
        %v2131 = vsel %vm1590, %v1557, -inf
        %v2132 = vmax.f32 %v2130, %v2131
        %v2133 = vsel %vm1590, %v1589, -inf
        %v2134 = vmax.f32 %v2132, %v2133
        %2135 = vst.msk [vmem:[%s1300] sm:$0xff] %vm1590, %v1607
        %2136 = vst.msk [vmem:[%s1300 + $0x8] sm:$0xff] %vm1590, %v1624
        %2137 = vst.msk [vmem:[%s1300 + $0x10] sm:$0xff] %vm1590, %v1641
        %2138 = vst.msk [vmem:[%s1300 + $0x18] sm:$0xff] %vm1590, %v1658
        %2139 = vst.msk [vmem:[%s1300 + $0x20] sm:$0xff] %vm1590, %v1675
        %2140 = vst.msk [vmem:[%s1300 + $0x28] sm:$0xff] %vm1590, %v1692
        %2141 = vst.msk [vmem:[%s1300 + $0x30] sm:$0xff] %vm1590, %v1709
        %2142 = vst.msk [vmem:[%s1300 + $0x38] sm:$0xff] %vm1590, %v1726
        %2143 = vst.msk [vmem:[%s1300 + $0x40] sm:$0xff] %vm1590, %v1743
        %2144 = vst.msk [vmem:[%s1300 + $0x48] sm:$0xff] %vm1590, %v1760
        %2145 = vst.msk [vmem:[%s1300 + $0x50] sm:$0xff] %vm1590, %v1777
        %2146 = vst.msk [vmem:[%s1300 + $0x58] sm:$0xff] %vm1590, %v1794
        %2147 = vst.msk [vmem:[%s1300 + $0x60] sm:$0xff] %vm1590, %v1811
        %2148 = vst.msk [vmem:[%s1300 + $0x68] sm:$0xff] %vm1590, %v1828
        %2149 = vst.msk [vmem:[%s1300 + $0x70] sm:$0xff] %vm1590, %v1845
        %2150 = vst.msk [vmem:[%s1300 + $0x78] sm:$0xff] %vm1590, %v1862
        %2151 = vst.msk [vmem:[%s1300 + $0x80] sm:$0xff] %vm1590, %v1879
        %2152 = vst.msk [vmem:[%s1300 + $0x88] sm:$0xff] %vm1590, %v1896
        %2153 = vst.msk [vmem:[%s1300 + $0x90] sm:$0xff] %vm1590, %v1913
        %2154 = vst.msk [vmem:[%s1300 + $0x98] sm:$0xff] %vm1590, %v1930
        %2155 = vst.msk [vmem:[%s1300 + $0xa0] sm:$0xff] %vm1590, %v1947
        %2156 = vst.msk [vmem:[%s1300 + $0xa8] sm:$0xff] %vm1590, %v1964
        %2157 = vst.msk [vmem:[%s1300 + $0xb0] sm:$0xff] %vm1590, %v1981
        %2158 = vst.msk [vmem:[%s1300 + $0xb8] sm:$0xff] %vm1590, %v1998
        %2159 = vst.msk [vmem:[%s1300 + $0xc0] sm:$0xff] %vm1590, %v2015
        %2160 = vst.msk [vmem:[%s1300 + $0xc8] sm:$0xff] %vm1590, %v2032
        %2161 = vst.msk [vmem:[%s1300 + $0xd0] sm:$0xff] %vm1590, %v2049
        %2162 = vst.msk [vmem:[%s1300 + $0xd8] sm:$0xff] %vm1590, %v2066
        %2163 = vst.msk [vmem:[%s1300 + $0xe0] sm:$0xff] %vm1590, %v2083
        %2164 = vst.msk [vmem:[%s1300 + $0xe8] sm:$0xff] %vm1590, %v2100
        %2165 = vst.msk [vmem:[%s1300 + $0xf0] sm:$0xff] %vm1590, %v2117
        %2166 = vst.msk [vmem:[%s1300 + $0xf8] sm:$0xff] %vm1590, %v2134
        %s2167 = smul.u32 32, %s12
        %p2168 = scmp.lt.s32.totalorder %s2167, 63
        %s2169 = scalar_select %p2168, %s2167, 63
        %s2170 = smul.addr %s2169, 8
        %s2171 = scalar_lea.vmem %s1, %s2170
        // Predicated region
        $region63: #{feature_extractor_forward.10} parent=57 // pred_check
          %p2172 = pneg %p56
        $region64: #{feature_extractor_forward.10} parent=57 // pred_check_branch
          %2174 = sbr.rel (%p2172) target = $region66
        $region65: #{feature_extractor_forward.10} parent=57 // pred_region
          %s2175 = smul.u32 32, %s12
        $region66: #{feature_extractor_forward.10} parent=57 // pred_fallthru
          _
      $region58: #{feature_extractor_forward.10} parent=5 // pred_fallthru
        _
      %p2176 = scmp.le.s32.totalorder 2, %s7
      // Predicated region
      $region67: #{feature_extractor_forward.10} parent=5 // pred_check
        %p2177 = pneg %p2176
      $region68: #{feature_extractor_forward.10} parent=5 // pred_check_branch
        %2179 = sbr.rel (%p2177) target = $region70
      $region69: #{feature_extractor_forward.10} parent=5 // pred_region
        %s2180 = ssub.s32 %s7, 2
        // Predicated region
        $region71: #{feature_extractor_forward.10} parent=69 // pred_check
          %p2181 = pneg %p62
        $region72: #{feature_extractor_forward.10} parent=69 // pred_check_branch
          %2183 = sbr.rel (%p2181) target = $region74
        $region73: #{feature_extractor_forward.10} parent=69 // pred_region
          %s2184 = smul.u32 32, %s13
          %p2185 = scmp.lt.s32.totalorder %s2184, 63
          %s2186 = scalar_select %p2185, %s2184, 63
          %s2187 = smul.addr %s2186, 8
          %s2188 = scalar_lea.vmem %s1, %s2187
        $region74: #{feature_extractor_forward.10} parent=69 // pred_fallthru
          _
      $region70: #{feature_extractor_forward.10} parent=5 // pred_fallthru
        _
    $region6: #{feature_extractor_forward.10} parent=1 // loop_footer
      %s11 = sadd.s32 1, %s7
    $region7: #{feature_extractor_forward.10} parent=1 // loop_footer_branch
      %6 = sbr.rel target = $region3
    $region8: #{feature_extractor_forward.10} parent=1 // loop_exit
      _

// kernel: feature_extractor_forward.11
$region0: #{feature_extractor_forward.11}
  #allocation0 [shape = 'u32[]', space=smem, size = 0x4, offset = 0x4, fixed_abs, tag = 'smem constant byte address 0x4 - core index']
  #allocation1 [shape = 'u32[144,128]{1,0:T(1,128)}', space=vmem, size = 0x12000, scoped, tag = 'internal scratch']
  %s0 = inlined_call_operand.vmem [shape: f32[512,144], index: 0, kind: input, shape index: {}]
  %s1 = inlined_call_operand.vmem [shape: f32[144,16], index: 1, kind: input, shape index: {}]
  %s2 = inlined_call_operand.vmem [shape: f32[1,16], index: 2, kind: input, shape index: {}]
  %s3 = inlined_call_operand.vmem [shape: f32[1,16], index: 3, kind: input, shape index: {}]
  %s4 = inlined_call_operand.vmem [shape: f32[1,16], index: 4, kind: input, shape index: {}]
  %s5 = inlined_call_operand.vmem [shape: f32[512,16], index: 5, kind: output, shape index: {}]
  %s6 = sld [smem:[#allocation0]]
  $region53: #{feature_extractor_forward.11} parent=0
    _
  %s8 = ssub.s32 1, %s6
  %s9 = scalar_select 0, %s8, %s6
  loop: start=0, step=1, limit=4
  $region2: #{feature_extractor_forward.11} parent=0 // loop_pre_header
    _
  $region3: #{feature_extractor_forward.11} parent=0 // loop_header
    %s11 = sphi 0, %s15
    %p12 = scmp.ge.s32.totalorder %s11, 4
    %s21 = sphi 0, %s23
    %s24 = sphi 0, %s21
    %s25 = sphi 0, %s24
    %s41 = sphi 0, %s25
    %s45 = sphi 0, %s45
    %s47 = sphi 0, %s45
    %s48 = sphi 0, %s47
    %s62 = sphi 0, %s48
    %s66 = sphi 0, %s66
    %s68 = sphi 0, %s66
    %s69 = sphi 0, %s68
    %s83 = sphi 0, %s69
    %s87 = sphi 0, %s87
    %s89 = sphi 0, %s87
    %s90 = sphi 0, %s89
    %s104 = sphi 0, %s90
    %s108 = sphi 0, %s108
    %s110 = sphi 0, %s108
    %s111 = sphi 0, %s110
    %s125 = sphi 0, %s111
    %s131 = sphi 0, %s133
    %s134 = sphi 0, %s131
    %s135 = sphi 0, %s134
    %s151 = sphi 0, %s135
  $region4: #{feature_extractor_forward.11} parent=0 // loop_header_branch
    %14 = sbr.rel (%p12) target = $region8
  $region5: #{feature_extractor_forward.11} parent=0 // loop_body
    %s16 = ssub.s32 %s11, 1
    %s17 = ssub.s32 %s11, 2
    %s18 = sadd.s32 %s11, 1
    %s19 = ssub.s32 %s11, %s18
    %p20 = scmp.eq.s32.totalorder %s19, 0
    %s22 = sadd.s32 %s21, 1
    %s23 = scalar_select %p20, %s21, %s22
    %p26 = pneg %p20
    %p27 = scmp.eq.s32.totalorder %s11, 1
    %p28 = por %p26, %p27
    %p29 = scmp.ne.s32.totalorder %s21, %s24
    %p30 = scmp.eq.s32.totalorder %s11, 0
    %p31 = por %p29, %p30
    %p32 = scmp.ne.s32.totalorder %s21, %s24
    %p33 = scmp.eq.s32.totalorder %s16, 1
    %p34 = por %p32, %p33
    %p35 = scmp.ne.s32.totalorder %s24, %s25
    %p36 = scmp.eq.s32.totalorder %s16, 0
    %p37 = por %p35, %p36
    %p38 = scmp.ne.s32.totalorder %s24, %s25
    %p39 = scmp.eq.s32.totalorder %s17, 1
    %p40 = por %p38, %p39
    %p42 = scmp.ne.s32.totalorder %s25, %s41
    %p43 = scmp.eq.s32.totalorder %s17, 0
    %p44 = por %p42, %p43
    %s46 = sadd.s32 %s45, 1
    %p49 = scmp.eq.s32.totalorder %s11, 1
    %p50 = scmp.ne.s32.totalorder %s45, %s47
    %p51 = scmp.eq.s32.totalorder %s11, 0
    %p52 = por %p50, %p51
    %p53 = scmp.ne.s32.totalorder %s45, %s47
    %p54 = scmp.eq.s32.totalorder %s16, 1
    %p55 = por %p53, %p54
    %p56 = scmp.ne.s32.totalorder %s47, %s48
    %p57 = scmp.eq.s32.totalorder %s16, 0
    %p58 = por %p56, %p57
    %p59 = scmp.ne.s32.totalorder %s47, %s48
    %p60 = scmp.eq.s32.totalorder %s17, 1
    %p61 = por %p59, %p60
    %p63 = scmp.ne.s32.totalorder %s48, %s62
    %p64 = scmp.eq.s32.totalorder %s17, 0
    %p65 = por %p63, %p64
    %s67 = sadd.s32 %s66, 1
    %p70 = scmp.eq.s32.totalorder %s11, 1
    %p71 = scmp.ne.s32.totalorder %s66, %s68
    %p72 = scmp.eq.s32.totalorder %s11, 0
    %p73 = por %p71, %p72
    %p74 = scmp.ne.s32.totalorder %s66, %s68
    %p75 = scmp.eq.s32.totalorder %s16, 1
    %p76 = por %p74, %p75
    %p77 = scmp.ne.s32.totalorder %s68, %s69
    %p78 = scmp.eq.s32.totalorder %s16, 0
    %p79 = por %p77, %p78
    %p80 = scmp.ne.s32.totalorder %s68, %s69
    %p81 = scmp.eq.s32.totalorder %s17, 1
    %p82 = por %p80, %p81
    %p84 = scmp.ne.s32.totalorder %s69, %s83
    %p85 = scmp.eq.s32.totalorder %s17, 0
    %p86 = por %p84, %p85
    %s88 = sadd.s32 %s87, 1
    %p91 = scmp.eq.s32.totalorder %s11, 1
    %p92 = scmp.ne.s32.totalorder %s87, %s89
    %p93 = scmp.eq.s32.totalorder %s11, 0
    %p94 = por %p92, %p93
    %p95 = scmp.ne.s32.totalorder %s87, %s89
    %p96 = scmp.eq.s32.totalorder %s16, 1
    %p97 = por %p95, %p96
    %p98 = scmp.ne.s32.totalorder %s89, %s90
    %p99 = scmp.eq.s32.totalorder %s16, 0
    %p100 = por %p98, %p99
    %p101 = scmp.ne.s32.totalorder %s89, %s90
    %p102 = scmp.eq.s32.totalorder %s17, 1
    %p103 = por %p101, %p102
    %p105 = scmp.ne.s32.totalorder %s90, %s104
    %p106 = scmp.eq.s32.totalorder %s17, 0
    %p107 = por %p105, %p106
    %s109 = sadd.s32 %s108, 1
    %p112 = scmp.eq.s32.totalorder %s11, 1
    %p113 = scmp.ne.s32.totalorder %s108, %s110
    %p114 = scmp.eq.s32.totalorder %s11, 0
    %p115 = por %p113, %p114
    %p116 = scmp.ne.s32.totalorder %s108, %s110
    %p117 = scmp.eq.s32.totalorder %s16, 1
    %p118 = por %p116, %p117
    %p119 = scmp.ne.s32.totalorder %s110, %s111
    %p120 = scmp.eq.s32.totalorder %s16, 0
    %p121 = por %p119, %p120
    %p122 = scmp.ne.s32.totalorder %s110, %s111
    %p123 = scmp.eq.s32.totalorder %s17, 1
    %p124 = por %p122, %p123
    %p126 = scmp.ne.s32.totalorder %s111, %s125
    %p127 = scmp.eq.s32.totalorder %s17, 0
    %p128 = por %p126, %p127
    %s129 = ssub.s32 %s11, %s18
    %p130 = scmp.eq.s32.totalorder %s129, 0
    %s132 = sadd.s32 %s131, 1
    %s133 = scalar_select %p130, %s131, %s132
    %p136 = pneg %p130
    %p137 = scmp.eq.s32.totalorder %s11, 1
    %p138 = por %p136, %p137
    %p139 = scmp.ne.s32.totalorder %s131, %s134
    %p140 = scmp.eq.s32.totalorder %s11, 0
    %p141 = por %p139, %p140
    %p142 = scmp.ne.s32.totalorder %s131, %s134
    %p143 = scmp.eq.s32.totalorder %s16, 1
    %p144 = por %p142, %p143
    %p145 = scmp.ne.s32.totalorder %s134, %s135
    %p146 = scmp.eq.s32.totalorder %s16, 0
    %p147 = por %p145, %p146
    %p148 = scmp.ne.s32.totalorder %s134, %s135
    %p149 = scmp.eq.s32.totalorder %s17, 1
    %p150 = por %p148, %p149
    %p152 = scmp.ne.s32.totalorder %s135, %s151
    %p153 = scmp.eq.s32.totalorder %s17, 0
    %p154 = por %p152, %p153
    %p155 = scmp.le.s32.totalorder 1, %s11
    %p156 = scmp.lt.s32.totalorder %s11, 3
    %p157 = pnand %p155, %p156
    %p158 = pneg %p157
    // Predicated region
    $region9: #{feature_extractor_forward.11} parent=5 // pred_check
      _
    $region10: #{feature_extractor_forward.11} parent=5 // pred_check_branch
      %160 = sbr.rel (%p157) target = $region12
    $region11: #{feature_extractor_forward.11} parent=5 // pred_region
      %s161 = ssub.s32 %s11, 1
      // Predicated region
      $region13: #{feature_extractor_forward.11} parent=11 // pred_check
        %p162 = pneg %p58
      $region14: #{feature_extractor_forward.11} parent=11 // pred_check_branch
        %164 = sbr.rel (%p162) target = $region16
      $region15: #{feature_extractor_forward.11} parent=11 // pred_region
        _
      $region16: #{feature_extractor_forward.11} parent=11 // pred_fallthru
        _
      // Predicated region
      $region17: #{feature_extractor_forward.11} parent=11 // pred_check
        %p165 = pneg %p79
      $region18: #{feature_extractor_forward.11} parent=11 // pred_check_branch
        %167 = sbr.rel (%p165) target = $region20
      $region19: #{feature_extractor_forward.11} parent=11 // pred_region
        _
      $region20: #{feature_extractor_forward.11} parent=11 // pred_fallthru
        _
      // Predicated region
      $region21: #{feature_extractor_forward.11} parent=11 // pred_check
        %p168 = pneg %p100
      $region22: #{feature_extractor_forward.11} parent=11 // pred_check_branch
        %170 = sbr.rel (%p168) target = $region24
      $region23: #{feature_extractor_forward.11} parent=11 // pred_region
        _
      $region24: #{feature_extractor_forward.11} parent=11 // pred_fallthru
        _
      // Predicated region
      $region25: #{feature_extractor_forward.11} parent=11 // pred_check
        %p171 = pneg %p121
      $region26: #{feature_extractor_forward.11} parent=11 // pred_check_branch
        %173 = sbr.rel (%p171) target = $region28
      $region27: #{feature_extractor_forward.11} parent=11 // pred_region
        _
      $region28: #{feature_extractor_forward.11} parent=11 // pred_fallthru
        _
    $region12: #{feature_extractor_forward.11} parent=5 // pred_fallthru
      _
    %p174 = scmp.lt.s32.totalorder %s11, 2
    // Predicated region
    $region29: #{feature_extractor_forward.11} parent=5 // pred_check
      %p175 = pneg %p174
    $region30: #{feature_extractor_forward.11} parent=5 // pred_check_branch
      %177 = sbr.rel (%p175) target = $region32
    $region31: #{feature_extractor_forward.11} parent=5 // pred_region
      // Predicated region
      $region33: #{feature_extractor_forward.11} parent=31 // pred_check
        %p178 = pneg %p31
      $region34: #{feature_extractor_forward.11} parent=31 // pred_check_branch
        %180 = sbr.rel (%p178) target = $region36
      $region35: #{feature_extractor_forward.11} parent=31 // pred_region
        %s181 = smul.u32 32, %s11
        %p182 = scmp.lt.s32.totalorder %s181, 63
        %s183 = scalar_select %p182, %s181, 63
        %s184 = smul.addr %s183, 2
        %s185 = smul.addr %s184, 8
        %s186 = scalar_lea.vmem %s0, %s185
        %s187 = smul.u32 32, %s11
      $region36: #{feature_extractor_forward.11} parent=31 // pred_fallthru
        _
    $region32: #{feature_extractor_forward.11} parent=5 // pred_fallthru
      _
    %p188 = scmp.le.s32.totalorder 1, %s11
    %p189 = scmp.lt.s32.totalorder %s11, 3
    %p190 = pnand %p188, %p189
    %p191 = pneg %p190
    // Predicated region
    $region37: #{feature_extractor_forward.11} parent=5 // pred_check
      _
    $region38: #{feature_extractor_forward.11} parent=5 // pred_check_branch
      %193 = sbr.rel (%p190) target = $region40
    $region39: #{feature_extractor_forward.11} parent=5 // pred_region
      %s194 = ssub.s32 %s11, 1
      %s195 = smul.u32 32, %s16
      %p196 = scmp.lt.s32.totalorder %s195, 63
      %s197 = scalar_select %p196, %s195, 63
      %s198 = smul.addr %s197, 2
      %s199 = smul.addr %s198, 8
      %s200 = scalar_lea.vmem %s0, %s199
      %p201 = pneg %p37
      %p202 = pneg %p34
      %p203 = pneg %p58
      %p204 = pneg %p55
      %p205 = pneg %p79
      %p206 = pneg %p76
      %p207 = pneg %p100
      %p208 = pneg %p97
      %p209 = pneg %p121
      %p210 = pneg %p118
      %p211 = pneg %p147
      %p212 = pneg %p144
      %s213 = smul.u32 32, %s16
      %p214 = scmp.lt.s32.totalorder %s213, 63
      %s215 = scalar_select %p214, %s213, 63
      %s216 = smul.addr %s215, 8
      %s217 = scalar_lea.vmem %s5, %s216
      %s218 = smul.u32 32, %s16
      %p219 = scmp.lt.s32.totalorder %s218, 63
      %s220 = scalar_select %p219, %s218, 63
      %s221 = smul.addr %s220, 2
      %s222 = smul.addr %s221, 8
      %s223 = scalar_lea.vmem %s0, %s222
      %s224 = smul.u32 32, %s16
      %s225 = smul.u32 32, %s16
      %p226 = scmp.lt.s32.totalorder %s225, 63
      %s227 = scalar_select %p226, %s225, 63
      %s228 = smul.addr %s227, 8
      %s229 = scalar_lea.vmem %s5, %s228
      %s230 = smul.u32 32, %s16
      %v231 = vld [vmem:[%s223] sm:$0xff]
      %v232 = vld [vmem:[%s223 + $0x8] sm:$0xff]
      %v233 = vld [vmem:[%s223 + $0x10] sm:$0xff]
      %v234 = vld [vmem:[%s223 + $0x18] sm:$0xff]
      %v235 = vld [vmem:[%s223 + $0x20] sm:$0xff]
      %v236 = vld [vmem:[%s223 + $0x28] sm:$0xff]
      %v237 = vld [vmem:[%s223 + $0x30] sm:$0xff]
      %v238 = vld [vmem:[%s223 + $0x38] sm:$0xff]
      %v239 = vld [vmem:[%s223 + $0x40] sm:$0xff]
      %v240 = vld [vmem:[%s223 + $0x48] sm:$0xff]
      %v241 = vld [vmem:[%s223 + $0x50] sm:$0xff]
      %v242 = vld [vmem:[%s223 + $0x58] sm:$0xff]
      %v243 = vld [vmem:[%s223 + $0x60] sm:$0xff]
      %v244 = vld [vmem:[%s223 + $0x68] sm:$0xff]
      %v245 = vld [vmem:[%s223 + $0x70] sm:$0xff]
      %v246 = vld [vmem:[%s223 + $0x78] sm:$0xff]
      %v247 = vld [vmem:[%s223 + $0x80] sm:$0xff]
      %v248 = vld [vmem:[%s223 + $0x88] sm:$0xff]
      %v249 = vld [vmem:[%s223 + $0x90] sm:$0xff]
      %v250 = vld [vmem:[%s223 + $0x98] sm:$0xff]
      %v251 = vld [vmem:[%s223 + $0xa0] sm:$0xff]
      %v252 = vld [vmem:[%s223 + $0xa8] sm:$0xff]
      %v253 = vld [vmem:[%s223 + $0xb0] sm:$0xff]
      %v254 = vld [vmem:[%s223 + $0xb8] sm:$0xff]
      %v255 = vld [vmem:[%s223 + $0xc0] sm:$0xff]
      %v256 = vld [vmem:[%s223 + $0xc8] sm:$0xff]
      %v257 = vld [vmem:[%s223 + $0xd0] sm:$0xff]
      %v258 = vld [vmem:[%s223 + $0xd8] sm:$0xff]
      %v259 = vld [vmem:[%s223 + $0xe0] sm:$0xff]
      %v260 = vld [vmem:[%s223 + $0xe8] sm:$0xff]
      %v261 = vld [vmem:[%s223 + $0xf0] sm:$0xff]
      %v262 = vld [vmem:[%s223 + $0xf8] sm:$0xff]
      %v263 = vld [vmem:[%s223 + $0x100] sm:$0xff]
      %v264 = vld [vmem:[%s223 + $0x108] sm:$0xff]
      %v265 = vld [vmem:[%s223 + $0x110] sm:$0xff]
      %v266 = vld [vmem:[%s223 + $0x118] sm:$0xff]
      %v267 = vld [vmem:[%s223 + $0x120] sm:$0xff]
      %v268 = vld [vmem:[%s223 + $0x128] sm:$0xff]
      %v269 = vld [vmem:[%s223 + $0x130] sm:$0xff]
      %v270 = vld [vmem:[%s223 + $0x138] sm:$0xff]
      %v271 = vld [vmem:[%s223 + $0x140] sm:$0xff]
      %v272 = vld [vmem:[%s223 + $0x148] sm:$0xff]
      %v273 = vld [vmem:[%s223 + $0x150] sm:$0xff]
      %v274 = vld [vmem:[%s223 + $0x158] sm:$0xff]
      %v275 = vld [vmem:[%s223 + $0x160] sm:$0xff]
      %v276 = vld [vmem:[%s223 + $0x168] sm:$0xff]
      %v277 = vld [vmem:[%s223 + $0x170] sm:$0xff]
      %v278 = vld [vmem:[%s223 + $0x178] sm:$0xff]
      %v279 = vld [vmem:[%s223 + $0x180] sm:$0xff]
      %v280 = vld [vmem:[%s223 + $0x188] sm:$0xff]
      %v281 = vld [vmem:[%s223 + $0x190] sm:$0xff]
      %v282 = vld [vmem:[%s223 + $0x198] sm:$0xff]
      %v283 = vld [vmem:[%s223 + $0x1a0] sm:$0xff]
      %v284 = vld [vmem:[%s223 + $0x1a8] sm:$0xff]
      %v285 = vld [vmem:[%s223 + $0x1b0] sm:$0xff]
      %v286 = vld [vmem:[%s223 + $0x1b8] sm:$0xff]
      %v287 = vld [vmem:[%s223 + $0x1c0] sm:$0xff]
      %v288 = vld [vmem:[%s223 + $0x1c8] sm:$0xff]
      %v289 = vld [vmem:[%s223 + $0x1d0] sm:$0xff]
      %v290 = vld [vmem:[%s223 + $0x1d8] sm:$0xff]
      %v291 = vld [vmem:[%s223 + $0x1e0] sm:$0xff]
      %v292 = vld [vmem:[%s223 + $0x1e8] sm:$0xff]
      %v293 = vld [vmem:[%s223 + $0x1f0] sm:$0xff]
      %v294 = vld [vmem:[%s223 + $0x1f8] sm:$0xff]
      %v295 = vld [vmem:[%s1] sm:$0xff]
      %v296 = vld [vmem:[%s1 + $0x8] sm:$0xff]
      %v297 = vld [vmem:[%s1 + $0x10] sm:$0xff]
      %v298 = vld [vmem:[%s1 + $0x18] sm:$0xff]
      %v299 = vld [vmem:[%s1 + $0x20] sm:$0xff]
      %v300 = vld [vmem:[%s1 + $0x28] sm:$0xff]
      %v301 = vld [vmem:[%s1 + $0x30] sm:$0xff]
      %v302 = vld [vmem:[%s1 + $0x38] sm:$0xff]
      %v303 = vld [vmem:[%s1 + $0x40] sm:$0xff]
      %v304 = vld [vmem:[%s1 + $0x48] sm:$0xff]
      %v305 = vld [vmem:[%s1 + $0x50] sm:$0xff]
      %v306 = vld [vmem:[%s1 + $0x58] sm:$0xff]
      %v307 = vld [vmem:[%s1 + $0x60] sm:$0xff]
      %v308 = vld [vmem:[%s1 + $0x68] sm:$0xff]
      %v309 = vld [vmem:[%s1 + $0x70] sm:$0xff]
      %v310 = vld [vmem:[%s1 + $0x78] sm:$0xff]
      %v311 = vld [vmem:[%s1 + $0x80] sm:$0xff]
      %v312 = vld [vmem:[%s1 + $0x88] sm:$0xff]
      %v313 = vld [vmem:[%s2] sm:$0x1]
      %v315 = vlaneseq
      %v316 = vshrl.u32 %v315, 7
      %v317 = vsub.s32 0, %v316
      %v318 = vrot.slane %v313, %v317
      %vm320 = vcmask 130048
      %v322 = vsel %vm320, %v232, 0
      %v325 = vsel %vm320, %v234, 0
      %v328 = vsel %vm320, %v236, 0
      %v331 = vsel %vm320, %v238, 0
      %v334 = vsel %vm320, %v240, 0
      %v337 = vsel %vm320, %v242, 0
      %v340 = vsel %vm320, %v244, 0
      %v343 = vsel %vm320, %v246, 0
      %v346 = vsel %vm320, %v248, 0
      %v349 = vsel %vm320, %v250, 0
      %v352 = vsel %vm320, %v252, 0
      %v355 = vsel %vm320, %v254, 0
      %v358 = vsel %vm320, %v256, 0
      %v361 = vsel %vm320, %v258, 0
      %v364 = vsel %vm320, %v260, 0
      %v367 = vsel %vm320, %v262, 0
      %v370 = vsel %vm320, %v264, 0
      %v373 = vsel %vm320, %v266, 0
      %v376 = vsel %vm320, %v268, 0
      %v379 = vsel %vm320, %v270, 0
      %v382 = vsel %vm320, %v272, 0
      %v385 = vsel %vm320, %v274, 0
      %v388 = vsel %vm320, %v276, 0
      %v391 = vsel %vm320, %v278, 0
      %v394 = vsel %vm320, %v280, 0
      %v397 = vsel %vm320, %v282, 0
      %v400 = vsel %vm320, %v284, 0
      %v403 = vsel %vm320, %v286, 0
      %v406 = vsel %vm320, %v288, 0
      %v409 = vsel %vm320, %v290, 0
      %v412 = vsel %vm320, %v292, 0
      %v415 = vsel %vm320, %v294, 0
      %417 = vmatprep.subr.mxu0 0.0
      %418 = vmatpush1.msra.mxu0 %v295
      %419 = vmatprep.subr.mxu0 0.0
      %420 = vmatpush1.msra.mxu0 %v296
      %421 = vmatprep.subr.mxu0 0.0
      %422 = vmatpush1.msra.mxu0 %v297
      %423 = vmatprep.subr.mxu0 0.0
      %424 = vmatpush1.msra.mxu0 %v298
      %425 = vmatprep.subr.mxu0 0.0
      %426 = vmatpush1.msra.mxu0 %v299
      %427 = vmatprep.subr.mxu0 0.0
      %428 = vmatpush1.msra.mxu0 %v300
      %429 = vmatprep.subr.mxu0 0.0
      %430 = vmatpush1.msra.mxu0 %v301
      %431 = vmatprep.subr.mxu0 0.0
      %432 = vmatpush1.msra.mxu0 %v302
      %433 = vmatprep.subr.mxu0 0.0
      %434 = vmatpush1.msra.mxu0 %v303
      %435 = vmatprep.subr.mxu0 0.0
      %436 = vmatpush1.msra.mxu0 %v304
      %437 = vmatprep.subr.mxu0 0.0
      %438 = vmatpush1.msra.mxu0 %v305
      %439 = vmatprep.subr.mxu0 0.0
      %440 = vmatpush1.msra.mxu0 %v306
      %441 = vmatprep.subr.mxu0 0.0
      %442 = vmatpush1.msra.mxu0 %v307
      %443 = vmatprep.subr.mxu0 0.0
      %444 = vmatpush1.msra.mxu0 %v308
      %445 = vmatprep.subr.mxu0 0.0
      %446 = vmatpush1.msra.mxu0 %v309
      %447 = vmatprep.subr.mxu0 0.0
      %448 = vmatpush1.msra.mxu0 %v310
      %449 = vmatprep.subr.mxu0 0.0
      %450 = vmatpush1.msra.mxu0 %v311
      %451 = vmatprep.subr.mxu0 0.0
      %452 = vmatpush1.msra.mxu0 %v312
      %453 = vmatprep.subr.mxu0 0.0
      %454 = vmatpush1.msra.mxu0 0.0
      %455 = vmatprep.subr.mxu0 0.0
      %456 = vmatpush1.msra.mxu0 0.0
      %457 = vmatprep.subr.mxu0 0.0
      %458 = vmatpush1.msra.mxu0 0.0
      %459 = vmatprep.subr.mxu0 0.0
      %460 = vmatpush1.msra.mxu0 0.0
      %461 = vmatprep.subr.mxu0 0.0
      %462 = vmatpush1.msra.mxu0 0.0
      %463 = vmatprep.subr.mxu0 0.0
      %464 = vmatpush1.msra.mxu0 0.0
      %465 = vmatprep.subr.mxu0 0.0
      %466 = vmatpush1.msra.mxu0 0.0
      %467 = vmatprep.subr.mxu0 0.0
      %468 = vmatpush1.msra.mxu0 0.0
      %469 = vmatprep.subr.mxu0 0.0
      %470 = vmatpush1.msra.mxu0 0.0
      %471 = vmatprep.subr.mxu0 0.0
      %472 = vmatpush1.msra.mxu0 0.0
      %473 = vmatprep.subr.mxu0 0.0
      %474 = vmatpush1.msra.mxu0 0.0
      %475 = vmatprep.subr.mxu0 0.0
      %476 = vmatpush1.msra.mxu0 0.0
      %477 = vmatprep.subr.mxu0 0.0
      %478 = vmatpush1.msra.mxu0 0.0
      %479 = vmatprep.subr.mxu0 0.0
      %480 = vmatpush1.msra.mxu0 0.0
      %481 = vmatprep.mubr.f32.mxu0 %v322
      %482 = vmatmul.mubr.f32.gmra.mrb[0].mxu0 %v231
      %v483 = vpop.f32.mrb[0].mxu0
      %v484 = vadd.f32 %v318, %v483
      %v485 = vpop.f32.mrb[0].mxu0
      %486 = vmatprep.mubr.f32.mxu0 %v325
      %487 = vmatmul.mubr.f32.gmra.mrb[0].mxu0 %v233
      %v488 = vpop.f32.mrb[0].mxu0
      %v489 = vadd.f32 %v318, %v488
      %v490 = vpop.f32.mrb[0].mxu0
      %491 = vmatprep.mubr.f32.mxu0 %v328
      %492 = vmatmul.mubr.f32.gmra.mrb[0].mxu0 %v235
      %v493 = vpop.f32.mrb[0].mxu0
      %v494 = vadd.f32 %v318, %v493
      %v495 = vpop.f32.mrb[0].mxu0
      %496 = vmatprep.mubr.f32.mxu0 %v331
      %497 = vmatmul.mubr.f32.gmra.mrb[0].mxu0 %v237
      %v498 = vpop.f32.mrb[0].mxu0
      %v499 = vadd.f32 %v318, %v498
      %v500 = vpop.f32.mrb[0].mxu0
      %501 = vmatprep.mubr.f32.mxu0 %v334
      %502 = vmatmul.mubr.f32.gmra.mrb[0].mxu0 %v239
      %v503 = vpop.f32.mrb[0].mxu0
      %v504 = vadd.f32 %v318, %v503
      %v505 = vpop.f32.mrb[0].mxu0
      %506 = vmatprep.mubr.f32.mxu0 %v337
      %507 = vmatmul.mubr.f32.gmra.mrb[0].mxu0 %v241
      %v508 = vpop.f32.mrb[0].mxu0
      %v509 = vadd.f32 %v318, %v508
      %v510 = vpop.f32.mrb[0].mxu0
      %511 = vmatprep.mubr.f32.mxu0 %v340
      %512 = vmatmul.mubr.f32.gmra.mrb[0].mxu0 %v243
      %v513 = vpop.f32.mrb[0].mxu0
      %v514 = vadd.f32 %v318, %v513
      %v515 = vpop.f32.mrb[0].mxu0
      %516 = vmatprep.mubr.f32.mxu0 %v343
      %517 = vmatmul.mubr.f32.gmra.mrb[0].mxu0 %v245
      %v518 = vpop.f32.mrb[0].mxu0
      %v519 = vadd.f32 %v318, %v518
      %v520 = vpop.f32.mrb[0].mxu0
      %521 = vmatprep.mubr.f32.mxu0 %v346
      %522 = vmatmul.mubr.f32.gmra.mrb[0].mxu0 %v247
      %v523 = vpop.f32.mrb[0].mxu0
      %v524 = vadd.f32 %v318, %v523
      %v525 = vpop.f32.mrb[0].mxu0
      %526 = vmatprep.mubr.f32.mxu0 %v349
      %527 = vmatmul.mubr.f32.gmra.mrb[0].mxu0 %v249
      %v528 = vpop.f32.mrb[0].mxu0
      %v529 = vadd.f32 %v318, %v528
      %v530 = vpop.f32.mrb[0].mxu0
      %531 = vmatprep.mubr.f32.mxu0 %v352
      %532 = vmatmul.mubr.f32.gmra.mrb[0].mxu0 %v251
      %v533 = vpop.f32.mrb[0].mxu0
      %v534 = vadd.f32 %v318, %v533
      %v535 = vpop.f32.mrb[0].mxu0
      %536 = vmatprep.mubr.f32.mxu0 %v355
      %537 = vmatmul.mubr.f32.gmra.mrb[0].mxu0 %v253
      %v538 = vpop.f32.mrb[0].mxu0
      %v539 = vadd.f32 %v318, %v538
      %v540 = vpop.f32.mrb[0].mxu0
      %541 = vmatprep.mubr.f32.mxu0 %v358
      %542 = vmatmul.mubr.f32.gmra.mrb[0].mxu0 %v255
      %v543 = vpop.f32.mrb[0].mxu0
      %v544 = vadd.f32 %v318, %v543
      %v545 = vpop.f32.mrb[0].mxu0
      %546 = vmatprep.mubr.f32.mxu0 %v361
      %547 = vmatmul.mubr.f32.gmra.mrb[0].mxu0 %v257
      %v548 = vpop.f32.mrb[0].mxu0
      %v549 = vadd.f32 %v318, %v548
      %v550 = vpop.f32.mrb[0].mxu0
      %551 = vmatprep.mubr.f32.mxu0 %v364
      %552 = vmatmul.mubr.f32.gmra.mrb[0].mxu0 %v259
      %v553 = vpop.f32.mrb[0].mxu0
      %v554 = vadd.f32 %v318, %v553
      %v555 = vpop.f32.mrb[0].mxu0
      %556 = vmatprep.mubr.f32.mxu0 %v367
      %557 = vmatmul.mubr.f32.gmra.mrb[0].mxu0 %v261
      %v558 = vpop.f32.mrb[0].mxu0
      %v559 = vadd.f32 %v318, %v558
      %v560 = vpop.f32.mrb[0].mxu0
      %561 = vmatprep.mubr.f32.mxu0 %v370
      %562 = vmatmul.mubr.f32.gmra.mrb[0].mxu0 %v263
      %v563 = vpop.f32.mrb[0].mxu0
      %v564 = vadd.f32 %v318, %v563
      %v565 = vpop.f32.mrb[0].mxu0
      %566 = vmatprep.mubr.f32.mxu0 %v373
      %567 = vmatmul.mubr.f32.gmra.mrb[0].mxu0 %v265
      %v568 = vpop.f32.mrb[0].mxu0
      %v569 = vadd.f32 %v318, %v568
      %v570 = vpop.f32.mrb[0].mxu0
      %571 = vmatprep.mubr.f32.mxu0 %v376
      %572 = vmatmul.mubr.f32.gmra.mrb[0].mxu0 %v267
      %v573 = vpop.f32.mrb[0].mxu0
      %v574 = vadd.f32 %v318, %v573
      %v575 = vpop.f32.mrb[0].mxu0
      %576 = vmatprep.mubr.f32.mxu0 %v379
      %577 = vmatmul.mubr.f32.gmra.mrb[0].mxu0 %v269
      %v578 = vpop.f32.mrb[0].mxu0
      %v579 = vadd.f32 %v318, %v578
      %v580 = vpop.f32.mrb[0].mxu0
      %581 = vmatprep.mubr.f32.mxu0 %v382
      %582 = vmatmul.mubr.f32.gmra.mrb[0].mxu0 %v271
      %v583 = vpop.f32.mrb[0].mxu0
      %v584 = vadd.f32 %v318, %v583
      %v585 = vpop.f32.mrb[0].mxu0
      %586 = vmatprep.mubr.f32.mxu0 %v385
      %587 = vmatmul.mubr.f32.gmra.mrb[0].mxu0 %v273
      %v588 = vpop.f32.mrb[0].mxu0
      %v589 = vadd.f32 %v318, %v588
      %v590 = vpop.f32.mrb[0].mxu0
      %591 = vmatprep.mubr.f32.mxu0 %v388
      %592 = vmatmul.mubr.f32.gmra.mrb[0].mxu0 %v275
      %v593 = vpop.f32.mrb[0].mxu0
      %v594 = vadd.f32 %v318, %v593
      %v595 = vpop.f32.mrb[0].mxu0
      %596 = vmatprep.mubr.f32.mxu0 %v391
      %597 = vmatmul.mubr.f32.gmra.mrb[0].mxu0 %v277
      %v598 = vpop.f32.mrb[0].mxu0
      %v599 = vadd.f32 %v318, %v598
      %v600 = vpop.f32.mrb[0].mxu0
      %601 = vmatprep.mubr.f32.mxu0 %v394
      %602 = vmatmul.mubr.f32.gmra.mrb[0].mxu0 %v279
      %v603 = vpop.f32.mrb[0].mxu0
      %v604 = vadd.f32 %v318, %v603
      %v605 = vpop.f32.mrb[0].mxu0
      %606 = vmatprep.mubr.f32.mxu0 %v397
      %607 = vmatmul.mubr.f32.gmra.mrb[0].mxu0 %v281
      %v608 = vpop.f32.mrb[0].mxu0
      %v609 = vadd.f32 %v318, %v608
      %v610 = vpop.f32.mrb[0].mxu0
      %611 = vmatprep.mubr.f32.mxu0 %v400
      %612 = vmatmul.mubr.f32.gmra.mrb[0].mxu0 %v283
      %v613 = vpop.f32.mrb[0].mxu0
      %v614 = vadd.f32 %v318, %v613
      %v615 = vpop.f32.mrb[0].mxu0
      %616 = vmatprep.mubr.f32.mxu0 %v403
      %617 = vmatmul.mubr.f32.gmra.mrb[0].mxu0 %v285
      %v618 = vpop.f32.mrb[0].mxu0
      %v619 = vadd.f32 %v318, %v618
      %v620 = vpop.f32.mrb[0].mxu0
      %621 = vmatprep.mubr.f32.mxu0 %v406
      %622 = vmatmul.mubr.f32.gmra.mrb[0].mxu0 %v287
      %v623 = vpop.f32.mrb[0].mxu0
      %v624 = vadd.f32 %v318, %v623
      %v625 = vpop.f32.mrb[0].mxu0
      %626 = vmatprep.mubr.f32.mxu0 %v409
      %627 = vmatmul.mubr.f32.gmra.mrb[0].mxu0 %v289
      %v628 = vpop.f32.mrb[0].mxu0
      %v629 = vadd.f32 %v318, %v628
      %v630 = vpop.f32.mrb[0].mxu0
      %631 = vmatprep.mubr.f32.mxu0 %v412
      %632 = vmatmul.mubr.f32.gmra.mrb[0].mxu0 %v291
      %v633 = vpop.f32.mrb[0].mxu0
      %v634 = vadd.f32 %v318, %v633
      %v635 = vpop.f32.mrb[0].mxu0
      %636 = vmatprep.mubr.f32.mxu0 %v415
      %637 = vmatmul.mubr.f32.gmra.mrb[0].mxu0 %v293
      %v638 = vpop.f32.mrb[0].mxu0
      %v639 = vadd.f32 %v318, %v638
      %v640 = vpop.f32.mrb[0].mxu0
      %641 = vdwg.mxu0
      %v642 = vmax.f32 %v484, 0.0
      %v643 = vmax.f32 %v489, 0.0
      %v644 = vmax.f32 %v494, 0.0
      %v645 = vmax.f32 %v499, 0.0
      %v646 = vmax.f32 %v504, 0.0
      %v647 = vmax.f32 %v509, 0.0
      %v648 = vmax.f32 %v514, 0.0
      %v649 = vmax.f32 %v519, 0.0
      %v650 = vmax.f32 %v524, 0.0
      %v651 = vmax.f32 %v529, 0.0
      %v652 = vmax.f32 %v534, 0.0
      %v653 = vmax.f32 %v539, 0.0
      %v654 = vmax.f32 %v544, 0.0
      %v655 = vmax.f32 %v549, 0.0
      %v656 = vmax.f32 %v554, 0.0
      %v657 = vmax.f32 %v559, 0.0
      %v658 = vmax.f32 %v564, 0.0
      %v659 = vmax.f32 %v569, 0.0
      %v660 = vmax.f32 %v574, 0.0
      %v661 = vmax.f32 %v579, 0.0
      %v662 = vmax.f32 %v584, 0.0
      %v663 = vmax.f32 %v589, 0.0
      %v664 = vmax.f32 %v594, 0.0
      %v665 = vmax.f32 %v599, 0.0
      %v666 = vmax.f32 %v604, 0.0
      %v667 = vmax.f32 %v609, 0.0
      %v668 = vmax.f32 %v614, 0.0
      %v669 = vmax.f32 %v619, 0.0
      %v670 = vmax.f32 %v624, 0.0
      %v671 = vmax.f32 %v629, 0.0
      %v672 = vmax.f32 %v634, 0.0
      %v673 = vmax.f32 %v639, 0.0
      %v674 = vld [vmem:[%s3] sm:$0x1]
      %v676 = vlaneseq
      %v677 = vshrl.u32 %v676, 7
      %v678 = vsub.s32 0, %v677
      %v679 = vrot.slane %v674, %v678
      %v681 = vmul.f32 %v642, %v679
      %v682 = vmul.f32 %v643, %v679
      %v683 = vmul.f32 %v644, %v679
      %v684 = vmul.f32 %v645, %v679
      %v685 = vmul.f32 %v646, %v679
      %v686 = vmul.f32 %v647, %v679
      %v687 = vmul.f32 %v648, %v679
      %v688 = vmul.f32 %v649, %v679
      %v689 = vmul.f32 %v650, %v679
      %v690 = vmul.f32 %v651, %v679
      %v691 = vmul.f32 %v652, %v679
      %v692 = vmul.f32 %v653, %v679
      %v693 = vmul.f32 %v654, %v679
      %v694 = vmul.f32 %v655, %v679
      %v695 = vmul.f32 %v656, %v679
      %v696 = vmul.f32 %v657, %v679
      %v697 = vmul.f32 %v658, %v679
      %v698 = vmul.f32 %v659, %v679
      %v699 = vmul.f32 %v660, %v679
      %v700 = vmul.f32 %v661, %v679
      %v701 = vmul.f32 %v662, %v679
      %v702 = vmul.f32 %v663, %v679
      %v703 = vmul.f32 %v664, %v679
      %v704 = vmul.f32 %v665, %v679
      %v705 = vmul.f32 %v666, %v679
      %v706 = vmul.f32 %v667, %v679
      %v707 = vmul.f32 %v668, %v679
      %v708 = vmul.f32 %v669, %v679
      %v709 = vmul.f32 %v670, %v679
      %v710 = vmul.f32 %v671, %v679
      %v711 = vmul.f32 %v672, %v679
      %v712 = vmul.f32 %v673, %v679
      %v713 = vld [vmem:[%s4] sm:$0x1]
      %v715 = vlaneseq
      %v716 = vshrl.u32 %v715, 7
      %v717 = vsub.s32 0, %v716
      %v718 = vrot.slane %v713, %v717
      %v720 = vadd.f32 %v681, %v718
      %v721 = vadd.f32 %v682, %v718
      %v722 = vadd.f32 %v683, %v718
      %v723 = vadd.f32 %v684, %v718
      %v724 = vadd.f32 %v685, %v718
      %v725 = vadd.f32 %v686, %v718
      %v726 = vadd.f32 %v687, %v718
      %v727 = vadd.f32 %v688, %v718
      %v728 = vadd.f32 %v689, %v718
      %v729 = vadd.f32 %v690, %v718
      %v730 = vadd.f32 %v691, %v718
      %v731 = vadd.f32 %v692, %v718
      %v732 = vadd.f32 %v693, %v718
      %v733 = vadd.f32 %v694, %v718
      %v734 = vadd.f32 %v695, %v718
      %v735 = vadd.f32 %v696, %v718
      %v736 = vadd.f32 %v697, %v718
      %v737 = vadd.f32 %v698, %v718
      %v738 = vadd.f32 %v699, %v718
      %v739 = vadd.f32 %v700, %v718
      %v740 = vadd.f32 %v701, %v718
      %v741 = vadd.f32 %v702, %v718
      %v742 = vadd.f32 %v703, %v718
      %v743 = vadd.f32 %v704, %v718
      %v744 = vadd.f32 %v705, %v718
      %v745 = vadd.f32 %v706, %v718
      %v746 = vadd.f32 %v707, %v718
      %v747 = vadd.f32 %v708, %v718
      %v748 = vadd.f32 %v709, %v718
      %v749 = vadd.f32 %v710, %v718
      %v750 = vadd.f32 %v711, %v718
      %v751 = vadd.f32 %v712, %v718
      %752 = vst.msk [vmem:[%s229] sm:$0xff] %vm320, %v720
      %753 = vst.msk [vmem:[%s229 + $0x8] sm:$0xff] %vm320, %v721
      %754 = vst.msk [vmem:[%s229 + $0x10] sm:$0xff] %vm320, %v722
      %755 = vst.msk [vmem:[%s229 + $0x18] sm:$0xff] %vm320, %v723
      %756 = vst.msk [vmem:[%s229 + $0x20] sm:$0xff] %vm320, %v724
      %757 = vst.msk [vmem:[%s229 + $0x28] sm:$0xff] %vm320, %v725
      %758 = vst.msk [vmem:[%s229 + $0x30] sm:$0xff] %vm320, %v726
      %759 = vst.msk [vmem:[%s229 + $0x38] sm:$0xff] %vm320, %v727
      %760 = vst.msk [vmem:[%s229 + $0x40] sm:$0xff] %vm320, %v728
      %761 = vst.msk [vmem:[%s229 + $0x48] sm:$0xff] %vm320, %v729
      %762 = vst.msk [vmem:[%s229 + $0x50] sm:$0xff] %vm320, %v730
      %763 = vst.msk [vmem:[%s229 + $0x58] sm:$0xff] %vm320, %v731
      %764 = vst.msk [vmem:[%s229 + $0x60] sm:$0xff] %vm320, %v732
      %765 = vst.msk [vmem:[%s229 + $0x68] sm:$0xff] %vm320, %v733
      %766 = vst.msk [vmem:[%s229 + $0x70] sm:$0xff] %vm320, %v734
      %767 = vst.msk [vmem:[%s229 + $0x78] sm:$0xff] %vm320, %v735
      %768 = vst.msk [vmem:[%s229 + $0x80] sm:$0xff] %vm320, %v736
      %769 = vst.msk [vmem:[%s229 + $0x88] sm:$0xff] %vm320, %v737
      %770 = vst.msk [vmem:[%s229 + $0x90] sm:$0xff] %vm320, %v738
      %771 = vst.msk [vmem:[%s229 + $0x98] sm:$0xff] %vm320, %v739
      %772 = vst.msk [vmem:[%s229 + $0xa0] sm:$0xff] %vm320, %v740
      %773 = vst.msk [vmem:[%s229 + $0xa8] sm:$0xff] %vm320, %v741
      %774 = vst.msk [vmem:[%s229 + $0xb0] sm:$0xff] %vm320, %v742
      %775 = vst.msk [vmem:[%s229 + $0xb8] sm:$0xff] %vm320, %v743
      %776 = vst.msk [vmem:[%s229 + $0xc0] sm:$0xff] %vm320, %v744
      %777 = vst.msk [vmem:[%s229 + $0xc8] sm:$0xff] %vm320, %v745
      %778 = vst.msk [vmem:[%s229 + $0xd0] sm:$0xff] %vm320, %v746
      %779 = vst.msk [vmem:[%s229 + $0xd8] sm:$0xff] %vm320, %v747
      %780 = vst.msk [vmem:[%s229 + $0xe0] sm:$0xff] %vm320, %v748
      %781 = vst.msk [vmem:[%s229 + $0xe8] sm:$0xff] %vm320, %v749
      %782 = vst.msk [vmem:[%s229 + $0xf0] sm:$0xff] %vm320, %v750
      %783 = vst.msk [vmem:[%s229 + $0xf8] sm:$0xff] %vm320, %v751
      %s784 = smul.u32 32, %s16
      %p785 = scmp.lt.s32.totalorder %s784, 63
      %s786 = scalar_select %p785, %s784, 63
      %s787 = smul.addr %s786, 8
      %s788 = scalar_lea.vmem %s5, %s787
      // Predicated region
      $region41: #{feature_extractor_forward.11} parent=39 // pred_check
        %p789 = pneg %p144
      $region42: #{feature_extractor_forward.11} parent=39 // pred_check_branch
        %791 = sbr.rel (%p789) target = $region44
      $region43: #{feature_extractor_forward.11} parent=39 // pred_region
        %s792 = smul.u32 32, %s16
      $region44: #{feature_extractor_forward.11} parent=39 // pred_fallthru
        _
    $region40: #{feature_extractor_forward.11} parent=5 // pred_fallthru
      _
    %p793 = scmp.le.s32.totalorder 2, %s11
    // Predicated region
    $region45: #{feature_extractor_forward.11} parent=5 // pred_check
      %p794 = pneg %p793
    $region46: #{feature_extractor_forward.11} parent=5 // pred_check_branch
      %796 = sbr.rel (%p794) target = $region48
    $region47: #{feature_extractor_forward.11} parent=5 // pred_region
      %s797 = ssub.s32 %s11, 2
      // Predicated region
      $region49: #{feature_extractor_forward.11} parent=47 // pred_check
        %p798 = pneg %p150
      $region50: #{feature_extractor_forward.11} parent=47 // pred_check_branch
        %800 = sbr.rel (%p798) target = $region52
      $region51: #{feature_extractor_forward.11} parent=47 // pred_region
        %s801 = smul.u32 32, %s17
        %p802 = scmp.lt.s32.totalorder %s801, 63
        %s803 = scalar_select %p802, %s801, 63
        %s804 = smul.addr %s803, 8
        %s805 = scalar_lea.vmem %s5, %s804
      $region52: #{feature_extractor_forward.11} parent=47 // pred_fallthru
        _
    $region48: #{feature_extractor_forward.11} parent=5 // pred_fallthru
      _
  $region6: #{feature_extractor_forward.11} parent=0 // loop_footer
    %s15 = sadd.s32 1, %s11
  $region7: #{feature_extractor_forward.11} parent=0 // loop_footer_branch
    %10 = sbr.rel target = $region3
  $region8: #{feature_extractor_forward.11} parent=0 // loop_exit
    _

// kernel: feature_extractor_forward.12
$region0: #{feature_extractor_forward.12}
  #allocation0 [shape = 'u32[]', space=smem, size = 0x4, offset = 0x4, fixed_abs, tag = 'smem constant byte address 0x4 - core index']
  #allocation1 [shape = 'u32[144,128]{1,0:T(1,128)}', space=vmem, size = 0x12000, scoped, tag = 'internal scratch']
  %s0 = inlined_call_operand.vmem [shape: f32[512,16], index: 0, kind: input, shape index: {}]
  %s1 = inlined_call_operand.vmem [shape: f32[16,16], index: 1, kind: input, shape index: {}]
  %s2 = inlined_call_operand.vmem [shape: f32[1,16], index: 2, kind: input, shape index: {}]
  %s3 = inlined_call_operand.vmem [shape: f32[1,16], index: 3, kind: input, shape index: {}]
  %s4 = inlined_call_operand.vmem [shape: f32[1,16], index: 4, kind: input, shape index: {}]
  %s5 = inlined_call_operand.vmem [shape: f32[512,16], index: 5, kind: output, shape index: {}]
  %s6 = sld [smem:[#allocation0]]
  $region53: #{feature_extractor_forward.12} parent=0
    _
  %s8 = ssub.s32 1, %s6
  %s9 = scalar_select 0, %s8, %s6
  loop: start=0, step=1, limit=4
  $region2: #{feature_extractor_forward.12} parent=0 // loop_pre_header
    _
  $region3: #{feature_extractor_forward.12} parent=0 // loop_header
    %s11 = sphi 0, %s15
    %p12 = scmp.ge.s32.totalorder %s11, 4
    %s21 = sphi 0, %s23
    %s24 = sphi 0, %s21
    %s25 = sphi 0, %s24
    %s41 = sphi 0, %s25
    %s45 = sphi 0, %s45
    %s47 = sphi 0, %s45
    %s48 = sphi 0, %s47
    %s62 = sphi 0, %s48
    %s66 = sphi 0, %s66
    %s68 = sphi 0, %s66
    %s69 = sphi 0, %s68
    %s83 = sphi 0, %s69
    %s87 = sphi 0, %s87
    %s89 = sphi 0, %s87
    %s90 = sphi 0, %s89
    %s104 = sphi 0, %s90
    %s108 = sphi 0, %s108
    %s110 = sphi 0, %s108
    %s111 = sphi 0, %s110
    %s125 = sphi 0, %s111
    %s131 = sphi 0, %s133
    %s134 = sphi 0, %s131
    %s135 = sphi 0, %s134
    %s151 = sphi 0, %s135
  $region4: #{feature_extractor_forward.12} parent=0 // loop_header_branch
    %14 = sbr.rel (%p12) target = $region8
  $region5: #{feature_extractor_forward.12} parent=0 // loop_body
    %s16 = ssub.s32 %s11, 1
    %s17 = ssub.s32 %s11, 2
    %s18 = sadd.s32 %s11, 1
    %s19 = ssub.s32 %s11, %s18
    %p20 = scmp.eq.s32.totalorder %s19, 0
    %s22 = sadd.s32 %s21, 1
    %s23 = scalar_select %p20, %s21, %s22
    %p26 = pneg %p20
    %p27 = scmp.eq.s32.totalorder %s11, 1
    %p28 = por %p26, %p27
    %p29 = scmp.ne.s32.totalorder %s21, %s24
    %p30 = scmp.eq.s32.totalorder %s11, 0
    %p31 = por %p29, %p30
    %p32 = scmp.ne.s32.totalorder %s21, %s24
    %p33 = scmp.eq.s32.totalorder %s16, 1
    %p34 = por %p32, %p33
    %p35 = scmp.ne.s32.totalorder %s24, %s25
    %p36 = scmp.eq.s32.totalorder %s16, 0
    %p37 = por %p35, %p36
    %p38 = scmp.ne.s32.totalorder %s24, %s25
    %p39 = scmp.eq.s32.totalorder %s17, 1
    %p40 = por %p38, %p39
    %p42 = scmp.ne.s32.totalorder %s25, %s41
    %p43 = scmp.eq.s32.totalorder %s17, 0
    %p44 = por %p42, %p43
    %s46 = sadd.s32 %s45, 1
    %p49 = scmp.eq.s32.totalorder %s11, 1
    %p50 = scmp.ne.s32.totalorder %s45, %s47
    %p51 = scmp.eq.s32.totalorder %s11, 0
    %p52 = por %p50, %p51
    %p53 = scmp.ne.s32.totalorder %s45, %s47
    %p54 = scmp.eq.s32.totalorder %s16, 1
    %p55 = por %p53, %p54
    %p56 = scmp.ne.s32.totalorder %s47, %s48
    %p57 = scmp.eq.s32.totalorder %s16, 0
    %p58 = por %p56, %p57
    %p59 = scmp.ne.s32.totalorder %s47, %s48
    %p60 = scmp.eq.s32.totalorder %s17, 1
    %p61 = por %p59, %p60
    %p63 = scmp.ne.s32.totalorder %s48, %s62
    %p64 = scmp.eq.s32.totalorder %s17, 0
    %p65 = por %p63, %p64
    %s67 = sadd.s32 %s66, 1
    %p70 = scmp.eq.s32.totalorder %s11, 1
    %p71 = scmp.ne.s32.totalorder %s66, %s68
    %p72 = scmp.eq.s32.totalorder %s11, 0
    %p73 = por %p71, %p72
    %p74 = scmp.ne.s32.totalorder %s66, %s68
    %p75 = scmp.eq.s32.totalorder %s16, 1
    %p76 = por %p74, %p75
    %p77 = scmp.ne.s32.totalorder %s68, %s69
    %p78 = scmp.eq.s32.totalorder %s16, 0
    %p79 = por %p77, %p78
    %p80 = scmp.ne.s32.totalorder %s68, %s69
    %p81 = scmp.eq.s32.totalorder %s17, 1
    %p82 = por %p80, %p81
    %p84 = scmp.ne.s32.totalorder %s69, %s83
    %p85 = scmp.eq.s32.totalorder %s17, 0
    %p86 = por %p84, %p85
    %s88 = sadd.s32 %s87, 1
    %p91 = scmp.eq.s32.totalorder %s11, 1
    %p92 = scmp.ne.s32.totalorder %s87, %s89
    %p93 = scmp.eq.s32.totalorder %s11, 0
    %p94 = por %p92, %p93
    %p95 = scmp.ne.s32.totalorder %s87, %s89
    %p96 = scmp.eq.s32.totalorder %s16, 1
    %p97 = por %p95, %p96
    %p98 = scmp.ne.s32.totalorder %s89, %s90
    %p99 = scmp.eq.s32.totalorder %s16, 0
    %p100 = por %p98, %p99
    %p101 = scmp.ne.s32.totalorder %s89, %s90
    %p102 = scmp.eq.s32.totalorder %s17, 1
    %p103 = por %p101, %p102
    %p105 = scmp.ne.s32.totalorder %s90, %s104
    %p106 = scmp.eq.s32.totalorder %s17, 0
    %p107 = por %p105, %p106
    %s109 = sadd.s32 %s108, 1
    %p112 = scmp.eq.s32.totalorder %s11, 1
    %p113 = scmp.ne.s32.totalorder %s108, %s110
    %p114 = scmp.eq.s32.totalorder %s11, 0
    %p115 = por %p113, %p114
    %p116 = scmp.ne.s32.totalorder %s108, %s110
    %p117 = scmp.eq.s32.totalorder %s16, 1
    %p118 = por %p116, %p117
    %p119 = scmp.ne.s32.totalorder %s110, %s111
    %p120 = scmp.eq.s32.totalorder %s16, 0
    %p121 = por %p119, %p120
    %p122 = scmp.ne.s32.totalorder %s110, %s111
    %p123 = scmp.eq.s32.totalorder %s17, 1
    %p124 = por %p122, %p123
    %p126 = scmp.ne.s32.totalorder %s111, %s125
    %p127 = scmp.eq.s32.totalorder %s17, 0
    %p128 = por %p126, %p127
    %s129 = ssub.s32 %s11, %s18
    %p130 = scmp.eq.s32.totalorder %s129, 0
    %s132 = sadd.s32 %s131, 1
    %s133 = scalar_select %p130, %s131, %s132
    %p136 = pneg %p130
    %p137 = scmp.eq.s32.totalorder %s11, 1
    %p138 = por %p136, %p137
    %p139 = scmp.ne.s32.totalorder %s131, %s134
    %p140 = scmp.eq.s32.totalorder %s11, 0
    %p141 = por %p139, %p140
    %p142 = scmp.ne.s32.totalorder %s131, %s134
    %p143 = scmp.eq.s32.totalorder %s16, 1
    %p144 = por %p142, %p143
    %p145 = scmp.ne.s32.totalorder %s134, %s135
    %p146 = scmp.eq.s32.totalorder %s16, 0
    %p147 = por %p145, %p146
    %p148 = scmp.ne.s32.totalorder %s134, %s135
    %p149 = scmp.eq.s32.totalorder %s17, 1
    %p150 = por %p148, %p149
    %p152 = scmp.ne.s32.totalorder %s135, %s151
    %p153 = scmp.eq.s32.totalorder %s17, 0
    %p154 = por %p152, %p153
    %p155 = scmp.le.s32.totalorder 1, %s11
    %p156 = scmp.lt.s32.totalorder %s11, 3
    %p157 = pnand %p155, %p156
    %p158 = pneg %p157
    // Predicated region
    $region9: #{feature_extractor_forward.12} parent=5 // pred_check
      _
    $region10: #{feature_extractor_forward.12} parent=5 // pred_check_branch
      %160 = sbr.rel (%p157) target = $region12
    $region11: #{feature_extractor_forward.12} parent=5 // pred_region
      %s161 = ssub.s32 %s11, 1
      // Predicated region
      $region13: #{feature_extractor_forward.12} parent=11 // pred_check
        %p162 = pneg %p58
      $region14: #{feature_extractor_forward.12} parent=11 // pred_check_branch
        %164 = sbr.rel (%p162) target = $region16
      $region15: #{feature_extractor_forward.12} parent=11 // pred_region
        _
      $region16: #{feature_extractor_forward.12} parent=11 // pred_fallthru
        _
      // Predicated region
      $region17: #{feature_extractor_forward.12} parent=11 // pred_check
        %p165 = pneg %p79
      $region18: #{feature_extractor_forward.12} parent=11 // pred_check_branch
        %167 = sbr.rel (%p165) target = $region20
      $region19: #{feature_extractor_forward.12} parent=11 // pred_region
        _
      $region20: #{feature_extractor_forward.12} parent=11 // pred_fallthru
        _
      // Predicated region
      $region21: #{feature_extractor_forward.12} parent=11 // pred_check
        %p168 = pneg %p100
      $region22: #{feature_extractor_forward.12} parent=11 // pred_check_branch
        %170 = sbr.rel (%p168) target = $region24
      $region23: #{feature_extractor_forward.12} parent=11 // pred_region
        _
      $region24: #{feature_extractor_forward.12} parent=11 // pred_fallthru
        _
      // Predicated region
      $region25: #{feature_extractor_forward.12} parent=11 // pred_check
        %p171 = pneg %p121
      $region26: #{feature_extractor_forward.12} parent=11 // pred_check_branch
        %173 = sbr.rel (%p171) target = $region28
      $region27: #{feature_extractor_forward.12} parent=11 // pred_region
        _
      $region28: #{feature_extractor_forward.12} parent=11 // pred_fallthru
        _
    $region12: #{feature_extractor_forward.12} parent=5 // pred_fallthru
      _
    %p174 = scmp.lt.s32.totalorder %s11, 2
    // Predicated region
    $region29: #{feature_extractor_forward.12} parent=5 // pred_check
      %p175 = pneg %p174
    $region30: #{feature_extractor_forward.12} parent=5 // pred_check_branch
      %177 = sbr.rel (%p175) target = $region32
    $region31: #{feature_extractor_forward.12} parent=5 // pred_region
      // Predicated region
      $region33: #{feature_extractor_forward.12} parent=31 // pred_check
        %p178 = pneg %p31
      $region34: #{feature_extractor_forward.12} parent=31 // pred_check_branch
        %180 = sbr.rel (%p178) target = $region36
      $region35: #{feature_extractor_forward.12} parent=31 // pred_region
        %s181 = smul.u32 32, %s11
        %p182 = scmp.lt.s32.totalorder %s181, 63
        %s183 = scalar_select %p182, %s181, 63
        %s184 = smul.addr %s183, 8
        %s185 = scalar_lea.vmem %s0, %s184
        %s186 = smul.u32 32, %s11
      $region36: #{feature_extractor_forward.12} parent=31 // pred_fallthru
        _
    $region32: #{feature_extractor_forward.12} parent=5 // pred_fallthru
      _
    %p187 = scmp.le.s32.totalorder 1, %s11
    %p188 = scmp.lt.s32.totalorder %s11, 3
    %p189 = pnand %p187, %p188
    %p190 = pneg %p189
    // Predicated region
    $region37: #{feature_extractor_forward.12} parent=5 // pred_check
      _
    $region38: #{feature_extractor_forward.12} parent=5 // pred_check_branch
      %192 = sbr.rel (%p189) target = $region40
    $region39: #{feature_extractor_forward.12} parent=5 // pred_region
      %s193 = ssub.s32 %s11, 1
      %s194 = smul.u32 32, %s16
      %p195 = scmp.lt.s32.totalorder %s194, 63
      %s196 = scalar_select %p195, %s194, 63
      %s197 = smul.addr %s196, 8
      %s198 = scalar_lea.vmem %s0, %s197
      %p199 = pneg %p37
      %p200 = pneg %p34
      %p201 = pneg %p58
      %p202 = pneg %p55
      %p203 = pneg %p79
      %p204 = pneg %p76
      %p205 = pneg %p100
      %p206 = pneg %p97
      %p207 = pneg %p121
      %p208 = pneg %p118
      %p209 = pneg %p147
      %p210 = pneg %p144
      %s211 = smul.u32 32, %s16
      %p212 = scmp.lt.s32.totalorder %s211, 63
      %s213 = scalar_select %p212, %s211, 63
      %s214 = smul.addr %s213, 8
      %s215 = scalar_lea.vmem %s5, %s214
      %s216 = smul.u32 32, %s16
      %p217 = scmp.lt.s32.totalorder %s216, 63
      %s218 = scalar_select %p217, %s216, 63
      %s219 = smul.addr %s218, 8
      %s220 = scalar_lea.vmem %s0, %s219
      %s221 = smul.u32 32, %s16
      %s222 = smul.u32 32, %s16
      %p223 = scmp.lt.s32.totalorder %s222, 63
      %s224 = scalar_select %p223, %s222, 63
      %s225 = smul.addr %s224, 8
      %s226 = scalar_lea.vmem %s5, %s225
      %s227 = smul.u32 32, %s16
      %v228 = vld [vmem:[%s220] sm:$0xff]
      %v229 = vld [vmem:[%s220 + $0x8] sm:$0xff]
      %v230 = vld [vmem:[%s220 + $0x10] sm:$0xff]
      %v231 = vld [vmem:[%s220 + $0x18] sm:$0xff]
      %v232 = vld [vmem:[%s220 + $0x20] sm:$0xff]
      %v233 = vld [vmem:[%s220 + $0x28] sm:$0xff]
      %v234 = vld [vmem:[%s220 + $0x30] sm:$0xff]
      %v235 = vld [vmem:[%s220 + $0x38] sm:$0xff]
      %v236 = vld [vmem:[%s220 + $0x40] sm:$0xff]
      %v237 = vld [vmem:[%s220 + $0x48] sm:$0xff]
      %v238 = vld [vmem:[%s220 + $0x50] sm:$0xff]
      %v239 = vld [vmem:[%s220 + $0x58] sm:$0xff]
      %v240 = vld [vmem:[%s220 + $0x60] sm:$0xff]
      %v241 = vld [vmem:[%s220 + $0x68] sm:$0xff]
      %v242 = vld [vmem:[%s220 + $0x70] sm:$0xff]
      %v243 = vld [vmem:[%s220 + $0x78] sm:$0xff]
      %v244 = vld [vmem:[%s220 + $0x80] sm:$0xff]
      %v245 = vld [vmem:[%s220 + $0x88] sm:$0xff]
      %v246 = vld [vmem:[%s220 + $0x90] sm:$0xff]
      %v247 = vld [vmem:[%s220 + $0x98] sm:$0xff]
      %v248 = vld [vmem:[%s220 + $0xa0] sm:$0xff]
      %v249 = vld [vmem:[%s220 + $0xa8] sm:$0xff]
      %v250 = vld [vmem:[%s220 + $0xb0] sm:$0xff]
      %v251 = vld [vmem:[%s220 + $0xb8] sm:$0xff]
      %v252 = vld [vmem:[%s220 + $0xc0] sm:$0xff]
      %v253 = vld [vmem:[%s220 + $0xc8] sm:$0xff]
      %v254 = vld [vmem:[%s220 + $0xd0] sm:$0xff]
      %v255 = vld [vmem:[%s220 + $0xd8] sm:$0xff]
      %v256 = vld [vmem:[%s220 + $0xe0] sm:$0xff]
      %v257 = vld [vmem:[%s220 + $0xe8] sm:$0xff]
      %v258 = vld [vmem:[%s220 + $0xf0] sm:$0xff]
      %v259 = vld [vmem:[%s220 + $0xf8] sm:$0xff]
      %v260 = vld [vmem:[%s1] sm:$0xff]
      %v261 = vld [vmem:[%s1 + $0x8] sm:$0xff]
      %v262 = vld [vmem:[%s2] sm:$0x1]
      %v264 = vlaneseq
      %v265 = vshrl.u32 %v264, 7
      %v266 = vsub.s32 0, %v265
      %v267 = vrot.slane %v262, %v266
      %vm269 = vcmask 130048
      %v271 = vsel %vm269, %v228, 0
      %v274 = vsel %vm269, %v229, 0
      %v277 = vsel %vm269, %v230, 0
      %v280 = vsel %vm269, %v231, 0
      %v283 = vsel %vm269, %v232, 0
      %v286 = vsel %vm269, %v233, 0
      %v289 = vsel %vm269, %v234, 0
      %v292 = vsel %vm269, %v235, 0
      %v295 = vsel %vm269, %v236, 0
      %v298 = vsel %vm269, %v237, 0
      %v301 = vsel %vm269, %v238, 0
      %v304 = vsel %vm269, %v239, 0
      %v307 = vsel %vm269, %v240, 0
      %v310 = vsel %vm269, %v241, 0
      %v313 = vsel %vm269, %v242, 0
      %v316 = vsel %vm269, %v243, 0
      %v319 = vsel %vm269, %v244, 0
      %v322 = vsel %vm269, %v245, 0
      %v325 = vsel %vm269, %v246, 0
      %v328 = vsel %vm269, %v247, 0
      %v331 = vsel %vm269, %v248, 0
      %v334 = vsel %vm269, %v249, 0
      %v337 = vsel %vm269, %v250, 0
      %v340 = vsel %vm269, %v251, 0
      %v343 = vsel %vm269, %v252, 0
      %v346 = vsel %vm269, %v253, 0
      %v349 = vsel %vm269, %v254, 0
      %v352 = vsel %vm269, %v255, 0
      %v355 = vsel %vm269, %v256, 0
      %v358 = vsel %vm269, %v257, 0
      %v361 = vsel %vm269, %v258, 0
      %v364 = vsel %vm269, %v259, 0
      %366 = vmatprep.subr.mxu0 0.0
      %367 = vmatpush1.msra.mxu0 %v260
      %368 = vmatprep.subr.mxu0 0.0
      %369 = vmatpush1.msra.mxu0 %v261
      %370 = vmatprep.subr.mxu0 0.0
      %371 = vmatpush1.msra.mxu0 0.0
      %372 = vmatprep.subr.mxu0 0.0
      %373 = vmatpush1.msra.mxu0 0.0
      %374 = vmatprep.subr.mxu0 0.0
      %375 = vmatpush1.msra.mxu0 0.0
      %376 = vmatprep.subr.mxu0 0.0
      %377 = vmatpush1.msra.mxu0 0.0
      %378 = vmatprep.subr.mxu0 0.0
      %379 = vmatpush1.msra.mxu0 0.0
      %380 = vmatprep.subr.mxu0 0.0
      %381 = vmatpush1.msra.mxu0 0.0
      %382 = vmatprep.subr.mxu0 0.0
      %383 = vmatpush1.msra.mxu0 0.0
      %384 = vmatprep.subr.mxu0 0.0
      %385 = vmatpush1.msra.mxu0 0.0
      %386 = vmatprep.subr.mxu0 0.0
      %387 = vmatpush1.msra.mxu0 0.0
      %388 = vmatprep.subr.mxu0 0.0
      %389 = vmatpush1.msra.mxu0 0.0
      %390 = vmatprep.subr.mxu0 0.0
      %391 = vmatpush1.msra.mxu0 0.0
      %392 = vmatprep.subr.mxu0 0.0
      %393 = vmatpush1.msra.mxu0 0.0
      %394 = vmatprep.subr.mxu0 0.0
      %395 = vmatpush1.msra.mxu0 0.0
      %396 = vmatprep.subr.mxu0 0.0
      %397 = vmatpush1.msra.mxu0 0.0
      %398 = vmatprep.subr.mxu0 0.0
      %399 = vmatpush1.msra.mxu0 0.0
      %400 = vmatprep.subr.mxu0 0.0
      %401 = vmatpush1.msra.mxu0 0.0
      %402 = vmatprep.subr.mxu0 0.0
      %403 = vmatpush1.msra.mxu0 0.0
      %404 = vmatprep.subr.mxu0 0.0
      %405 = vmatpush1.msra.mxu0 0.0
      %406 = vmatprep.subr.mxu0 0.0
      %407 = vmatpush1.msra.mxu0 0.0
      %408 = vmatprep.subr.mxu0 0.0
      %409 = vmatpush1.msra.mxu0 0.0
      %410 = vmatprep.subr.mxu0 0.0
      %411 = vmatpush1.msra.mxu0 0.0
      %412 = vmatprep.subr.mxu0 0.0
      %413 = vmatpush1.msra.mxu0 0.0
      %414 = vmatprep.subr.mxu0 0.0
      %415 = vmatpush1.msra.mxu0 0.0
      %416 = vmatprep.subr.mxu0 0.0
      %417 = vmatpush1.msra.mxu0 0.0
      %418 = vmatprep.subr.mxu0 0.0
      %419 = vmatpush1.msra.mxu0 0.0
      %420 = vmatprep.subr.mxu0 0.0
      %421 = vmatpush1.msra.mxu0 0.0
      %422 = vmatprep.subr.mxu0 0.0
      %423 = vmatpush1.msra.mxu0 0.0
      %424 = vmatprep.subr.mxu0 0.0
      %425 = vmatpush1.msra.mxu0 0.0
      %426 = vmatprep.subr.mxu0 0.0
      %427 = vmatpush1.msra.mxu0 0.0
      %428 = vmatprep.subr.mxu0 0.0
      %429 = vmatpush1.msra.mxu0 0.0
      %430 = vmatprep.mubr.f32.mxu0 0.0
      %431 = vmatmul.mubr.f32.gmra.mrb[0].mxu0 %v271
      %v432 = vpop.f32.mrb[0].mxu0
      %v433 = vadd.f32 %v267, %v432
      %v434 = vpop.f32.mrb[0].mxu0
      %435 = vmatprep.mubr.f32.mxu0 0.0
      %436 = vmatmul.mubr.f32.gmra.mrb[0].mxu0 %v274
      %v437 = vpop.f32.mrb[0].mxu0
      %v438 = vadd.f32 %v267, %v437
      %v439 = vpop.f32.mrb[0].mxu0
      %440 = vmatprep.mubr.f32.mxu0 0.0
      %441 = vmatmul.mubr.f32.gmra.mrb[0].mxu0 %v277
      %v442 = vpop.f32.mrb[0].mxu0
      %v443 = vadd.f32 %v267, %v442
      %v444 = vpop.f32.mrb[0].mxu0
      %445 = vmatprep.mubr.f32.mxu0 0.0
      %446 = vmatmul.mubr.f32.gmra.mrb[0].mxu0 %v280
      %v447 = vpop.f32.mrb[0].mxu0
      %v448 = vadd.f32 %v267, %v447
      %v449 = vpop.f32.mrb[0].mxu0
      %450 = vmatprep.mubr.f32.mxu0 0.0
      %451 = vmatmul.mubr.f32.gmra.mrb[0].mxu0 %v283
      %v452 = vpop.f32.mrb[0].mxu0
      %v453 = vadd.f32 %v267, %v452
      %v454 = vpop.f32.mrb[0].mxu0
      %455 = vmatprep.mubr.f32.mxu0 0.0
      %456 = vmatmul.mubr.f32.gmra.mrb[0].mxu0 %v286
      %v457 = vpop.f32.mrb[0].mxu0
      %v458 = vadd.f32 %v267, %v457
      %v459 = vpop.f32.mrb[0].mxu0
      %460 = vmatprep.mubr.f32.mxu0 0.0
      %461 = vmatmul.mubr.f32.gmra.mrb[0].mxu0 %v289
      %v462 = vpop.f32.mrb[0].mxu0
      %v463 = vadd.f32 %v267, %v462
      %v464 = vpop.f32.mrb[0].mxu0
      %465 = vmatprep.mubr.f32.mxu0 0.0
      %466 = vmatmul.mubr.f32.gmra.mrb[0].mxu0 %v292
      %v467 = vpop.f32.mrb[0].mxu0
      %v468 = vadd.f32 %v267, %v467
      %v469 = vpop.f32.mrb[0].mxu0
      %470 = vmatprep.mubr.f32.mxu0 0.0
      %471 = vmatmul.mubr.f32.gmra.mrb[0].mxu0 %v295
      %v472 = vpop.f32.mrb[0].mxu0
      %v473 = vadd.f32 %v267, %v472
      %v474 = vpop.f32.mrb[0].mxu0
      %475 = vmatprep.mubr.f32.mxu0 0.0
      %476 = vmatmul.mubr.f32.gmra.mrb[0].mxu0 %v298
      %v477 = vpop.f32.mrb[0].mxu0
      %v478 = vadd.f32 %v267, %v477
      %v479 = vpop.f32.mrb[0].mxu0
      %480 = vmatprep.mubr.f32.mxu0 0.0
      %481 = vmatmul.mubr.f32.gmra.mrb[0].mxu0 %v301
      %v482 = vpop.f32.mrb[0].mxu0
      %v483 = vadd.f32 %v267, %v482
      %v484 = vpop.f32.mrb[0].mxu0
      %485 = vmatprep.mubr.f32.mxu0 0.0
      %486 = vmatmul.mubr.f32.gmra.mrb[0].mxu0 %v304
      %v487 = vpop.f32.mrb[0].mxu0
      %v488 = vadd.f32 %v267, %v487
      %v489 = vpop.f32.mrb[0].mxu0
      %490 = vmatprep.mubr.f32.mxu0 0.0
      %491 = vmatmul.mubr.f32.gmra.mrb[0].mxu0 %v307
      %v492 = vpop.f32.mrb[0].mxu0
      %v493 = vadd.f32 %v267, %v492
      %v494 = vpop.f32.mrb[0].mxu0
      %495 = vmatprep.mubr.f32.mxu0 0.0
      %496 = vmatmul.mubr.f32.gmra.mrb[0].mxu0 %v310
      %v497 = vpop.f32.mrb[0].mxu0
      %v498 = vadd.f32 %v267, %v497
      %v499 = vpop.f32.mrb[0].mxu0
      %500 = vmatprep.mubr.f32.mxu0 0.0
      %501 = vmatmul.mubr.f32.gmra.mrb[0].mxu0 %v313
      %v502 = vpop.f32.mrb[0].mxu0
      %v503 = vadd.f32 %v267, %v502
      %v504 = vpop.f32.mrb[0].mxu0
      %505 = vmatprep.mubr.f32.mxu0 0.0
      %506 = vmatmul.mubr.f32.gmra.mrb[0].mxu0 %v316
      %v507 = vpop.f32.mrb[0].mxu0
      %v508 = vadd.f32 %v267, %v507
      %v509 = vpop.f32.mrb[0].mxu0
      %510 = vmatprep.mubr.f32.mxu0 0.0
      %511 = vmatmul.mubr.f32.gmra.mrb[0].mxu0 %v319
      %v512 = vpop.f32.mrb[0].mxu0
      %v513 = vadd.f32 %v267, %v512
      %v514 = vpop.f32.mrb[0].mxu0
      %515 = vmatprep.mubr.f32.mxu0 0.0
      %516 = vmatmul.mubr.f32.gmra.mrb[0].mxu0 %v322
      %v517 = vpop.f32.mrb[0].mxu0
      %v518 = vadd.f32 %v267, %v517
      %v519 = vpop.f32.mrb[0].mxu0
      %520 = vmatprep.mubr.f32.mxu0 0.0
      %521 = vmatmul.mubr.f32.gmra.mrb[0].mxu0 %v325
      %v522 = vpop.f32.mrb[0].mxu0
      %v523 = vadd.f32 %v267, %v522
      %v524 = vpop.f32.mrb[0].mxu0
      %525 = vmatprep.mubr.f32.mxu0 0.0
      %526 = vmatmul.mubr.f32.gmra.mrb[0].mxu0 %v328
      %v527 = vpop.f32.mrb[0].mxu0
      %v528 = vadd.f32 %v267, %v527
      %v529 = vpop.f32.mrb[0].mxu0
      %530 = vmatprep.mubr.f32.mxu0 0.0
      %531 = vmatmul.mubr.f32.gmra.mrb[0].mxu0 %v331
      %v532 = vpop.f32.mrb[0].mxu0
      %v533 = vadd.f32 %v267, %v532
      %v534 = vpop.f32.mrb[0].mxu0
      %535 = vmatprep.mubr.f32.mxu0 0.0
      %536 = vmatmul.mubr.f32.gmra.mrb[0].mxu0 %v334
      %v537 = vpop.f32.mrb[0].mxu0
      %v538 = vadd.f32 %v267, %v537
      %v539 = vpop.f32.mrb[0].mxu0
      %540 = vmatprep.mubr.f32.mxu0 0.0
      %541 = vmatmul.mubr.f32.gmra.mrb[0].mxu0 %v337
      %v542 = vpop.f32.mrb[0].mxu0
      %v543 = vadd.f32 %v267, %v542
      %v544 = vpop.f32.mrb[0].mxu0
      %545 = vmatprep.mubr.f32.mxu0 0.0
      %546 = vmatmul.mubr.f32.gmra.mrb[0].mxu0 %v340
      %v547 = vpop.f32.mrb[0].mxu0
      %v548 = vadd.f32 %v267, %v547
      %v549 = vpop.f32.mrb[0].mxu0
      %550 = vmatprep.mubr.f32.mxu0 0.0
      %551 = vmatmul.mubr.f32.gmra.mrb[0].mxu0 %v343
      %v552 = vpop.f32.mrb[0].mxu0
      %v553 = vadd.f32 %v267, %v552
      %v554 = vpop.f32.mrb[0].mxu0
      %555 = vmatprep.mubr.f32.mxu0 0.0
      %556 = vmatmul.mubr.f32.gmra.mrb[0].mxu0 %v346
      %v557 = vpop.f32.mrb[0].mxu0
      %v558 = vadd.f32 %v267, %v557
      %v559 = vpop.f32.mrb[0].mxu0
      %560 = vmatprep.mubr.f32.mxu0 0.0
      %561 = vmatmul.mubr.f32.gmra.mrb[0].mxu0 %v349
      %v562 = vpop.f32.mrb[0].mxu0
      %v563 = vadd.f32 %v267, %v562
      %v564 = vpop.f32.mrb[0].mxu0
      %565 = vmatprep.mubr.f32.mxu0 0.0
      %566 = vmatmul.mubr.f32.gmra.mrb[0].mxu0 %v352
      %v567 = vpop.f32.mrb[0].mxu0
      %v568 = vadd.f32 %v267, %v567
      %v569 = vpop.f32.mrb[0].mxu0
      %570 = vmatprep.mubr.f32.mxu0 0.0
      %571 = vmatmul.mubr.f32.gmra.mrb[0].mxu0 %v355
      %v572 = vpop.f32.mrb[0].mxu0
      %v573 = vadd.f32 %v267, %v572
      %v574 = vpop.f32.mrb[0].mxu0
      %575 = vmatprep.mubr.f32.mxu0 0.0
      %576 = vmatmul.mubr.f32.gmra.mrb[0].mxu0 %v358
      %v577 = vpop.f32.mrb[0].mxu0
      %v578 = vadd.f32 %v267, %v577
      %v579 = vpop.f32.mrb[0].mxu0
      %580 = vmatprep.mubr.f32.mxu0 0.0
      %581 = vmatmul.mubr.f32.gmra.mrb[0].mxu0 %v361
      %v582 = vpop.f32.mrb[0].mxu0
      %v583 = vadd.f32 %v267, %v582
      %v584 = vpop.f32.mrb[0].mxu0
      %585 = vmatprep.mubr.f32.mxu0 0.0
      %586 = vmatmul.mubr.f32.gmra.mrb[0].mxu0 %v364
      %v587 = vpop.f32.mrb[0].mxu0
      %v588 = vadd.f32 %v267, %v587
      %v589 = vpop.f32.mrb[0].mxu0
      %590 = vdwg.mxu0
      %v591 = vmax.f32 %v433, 0.0
      %v592 = vmax.f32 %v438, 0.0
      %v593 = vmax.f32 %v443, 0.0
      %v594 = vmax.f32 %v448, 0.0
      %v595 = vmax.f32 %v453, 0.0
      %v596 = vmax.f32 %v458, 0.0
      %v597 = vmax.f32 %v463, 0.0
      %v598 = vmax.f32 %v468, 0.0
      %v599 = vmax.f32 %v473, 0.0
      %v600 = vmax.f32 %v478, 0.0
      %v601 = vmax.f32 %v483, 0.0
      %v602 = vmax.f32 %v488, 0.0
      %v603 = vmax.f32 %v493, 0.0
      %v604 = vmax.f32 %v498, 0.0
      %v605 = vmax.f32 %v503, 0.0
      %v606 = vmax.f32 %v508, 0.0
      %v607 = vmax.f32 %v513, 0.0
      %v608 = vmax.f32 %v518, 0.0
      %v609 = vmax.f32 %v523, 0.0
      %v610 = vmax.f32 %v528, 0.0
      %v611 = vmax.f32 %v533, 0.0
      %v612 = vmax.f32 %v538, 0.0
      %v613 = vmax.f32 %v543, 0.0
      %v614 = vmax.f32 %v548, 0.0
      %v615 = vmax.f32 %v553, 0.0
      %v616 = vmax.f32 %v558, 0.0
      %v617 = vmax.f32 %v563, 0.0
      %v618 = vmax.f32 %v568, 0.0
      %v619 = vmax.f32 %v573, 0.0
      %v620 = vmax.f32 %v578, 0.0
      %v621 = vmax.f32 %v583, 0.0
      %v622 = vmax.f32 %v588, 0.0
      %v623 = vld [vmem:[%s3] sm:$0x1]
      %v625 = vlaneseq
      %v626 = vshrl.u32 %v625, 7
      %v627 = vsub.s32 0, %v626
      %v628 = vrot.slane %v623, %v627
      %v630 = vmul.f32 %v591, %v628
      %v631 = vmul.f32 %v592, %v628
      %v632 = vmul.f32 %v593, %v628
      %v633 = vmul.f32 %v594, %v628
      %v634 = vmul.f32 %v595, %v628
      %v635 = vmul.f32 %v596, %v628
      %v636 = vmul.f32 %v597, %v628
      %v637 = vmul.f32 %v598, %v628
      %v638 = vmul.f32 %v599, %v628
      %v639 = vmul.f32 %v600, %v628
      %v640 = vmul.f32 %v601, %v628
      %v641 = vmul.f32 %v602, %v628
      %v642 = vmul.f32 %v603, %v628
      %v643 = vmul.f32 %v604, %v628
      %v644 = vmul.f32 %v605, %v628
      %v645 = vmul.f32 %v606, %v628
      %v646 = vmul.f32 %v607, %v628
      %v647 = vmul.f32 %v608, %v628
      %v648 = vmul.f32 %v609, %v628
      %v649 = vmul.f32 %v610, %v628
      %v650 = vmul.f32 %v611, %v628
      %v651 = vmul.f32 %v612, %v628
      %v652 = vmul.f32 %v613, %v628
      %v653 = vmul.f32 %v614, %v628
      %v654 = vmul.f32 %v615, %v628
      %v655 = vmul.f32 %v616, %v628
      %v656 = vmul.f32 %v617, %v628
      %v657 = vmul.f32 %v618, %v628
      %v658 = vmul.f32 %v619, %v628
      %v659 = vmul.f32 %v620, %v628
      %v660 = vmul.f32 %v621, %v628
      %v661 = vmul.f32 %v622, %v628
      %v662 = vld [vmem:[%s4] sm:$0x1]
      %v664 = vlaneseq
      %v665 = vshrl.u32 %v664, 7
      %v666 = vsub.s32 0, %v665
      %v667 = vrot.slane %v662, %v666
      %v669 = vadd.f32 %v630, %v667
      %v670 = vadd.f32 %v631, %v667
      %v671 = vadd.f32 %v632, %v667
      %v672 = vadd.f32 %v633, %v667
      %v673 = vadd.f32 %v634, %v667
      %v674 = vadd.f32 %v635, %v667
      %v675 = vadd.f32 %v636, %v667
      %v676 = vadd.f32 %v637, %v667
      %v677 = vadd.f32 %v638, %v667
      %v678 = vadd.f32 %v639, %v667
      %v679 = vadd.f32 %v640, %v667
      %v680 = vadd.f32 %v641, %v667
      %v681 = vadd.f32 %v642, %v667
      %v682 = vadd.f32 %v643, %v667
      %v683 = vadd.f32 %v644, %v667
      %v684 = vadd.f32 %v645, %v667
      %v685 = vadd.f32 %v646, %v667
      %v686 = vadd.f32 %v647, %v667
      %v687 = vadd.f32 %v648, %v667
      %v688 = vadd.f32 %v649, %v667
      %v689 = vadd.f32 %v650, %v667
      %v690 = vadd.f32 %v651, %v667
      %v691 = vadd.f32 %v652, %v667
      %v692 = vadd.f32 %v653, %v667
      %v693 = vadd.f32 %v654, %v667
      %v694 = vadd.f32 %v655, %v667
      %v695 = vadd.f32 %v656, %v667
      %v696 = vadd.f32 %v657, %v667
      %v697 = vadd.f32 %v658, %v667
      %v698 = vadd.f32 %v659, %v667
      %v699 = vadd.f32 %v660, %v667
      %v700 = vadd.f32 %v661, %v667
      %701 = vst.msk [vmem:[%s226] sm:$0xff] %vm269, %v669
      %702 = vst.msk [vmem:[%s226 + $0x8] sm:$0xff] %vm269, %v670
      %703 = vst.msk [vmem:[%s226 + $0x10] sm:$0xff] %vm269, %v671
      %704 = vst.msk [vmem:[%s226 + $0x18] sm:$0xff] %vm269, %v672
      %705 = vst.msk [vmem:[%s226 + $0x20] sm:$0xff] %vm269, %v673
      %706 = vst.msk [vmem:[%s226 + $0x28] sm:$0xff] %vm269, %v674
      %707 = vst.msk [vmem:[%s226 + $0x30] sm:$0xff] %vm269, %v675
      %708 = vst.msk [vmem:[%s226 + $0x38] sm:$0xff] %vm269, %v676
      %709 = vst.msk [vmem:[%s226 + $0x40] sm:$0xff] %vm269, %v677
      %710 = vst.msk [vmem:[%s226 + $0x48] sm:$0xff] %vm269, %v678
      %711 = vst.msk [vmem:[%s226 + $0x50] sm:$0xff] %vm269, %v679
      %712 = vst.msk [vmem:[%s226 + $0x58] sm:$0xff] %vm269, %v680
      %713 = vst.msk [vmem:[%s226 + $0x60] sm:$0xff] %vm269, %v681
      %714 = vst.msk [vmem:[%s226 + $0x68] sm:$0xff] %vm269, %v682
      %715 = vst.msk [vmem:[%s226 + $0x70] sm:$0xff] %vm269, %v683
      %716 = vst.msk [vmem:[%s226 + $0x78] sm:$0xff] %vm269, %v684
      %717 = vst.msk [vmem:[%s226 + $0x80] sm:$0xff] %vm269, %v685
      %718 = vst.msk [vmem:[%s226 + $0x88] sm:$0xff] %vm269, %v686
      %719 = vst.msk [vmem:[%s226 + $0x90] sm:$0xff] %vm269, %v687
      %720 = vst.msk [vmem:[%s226 + $0x98] sm:$0xff] %vm269, %v688
      %721 = vst.msk [vmem:[%s226 + $0xa0] sm:$0xff] %vm269, %v689
      %722 = vst.msk [vmem:[%s226 + $0xa8] sm:$0xff] %vm269, %v690
      %723 = vst.msk [vmem:[%s226 + $0xb0] sm:$0xff] %vm269, %v691
      %724 = vst.msk [vmem:[%s226 + $0xb8] sm:$0xff] %vm269, %v692
      %725 = vst.msk [vmem:[%s226 + $0xc0] sm:$0xff] %vm269, %v693
      %726 = vst.msk [vmem:[%s226 + $0xc8] sm:$0xff] %vm269, %v694
      %727 = vst.msk [vmem:[%s226 + $0xd0] sm:$0xff] %vm269, %v695
      %728 = vst.msk [vmem:[%s226 + $0xd8] sm:$0xff] %vm269, %v696
      %729 = vst.msk [vmem:[%s226 + $0xe0] sm:$0xff] %vm269, %v697
      %730 = vst.msk [vmem:[%s226 + $0xe8] sm:$0xff] %vm269, %v698
      %731 = vst.msk [vmem:[%s226 + $0xf0] sm:$0xff] %vm269, %v699
      %732 = vst.msk [vmem:[%s226 + $0xf8] sm:$0xff] %vm269, %v700
      %s733 = smul.u32 32, %s16
      %p734 = scmp.lt.s32.totalorder %s733, 63
      %s735 = scalar_select %p734, %s733, 63
      %s736 = smul.addr %s735, 8
      %s737 = scalar_lea.vmem %s5, %s736
      // Predicated region
      $region41: #{feature_extractor_forward.12} parent=39 // pred_check
        %p738 = pneg %p144
      $region42: #{feature_extractor_forward.12} parent=39 // pred_check_branch
        %740 = sbr.rel (%p738) target = $region44
      $region43: #{feature_extractor_forward.12} parent=39 // pred_region
        %s741 = smul.u32 32, %s16
      $region44: #{feature_extractor_forward.12} parent=39 // pred_fallthru
        _
    $region40: #{feature_extractor_forward.12} parent=5 // pred_fallthru
      _
    %p742 = scmp.le.s32.totalorder 2, %s11
    // Predicated region
    $region45: #{feature_extractor_forward.12} parent=5 // pred_check
      %p743 = pneg %p742
    $region46: #{feature_extractor_forward.12} parent=5 // pred_check_branch
      %745 = sbr.rel (%p743) target = $region48
    $region47: #{feature_extractor_forward.12} parent=5 // pred_region
      %s746 = ssub.s32 %s11, 2
      // Predicated region
      $region49: #{feature_extractor_forward.12} parent=47 // pred_check
        %p747 = pneg %p150
      $region50: #{feature_extractor_forward.12} parent=47 // pred_check_branch
        %749 = sbr.rel (%p747) target = $region52
      $region51: #{feature_extractor_forward.12} parent=47 // pred_region
        %s750 = smul.u32 32, %s17
        %p751 = scmp.lt.s32.totalorder %s750, 63
        %s752 = scalar_select %p751, %s750, 63
        %s753 = smul.addr %s752, 8
        %s754 = scalar_lea.vmem %s5, %s753
      $region52: #{feature_extractor_forward.12} parent=47 // pred_fallthru
        _
    $region48: #{feature_extractor_forward.12} parent=5 // pred_fallthru
      _
  $region6: #{feature_extractor_forward.12} parent=0 // loop_footer
    %s15 = sadd.s32 1, %s11
  $region7: #{feature_extractor_forward.12} parent=0 // loop_footer_branch
    %10 = sbr.rel target = $region3
  $region8: #{feature_extractor_forward.12} parent=0 // loop_exit
    _

// kernel: feature_extractor_forward.15
$region0: #{feature_extractor_forward.15}
  #allocation0 [shape = 'u32[]', space=smem, size = 0x4, offset = 0x4, fixed_abs, tag = 'smem constant byte address 0x4 - core index']
  #allocation1 [shape = 'u32[144,128]{1,0:T(1,128)}', space=vmem, size = 0x12000, scoped, tag = 'internal scratch']
  #allocation2 [shape = 'f32[2,32]{1,0:T(2,128)}', space=vmem, size = 0x400, scoped, tag = 'scratch operand']
  %s0 = inlined_call_operand.vmem [shape: f32[4,2,64], index: 0, kind: input, shape index: {}]
  %s1 = inlined_call_operand.vmem [shape: f32[64,32], index: 1, kind: input, shape index: {}]
  %s2 = inlined_call_operand.vmem [shape: f32[64,32], index: 2, kind: input, shape index: {}]
  %s3 = inlined_call_operand.vmem [shape: f32[64,32], index: 3, kind: input, shape index: {}]
  %s4 = inlined_call_operand.vmem [shape: f32[32,32], index: 4, kind: input, shape index: {}]
  %s5 = inlined_call_operand.vmem [shape: f32[32,32], index: 5, kind: input, shape index: {}]
  %s6 = inlined_call_operand.vmem [shape: f32[32,32], index: 6, kind: input, shape index: {}]
  %s7 = inlined_call_operand.vmem [shape: f32[1,32], index: 7, kind: input, shape index: {}]
  %s8 = inlined_call_operand.vmem [shape: f32[1,32], index: 8, kind: input, shape index: {}]
  %s9 = inlined_call_operand.vmem [shape: f32[1,32], index: 9, kind: input, shape index: {}]
  %s10 = inlined_call_operand.vmem [shape: f32[1,32], index: 10, kind: input, shape index: {}]
  %s11 = inlined_call_operand.vmem [shape: f32[1,32], index: 11, kind: input, shape index: {}]
  %s12 = inlined_call_operand.vmem [shape: f32[1,32], index: 12, kind: input, shape index: {}]
  %s13 = inlined_call_operand.hbm [shape: f32[2,32], index: 13, kind: output, shape index: {}]
  %s14 = sld [smem:[#allocation0]]
  $region93: #{feature_extractor_forward.15} parent=0
    _
  %s16 = ssub.s32 1, %s14
  %s17 = scalar_select 0, %s16, %s14
  $region1: #{feature_extractor_forward.15} parent=0
    #allocation3 [shape = 'u8[1024]{0}', space=vmem, size = 0x400, scoped, tag = 'output window, operand 0, single buffered']
    #allocation4 [shape = 's32[2]{0}', space=sflag, size = 0x8, scoped, tag = 'scoped memory for feature_extractor_forward.15']
    %18 = vsyncpa [#allocation4], 0
    loop: start=0, step=1, limit=6
    $region2: #{feature_extractor_forward.15} parent=1 // loop_pre_header
      _
    $region3: #{feature_extractor_forward.15} parent=1 // loop_header
      %s20 = sphi 0, %s24
      %p21 = scmp.ge.s32.totalorder %s20, 6
      %s30 = sphi 0, %s32
      %s33 = sphi 0, %s30
      %s34 = sphi 0, %s33
      %s50 = sphi 0, %s34
      %s54 = sphi 0, %s54
      %s56 = sphi 0, %s54
      %s57 = sphi 0, %s56
      %s71 = sphi 0, %s57
      %s75 = sphi 0, %s75
      %s77 = sphi 0, %s75
      %s78 = sphi 0, %s77
      %s92 = sphi 0, %s78
      %s96 = sphi 0, %s96
      %s98 = sphi 0, %s96
      %s99 = sphi 0, %s98
      %s113 = sphi 0, %s99
      %s117 = sphi 0, %s117
      %s119 = sphi 0, %s117
      %s120 = sphi 0, %s119
      %s134 = sphi 0, %s120
      %s138 = sphi 0, %s138
      %s140 = sphi 0, %s138
      %s141 = sphi 0, %s140
      %s155 = sphi 0, %s141
      %s159 = sphi 0, %s159
      %s161 = sphi 0, %s159
      %s162 = sphi 0, %s161
      %s176 = sphi 0, %s162
      %s180 = sphi 0, %s180
      %s182 = sphi 0, %s180
      %s183 = sphi 0, %s182
      %s197 = sphi 0, %s183
      %s201 = sphi 0, %s201
      %s203 = sphi 0, %s201
      %s204 = sphi 0, %s203
      %s218 = sphi 0, %s204
      %s222 = sphi 0, %s222
      %s224 = sphi 0, %s222
      %s225 = sphi 0, %s224
      %s239 = sphi 0, %s225
      %s243 = sphi 0, %s243
      %s245 = sphi 0, %s243
      %s246 = sphi 0, %s245
      %s260 = sphi 0, %s246
      %s264 = sphi 0, %s264
      %s266 = sphi 0, %s264
      %s267 = sphi 0, %s266
      %s281 = sphi 0, %s267
      %s285 = sphi 0, %s285
      %s287 = sphi 0, %s285
      %s288 = sphi 0, %s287
      %s302 = sphi 0, %s288
      %s306 = sphi 0, %s306
      %s308 = sphi 0, %s306
      %s309 = sphi 0, %s308
      %s323 = sphi 0, %s309
    $region4: #{feature_extractor_forward.15} parent=1 // loop_header_branch
      %23 = sbr.rel (%p21) target = $region8
    $region5: #{feature_extractor_forward.15} parent=1 // loop_body
      %s25 = ssub.s32 %s20, 1
      %s26 = ssub.s32 %s20, 2
      %s27 = sadd.s32 %s20, 1
      %s28 = ssub.s32 %s20, %s27
      %p29 = scmp.eq.s32.totalorder %s28, 0
      %s31 = sadd.s32 %s30, 1
      %s32 = scalar_select %p29, %s30, %s31
      %p35 = pneg %p29
      %p36 = scmp.eq.s32.totalorder %s20, 3
      %p37 = por %p35, %p36
      %p38 = scmp.ne.s32.totalorder %s30, %s33
      %p39 = scmp.eq.s32.totalorder %s20, 0
      %p40 = por %p38, %p39
      %p41 = scmp.ne.s32.totalorder %s30, %s33
      %p42 = scmp.eq.s32.totalorder %s25, 3
      %p43 = por %p41, %p42
      %p44 = scmp.ne.s32.totalorder %s33, %s34
      %p45 = scmp.eq.s32.totalorder %s25, 0
      %p46 = por %p44, %p45
      %p47 = scmp.ne.s32.totalorder %s33, %s34
      %p48 = scmp.eq.s32.totalorder %s26, 3
      %p49 = por %p47, %p48
      %p51 = scmp.ne.s32.totalorder %s34, %s50
      %p52 = scmp.eq.s32.totalorder %s26, 0
      %p53 = por %p51, %p52
      %s55 = sadd.s32 %s54, 1
      %p58 = scmp.eq.s32.totalorder %s20, 3
      %p59 = scmp.ne.s32.totalorder %s54, %s56
      %p60 = scmp.eq.s32.totalorder %s20, 0
      %p61 = por %p59, %p60
      %p62 = scmp.ne.s32.totalorder %s54, %s56
      %p63 = scmp.eq.s32.totalorder %s25, 3
      %p64 = por %p62, %p63
      %p65 = scmp.ne.s32.totalorder %s56, %s57
      %p66 = scmp.eq.s32.totalorder %s25, 0
      %p67 = por %p65, %p66
      %p68 = scmp.ne.s32.totalorder %s56, %s57
      %p69 = scmp.eq.s32.totalorder %s26, 3
      %p70 = por %p68, %p69
      %p72 = scmp.ne.s32.totalorder %s57, %s71
      %p73 = scmp.eq.s32.totalorder %s26, 0
      %p74 = por %p72, %p73
      %s76 = sadd.s32 %s75, 1
      %p79 = scmp.eq.s32.totalorder %s20, 3
      %p80 = scmp.ne.s32.totalorder %s75, %s77
      %p81 = scmp.eq.s32.totalorder %s20, 0
      %p82 = por %p80, %p81
      %p83 = scmp.ne.s32.totalorder %s75, %s77
      %p84 = scmp.eq.s32.totalorder %s25, 3
      %p85 = por %p83, %p84
      %p86 = scmp.ne.s32.totalorder %s77, %s78
      %p87 = scmp.eq.s32.totalorder %s25, 0
      %p88 = por %p86, %p87
      %p89 = scmp.ne.s32.totalorder %s77, %s78
      %p90 = scmp.eq.s32.totalorder %s26, 3
      %p91 = por %p89, %p90
      %p93 = scmp.ne.s32.totalorder %s78, %s92
      %p94 = scmp.eq.s32.totalorder %s26, 0
      %p95 = por %p93, %p94
      %s97 = sadd.s32 %s96, 1
      %p100 = scmp.eq.s32.totalorder %s20, 3
      %p101 = scmp.ne.s32.totalorder %s96, %s98
      %p102 = scmp.eq.s32.totalorder %s20, 0
      %p103 = por %p101, %p102
      %p104 = scmp.ne.s32.totalorder %s96, %s98
      %p105 = scmp.eq.s32.totalorder %s25, 3
      %p106 = por %p104, %p105
      %p107 = scmp.ne.s32.totalorder %s98, %s99
      %p108 = scmp.eq.s32.totalorder %s25, 0
      %p109 = por %p107, %p108
      %p110 = scmp.ne.s32.totalorder %s98, %s99
      %p111 = scmp.eq.s32.totalorder %s26, 3
      %p112 = por %p110, %p111
      %p114 = scmp.ne.s32.totalorder %s99, %s113
      %p115 = scmp.eq.s32.totalorder %s26, 0
      %p116 = por %p114, %p115
      %s118 = sadd.s32 %s117, 1
      %p121 = scmp.eq.s32.totalorder %s20, 3
      %p122 = scmp.ne.s32.totalorder %s117, %s119
      %p123 = scmp.eq.s32.totalorder %s20, 0
      %p124 = por %p122, %p123
      %p125 = scmp.ne.s32.totalorder %s117, %s119
      %p126 = scmp.eq.s32.totalorder %s25, 3
      %p127 = por %p125, %p126
      %p128 = scmp.ne.s32.totalorder %s119, %s120
      %p129 = scmp.eq.s32.totalorder %s25, 0
      %p130 = por %p128, %p129
      %p131 = scmp.ne.s32.totalorder %s119, %s120
      %p132 = scmp.eq.s32.totalorder %s26, 3
      %p133 = por %p131, %p132
      %p135 = scmp.ne.s32.totalorder %s120, %s134
      %p136 = scmp.eq.s32.totalorder %s26, 0
      %p137 = por %p135, %p136
      %s139 = sadd.s32 %s138, 1
      %p142 = scmp.eq.s32.totalorder %s20, 3
      %p143 = scmp.ne.s32.totalorder %s138, %s140
      %p144 = scmp.eq.s32.totalorder %s20, 0
      %p145 = por %p143, %p144
      %p146 = scmp.ne.s32.totalorder %s138, %s140
      %p147 = scmp.eq.s32.totalorder %s25, 3
      %p148 = por %p146, %p147
      %p149 = scmp.ne.s32.totalorder %s140, %s141
      %p150 = scmp.eq.s32.totalorder %s25, 0
      %p151 = por %p149, %p150
      %p152 = scmp.ne.s32.totalorder %s140, %s141
      %p153 = scmp.eq.s32.totalorder %s26, 3
      %p154 = por %p152, %p153
      %p156 = scmp.ne.s32.totalorder %s141, %s155
      %p157 = scmp.eq.s32.totalorder %s26, 0
      %p158 = por %p156, %p157
      %s160 = sadd.s32 %s159, 1
      %p163 = scmp.eq.s32.totalorder %s20, 3
      %p164 = scmp.ne.s32.totalorder %s159, %s161
      %p165 = scmp.eq.s32.totalorder %s20, 0
      %p166 = por %p164, %p165
      %p167 = scmp.ne.s32.totalorder %s159, %s161
      %p168 = scmp.eq.s32.totalorder %s25, 3
      %p169 = por %p167, %p168
      %p170 = scmp.ne.s32.totalorder %s161, %s162
      %p171 = scmp.eq.s32.totalorder %s25, 0
      %p172 = por %p170, %p171
      %p173 = scmp.ne.s32.totalorder %s161, %s162
      %p174 = scmp.eq.s32.totalorder %s26, 3
      %p175 = por %p173, %p174
      %p177 = scmp.ne.s32.totalorder %s162, %s176
      %p178 = scmp.eq.s32.totalorder %s26, 0
      %p179 = por %p177, %p178
      %s181 = sadd.s32 %s180, 1
      %p184 = scmp.eq.s32.totalorder %s20, 3
      %p185 = scmp.ne.s32.totalorder %s180, %s182
      %p186 = scmp.eq.s32.totalorder %s20, 0
      %p187 = por %p185, %p186
      %p188 = scmp.ne.s32.totalorder %s180, %s182
      %p189 = scmp.eq.s32.totalorder %s25, 3
      %p190 = por %p188, %p189
      %p191 = scmp.ne.s32.totalorder %s182, %s183
      %p192 = scmp.eq.s32.totalorder %s25, 0
      %p193 = por %p191, %p192
      %p194 = scmp.ne.s32.totalorder %s182, %s183
      %p195 = scmp.eq.s32.totalorder %s26, 3
      %p196 = por %p194, %p195
      %p198 = scmp.ne.s32.totalorder %s183, %s197
      %p199 = scmp.eq.s32.totalorder %s26, 0
      %p200 = por %p198, %p199
      %s202 = sadd.s32 %s201, 1
      %p205 = scmp.eq.s32.totalorder %s20, 3
      %p206 = scmp.ne.s32.totalorder %s201, %s203
      %p207 = scmp.eq.s32.totalorder %s20, 0
      %p208 = por %p206, %p207
      %p209 = scmp.ne.s32.totalorder %s201, %s203
      %p210 = scmp.eq.s32.totalorder %s25, 3
      %p211 = por %p209, %p210
      %p212 = scmp.ne.s32.totalorder %s203, %s204
      %p213 = scmp.eq.s32.totalorder %s25, 0
      %p214 = por %p212, %p213
      %p215 = scmp.ne.s32.totalorder %s203, %s204
      %p216 = scmp.eq.s32.totalorder %s26, 3
      %p217 = por %p215, %p216
      %p219 = scmp.ne.s32.totalorder %s204, %s218
      %p220 = scmp.eq.s32.totalorder %s26, 0
      %p221 = por %p219, %p220
      %s223 = sadd.s32 %s222, 1
      %p226 = scmp.eq.s32.totalorder %s20, 3
      %p227 = scmp.ne.s32.totalorder %s222, %s224
      %p228 = scmp.eq.s32.totalorder %s20, 0
      %p229 = por %p227, %p228
      %p230 = scmp.ne.s32.totalorder %s222, %s224
      %p231 = scmp.eq.s32.totalorder %s25, 3
      %p232 = por %p230, %p231
      %p233 = scmp.ne.s32.totalorder %s224, %s225
      %p234 = scmp.eq.s32.totalorder %s25, 0
      %p235 = por %p233, %p234
      %p236 = scmp.ne.s32.totalorder %s224, %s225
      %p237 = scmp.eq.s32.totalorder %s26, 3
      %p238 = por %p236, %p237
      %p240 = scmp.ne.s32.totalorder %s225, %s239
      %p241 = scmp.eq.s32.totalorder %s26, 0
      %p242 = por %p240, %p241
      %s244 = sadd.s32 %s243, 1
      %p247 = scmp.eq.s32.totalorder %s20, 3
      %p248 = scmp.ne.s32.totalorder %s243, %s245
      %p249 = scmp.eq.s32.totalorder %s20, 0
      %p250 = por %p248, %p249
      %p251 = scmp.ne.s32.totalorder %s243, %s245
      %p252 = scmp.eq.s32.totalorder %s25, 3
      %p253 = por %p251, %p252
      %p254 = scmp.ne.s32.totalorder %s245, %s246
      %p255 = scmp.eq.s32.totalorder %s25, 0
      %p256 = por %p254, %p255
      %p257 = scmp.ne.s32.totalorder %s245, %s246
      %p258 = scmp.eq.s32.totalorder %s26, 3
      %p259 = por %p257, %p258
      %p261 = scmp.ne.s32.totalorder %s246, %s260
      %p262 = scmp.eq.s32.totalorder %s26, 0
      %p263 = por %p261, %p262
      %s265 = sadd.s32 %s264, 1
      %p268 = scmp.eq.s32.totalorder %s20, 3
      %p269 = scmp.ne.s32.totalorder %s264, %s266
      %p270 = scmp.eq.s32.totalorder %s20, 0
      %p271 = por %p269, %p270
      %p272 = scmp.ne.s32.totalorder %s264, %s266
      %p273 = scmp.eq.s32.totalorder %s25, 3
      %p274 = por %p272, %p273
      %p275 = scmp.ne.s32.totalorder %s266, %s267
      %p276 = scmp.eq.s32.totalorder %s25, 0
      %p277 = por %p275, %p276
      %p278 = scmp.ne.s32.totalorder %s266, %s267
      %p279 = scmp.eq.s32.totalorder %s26, 3
      %p280 = por %p278, %p279
      %p282 = scmp.ne.s32.totalorder %s267, %s281
      %p283 = scmp.eq.s32.totalorder %s26, 0
      %p284 = por %p282, %p283
      %s286 = sadd.s32 %s285, 1
      %p289 = scmp.eq.s32.totalorder %s20, 3
      %p290 = scmp.ne.s32.totalorder %s285, %s287
      %p291 = scmp.eq.s32.totalorder %s20, 0
      %p292 = por %p290, %p291
      %p293 = scmp.ne.s32.totalorder %s285, %s287
      %p294 = scmp.eq.s32.totalorder %s25, 3
      %p295 = por %p293, %p294
      %p296 = scmp.ne.s32.totalorder %s287, %s288
      %p297 = scmp.eq.s32.totalorder %s25, 0
      %p298 = por %p296, %p297
      %p299 = scmp.ne.s32.totalorder %s287, %s288
      %p300 = scmp.eq.s32.totalorder %s26, 3
      %p301 = por %p299, %p300
      %p303 = scmp.ne.s32.totalorder %s288, %s302
      %p304 = scmp.eq.s32.totalorder %s26, 0
      %p305 = por %p303, %p304
      %s307 = sadd.s32 %s306, 1
      %p310 = scmp.eq.s32.totalorder %s20, 3
      %p311 = scmp.ne.s32.totalorder %s306, %s308
      %p312 = scmp.eq.s32.totalorder %s20, 0
      %p313 = por %p311, %p312
      %p314 = scmp.ne.s32.totalorder %s306, %s308
      %p315 = scmp.eq.s32.totalorder %s25, 3
      %p316 = por %p314, %p315
      %p317 = scmp.ne.s32.totalorder %s308, %s309
      %p318 = scmp.eq.s32.totalorder %s25, 0
      %p319 = por %p317, %p318
      %p320 = scmp.ne.s32.totalorder %s308, %s309
      %p321 = scmp.eq.s32.totalorder %s26, 3
      %p322 = por %p320, %p321
      %p324 = scmp.ne.s32.totalorder %s309, %s323
      %p325 = scmp.eq.s32.totalorder %s26, 0
      %p326 = por %p324, %p325
      %p327 = scmp.le.s32.totalorder 1, %s20
      %p328 = scmp.lt.s32.totalorder %s20, 5
      %p329 = pnand %p327, %p328
      %p330 = pneg %p329
      // Predicated region
      $region9: #{feature_extractor_forward.15} parent=5 // pred_check
        _
      $region10: #{feature_extractor_forward.15} parent=5 // pred_check_branch
        %332 = sbr.rel (%p329) target = $region12
      $region11: #{feature_extractor_forward.15} parent=5 // pred_region
        %s333 = ssub.s32 %s20, 1
        // Predicated region
        $region13: #{feature_extractor_forward.15} parent=11 // pred_check
          %p334 = pneg %p67
        $region14: #{feature_extractor_forward.15} parent=11 // pred_check_branch
          %336 = sbr.rel (%p334) target = $region16
        $region15: #{feature_extractor_forward.15} parent=11 // pred_region
          _
        $region16: #{feature_extractor_forward.15} parent=11 // pred_fallthru
          _
        // Predicated region
        $region17: #{feature_extractor_forward.15} parent=11 // pred_check
          %p337 = pneg %p88
        $region18: #{feature_extractor_forward.15} parent=11 // pred_check_branch
          %339 = sbr.rel (%p337) target = $region20
        $region19: #{feature_extractor_forward.15} parent=11 // pred_region
          _
        $region20: #{feature_extractor_forward.15} parent=11 // pred_fallthru
          _
        // Predicated region
        $region21: #{feature_extractor_forward.15} parent=11 // pred_check
          %p340 = pneg %p109
        $region22: #{feature_extractor_forward.15} parent=11 // pred_check_branch
          %342 = sbr.rel (%p340) target = $region24
        $region23: #{feature_extractor_forward.15} parent=11 // pred_region
          _
        $region24: #{feature_extractor_forward.15} parent=11 // pred_fallthru
          _
        // Predicated region
        $region25: #{feature_extractor_forward.15} parent=11 // pred_check
          %p343 = pneg %p130
        $region26: #{feature_extractor_forward.15} parent=11 // pred_check_branch
          %345 = sbr.rel (%p343) target = $region28
        $region27: #{feature_extractor_forward.15} parent=11 // pred_region
          _
        $region28: #{feature_extractor_forward.15} parent=11 // pred_fallthru
          _
        // Predicated region
        $region29: #{feature_extractor_forward.15} parent=11 // pred_check
          %p346 = pneg %p151
        $region30: #{feature_extractor_forward.15} parent=11 // pred_check_branch
          %348 = sbr.rel (%p346) target = $region32
        $region31: #{feature_extractor_forward.15} parent=11 // pred_region
          _
        $region32: #{feature_extractor_forward.15} parent=11 // pred_fallthru
          _
        // Predicated region
        $region33: #{feature_extractor_forward.15} parent=11 // pred_check
          %p349 = pneg %p172
        $region34: #{feature_extractor_forward.15} parent=11 // pred_check_branch
          %351 = sbr.rel (%p349) target = $region36
        $region35: #{feature_extractor_forward.15} parent=11 // pred_region
          _
        $region36: #{feature_extractor_forward.15} parent=11 // pred_fallthru
          _
        // Predicated region
        $region37: #{feature_extractor_forward.15} parent=11 // pred_check
          %p352 = pneg %p193
        $region38: #{feature_extractor_forward.15} parent=11 // pred_check_branch
          %354 = sbr.rel (%p352) target = $region40
        $region39: #{feature_extractor_forward.15} parent=11 // pred_region
          _
        $region40: #{feature_extractor_forward.15} parent=11 // pred_fallthru
          _
        // Predicated region
        $region41: #{feature_extractor_forward.15} parent=11 // pred_check
          %p355 = pneg %p214
        $region42: #{feature_extractor_forward.15} parent=11 // pred_check_branch
          %357 = sbr.rel (%p355) target = $region44
        $region43: #{feature_extractor_forward.15} parent=11 // pred_region
          _
        $region44: #{feature_extractor_forward.15} parent=11 // pred_fallthru
          _
        // Predicated region
        $region45: #{feature_extractor_forward.15} parent=11 // pred_check
          %p358 = pneg %p235
        $region46: #{feature_extractor_forward.15} parent=11 // pred_check_branch
          %360 = sbr.rel (%p358) target = $region48
        $region47: #{feature_extractor_forward.15} parent=11 // pred_region
          _
        $region48: #{feature_extractor_forward.15} parent=11 // pred_fallthru
          _
        // Predicated region
        $region49: #{feature_extractor_forward.15} parent=11 // pred_check
          %p361 = pneg %p256
        $region50: #{feature_extractor_forward.15} parent=11 // pred_check_branch
          %363 = sbr.rel (%p361) target = $region52
        $region51: #{feature_extractor_forward.15} parent=11 // pred_region
          _
        $region52: #{feature_extractor_forward.15} parent=11 // pred_fallthru
          _
        // Predicated region
        $region53: #{feature_extractor_forward.15} parent=11 // pred_check
          %p364 = pneg %p277
        $region54: #{feature_extractor_forward.15} parent=11 // pred_check_branch
          %366 = sbr.rel (%p364) target = $region56
        $region55: #{feature_extractor_forward.15} parent=11 // pred_region
          _
        $region56: #{feature_extractor_forward.15} parent=11 // pred_fallthru
          _
        // Predicated region
        $region57: #{feature_extractor_forward.15} parent=11 // pred_check
          %p367 = pneg %p298
        $region58: #{feature_extractor_forward.15} parent=11 // pred_check_branch
          %369 = sbr.rel (%p367) target = $region60
        $region59: #{feature_extractor_forward.15} parent=11 // pred_region
          _
        $region60: #{feature_extractor_forward.15} parent=11 // pred_fallthru
          _
      $region12: #{feature_extractor_forward.15} parent=5 // pred_fallthru
        _
      %p370 = scmp.lt.s32.totalorder %s20, 4
      // Predicated region
      $region61: #{feature_extractor_forward.15} parent=5 // pred_check
        %p371 = pneg %p370
      $region62: #{feature_extractor_forward.15} parent=5 // pred_check_branch
        %373 = sbr.rel (%p371) target = $region64
      $region63: #{feature_extractor_forward.15} parent=5 // pred_region
        // Predicated region
        $region65: #{feature_extractor_forward.15} parent=63 // pred_check
          %p374 = pneg %p40
        $region66: #{feature_extractor_forward.15} parent=63 // pred_check_branch
          %376 = sbr.rel (%p374) target = $region68
        $region67: #{feature_extractor_forward.15} parent=63 // pred_region
          %p377 = scmp.lt.s32.totalorder %s20, 3
          %s378 = scalar_select %p377, %s20, 3
          %s379 = smul.addr %s378, 2
          %s380 = scalar_lea.vmem %s0, %s379
        $region68: #{feature_extractor_forward.15} parent=63 // pred_fallthru
          _
      $region64: #{feature_extractor_forward.15} parent=5 // pred_fallthru
        _
      %p381 = scmp.le.s32.totalorder 1, %s20
      %p382 = scmp.lt.s32.totalorder %s20, 5
      %p383 = pnand %p381, %p382
      %p384 = pneg %p383
      // Predicated region
      $region69: #{feature_extractor_forward.15} parent=5 // pred_check
        _
      $region70: #{feature_extractor_forward.15} parent=5 // pred_check_branch
        %386 = sbr.rel (%p383) target = $region72
      $region71: #{feature_extractor_forward.15} parent=5 // pred_region
        %s387 = ssub.s32 %s20, 1
        %p388 = scmp.lt.s32.totalorder %s25, 3
        %s389 = scalar_select %p388, %s25, 3
        %s390 = smul.addr %s389, 2
        %s391 = scalar_lea.vmem %s0, %s390
        %p392 = pneg %p46
        %p393 = pneg %p43
        %p394 = pneg %p67
        %p395 = pneg %p64
        %p396 = pneg %p88
        %p397 = pneg %p85
        %p398 = pneg %p109
        %p399 = pneg %p106
        %p400 = pneg %p130
        %p401 = pneg %p127
        %p402 = pneg %p151
        %p403 = pneg %p148
        %p404 = pneg %p172
        %p405 = pneg %p169
        %p406 = pneg %p193
        %p407 = pneg %p190
        %p408 = pneg %p214
        %p409 = pneg %p211
        %p410 = pneg %p235
        %p411 = pneg %p232
        %p412 = pneg %p256
        %p413 = pneg %p253
        %p414 = pneg %p277
        %p415 = pneg %p274
        %p416 = pneg %p298
        %p417 = pneg %p295
        %p418 = pneg %p319
        %p419 = pneg %p316
        %p420 = scmp.lt.s32.totalorder %s25, 3
        %s421 = scalar_select %p420, %s25, 3
        %s422 = smul.addr %s421, 2
        %s423 = scalar_lea.vmem %s0, %s422
        %p424 = scmp.eq.s32.totalorder %s25, 0
        // Predicated region
        $region73: #{feature_extractor_forward.15} parent=71 // pred_check
          %p425 = pneg %p424
        $region74: #{feature_extractor_forward.15} parent=71 // pred_check_branch
          %427 = sbr.rel (%p425) target = $region76
        $region75: #{feature_extractor_forward.15} parent=71 // pred_region
          %vm428 = vcmask 254976
          %429 = vst.msk [vmem:[#allocation2] sm:$0x3] %vm428, 0.0
        $region76: #{feature_extractor_forward.15} parent=71 // pred_fallthru
          _
        %v430 = vld [vmem:[%s423] sm:$0x3]
        %v431 = vld [vmem:[#allocation2] sm:$0x3]
        %v432 = vld [vmem:[%s1] sm:$0xff]
        %v433 = vld [vmem:[%s1 + $0x8] sm:$0xff]
        %v434 = vld [vmem:[%s1 + $0x10] sm:$0xff]
        %v435 = vld [vmem:[%s1 + $0x18] sm:$0xff]
        %v436 = vld [vmem:[%s1 + $0x20] sm:$0xff]
        %v437 = vld [vmem:[%s1 + $0x28] sm:$0xff]
        %v438 = vld [vmem:[%s1 + $0x30] sm:$0xff]
        %v439 = vld [vmem:[%s1 + $0x38] sm:$0xff]
        %v440 = vld [vmem:[%s4] sm:$0xff]
        %v441 = vld [vmem:[%s4 + $0x8] sm:$0xff]
        %v442 = vld [vmem:[%s4 + $0x10] sm:$0xff]
        %v443 = vld [vmem:[%s4 + $0x18] sm:$0xff]
        %vm444 = vcmask 261120
        %v446 = vsel %vm444, %v431, 0
        %448 = vmatprep.subr.mxu0 0.0
        %449 = vmatpush1.msra.mxu0 %v440
        %450 = vmatprep.subr.mxu0 0.0
        %451 = vmatpush1.msra.mxu0 %v441
        %452 = vmatprep.subr.mxu0 0.0
        %453 = vmatpush1.msra.mxu0 %v442
        %454 = vmatprep.subr.mxu0 0.0
        %455 = vmatpush1.msra.mxu0 %v443
        %456 = vmatprep.subr.mxu0 0.0
        %457 = vmatpush1.msra.mxu0 0.0
        %458 = vmatprep.subr.mxu0 0.0
        %459 = vmatpush1.msra.mxu0 0.0
        %460 = vmatprep.subr.mxu0 0.0
        %461 = vmatpush1.msra.mxu0 0.0
        %462 = vmatprep.subr.mxu0 0.0
        %463 = vmatpush1.msra.mxu0 0.0
        %464 = vmatprep.subr.mxu0 0.0
        %465 = vmatpush1.msra.mxu0 0.0
        %466 = vmatprep.subr.mxu0 0.0
        %467 = vmatpush1.msra.mxu0 0.0
        %468 = vmatprep.subr.mxu0 0.0
        %469 = vmatpush1.msra.mxu0 0.0
        %470 = vmatprep.subr.mxu0 0.0
        %471 = vmatpush1.msra.mxu0 0.0
        %472 = vmatprep.subr.mxu0 0.0
        %473 = vmatpush1.msra.mxu0 0.0
        %474 = vmatprep.subr.mxu0 0.0
        %475 = vmatpush1.msra.mxu0 0.0
        %476 = vmatprep.subr.mxu0 0.0
        %477 = vmatpush1.msra.mxu0 0.0
        %478 = vmatprep.subr.mxu0 0.0
        %479 = vmatpush1.msra.mxu0 0.0
        %480 = vmatprep.subr.mxu0 0.0
        %481 = vmatpush1.msra.mxu0 0.0
        %482 = vmatprep.subr.mxu0 0.0
        %483 = vmatpush1.msra.mxu0 0.0
        %484 = vmatprep.subr.mxu0 0.0
        %485 = vmatpush1.msra.mxu0 0.0
        %486 = vmatprep.subr.mxu0 0.0
        %487 = vmatpush1.msra.mxu0 0.0
        %488 = vmatprep.subr.mxu0 0.0
        %489 = vmatpush1.msra.mxu0 0.0
        %490 = vmatprep.subr.mxu0 0.0
        %491 = vmatpush1.msra.mxu0 0.0
        %492 = vmatprep.subr.mxu0 0.0
        %493 = vmatpush1.msra.mxu0 0.0
        %494 = vmatprep.subr.mxu0 0.0
        %495 = vmatpush1.msra.mxu0 0.0
        %496 = vmatprep.subr.mxu0 0.0
        %497 = vmatpush1.msra.mxu0 0.0
        %498 = vmatprep.subr.mxu0 0.0
        %499 = vmatpush1.msra.mxu0 0.0
        %500 = vmatprep.subr.mxu0 0.0
        %501 = vmatpush1.msra.mxu0 0.0
        %502 = vmatprep.subr.mxu0 0.0
        %503 = vmatpush1.msra.mxu0 0.0
        %504 = vmatprep.subr.mxu0 0.0
        %505 = vmatpush1.msra.mxu0 0.0
        %506 = vmatprep.subr.mxu0 0.0
        %507 = vmatpush1.msra.mxu0 0.0
        %508 = vmatprep.subr.mxu0 0.0
        %509 = vmatpush1.msra.mxu0 0.0
        %510 = vmatprep.subr.mxu0 0.0
        %511 = vmatpush1.msra.mxu0 0.0
        %512 = vmatprep.mubr.f32.mxu0 0.0
        %513 = vmatmul.mubr.f32.gmra.mrb[0].mxu0 %v446
        %v514 = vpop.f32.mrb[0].mxu0
        %v515 = vadd.f32 0.0, %v514
        %v516 = vpop.f32.mrb[0].mxu0
        %517 = vdwg.mxu0
        %vm518 = vcmask 523264
        %v520 = vsel %vm518, %v430, 0
        %522 = vmatprep.subr.mxu0 0.0
        %523 = vmatpush1.msra.mxu0 %v432
        %524 = vmatprep.subr.mxu0 0.0
        %525 = vmatpush1.msra.mxu0 %v433
        %526 = vmatprep.subr.mxu0 0.0
        %527 = vmatpush1.msra.mxu0 %v434
        %528 = vmatprep.subr.mxu0 0.0
        %529 = vmatpush1.msra.mxu0 %v435
        %530 = vmatprep.subr.mxu0 0.0
        %531 = vmatpush1.msra.mxu0 %v436
        %532 = vmatprep.subr.mxu0 0.0
        %533 = vmatpush1.msra.mxu0 %v437
        %534 = vmatprep.subr.mxu0 0.0
        %535 = vmatpush1.msra.mxu0 %v438
        %536 = vmatprep.subr.mxu0 0.0
        %537 = vmatpush1.msra.mxu0 %v439
        %538 = vmatprep.subr.mxu0 0.0
        %539 = vmatpush1.msra.mxu0 0.0
        %540 = vmatprep.subr.mxu0 0.0
        %541 = vmatpush1.msra.mxu0 0.0
        %542 = vmatprep.subr.mxu0 0.0
        %543 = vmatpush1.msra.mxu0 0.0
        %544 = vmatprep.subr.mxu0 0.0
        %545 = vmatpush1.msra.mxu0 0.0
        %546 = vmatprep.subr.mxu0 0.0
        %547 = vmatpush1.msra.mxu0 0.0
        %548 = vmatprep.subr.mxu0 0.0
        %549 = vmatpush1.msra.mxu0 0.0
        %550 = vmatprep.subr.mxu0 0.0
        %551 = vmatpush1.msra.mxu0 0.0
        %552 = vmatprep.subr.mxu0 0.0
        %553 = vmatpush1.msra.mxu0 0.0
        %554 = vmatprep.subr.mxu0 0.0
        %555 = vmatpush1.msra.mxu0 0.0
        %556 = vmatprep.subr.mxu0 0.0
        %557 = vmatpush1.msra.mxu0 0.0
        %558 = vmatprep.subr.mxu0 0.0
        %559 = vmatpush1.msra.mxu0 0.0
        %560 = vmatprep.subr.mxu0 0.0
        %561 = vmatpush1.msra.mxu0 0.0
        %562 = vmatprep.subr.mxu0 0.0
        %563 = vmatpush1.msra.mxu0 0.0
        %564 = vmatprep.subr.mxu0 0.0
        %565 = vmatpush1.msra.mxu0 0.0
        %566 = vmatprep.subr.mxu0 0.0
        %567 = vmatpush1.msra.mxu0 0.0
        %568 = vmatprep.subr.mxu0 0.0
        %569 = vmatpush1.msra.mxu0 0.0
        %570 = vmatprep.subr.mxu0 0.0
        %571 = vmatpush1.msra.mxu0 0.0
        %572 = vmatprep.subr.mxu0 0.0
        %573 = vmatpush1.msra.mxu0 0.0
        %574 = vmatprep.subr.mxu0 0.0
        %575 = vmatpush1.msra.mxu0 0.0
        %576 = vmatprep.subr.mxu0 0.0
        %577 = vmatpush1.msra.mxu0 0.0
        %578 = vmatprep.subr.mxu0 0.0
        %579 = vmatpush1.msra.mxu0 0.0
        %580 = vmatprep.subr.mxu0 0.0
        %581 = vmatpush1.msra.mxu0 0.0
        %582 = vmatprep.subr.mxu0 0.0
        %583 = vmatpush1.msra.mxu0 0.0
        %584 = vmatprep.subr.mxu0 0.0
        %585 = vmatpush1.msra.mxu0 0.0
        %586 = vmatprep.mubr.f32.mxu0 0.0
        %587 = vmatmul.mubr.f32.gmra.mrb[0].mxu0 %v520
        %v588 = vpop.f32.mrb[0].mxu0
        %v589 = vadd.f32 %v515, %v588
        %v590 = vpop.f32.mrb[0].mxu0
        %591 = vdwg.mxu0
        %v592 = vld [vmem:[%s7] sm:$0x1]
        %v594 = vlaneseq
        %v595 = vshrl.u32 %v594, 7
        %v596 = vsub.s32 0, %v595
        %v597 = vrot.slane %v592, %v596
        %v599 = vadd.f32 %v589, %v597
        %v600 = vsub.f32 0.0, %v599
        %v601 = vmul.f32 %v600, 1.442695
        %v602 = vpow.pop %v601
        %v603 = vadd.f32 %v602, 1.0
        %v604 = vrcp.pop %v603
        %v605 = vmul.f32 1.0, %v604
        %v606 = vld [vmem:[%s2] sm:$0xff]
        %v607 = vld [vmem:[%s2 + $0x8] sm:$0xff]
        %v608 = vld [vmem:[%s2 + $0x10] sm:$0xff]
        %v609 = vld [vmem:[%s2 + $0x18] sm:$0xff]
        %v610 = vld [vmem:[%s2 + $0x20] sm:$0xff]
        %v611 = vld [vmem:[%s2 + $0x28] sm:$0xff]
        %v612 = vld [vmem:[%s2 + $0x30] sm:$0xff]
        %v613 = vld [vmem:[%s2 + $0x38] sm:$0xff]
        %v614 = vld [vmem:[%s5] sm:$0xff]
        %v615 = vld [vmem:[%s5 + $0x8] sm:$0xff]
        %v616 = vld [vmem:[%s5 + $0x10] sm:$0xff]
        %v617 = vld [vmem:[%s5 + $0x18] sm:$0xff]
        %618 = vmatprep.subr.mxu0 0.0
        %619 = vmatpush1.msra.mxu0 %v614
        %620 = vmatprep.subr.mxu0 0.0
        %621 = vmatpush1.msra.mxu0 %v615
        %622 = vmatprep.subr.mxu0 0.0
        %623 = vmatpush1.msra.mxu0 %v616
        %624 = vmatprep.subr.mxu0 0.0
        %625 = vmatpush1.msra.mxu0 %v617
        %626 = vmatprep.subr.mxu0 0.0
        %627 = vmatpush1.msra.mxu0 0.0
        %628 = vmatprep.subr.mxu0 0.0
        %629 = vmatpush1.msra.mxu0 0.0
        %630 = vmatprep.subr.mxu0 0.0
        %631 = vmatpush1.msra.mxu0 0.0
        %632 = vmatprep.subr.mxu0 0.0
        %633 = vmatpush1.msra.mxu0 0.0
        %634 = vmatprep.subr.mxu0 0.0
        %635 = vmatpush1.msra.mxu0 0.0
        %636 = vmatprep.subr.mxu0 0.0
        %637 = vmatpush1.msra.mxu0 0.0
        %638 = vmatprep.subr.mxu0 0.0
        %639 = vmatpush1.msra.mxu0 0.0
        %640 = vmatprep.subr.mxu0 0.0
        %641 = vmatpush1.msra.mxu0 0.0
        %642 = vmatprep.subr.mxu0 0.0
        %643 = vmatpush1.msra.mxu0 0.0
        %644 = vmatprep.subr.mxu0 0.0
        %645 = vmatpush1.msra.mxu0 0.0
        %646 = vmatprep.subr.mxu0 0.0
        %647 = vmatpush1.msra.mxu0 0.0
        %648 = vmatprep.subr.mxu0 0.0
        %649 = vmatpush1.msra.mxu0 0.0
        %650 = vmatprep.subr.mxu0 0.0
        %651 = vmatpush1.msra.mxu0 0.0
        %652 = vmatprep.subr.mxu0 0.0
        %653 = vmatpush1.msra.mxu0 0.0
        %654 = vmatprep.subr.mxu0 0.0
        %655 = vmatpush1.msra.mxu0 0.0
        %656 = vmatprep.subr.mxu0 0.0
        %657 = vmatpush1.msra.mxu0 0.0
        %658 = vmatprep.subr.mxu0 0.0
        %659 = vmatpush1.msra.mxu0 0.0
        %660 = vmatprep.subr.mxu0 0.0
        %661 = vmatpush1.msra.mxu0 0.0
        %662 = vmatprep.subr.mxu0 0.0
        %663 = vmatpush1.msra.mxu0 0.0
        %664 = vmatprep.subr.mxu0 0.0
        %665 = vmatpush1.msra.mxu0 0.0
        %666 = vmatprep.subr.mxu0 0.0
        %667 = vmatpush1.msra.mxu0 0.0
        %668 = vmatprep.subr.mxu0 0.0
        %669 = vmatpush1.msra.mxu0 0.0
        %670 = vmatprep.subr.mxu0 0.0
        %671 = vmatpush1.msra.mxu0 0.0
        %672 = vmatprep.subr.mxu0 0.0
        %673 = vmatpush1.msra.mxu0 0.0
        %674 = vmatprep.subr.mxu0 0.0
        %675 = vmatpush1.msra.mxu0 0.0
        %676 = vmatprep.subr.mxu0 0.0
        %677 = vmatpush1.msra.mxu0 0.0
        %678 = vmatprep.subr.mxu0 0.0
        %679 = vmatpush1.msra.mxu0 0.0
        %680 = vmatprep.subr.mxu0 0.0
        %681 = vmatpush1.msra.mxu0 0.0
        %682 = vmatprep.mubr.f32.mxu0 0.0
        %683 = vmatmul.mubr.f32.gmra.mrb[0].mxu0 %v446
        %v684 = vpop.f32.mrb[0].mxu0
        %v685 = vadd.f32 0.0, %v684
        %v686 = vpop.f32.mrb[0].mxu0
        %687 = vdwg.mxu0
        %688 = vmatprep.subr.mxu0 0.0
        %689 = vmatpush1.msra.mxu0 %v606
        %690 = vmatprep.subr.mxu0 0.0
        %691 = vmatpush1.msra.mxu0 %v607
        %692 = vmatprep.subr.mxu0 0.0
        %693 = vmatpush1.msra.mxu0 %v608
        %694 = vmatprep.subr.mxu0 0.0
        %695 = vmatpush1.msra.mxu0 %v609
        %696 = vmatprep.subr.mxu0 0.0
        %697 = vmatpush1.msra.mxu0 %v610
        %698 = vmatprep.subr.mxu0 0.0
        %699 = vmatpush1.msra.mxu0 %v611
        %700 = vmatprep.subr.mxu0 0.0
        %701 = vmatpush1.msra.mxu0 %v612
        %702 = vmatprep.subr.mxu0 0.0
        %703 = vmatpush1.msra.mxu0 %v613
        %704 = vmatprep.subr.mxu0 0.0
        %705 = vmatpush1.msra.mxu0 0.0
        %706 = vmatprep.subr.mxu0 0.0
        %707 = vmatpush1.msra.mxu0 0.0
        %708 = vmatprep.subr.mxu0 0.0
        %709 = vmatpush1.msra.mxu0 0.0
        %710 = vmatprep.subr.mxu0 0.0
        %711 = vmatpush1.msra.mxu0 0.0
        %712 = vmatprep.subr.mxu0 0.0
        %713 = vmatpush1.msra.mxu0 0.0
        %714 = vmatprep.subr.mxu0 0.0
        %715 = vmatpush1.msra.mxu0 0.0
        %716 = vmatprep.subr.mxu0 0.0
        %717 = vmatpush1.msra.mxu0 0.0
        %718 = vmatprep.subr.mxu0 0.0
        %719 = vmatpush1.msra.mxu0 0.0
        %720 = vmatprep.subr.mxu0 0.0
        %721 = vmatpush1.msra.mxu0 0.0
        %722 = vmatprep.subr.mxu0 0.0
        %723 = vmatpush1.msra.mxu0 0.0
        %724 = vmatprep.subr.mxu0 0.0
        %725 = vmatpush1.msra.mxu0 0.0
        %726 = vmatprep.subr.mxu0 0.0
        %727 = vmatpush1.msra.mxu0 0.0
        %728 = vmatprep.subr.mxu0 0.0
        %729 = vmatpush1.msra.mxu0 0.0
        %730 = vmatprep.subr.mxu0 0.0
        %731 = vmatpush1.msra.mxu0 0.0
        %732 = vmatprep.subr.mxu0 0.0
        %733 = vmatpush1.msra.mxu0 0.0
        %734 = vmatprep.subr.mxu0 0.0
        %735 = vmatpush1.msra.mxu0 0.0
        %736 = vmatprep.subr.mxu0 0.0
        %737 = vmatpush1.msra.mxu0 0.0
        %738 = vmatprep.subr.mxu0 0.0
        %739 = vmatpush1.msra.mxu0 0.0
        %740 = vmatprep.subr.mxu0 0.0
        %741 = vmatpush1.msra.mxu0 0.0
        %742 = vmatprep.subr.mxu0 0.0
        %743 = vmatpush1.msra.mxu0 0.0
        %744 = vmatprep.subr.mxu0 0.0
        %745 = vmatpush1.msra.mxu0 0.0
        %746 = vmatprep.subr.mxu0 0.0
        %747 = vmatpush1.msra.mxu0 0.0
        %748 = vmatprep.subr.mxu0 0.0
        %749 = vmatpush1.msra.mxu0 0.0
        %750 = vmatprep.subr.mxu0 0.0
        %751 = vmatpush1.msra.mxu0 0.0
        %752 = vmatprep.mubr.f32.mxu0 0.0
        %753 = vmatmul.mubr.f32.gmra.mrb[0].mxu0 %v520
        %v754 = vpop.f32.mrb[0].mxu0
        %v755 = vadd.f32 %v685, %v754
        %v756 = vpop.f32.mrb[0].mxu0
        %757 = vdwg.mxu0
        %v758 = vld [vmem:[%s8] sm:$0x1]
        %v760 = vlaneseq
        %v761 = vshrl.u32 %v760, 7
        %v762 = vsub.s32 0, %v761
        %v763 = vrot.slane %v758, %v762
        %v765 = vadd.f32 %v755, %v763
        %v766 = vsub.f32 0.0, %v765
        %v767 = vmul.f32 %v766, 1.442695
        %v768 = vpow.pop %v767
        %v769 = vadd.f32 %v768, 1.0
        %v770 = vrcp.pop %v769
        %v771 = vmul.f32 1.0, %v770
        %v772 = vld [vmem:[%s3] sm:$0xff]
        %v773 = vld [vmem:[%s3 + $0x8] sm:$0xff]
        %v774 = vld [vmem:[%s3 + $0x10] sm:$0xff]
        %v775 = vld [vmem:[%s3 + $0x18] sm:$0xff]
        %v776 = vld [vmem:[%s3 + $0x20] sm:$0xff]
        %v777 = vld [vmem:[%s3 + $0x28] sm:$0xff]
        %v778 = vld [vmem:[%s3 + $0x30] sm:$0xff]
        %v779 = vld [vmem:[%s3 + $0x38] sm:$0xff]
        %v780 = vld [vmem:[%s9] sm:$0x1]
        %v782 = vlaneseq
        %v783 = vshrl.u32 %v782, 7
        %v784 = vsub.s32 0, %v783
        %v785 = vrot.slane %v780, %v784
        %787 = vmatprep.subr.mxu0 0.0
        %788 = vmatpush1.msra.mxu0 %v772
        %789 = vmatprep.subr.mxu0 0.0
        %790 = vmatpush1.msra.mxu0 %v773
        %791 = vmatprep.subr.mxu0 0.0
        %792 = vmatpush1.msra.mxu0 %v774
        %793 = vmatprep.subr.mxu0 0.0
        %794 = vmatpush1.msra.mxu0 %v775
        %795 = vmatprep.subr.mxu0 0.0
        %796 = vmatpush1.msra.mxu0 %v776
        %797 = vmatprep.subr.mxu0 0.0
        %798 = vmatpush1.msra.mxu0 %v777
        %799 = vmatprep.subr.mxu0 0.0
        %800 = vmatpush1.msra.mxu0 %v778
        %801 = vmatprep.subr.mxu0 0.0
        %802 = vmatpush1.msra.mxu0 %v779
        %803 = vmatprep.subr.mxu0 0.0
        %804 = vmatpush1.msra.mxu0 0.0
        %805 = vmatprep.subr.mxu0 0.0
        %806 = vmatpush1.msra.mxu0 0.0
        %807 = vmatprep.subr.mxu0 0.0
        %808 = vmatpush1.msra.mxu0 0.0
        %809 = vmatprep.subr.mxu0 0.0
        %810 = vmatpush1.msra.mxu0 0.0
        %811 = vmatprep.subr.mxu0 0.0
        %812 = vmatpush1.msra.mxu0 0.0
        %813 = vmatprep.subr.mxu0 0.0
        %814 = vmatpush1.msra.mxu0 0.0
        %815 = vmatprep.subr.mxu0 0.0
        %816 = vmatpush1.msra.mxu0 0.0
        %817 = vmatprep.subr.mxu0 0.0
        %818 = vmatpush1.msra.mxu0 0.0
        %819 = vmatprep.subr.mxu0 0.0
        %820 = vmatpush1.msra.mxu0 0.0
        %821 = vmatprep.subr.mxu0 0.0
        %822 = vmatpush1.msra.mxu0 0.0
        %823 = vmatprep.subr.mxu0 0.0
        %824 = vmatpush1.msra.mxu0 0.0
        %825 = vmatprep.subr.mxu0 0.0
        %826 = vmatpush1.msra.mxu0 0.0
        %827 = vmatprep.subr.mxu0 0.0
        %828 = vmatpush1.msra.mxu0 0.0
        %829 = vmatprep.subr.mxu0 0.0
        %830 = vmatpush1.msra.mxu0 0.0
        %831 = vmatprep.subr.mxu0 0.0
        %832 = vmatpush1.msra.mxu0 0.0
        %833 = vmatprep.subr.mxu0 0.0
        %834 = vmatpush1.msra.mxu0 0.0
        %835 = vmatprep.subr.mxu0 0.0
        %836 = vmatpush1.msra.mxu0 0.0
        %837 = vmatprep.subr.mxu0 0.0
        %838 = vmatpush1.msra.mxu0 0.0
        %839 = vmatprep.subr.mxu0 0.0
        %840 = vmatpush1.msra.mxu0 0.0
        %841 = vmatprep.subr.mxu0 0.0
        %842 = vmatpush1.msra.mxu0 0.0
        %843 = vmatprep.subr.mxu0 0.0
        %844 = vmatpush1.msra.mxu0 0.0
        %845 = vmatprep.subr.mxu0 0.0
        %846 = vmatpush1.msra.mxu0 0.0
        %847 = vmatprep.subr.mxu0 0.0
        %848 = vmatpush1.msra.mxu0 0.0
        %849 = vmatprep.subr.mxu0 0.0
        %850 = vmatpush1.msra.mxu0 0.0
        %851 = vmatprep.mubr.f32.mxu0 0.0
        %852 = vmatmul.mubr.f32.gmra.mrb[0].mxu0 %v520
        %v853 = vpop.f32.mrb[0].mxu0
        %v854 = vadd.f32 %v785, %v853
        %v855 = vpop.f32.mrb[0].mxu0
        %856 = vdwg.mxu0
        %v857 = vld [vmem:[%s6] sm:$0xff]
        %v858 = vld [vmem:[%s6 + $0x8] sm:$0xff]
        %v859 = vld [vmem:[%s6 + $0x10] sm:$0xff]
        %v860 = vld [vmem:[%s6 + $0x18] sm:$0xff]
        %v861 = vld [vmem:[%s10] sm:$0x1]
        %v863 = vlaneseq
        %v864 = vshrl.u32 %v863, 7
        %v865 = vsub.s32 0, %v864
        %v866 = vrot.slane %v861, %v865
        %868 = vmatprep.subr.mxu0 0.0
        %869 = vmatpush1.msra.mxu0 %v857
        %870 = vmatprep.subr.mxu0 0.0
        %871 = vmatpush1.msra.mxu0 %v858
        %872 = vmatprep.subr.mxu0 0.0
        %873 = vmatpush1.msra.mxu0 %v859
        %874 = vmatprep.subr.mxu0 0.0
        %875 = vmatpush1.msra.mxu0 %v860
        %876 = vmatprep.subr.mxu0 0.0
        %877 = vmatpush1.msra.mxu0 0.0
        %878 = vmatprep.subr.mxu0 0.0
        %879 = vmatpush1.msra.mxu0 0.0
        %880 = vmatprep.subr.mxu0 0.0
        %881 = vmatpush1.msra.mxu0 0.0
        %882 = vmatprep.subr.mxu0 0.0
        %883 = vmatpush1.msra.mxu0 0.0
        %884 = vmatprep.subr.mxu0 0.0
        %885 = vmatpush1.msra.mxu0 0.0
        %886 = vmatprep.subr.mxu0 0.0
        %887 = vmatpush1.msra.mxu0 0.0
        %888 = vmatprep.subr.mxu0 0.0
        %889 = vmatpush1.msra.mxu0 0.0
        %890 = vmatprep.subr.mxu0 0.0
        %891 = vmatpush1.msra.mxu0 0.0
        %892 = vmatprep.subr.mxu0 0.0
        %893 = vmatpush1.msra.mxu0 0.0
        %894 = vmatprep.subr.mxu0 0.0
        %895 = vmatpush1.msra.mxu0 0.0
        %896 = vmatprep.subr.mxu0 0.0
        %897 = vmatpush1.msra.mxu0 0.0
        %898 = vmatprep.subr.mxu0 0.0
        %899 = vmatpush1.msra.mxu0 0.0
        %900 = vmatprep.subr.mxu0 0.0
        %901 = vmatpush1.msra.mxu0 0.0
        %902 = vmatprep.subr.mxu0 0.0
        %903 = vmatpush1.msra.mxu0 0.0
        %904 = vmatprep.subr.mxu0 0.0
        %905 = vmatpush1.msra.mxu0 0.0
        %906 = vmatprep.subr.mxu0 0.0
        %907 = vmatpush1.msra.mxu0 0.0
        %908 = vmatprep.subr.mxu0 0.0
        %909 = vmatpush1.msra.mxu0 0.0
        %910 = vmatprep.subr.mxu0 0.0
        %911 = vmatpush1.msra.mxu0 0.0
        %912 = vmatprep.subr.mxu0 0.0
        %913 = vmatpush1.msra.mxu0 0.0
        %914 = vmatprep.subr.mxu0 0.0
        %915 = vmatpush1.msra.mxu0 0.0
        %916 = vmatprep.subr.mxu0 0.0
        %917 = vmatpush1.msra.mxu0 0.0
        %918 = vmatprep.subr.mxu0 0.0
        %919 = vmatpush1.msra.mxu0 0.0
        %920 = vmatprep.subr.mxu0 0.0
        %921 = vmatpush1.msra.mxu0 0.0
        %922 = vmatprep.subr.mxu0 0.0
        %923 = vmatpush1.msra.mxu0 0.0
        %924 = vmatprep.subr.mxu0 0.0
        %925 = vmatpush1.msra.mxu0 0.0
        %926 = vmatprep.subr.mxu0 0.0
        %927 = vmatpush1.msra.mxu0 0.0
        %928 = vmatprep.subr.mxu0 0.0
        %929 = vmatpush1.msra.mxu0 0.0
        %930 = vmatprep.subr.mxu0 0.0
        %931 = vmatpush1.msra.mxu0 0.0
        %932 = vmatprep.mubr.f32.mxu0 0.0
        %933 = vmatmul.mubr.f32.gmra.mrb[0].mxu0 %v446
        %v934 = vpop.f32.mrb[0].mxu0
        %v935 = vadd.f32 %v866, %v934
        %v936 = vpop.f32.mrb[0].mxu0
        %937 = vdwg.mxu0
        %v938 = vmul.f32 %v605, %v935
        %v939 = vadd.f32 %v854, %v938
        %v940 = vtanh.pop %v939
        %v941 = vsub.f32 1.0, %v771
        %v942 = vmul.f32 %v941, %v940
        %v943 = vmul.f32 %v771, %v431
        %v944 = vadd.f32 %v942, %v943
        %vm945 = vcmask 254976
        %946 = vst.msk [vmem:[#allocation2] sm:$0x3] %vm945, %v944
        %p947 = scmp.eq.s32.totalorder %s25, 3
        // Predicated region
        $region77: #{feature_extractor_forward.15} parent=71 // pred_check
          %p948 = pneg %p947
        $region78: #{feature_extractor_forward.15} parent=71 // pred_check_branch
          %950 = sbr.rel (%p948) target = $region80
        $region79: #{feature_extractor_forward.15} parent=71 // pred_region
          %v951 = vld [vmem:[%s11] sm:$0x1]
          %v953 = vlaneseq
          %v954 = vshrl.u32 %v953, 7
          %v955 = vsub.s32 0, %v954
          %v956 = vrot.slane %v951, %v955
          %v958 = vmul.f32 %v944, %v956
          %v959 = vld [vmem:[%s12] sm:$0x1]
          %v961 = vlaneseq
          %v962 = vshrl.u32 %v961, 7
          %v963 = vsub.s32 0, %v962
          %v964 = vrot.slane %v959, %v963
          %v966 = vadd.f32 %v958, %v964
          %967 = vst.msk [vmem:[#allocation3] sm:$0x3] %vm945, %v966
        $region80: #{feature_extractor_forward.15} parent=71 // pred_fallthru
          _
        // Predicated region
        $region81: #{feature_extractor_forward.15} parent=71 // pred_check
          %p968 = pneg %p316
        $region82: #{feature_extractor_forward.15} parent=71 // pred_check_branch
          %970 = sbr.rel (%p968) target = $region84
        $region83: #{feature_extractor_forward.15} parent=71 // pred_region
          %s972 = ssub.s32 32, 32
          %973 = vsyncadd [#allocation4], %s972
          %s975 = sshll.u32 [#allocation3], 4
          %s976 = int_to_ptr.vmem [resolvable:$true] %s975
          %978 = dma.vmem_to_hbm [thread:$0]  %s976, 32, %s13, [#allocation4]
        $region84: #{feature_extractor_forward.15} parent=71 // pred_fallthru
          _
        // Predicated region
        $region85: #{feature_extractor_forward.15} parent=71 // pred_check
          %p979 = pneg %p316
        $region86: #{feature_extractor_forward.15} parent=71 // pred_check_branch
          %981 = sbr.rel (%p979) target = $region88
        $region87: #{feature_extractor_forward.15} parent=71 // pred_region
          %982 = dma.done [#allocation4], 32
        $region88: #{feature_extractor_forward.15} parent=71 // pred_fallthru
          _
      $region72: #{feature_extractor_forward.15} parent=5 // pred_fallthru
        _
      %p983 = scmp.le.s32.totalorder 2, %s20
      // Predicated region
      $region89: #{feature_extractor_forward.15} parent=5 // pred_check
        %p984 = pneg %p983
      $region90: #{feature_extractor_forward.15} parent=5 // pred_check_branch
        %986 = sbr.rel (%p984) target = $region92
      $region91: #{feature_extractor_forward.15} parent=5 // pred_region
        %s987 = ssub.s32 %s20, 2
      $region92: #{feature_extractor_forward.15} parent=5 // pred_fallthru
        _
    $region6: #{feature_extractor_forward.15} parent=1 // loop_footer
      %s24 = sadd.s32 1, %s20
    $region7: #{feature_extractor_forward.15} parent=1 // loop_footer_branch
      %19 = sbr.rel target = $region3
    $region8: #{feature_extractor_forward.15} parent=1 // loop_exit
      _
    %988 = vsyncpa [#allocation4], 1
    %s989 = scalar_lea.sflag [#allocation4], 1
    %990 = vsyncpa %s989, 1

// kernel: feature_extractor_forward.14
$region0: #{feature_extractor_forward.14}
  #allocation0 [shape = 'u32[]', space=smem, size = 0x4, offset = 0x4, fixed_abs, tag = 'smem constant byte address 0x4 - core index']
  #allocation1 [shape = 'u32[144,128]{1,0:T(1,128)}', space=vmem, size = 0x12000, scoped, tag = 'internal scratch']
  %s0 = inlined_call_operand.vmem [shape: f32[16,32,16], index: 0, kind: input, shape index: {}]
  %s1 = inlined_call_operand.vmem [shape: f32[32,16], index: 1, kind: output, shape index: {}]
  %s2 = sld [smem:[#allocation0]]
  $region14: #{feature_extractor_forward.14} parent=0
    _
  %s4 = ssub.s32 1, %s2
  %s5 = scalar_select 0, %s4, %s2
  // Predicated region
  $region2: #{feature_extractor_forward.14} parent=0 // pred_check
    _
  $region3: #{feature_extractor_forward.14} parent=0 // pred_check_branch
    %7 = sbr.rel (0) target = $region5
  $region4: #{feature_extractor_forward.14} parent=0 // pred_region
    _
  $region5: #{feature_extractor_forward.14} parent=0 // pred_fallthru
    _
  %v8 = vld [vmem:[%s0] sm:$0xff]
  %v9 = vld [vmem:[%s0 + $0x8] sm:$0xff]
  %v10 = vld [vmem:[%s0 + $0x10] sm:$0xff]
  %v11 = vld [vmem:[%s0 + $0x18] sm:$0xff]
  %v12 = vld [vmem:[%s0 + $0x20] sm:$0xff]
  %v13 = vld [vmem:[%s0 + $0x28] sm:$0xff]
  %v14 = vld [vmem:[%s0 + $0x30] sm:$0xff]
  %v15 = vld [vmem:[%s0 + $0x38] sm:$0xff]
  %v16 = vld [vmem:[%s0 + $0x40] sm:$0xff]
  %v17 = vld [vmem:[%s0 + $0x48] sm:$0xff]
  %v18 = vld [vmem:[%s0 + $0x50] sm:$0xff]
  %v19 = vld [vmem:[%s0 + $0x58] sm:$0xff]
  %v20 = vld [vmem:[%s0 + $0x60] sm:$0xff]
  %v21 = vld [vmem:[%s0 + $0x68] sm:$0xff]
  %v22 = vld [vmem:[%s0 + $0x70] sm:$0xff]
  %v23 = vld [vmem:[%s0 + $0x78] sm:$0xff]
  %v24 = vld [vmem:[%s0 + $0x80] sm:$0xff]
  %v25 = vld [vmem:[%s0 + $0x88] sm:$0xff]
  %v26 = vld [vmem:[%s0 + $0x90] sm:$0xff]
  %v27 = vld [vmem:[%s0 + $0x98] sm:$0xff]
  %v28 = vld [vmem:[%s0 + $0xa0] sm:$0xff]
  %v29 = vld [vmem:[%s0 + $0xa8] sm:$0xff]
  %v30 = vld [vmem:[%s0 + $0xb0] sm:$0xff]
  %v31 = vld [vmem:[%s0 + $0xb8] sm:$0xff]
  %v32 = vld [vmem:[%s0 + $0xc0] sm:$0xff]
  %v33 = vld [vmem:[%s0 + $0xc8] sm:$0xff]
  %v34 = vld [vmem:[%s0 + $0xd0] sm:$0xff]
  %v35 = vld [vmem:[%s0 + $0xd8] sm:$0xff]
  %v36 = vld [vmem:[%s0 + $0xe0] sm:$0xff]
  %v37 = vld [vmem:[%s0 + $0xe8] sm:$0xff]
  %v38 = vld [vmem:[%s0 + $0xf0] sm:$0xff]
  %v39 = vld [vmem:[%s0 + $0xf8] sm:$0xff]
  %v40 = vld [vmem:[%s0 + $0x100] sm:$0xff]
  %v41 = vld [vmem:[%s0 + $0x108] sm:$0xff]
  %v42 = vld [vmem:[%s0 + $0x110] sm:$0xff]
  %v43 = vld [vmem:[%s0 + $0x118] sm:$0xff]
  %v44 = vld [vmem:[%s0 + $0x120] sm:$0xff]
  %v45 = vld [vmem:[%s0 + $0x128] sm:$0xff]
  %v46 = vld [vmem:[%s0 + $0x130] sm:$0xff]
  %v47 = vld [vmem:[%s0 + $0x138] sm:$0xff]
  %v48 = vld [vmem:[%s0 + $0x140] sm:$0xff]
  %v49 = vld [vmem:[%s0 + $0x148] sm:$0xff]
  %v50 = vld [vmem:[%s0 + $0x150] sm:$0xff]
  %v51 = vld [vmem:[%s0 + $0x158] sm:$0xff]
  %v52 = vld [vmem:[%s0 + $0x160] sm:$0xff]
  %v53 = vld [vmem:[%s0 + $0x168] sm:$0xff]
  %v54 = vld [vmem:[%s0 + $0x170] sm:$0xff]
  %v55 = vld [vmem:[%s0 + $0x178] sm:$0xff]
  %v56 = vld [vmem:[%s0 + $0x180] sm:$0xff]
  %v57 = vld [vmem:[%s0 + $0x188] sm:$0xff]
  %v58 = vld [vmem:[%s0 + $0x190] sm:$0xff]
  %v59 = vld [vmem:[%s0 + $0x198] sm:$0xff]
  %v60 = vld [vmem:[%s0 + $0x1a0] sm:$0xff]
  %v61 = vld [vmem:[%s0 + $0x1a8] sm:$0xff]
  %v62 = vld [vmem:[%s0 + $0x1b0] sm:$0xff]
  %v63 = vld [vmem:[%s0 + $0x1b8] sm:$0xff]
  %v64 = vld [vmem:[%s0 + $0x1c0] sm:$0xff]
  %v65 = vld [vmem:[%s0 + $0x1c8] sm:$0xff]
  %v66 = vld [vmem:[%s0 + $0x1d0] sm:$0xff]
  %v67 = vld [vmem:[%s0 + $0x1d8] sm:$0xff]
  %v68 = vld [vmem:[%s0 + $0x1e0] sm:$0xff]
  %v69 = vld [vmem:[%s0 + $0x1e8] sm:$0xff]
  %v70 = vld [vmem:[%s0 + $0x1f0] sm:$0xff]
  %v71 = vld [vmem:[%s0 + $0x1f8] sm:$0xff]
  %vm72 = vcmask 130048
  %v73 = vsel %vm72, %v8, 0.0
  %v74 = vsel %vm72, %v12, 0.0
  %v75 = vadd.f32 %v73, %v74
  %v76 = vsel %vm72, %v16, 0.0
  %v77 = vadd.f32 %v75, %v76
  %v78 = vsel %vm72, %v20, 0.0
  %v79 = vadd.f32 %v77, %v78
  %v80 = vsel %vm72, %v24, 0.0
  %v81 = vadd.f32 %v79, %v80
  %v82 = vsel %vm72, %v28, 0.0
  %v83 = vadd.f32 %v81, %v82
  %v84 = vsel %vm72, %v32, 0.0
  %v85 = vadd.f32 %v83, %v84
  %v86 = vsel %vm72, %v36, 0.0
  %v87 = vadd.f32 %v85, %v86
  %v88 = vsel %vm72, %v40, 0.0
  %v89 = vadd.f32 %v87, %v88
  %v90 = vsel %vm72, %v44, 0.0
  %v91 = vadd.f32 %v89, %v90
  %v92 = vsel %vm72, %v48, 0.0
  %v93 = vadd.f32 %v91, %v92
  %v94 = vsel %vm72, %v52, 0.0
  %v95 = vadd.f32 %v93, %v94
  %v96 = vsel %vm72, %v56, 0.0
  %v97 = vadd.f32 %v95, %v96
  %v98 = vsel %vm72, %v60, 0.0
  %v99 = vadd.f32 %v97, %v98
  %v100 = vsel %vm72, %v64, 0.0
  %v101 = vadd.f32 %v99, %v100
  %v102 = vsel %vm72, %v68, 0.0
  %v103 = vadd.f32 %v101, %v102
  %v104 = vsel %vm72, %v9, 0.0
  %v105 = vsel %vm72, %v13, 0.0
  %v106 = vadd.f32 %v104, %v105
  %v107 = vsel %vm72, %v17, 0.0
  %v108 = vadd.f32 %v106, %v107
  %v109 = vsel %vm72, %v21, 0.0
  %v110 = vadd.f32 %v108, %v109
  %v111 = vsel %vm72, %v25, 0.0
  %v112 = vadd.f32 %v110, %v111
  %v113 = vsel %vm72, %v29, 0.0
  %v114 = vadd.f32 %v112, %v113
  %v115 = vsel %vm72, %v33, 0.0
  %v116 = vadd.f32 %v114, %v115
  %v117 = vsel %vm72, %v37, 0.0
  %v118 = vadd.f32 %v116, %v117
  %v119 = vsel %vm72, %v41, 0.0
  %v120 = vadd.f32 %v118, %v119
  %v121 = vsel %vm72, %v45, 0.0
  %v122 = vadd.f32 %v120, %v121
  %v123 = vsel %vm72, %v49, 0.0
  %v124 = vadd.f32 %v122, %v123
  %v125 = vsel %vm72, %v53, 0.0
  %v126 = vadd.f32 %v124, %v125
  %v127 = vsel %vm72, %v57, 0.0
  %v128 = vadd.f32 %v126, %v127
  %v129 = vsel %vm72, %v61, 0.0
  %v130 = vadd.f32 %v128, %v129
  %v131 = vsel %vm72, %v65, 0.0
  %v132 = vadd.f32 %v130, %v131
  %v133 = vsel %vm72, %v69, 0.0
  %v134 = vadd.f32 %v132, %v133
  %v135 = vsel %vm72, %v10, 0.0
  %v136 = vsel %vm72, %v14, 0.0
  %v137 = vadd.f32 %v135, %v136
  %v138 = vsel %vm72, %v18, 0.0
  %v139 = vadd.f32 %v137, %v138
  %v140 = vsel %vm72, %v22, 0.0
  %v141 = vadd.f32 %v139, %v140
  %v142 = vsel %vm72, %v26, 0.0
  %v143 = vadd.f32 %v141, %v142
  %v144 = vsel %vm72, %v30, 0.0
  %v145 = vadd.f32 %v143, %v144
  %v146 = vsel %vm72, %v34, 0.0
  %v147 = vadd.f32 %v145, %v146
  %v148 = vsel %vm72, %v38, 0.0
  %v149 = vadd.f32 %v147, %v148
  %v150 = vsel %vm72, %v42, 0.0
  %v151 = vadd.f32 %v149, %v150
  %v152 = vsel %vm72, %v46, 0.0
  %v153 = vadd.f32 %v151, %v152
  %v154 = vsel %vm72, %v50, 0.0
  %v155 = vadd.f32 %v153, %v154
  %v156 = vsel %vm72, %v54, 0.0
  %v157 = vadd.f32 %v155, %v156
  %v158 = vsel %vm72, %v58, 0.0
  %v159 = vadd.f32 %v157, %v158
  %v160 = vsel %vm72, %v62, 0.0
  %v161 = vadd.f32 %v159, %v160
  %v162 = vsel %vm72, %v66, 0.0
  %v163 = vadd.f32 %v161, %v162
  %v164 = vsel %vm72, %v70, 0.0
  %v165 = vadd.f32 %v163, %v164
  %v166 = vsel %vm72, %v11, 0.0
  %v167 = vsel %vm72, %v15, 0.0
  %v168 = vadd.f32 %v166, %v167
  %v169 = vsel %vm72, %v19, 0.0
  %v170 = vadd.f32 %v168, %v169
  %v171 = vsel %vm72, %v23, 0.0
  %v172 = vadd.f32 %v170, %v171
  %v173 = vsel %vm72, %v27, 0.0
  %v174 = vadd.f32 %v172, %v173
  %v175 = vsel %vm72, %v31, 0.0
  %v176 = vadd.f32 %v174, %v175
  %v177 = vsel %vm72, %v35, 0.0
  %v178 = vadd.f32 %v176, %v177
  %v179 = vsel %vm72, %v39, 0.0
  %v180 = vadd.f32 %v178, %v179
  %v181 = vsel %vm72, %v43, 0.0
  %v182 = vadd.f32 %v180, %v181
  %v183 = vsel %vm72, %v47, 0.0
  %v184 = vadd.f32 %v182, %v183
  %v185 = vsel %vm72, %v51, 0.0
  %v186 = vadd.f32 %v184, %v185
  %v187 = vsel %vm72, %v55, 0.0
  %v188 = vadd.f32 %v186, %v187
  %v189 = vsel %vm72, %v59, 0.0
  %v190 = vadd.f32 %v188, %v189
  %v191 = vsel %vm72, %v63, 0.0
  %v192 = vadd.f32 %v190, %v191
  %v193 = vsel %vm72, %v67, 0.0
  %v194 = vadd.f32 %v192, %v193
  %v195 = vsel %vm72, %v71, 0.0
  %v196 = vadd.f32 %v194, %v195
  %v197 = vmul.f32 %v103, 0.0625
  %v198 = vmul.f32 %v134, 0.0625
  %v199 = vmul.f32 %v165, 0.0625
  %v200 = vmul.f32 %v196, 0.0625
  %201 = vst.msk [vmem:[%s1] sm:$0xff] %vm72, %v197
  %202 = vst.msk [vmem:[%s1 + $0x8] sm:$0xff] %vm72, %v198
  %203 = vst.msk [vmem:[%s1 + $0x10] sm:$0xff] %vm72, %v199
  %204 = vst.msk [vmem:[%s1 + $0x18] sm:$0xff] %vm72, %v200
  // Predicated region
  $region6: #{feature_extractor_forward.14} parent=0 // pred_check
    _
  $region7: #{feature_extractor_forward.14} parent=0 // pred_check_branch
    %206 = sbr.rel (0) target = $region9
  $region8: #{feature_extractor_forward.14} parent=0 // pred_region
    _
  $region9: #{feature_extractor_forward.14} parent=0 // pred_fallthru
    _
  // Predicated region
  $region10: #{feature_extractor_forward.14} parent=0 // pred_check
    _
  $region11: #{feature_extractor_forward.14} parent=0 // pred_check_branch
    %208 = sbr.rel (0) target = $region13
  $region12: #{feature_extractor_forward.14} parent=0 // pred_region
    _
  $region13: #{feature_extractor_forward.14} parent=0 // pred_fallthru
    _

</llo_original>
